<compile_context>
chip_gen: v5e
topology: v5e:2x2
jax: 0.10.0
libtpu: 0.0.40
codegen_flags: <defaults>
</compile_context>

<pallas_src>
import functools

import numpy as np
import jax
import jax.numpy as jnp
from jax.experimental import pallas as pl
from jax.experimental.pallas import tpu as pltpu  # noqa: F401  (kept for TPU-specific tuning hooks)

# ---------------------------------------------------------------------------
# small config, structurally consistent with DynamicResolutionViT defaults
# ---------------------------------------------------------------------------
IMG_SIZE = 16
BASE_PATCH_SIZE = 8          # divisible by 2**(num_stages-1)
IN_CHANNEL = 3
NUM_CLASSES = 16
EMBED_DIM = 48
NUM_BLOCKS = (1, 1, 1)
SPLIT_RATIOS = (None, 0.5, 0.5)
NUM_HEADS = 3
MLP_RATIO = 4.0
LN_EPS = 1e-6
BATCH = 2

_SQRT1_2 = 0.7071067811865476
_NEG_BIG = -1e30


# ---------------------------------------------------------------------------
# in-kernel math helpers (traced inside Pallas kernels, all f32 element-wise)
# ---------------------------------------------------------------------------
def _erf(x):
    # Abramowitz & Stegun 7.1.26 rational approximation (|err| < 1.5e-7);
    # matches torch.nn.GELU() (exact erf) to f32 tolerance.
    p = 0.3275911
    a1, a2, a3, a4, a5 = (0.254829592, -0.284496736, 1.421413741,
                          -1.453152027, 1.061405429)
    s = jnp.where(x >= 0, 1.0, -1.0)
    ax = jnp.abs(x)
    t = 1.0 / (1.0 + p * ax)
    poly = ((((a5 * t + a4) * t + a3) * t + a2) * t + a1) * t
    return s * (1.0 - poly * jnp.exp(-ax * ax))


def _gelu(x):
    return 0.5 * x * (1.0 + _erf(x * _SQRT1_2))


def _layernorm(x, w, b, eps):
    mu = jnp.mean(x, axis=-1, keepdims=True)
    var = jnp.mean((x - mu) * (x - mu), axis=-1, keepdims=True)
    return (x - mu) * jax.lax.rsqrt(var + eps) * w + b


# ---------------------------------------------------------------------------
# Pallas kernels
# ---------------------------------------------------------------------------
def _linear_kernel(x_ref, w_ref, b_ref, o_ref):
    # bf16 MXU operands, f32 accumulation; bias add in f32.
    o_ref[...] = jnp.dot(x_ref[...].astype(jnp.bfloat16), w_ref[...],
                         preferred_element_type=jnp.float32) + b_ref[...]


def linear(x, w_bf16, b):
    """x:(M,K) @ w:(K,N) + b:(1,N); whole arrays resident in VMEM (small)."""
    m = x.shape[0]
    n = w_bf16.shape[1]
    return pl.pallas_call(
        _linear_kernel,
        out_shape=jax.ShapeDtypeStruct((m, n), jnp.float32),
    )(x, w_bf16, b)


def _block_kernel(x_ref, bias_ref, clssel_ref, toksel_ref,
                  ln1w_ref, ln1b_ref, qkvw_ref, qkvb_ref,
                  projw_ref, projb_ref, ln2w_ref, ln2b_ref,
                  fc1w_ref, fc1b_ref, fc2w_ref, fc2b_ref,
                  xo_ref, ca_ref, *, num_heads, eps):
    """Fused pre-norm transformer block over the whole (B*Np, C) slab.

    Samples are separated purely by the additive block-diagonal `bias`
    (which also masks padded key tokens), so every tensor stays 2-D and
    every matmul sees the full folded batch."""
    x = x_ref[...]                                   # (BN, C) f32
    bn, c = x.shape
    hd = c // num_heads
    scale = float(hd) ** -0.5
    bias = bias_ref[...]                             # (BN, BN) f32

    # ---- attention branch ----
    h = _layernorm(x, ln1w_ref[...], ln1b_ref[...], eps)
    qkv = jnp.dot(h.astype(jnp.bfloat16), qkvw_ref[...],
                  preferred_element_type=jnp.float32) + qkvb_ref[...]   # (BN, 3C)

    attn_out = jnp.zeros((bn, c), jnp.float32)
    p_sum = jnp.zeros((bn, bn), jnp.float32)
    for hidx in range(num_heads):                    # small, unrolled; no concat
        q = qkv[:, hidx * hd:(hidx + 1) * hd].astype(jnp.bfloat16)
        k = qkv[:, c + hidx * hd:c + (hidx + 1) * hd].astype(jnp.bfloat16)
        v = qkv[:, 2 * c + hidx * hd:2 * c + (hidx + 1) * hd].astype(jnp.bfloat16)
        s = jax.lax.dot_general(q, k, (((1,), (1,)), ((), ())),
                                preferred_element_type=jnp.float32)
        s = s * scale + bias
        s = s - jnp.max(s, axis=-1, keepdims=True)
        e = jnp.exp(s)
        p = e * pl.reciprocal(jnp.sum(e, axis=-1, keepdims=True), approx=True)
        p_sum = p_sum + p
        o = jnp.dot(p.astype(jnp.bfloat16), v,
                    preferred_element_type=jnp.float32)                  # (BN, hd)
        # proj(concat_h o_h) == sum_h o_h @ Wproj[h*hd:(h+1)*hd, :]
        attn_out = attn_out + jnp.dot(
            o.astype(jnp.bfloat16), projw_ref[hidx * hd:(hidx + 1) * hd, :],
            preferred_element_type=jnp.float32)
    x = x + attn_out + projb_ref[...]                # attn_drop/proj_drop p=0

    # ---- MLP branch ----
    h2 = _layernorm(x, ln2w_ref[...], ln2b_ref[...], eps)
    m = _gelu(jnp.dot(h2.astype(jnp.bfloat16), fc1w_ref[...],
                      preferred_element_type=jnp.float32) + fc1b_ref[...])
    y = jnp.dot(m.astype(jnp.bfloat16), fc2w_ref[...],
                preferred_element_type=jnp.float32) + fc2b_ref[...]
    xo_ref[...] = x + y

    # ---- lane-dense cls_attn: ca[b, r] = mean_h p[b*Np + r, b*Np] ----
    # cross-sample / padded probabilities are exactly 0 (masked to -1e30),
    # so two selector matmuls extract the per-sample cls column with tokens
    # landing on the lane axis (no transposes, no (N,1) masked stores).
    cls_cols = jax.lax.dot_general(clssel_ref[...], p_sum,
                                   (((1,), (1,)), ((), ())),
                                   preferred_element_type=jnp.float32)   # (B, BN)
    ca = jnp.dot(cls_cols, toksel_ref[...],
                 preferred_element_type=jnp.float32)                     # (B, Np)
    ca_ref[...] = ca * (1.0 / num_heads)


def transformer_block(x2d, bias, cls_sel, tok_sel, p, num_heads, eps,
                      batch, n_pad):
    bn, c = x2d.shape
    return pl.pallas_call(
        functools.partial(_block_kernel, num_heads=num_heads, eps=eps),
        out_shape=(jax.ShapeDtypeStruct((bn, c), jnp.float32),
                   jax.ShapeDtypeStruct((batch, n_pad), jnp.float32)),
    )(x2d, bias, cls_sel, tok_sel,
      p["ln1_w"], p["ln1_b"], p["qkv_w"], p["qkv_b"],
      p["proj_w"], p["proj_b"], p["ln2_w"], p["ln2_b"],
      p["fc1_w"], p["fc1_b"], p["fc2_w"], p["fc2_b"])


def _ln_head_kernel(x_ref, nw_ref, nb_ref, hw_ref, hb_ref, o_ref, *, eps):
    h = _layernorm(x_ref[...], nw_ref[...], nb_ref[...], eps)
    o_ref[...] = jnp.dot(h, hw_ref[...],
                         preferred_element_type=jnp.float32) + hb_ref[...]


def ln_head(x_cls, nw, nb, hw, hb, eps):
    b = x_cls.shape[0]
    n_cls = hw.shape[1]
    return pl.pallas_call(
        functools.partial(_ln_head_kernel, eps=eps),
        out_shape=jax.ShapeDtypeStruct((b, n_cls), jnp.float32),
    )(x_cls, nw, nb, hw, hb)


# ---------------------------------------------------------------------------
# static helpers (trace-time constants)
# ---------------------------------------------------------------------------
def compute_token_indices(img_size, patch_size, base_patch_size):
    """Exact replica of PatchEmbed.__init__ quadtree token-index construction."""
    grid_size = (img_size // patch_size, img_size // patch_size)
    grid_h = img_size // base_patch_size
    grid_w = img_size // base_patch_size
    hs, ws = np.meshgrid(np.arange(grid_h), np.arange(grid_w))
    hs, ws = hs.flatten(), ws.flatten()
    hws = [(h, w) for h, w in zip(hs, ws)]

    def split_hw(hw):
        h, w = hw
        return ((h * 2, w * 2), (h * 2 + 1, w * 2),
                (h * 2, w * 2 + 1), (h * 2 + 1, w * 2 + 1))

    while grid_h < grid_size[0]:
        hws = [split_hw(hw) for hw in hws]
        hws = [hw for sub in hws for hw in sub]
        grid_h, grid_w = grid_h * 2, grid_w * 2
    return np.array([h + w * grid_w for h, w in hws], dtype=np.int32)


@functools.lru_cache(maxsize=None)
def _attn_constants(batch, n_pad, n_tok):
    """Block-diagonal attention bias + cls/token selector matrices (static)."""
    bn = batch * n_pad
    idx = np.arange(bn)
    same = (idx[:, None] // n_pad) == (idx[None, :] // n_pad)
    real = (idx[None, :] % n_pad) < n_tok
    bias = np.where(same & real, 0.0, _NEG_BIG).astype(np.float32)
    cls_sel = (idx[None, :] == (np.arange(batch)[:, None] * n_pad)
               ).astype(np.float32)                          # (B, BN)
    tok_sel = ((idx[:, None] % n_pad) ==
               np.arange(n_pad)[None, :]).astype(np.float32)  # (BN, Np)
    return jnp.asarray(bias), jnp.asarray(cls_sel), jnp.asarray(tok_sel)


# ---------------------------------------------------------------------------
# PatchEmbed: quadtree permutation folded into patch extraction + Pallas matmul
# ---------------------------------------------------------------------------
def patch_embed(image, sp):
    b, c, hgt, wid = image.shape
    p = sp["patch_size"]
    gh, gw = hgt // p, wid // p
    e = sp["proj_b"].shape[1]
    # stride-p Conv2d == non-overlapping patch extraction + matmul.
    patches = image.reshape(b, c, gh, p, gw, p).transpose(0, 2, 4, 1, 3, 5)
    patches = patches.reshape(b, gh * gw, c * p * p)
    patches = patches[:, sp["token_indices"], :]   # static quadtree permutation
    out = linear(patches.reshape(b * gh * gw, c * p * p),
                 sp["proj_w"], sp["proj_b"])       # Pallas matmul, batch folded
    return out.reshape(b, gh * gw, e)


# ---------------------------------------------------------------------------
# on-device split bookkeeping (replaces the reference's CPU numpy block-diag)
# ---------------------------------------------------------------------------
def split_bookkeeping(cls_attn, start_old, width_old, k, n_new_m1):
    """Top-k split decision + contiguous-range tables, all on device.

    Every current (non-cls) token owns a contiguous run of quadtree-ordered
    patches (start/width); the reference's block-diagonal matrices are exactly
    "uniform average over that run", so only (owner, start, width) is needed."""
    bsz, n_old_m1 = cls_attn.shape
    _, top_idx = jax.lax.top_k(cls_attn, k)                      # torch.topk equiv
    split_mask = jnp.sum(jax.nn.one_hot(top_idx, n_old_m1, dtype=jnp.int32),
                         axis=1)                                  # (B, Nold-1) 0/1
    counts = 1 + 3 * split_mask                                   # 1 or 4 children
    cum = jnp.cumsum(counts, axis=1) - counts                     # exclusive prefix
    new_ids = jnp.arange(n_new_m1, dtype=jnp.int32)
    owner = jnp.sum((new_ids[None, :, None] >= cum[:, None, :]).astype(jnp.int32),
                    axis=2) - 1                                   # (B, Nnew-1)
    child = new_ids[None, :] - jnp.take_along_axis(cum, owner, axis=1)
    w_own = jnp.take_along_axis(width_old, owner, axis=1)
    s_own = jnp.take_along_axis(start_old, owner, axis=1)
    m_own = jnp.take_along_axis(split_mask, owner, axis=1)
    width_new = jnp.where(m_own == 1, w_own, 4 * w_own)           # new-stage units
    start_new = 4 * s_own + child * w_own
    return owner, start_new, width_new


def apply_split(x, embeds, owner, start_new, width_new):
    """upsample = gather, downsample = prefix-sum gather + scale (O(N*C))."""
    bsz, _, c = x.shape
    up_idx = jnp.concatenate(
        [jnp.zeros((bsz, 1), jnp.int32), owner + 1], axis=1)      # cls stays cls
    x_up = jnp.take_along_axis(x, up_idx[:, :, None], axis=1)
    patches = embeds[:, 1:, :]
    csum = jnp.concatenate(
        [jnp.zeros((bsz, 1, c), patches.dtype), jnp.cumsum(patches, axis=1)],
        axis=1)
    lo = jnp.take_along_axis(csum, start_new[:, :, None], axis=1)
    hi = jnp.take_along_axis(csum, (start_new + width_new)[:, :, None], axis=1)
    down = (hi - lo) / width_new[:, :, None].astype(jnp.float32)
    down = jnp.concatenate([embeds[:, 0:1, :], down], axis=1)
    return x_up + down


# ---------------------------------------------------------------------------
# stage + full forward
# ---------------------------------------------------------------------------
# TODO(synk): the irregular split bookkeeping / ragged gather-scale combine is
# kept as XLA (jnp) glue around the Pallas kernels rather than fused into one
# per-stage pallas_call; it is data-dependent index plumbing with negligible
# FLOPs (and now runs fully on device, unlike the reference's CPU path).
def stage_forward(sp, x, start, width, cls_attn, image, split_ratio):
    embeds = patch_embed(image, sp)                                    # (B, P, E)
    bsz = embeds.shape[0]
    cls_tok = jnp.broadcast_to(sp["cls_token"], (bsz, 1, EMBED_DIM))
    embeds = jnp.concatenate([cls_tok, embeds], axis=1) + sp["pos_embed"]

    if x is None:
        x = embeds
        nom1 = x.shape[1] - 1
        start = jnp.broadcast_to(jnp.arange(nom1, dtype=jnp.int32)[None, :],
                                 (bsz, nom1))
        width = jnp.ones((bsz, nom1), jnp.int32)
    else:
        n_old = x.shape[1]
        k = int(n_old * split_ratio)
        n_new_m1 = (n_old - 1) + 3 * k
        owner, start, width = split_bookkeeping(cls_attn, start, width,
                                                k, n_new_m1)
        x = apply_split(x, embeds, owner, start, width)

    n_tok = x.shape[1]
    n_pad = ((n_tok + 7) // 8) * 8                    # sublane-aligned token axis
    x_pad = jnp.pad(x, ((0, 0), (0, n_pad - n_tok), (0, 0)))
    x2d = x_pad.reshape(bsz * n_pad, EMBED_DIM)       # batch folded into tokens
    bias, cls_sel, tok_sel = _attn_constants(bsz, n_pad, n_tok)

    ca = None
    for blk in sp["blocks"]:
        x2d, ca = transformer_block(x2d, bias, cls_sel, tok_sel, blk,
                                    NUM_HEADS, LN_EPS, bsz, n_pad)
    x = x2d.reshape(bsz, n_pad, EMBED_DIM)[:, :n_tok]
    cls_attn = ca[:, 1:n_tok]                         # attn[:, :, 1:, 0].mean(1)
    return x, start, width, cls_attn


def dynamic_resolution_vit_forward(params, image):
    x = start = width = cls_attn = None
    for sp, ratio in zip(params["stages"], SPLIT_RATIOS):
        x, start, width, cls_attn = stage_forward(sp, x, start, width,
                                                  cls_attn, image, ratio)
    # LayerNorm is per-token, so norm(x)[:, 0] == norm(x[:, 0]); pre_logits = Identity
    x_cls = x[:, 0, :]
    return ln_head(x_cls, params["norm_w"], params["norm_b"],
                   params["head_w"], params["head_b"], LN_EPS)


# ---------------------------------------------------------------------------
# deterministic parameter initialization (matmul weights stored bf16)
# ---------------------------------------------------------------------------
def init_params(key):
    mlp_hidden = int(EMBED_DIM * MLP_RATIO)

    def normal(k, shape, scale=0.02):
        return scale * jax.random.normal(k, shape, dtype=jnp.float32)

    def bf16(x):
        return x.astype(jnp.bfloat16)

    stages = []
    patch_size = BASE_PATCH_SIZE * 2
    for s in range(len(NUM_BLOCKS)):
        patch_size = patch_size // 2
        num_patches = (IMG_SIZE // patch_size) ** 2
        key, *ks = jax.random.split(key, 8)
        conv_w = normal(ks[0], (EMBED_DIM, IN_CHANNEL, patch_size, patch_size))
        sp = {
            "patch_size": patch_size,
            "token_indices": compute_token_indices(IMG_SIZE, patch_size,
                                                   BASE_PATCH_SIZE),
            "proj_w": bf16(conv_w.reshape(EMBED_DIM, -1).T),   # (C*p*p, E)
            "proj_b": normal(ks[1], (1, EMBED_DIM)),
            "cls_token": normal(ks[2], (1, 1, EMBED_DIM)),
            "pos_embed": normal(ks[3], (1, num_patches + 1, EMBED_DIM)),
            "blocks": [],
        }
        for _ in range(NUM_BLOCKS[s]):
            key, *bk = jax.random.split(key, 7)
            sp["blocks"].append({
                "ln1_w": jnp.ones((1, EMBED_DIM), jnp.float32),
                "ln1_b": jnp.zeros((1, EMBED_DIM), jnp.float32),
                "qkv_w": bf16(normal(bk[0], (EMBED_DIM, 3 * EMBED_DIM))),
                "qkv_b": normal(bk[1], (1, 3 * EMBED_DIM)),
                "proj_w": bf16(normal(bk[2], (EMBED_DIM, EMBED_DIM))),
                "proj_b": jnp.zeros((1, EMBED_DIM), jnp.float32),
                "ln2_w": jnp.ones((1, EMBED_DIM), jnp.float32),
                "ln2_b": jnp.zeros((1, EMBED_DIM), jnp.float32),
                "fc1_w": bf16(normal(bk[3], (EMBED_DIM, mlp_hidden))),
                "fc1_b": jnp.zeros((1, mlp_hidden), jnp.float32),
                "fc2_w": bf16(normal(bk[4], (mlp_hidden, EMBED_DIM))),
                "fc2_b": jnp.zeros((1, EMBED_DIM), jnp.float32),
            })
        stages.append(sp)

    key, k1 = jax.random.split(key)
    return {
        "stages": stages,
        "norm_w": jnp.ones((1, EMBED_DIM), jnp.float32),
        "norm_b": jnp.zeros((1, EMBED_DIM), jnp.float32),
        "head_w": normal(k1, (EMBED_DIM, NUM_CLASSES)),
        "head_b": jnp.zeros((1, NUM_CLASSES), jnp.float32),
    }


# ---------------------------------------------------------------------------
if __name__ == "__main__":
    root = jax.random.PRNGKey(0)
    pkey, xkey = jax.random.split(root)
    params = init_params(pkey)
    image = jax.random.normal(xkey, (BATCH, IN_CHANNEL, IMG_SIZE, IMG_SIZE),
                              dtype=jnp.float32)
    # jit the whole forward: no host round trips anywhere (top-k etc. on device)
    fwd = jax.jit(lambda img: dynamic_resolution_vit_forward(params, img))
    logits = jax.block_until_ready(fwd(image))
    assert logits.shape == (BATCH, NUM_CLASSES), logits.shape
    assert bool(jnp.all(jnp.isfinite(logits)))
    print("KERNEL_OK")
</pallas_src>

<mosaic_0001>
module attributes {stable_mosaic.version = 11 : i64} {
  func.func @_linear_kernel(%arg0: memref<8x192xf32, #tpu.memory_space<vmem>>, %arg1: memref<192x48xbf16, #tpu.memory_space<vmem>>, %arg2: memref<1x48xf32, #tpu.memory_space<vmem>>, %arg3: memref<8x48xf32, #tpu.memory_space<vmem>>) attributes {dimension_semantics = [], scalar_prefetch = 0 : i64, scratch_operands = 0 : i64, tpu.core_type = #tpu.core_type<tc>} {
    %c0 = arith.constant 0 : index
    %c0_0 = arith.constant 0 : index
    %0 = vector.load %arg0[%c0, %c0_0] : memref<8x192xf32, #tpu.memory_space<vmem>>, vector<8x192xf32>
    %1 = arith.truncf %0 : vector<8x192xf32> to vector<8x192xbf16>
    %c0_1 = arith.constant 0 : index
    %c0_2 = arith.constant 0 : index
    %2 = vector.load %arg1[%c0_1, %c0_2] : memref<192x48xbf16, #tpu.memory_space<vmem>>, vector<192x48xbf16>
    %cst = arith.constant dense<0.000000e+00> : vector<8x48xf32>
    %3 = tpu.matmul %1, %2, %cst {dimension_numbers = #tpu.dot_dimension_numbers<[1], [0], [0], [1], [0, 0, 1, 1], [], []>} : vector<8x192xbf16>, vector<192x48xbf16>, vector<8x48xf32> -> vector<8x48xf32>
    %c0_3 = arith.constant 0 : index
    %c0_4 = arith.constant 0 : index
    %4 = vector.load %arg2[%c0_3, %c0_4] : memref<1x48xf32, #tpu.memory_space<vmem>>, vector<1x48xf32>
    %5 = vector.broadcast %4 : vector<1x48xf32> to vector<8x48xf32>
    %6 = arith.addf %3, %5 : vector<8x48xf32>
    %c0_5 = arith.constant 0 : index
    %c0_6 = arith.constant 0 : index
    %7 = vector.load %arg3[%c0_5, %c0_6] : memref<8x48xf32, #tpu.memory_space<vmem>>, vector<8x48xf32>
    tpu.vector_store %arg3[%c0_5, %c0_6], %6 {strides = array<i32>} : memref<8x48xf32, #tpu.memory_space<vmem>>, vector<8x48xf32>,
    return
  }
}

module attributes {stable_mosaic.version = 11 : i64} {
  func.func @_block_kernel(%arg0: memref<16x48xf32, #tpu.memory_space<vmem>>, %arg1: memref<16x16xf32, #tpu.memory_space<vmem>>, %arg2: memref<2x16xf32, #tpu.memory_space<vmem>>, %arg3: memref<16x8xf32, #tpu.memory_space<vmem>>, %arg4: memref<1x48xf32, #tpu.memory_space<vmem>>, %arg5: memref<1x48xf32, #tpu.memory_space<vmem>>, %arg6: memref<48x144xbf16, #tpu.memory_space<vmem>>, %arg7: memref<1x144xf32, #tpu.memory_space<vmem>>, %arg8: memref<48x48xbf16, #tpu.memory_space<vmem>>, %arg9: memref<1x48xf32, #tpu.memory_space<vmem>>, %arg10: memref<1x48xf32, #tpu.memory_space<vmem>>, %arg11: memref<1x48xf32, #tpu.memory_space<vmem>>, %arg12: memref<48x192xbf16, #tpu.memory_space<vmem>>, %arg13: memref<1x192xf32, #tpu.memory_space<vmem>>, %arg14: memref<192x48xbf16, #tpu.memory_space<vmem>>, %arg15: memref<1x48xf32, #tpu.memory_space<vmem>>, %arg16: memref<16x48xf32, #tpu.memory_space<vmem>>, %arg17: memref<2x8xf32, #tpu.memory_space<vmem>>) attributes {dimension_semantics = [], scalar_prefetch = 0 : i64, scratch_operands = 0 : i64, tpu.core_type = #tpu.core_type<tc>} {
    %c0 = arith.constant 0 : index
    %c0_0 = arith.constant 0 : index
    %0 = vector.load %arg0[%c0, %c0_0] : memref<16x48xf32, #tpu.memory_space<vmem>>, vector<16x48xf32>
    %c0_1 = arith.constant 0 : index
    %c0_2 = arith.constant 0 : index
    %1 = vector.load %arg1[%c0_1, %c0_2] : memref<16x16xf32, #tpu.memory_space<vmem>>, vector<16x16xf32>
    %c0_3 = arith.constant 0 : index
    %c0_4 = arith.constant 0 : index
    %2 = vector.load %arg4[%c0_3, %c0_4] : memref<1x48xf32, #tpu.memory_space<vmem>>, vector<1x48xf32>
    %c0_5 = arith.constant 0 : index
    %c0_6 = arith.constant 0 : index
    %3 = vector.load %arg5[%c0_5, %c0_6] : memref<1x48xf32, #tpu.memory_space<vmem>>, vector<1x48xf32>
    %cst = arith.constant dense<0.000000e+00> : vector<16xf32>
    %4 = vector.multi_reduction <add>, %0, %cst [1] : vector<16x48xf32> to vector<16xf32>
    %5 = vector.shape_cast %4 : vector<16xf32> to vector<16x1xf32>
    %cst_7 = arith.constant 4.800000e+01 : f32
    %6 = vector.broadcast %cst_7 : f32 to vector<16x1xf32>
    %7 = arith.divf %5, %6 : vector<16x1xf32>
    %8 = vector.broadcast %7 : vector<16x1xf32> to vector<16x48xf32>
    %9 = arith.subf %0, %8 : vector<16x48xf32>
    %10 = vector.broadcast %7 : vector<16x1xf32> to vector<16x48xf32>
    %11 = arith.subf %0, %10 : vector<16x48xf32>
    %12 = arith.mulf %9, %11 : vector<16x48xf32>
    %cst_8 = arith.constant dense<0.000000e+00> : vector<16xf32>
    %13 = vector.multi_reduction <add>, %12, %cst_8 [1] : vector<16x48xf32> to vector<16xf32>
    %14 = vector.shape_cast %13 : vector<16xf32> to vector<16x1xf32>
    %cst_9 = arith.constant 4.800000e+01 : f32
    %15 = vector.broadcast %cst_9 : f32 to vector<16x1xf32>
    %16 = arith.divf %14, %15 : vector<16x1xf32>
    %17 = vector.broadcast %7 : vector<16x1xf32> to vector<16x48xf32>
    %18 = arith.subf %0, %17 : vector<16x48xf32>
    %cst_10 = arith.constant 9.99999997E-7 : f32
    %19 = vector.broadcast %cst_10 : f32 to vector<16x1xf32>
    %20 = arith.addf %16, %19 : vector<16x1xf32>
    %21 = math.rsqrt %20 : vector<16x1xf32>
    %22 = vector.broadcast %21 : vector<16x1xf32> to vector<16x48xf32>
    %23 = arith.mulf %18, %22 : vector<16x48xf32>
    %24 = vector.broadcast %2 : vector<1x48xf32> to vector<16x48xf32>
    %25 = arith.mulf %23, %24 : vector<16x48xf32>
    %26 = vector.broadcast %3 : vector<1x48xf32> to vector<16x48xf32>
    %27 = arith.addf %25, %26 : vector<16x48xf32>
    %28 = arith.truncf %27 : vector<16x48xf32> to vector<16x48xbf16>
    %c0_11 = arith.constant 0 : index
    %c0_12 = arith.constant 0 : index
    %29 = vector.load %arg6[%c0_11, %c0_12] : memref<48x144xbf16, #tpu.memory_space<vmem>>, vector<48x144xbf16>
    %cst_13 = arith.constant dense<0.000000e+00> : vector<16x144xf32>
    %30 = tpu.matmul %28, %29, %cst_13 {dimension_numbers = #tpu.dot_dimension_numbers<[1], [0], [0], [1], [0, 0, 1, 1], [], []>} : vector<16x48xbf16>, vector<48x144xbf16>, vector<16x144xf32> -> vector<16x144xf32>
    %c0_14 = arith.constant 0 : index
    %c0_15 = arith.constant 0 : index
    %31 = vector.load %arg7[%c0_14, %c0_15] : memref<1x144xf32, #tpu.memory_space<vmem>>, vector<1x144xf32>
    %32 = vector.broadcast %31 : vector<1x144xf32> to vector<16x144xf32>
    %33 = arith.addf %30, %32 : vector<16x144xf32>
    %cst_16 = arith.constant 0.000000e+00 : f32
    %34 = vector.broadcast %cst_16 : f32 to vector<16x48xf32>
    %cst_17 = arith.constant 0.000000e+00 : f32
    %35 = vector.broadcast %cst_17 : f32 to vector<16x16xf32>
    %36 = vector.extract_strided_slice %33 {offsets = [0, 0], sizes = [16, 16], strides = [1, 1]} : vector<16x144xf32> to vector<16x16xf32>
    %37 = arith.truncf %36 : vector<16x16xf32> to vector<16x16xbf16>
    %38 = vector.extract_strided_slice %33 {offsets = [0, 48], sizes = [16, 16], strides = [1, 1]} : vector<16x144xf32> to vector<16x16xf32>
    %39 = arith.truncf %38 : vector<16x16xf32> to vector<16x16xbf16>
    %40 = vector.extract_strided_slice %33 {offsets = [0, 96], sizes = [16, 16], strides = [1, 1]} : vector<16x144xf32> to vector<16x16xf32>
    %41 = arith.truncf %40 : vector<16x16xf32> to vector<16x16xbf16>
    %cst_18 = arith.constant dense<0.000000e+00> : vector<16x16xf32>
    %42 = tpu.matmul %37, %39, %cst_18 {dimension_numbers = #tpu.dot_dimension_numbers<[1], [1], [0], [0], [0, 0, 1, 0], [], []>} : vector<16x16xbf16>, vector<16x16xbf16>, vector<16x16xf32> -> vector<16x16xf32>
    %cst_19 = arith.constant 2.500000e-01 : f32
    %43 = vector.broadcast %cst_19 : f32 to vector<16x16xf32>
    %44 = arith.mulf %42, %43 : vector<16x16xf32>
    %45 = arith.addf %44, %1 : vector<16x16xf32>
    %cst_20 = arith.constant dense<0xFF800000> : vector<16xf32>
    %46 = vector.multi_reduction <maximumf>, %45, %cst_20 [1] : vector<16x16xf32> to vector<16xf32>
    %47 = vector.shape_cast %46 : vector<16xf32> to vector<16x1xf32>
    %48 = vector.broadcast %47 : vector<16x1xf32> to vector<16x16xf32>
    %49 = arith.subf %45, %48 : vector<16x16xf32>
    %50 = math.exp %49 : vector<16x16xf32>
    %cst_21 = arith.constant dense<0.000000e+00> : vector<16xf32>
    %51 = vector.multi_reduction <add>, %50, %cst_21 [1] : vector<16x16xf32> to vector<16xf32>
    %52 = vector.shape_cast %51 : vector<16xf32> to vector<16x1xf32>
    %53 = tpu.reciprocal %52 {approx = true} : vector<16x1xf32> -> vector<16x1xf32>
    %54 = vector.broadcast %53 : vector<16x1xf32> to vector<16x16xf32>
    %55 = arith.mulf %50, %54 : vector<16x16xf32>
    %56 = arith.addf %35, %55 : vector<16x16xf32>
    %57 = arith.truncf %55 : vector<16x16xf32> to vector<16x16xbf16>
    %cst_22 = arith.constant dense<0.000000e+00> : vector<16x16xf32>
    %58 = tpu.matmul %57, %41, %cst_22 {dimension_numbers = #tpu.dot_dimension_numbers<[1], [0], [0], [1], [0, 0, 1, 1], [], []>} : vector<16x16xbf16>, vector<16x16xbf16>, vector<16x16xf32> -> vector<16x16xf32>
    %59 = arith.truncf %58 : vector<16x16xf32> to vector<16x16xbf16>
    %c0_23 = arith.constant 0 : index
    %c0_24 = arith.constant 0 : index
    %60 = vector.load %arg8[%c0_23, %c0_24] : memref<48x48xbf16, #tpu.memory_space<vmem>>, vector<16x48xbf16>
    %cst_25 = arith.constant dense<0.000000e+00> : vector<16x48xf32>
    %61 = tpu.matmul %59, %60, %cst_25 {dimension_numbers = #tpu.dot_dimension_numbers<[1], [0], [0], [1], [0, 0, 1, 1], [], []>} : vector<16x16xbf16>, vector<16x48xbf16>, vector<16x48xf32> -> vector<16x48xf32>
    %62 = arith.addf %34, %61 : vector<16x48xf32>
    %63 = vector.extract_strided_slice %33 {offsets = [0, 16], sizes = [16, 16], strides = [1, 1]} : vector<16x144xf32> to vector<16x16xf32>
    %64 = arith.truncf %63 : vector<16x16xf32> to vector<16x16xbf16>
    %65 = vector.extract_strided_slice %33 {offsets = [0, 64], sizes = [16, 16], strides = [1, 1]} : vector<16x144xf32> to vector<16x16xf32>
    %66 = arith.truncf %65 : vector<16x16xf32> to vector<16x16xbf16>
    %67 = vector.extract_strided_slice %33 {offsets = [0, 112], sizes = [16, 16], strides = [1, 1]} : vector<16x144xf32> to vector<16x16xf32>
    %68 = arith.truncf %67 : vector<16x16xf32> to vector<16x16xbf16>
    %cst_26 = arith.constant dense<0.000000e+00> : vector<16x16xf32>
    %69 = tpu.matmul %64, %66, %cst_26 {dimension_numbers = #tpu.dot_dimension_numbers<[1], [1], [0], [0], [0, 0, 1, 0], [], []>} : vector<16x16xbf16>, vector<16x16xbf16>, vector<16x16xf32> -> vector<16x16xf32>
    %cst_27 = arith.constant 2.500000e-01 : f32
    %70 = vector.broadcast %cst_27 : f32 to vector<16x16xf32>
    %71 = arith.mulf %69, %70 : vector<16x16xf32>
    %72 = arith.addf %71, %1 : vector<16x16xf32>
    %cst_28 = arith.constant dense<0xFF800000> : vector<16xf32>
    %73 = vector.multi_reduction <maximumf>, %72, %cst_28 [1] : vector<16x16xf32> to vector<16xf32>
    %74 = vector.shape_cast %73 : vector<16xf32> to vector<16x1xf32>
    %75 = vector.broadcast %74 : vector<16x1xf32> to vector<16x16xf32>
    %76 = arith.subf %72, %75 : vector<16x16xf32>
    %77 = math.exp %76 : vector<16x16xf32>
    %cst_29 = arith.constant dense<0.000000e+00> : vector<16xf32>
    %78 = vector.multi_reduction <add>, %77, %cst_29 [1] : vector<16x16xf32> to vector<16xf32>
    %79 = vector.shape_cast %78 : vector<16xf32> to vector<16x1xf32>
    %80 = tpu.reciprocal %79 {approx = true} : vector<16x1xf32> -> vector<16x1xf32>
    %81 = vector.broadcast %80 : vector<16x1xf32> to vector<16x16xf32>
    %82 = arith.mulf %77, %81 : vector<16x16xf32>
    %83 = arith.addf %56, %82 : vector<16x16xf32>
    %84 = arith.truncf %82 : vector<16x16xf32> to vector<16x16xbf16>
    %cst_30 = arith.constant dense<0.000000e+00> : vector<16x16xf32>
    %85 = tpu.matmul %84, %68, %cst_30 {dimension_numbers = #tpu.dot_dimension_numbers<[1], [0], [0], [1], [0, 0, 1, 1], [], []>} : vector<16x16xbf16>, vector<16x16xbf16>, vector<16x16xf32> -> vector<16x16xf32>
    %86 = arith.truncf %85 : vector<16x16xf32> to vector<16x16xbf16>
    %c16 = arith.constant 16 : index
    %c0_31 = arith.constant 0 : index
    %87 = vector.load %arg8[%c16, %c0_31] : memref<48x48xbf16, #tpu.memory_space<vmem>>, vector<16x48xbf16>
    %cst_32 = arith.constant dense<0.000000e+00> : vector<16x48xf32>
    %88 = tpu.matmul %86, %87, %cst_32 {dimension_numbers = #tpu.dot_dimension_numbers<[1], [0], [0], [1], [0, 0, 1, 1], [], []>} : vector<16x16xbf16>, vector<16x48xbf16>, vector<16x48xf32> -> vector<16x48xf32>
    %89 = arith.addf %62, %88 : vector<16x48xf32>
    %90 = vector.extract_strided_slice %33 {offsets = [0, 32], sizes = [16, 16], strides = [1, 1]} : vector<16x144xf32> to vector<16x16xf32>
    %91 = arith.truncf %90 : vector<16x16xf32> to vector<16x16xbf16>
    %92 = vector.extract_strided_slice %33 {offsets = [0, 80], sizes = [16, 16], strides = [1, 1]} : vector<16x144xf32> to vector<16x16xf32>
    %93 = arith.truncf %92 : vector<16x16xf32> to vector<16x16xbf16>
    %94 = vector.extract_strided_slice %33 {offsets = [0, 128], sizes = [16, 16], strides = [1, 1]} : vector<16x144xf32> to vector<16x16xf32>
    %95 = arith.truncf %94 : vector<16x16xf32> to vector<16x16xbf16>
    %cst_33 = arith.constant dense<0.000000e+00> : vector<16x16xf32>
    %96 = tpu.matmul %91, %93, %cst_33 {dimension_numbers = #tpu.dot_dimension_numbers<[1], [1], [0], [0], [0, 0, 1, 0], [], []>} : vector<16x16xbf16>, vector<16x16xbf16>, vector<16x16xf32> -> vector<16x16xf32>
    %cst_34 = arith.constant 2.500000e-01 : f32
    %97 = vector.broadcast %cst_34 : f32 to vector<16x16xf32>
    %98 = arith.mulf %96, %97 : vector<16x16xf32>
    %99 = arith.addf %98, %1 : vector<16x16xf32>
    %cst_35 = arith.constant dense<0xFF800000> : vector<16xf32>
    %100 = vector.multi_reduction <maximumf>, %99, %cst_35 [1] : vector<16x16xf32> to vector<16xf32>
    %101 = vector.shape_cast %100 : vector<16xf32> to vector<16x1xf32>
    %102 = vector.broadcast %101 : vector<16x1xf32> to vector<16x16xf32>
    %103 = arith.subf %99, %102 : vector<16x16xf32>
    %104 = math.exp %103 : vector<16x16xf32>
    %cst_36 = arith.constant dense<0.000000e+00> : vector<16xf32>
    %105 = vector.multi_reduction <add>, %104, %cst_36 [1] : vector<16x16xf32> to vector<16xf32>
    %106 = vector.shape_cast %105 : vector<16xf32> to vector<16x1xf32>
    %107 = tpu.reciprocal %106 {approx = true} : vector<16x1xf32> -> vector<16x1xf32>
    %108 = vector.broadcast %107 : vector<16x1xf32> to vector<16x16xf32>
    %109 = arith.mulf %104, %108 : vector<16x16xf32>
    %110 = arith.addf %83, %109 : vector<16x16xf32>
    %111 = arith.truncf %109 : vector<16x16xf32> to vector<16x16xbf16>
    %cst_37 = arith.constant dense<0.000000e+00> : vector<16x16xf32>
    %112 = tpu.matmul %111, %95, %cst_37 {dimension_numbers = #tpu.dot_dimension_numbers<[1], [0], [0], [1], [0, 0, 1, 1], [], []>} : vector<16x16xbf16>, vector<16x16xbf16>, vector<16x16xf32> -> vector<16x16xf32>
    %113 = arith.truncf %112 : vector<16x16xf32> to vector<16x16xbf16>
    %c32 = arith.constant 32 : index
    %c0_38 = arith.constant 0 : index
    %114 = vector.load %arg8[%c32, %c0_38] : memref<48x48xbf16, #tpu.memory_space<vmem>>, vector<16x48xbf16>
    %cst_39 = arith.constant dense<0.000000e+00> : vector<16x48xf32>
    %115 = tpu.matmul %113, %114, %cst_39 {dimension_numbers = #tpu.dot_dimension_numbers<[1], [0], [0], [1], [0, 0, 1, 1], [], []>} : vector<16x16xbf16>, vector<16x48xbf16>, vector<16x48xf32> -> vector<16x48xf32>
    %116 = arith.addf %89, %115 : vector<16x48xf32>
    %117 = arith.addf %0, %116 : vector<16x48xf32>
    %c0_40 = arith.constant 0 : index
    %c0_41 = arith.constant 0 : index
    %118 = vector.load %arg9[%c0_40, %c0_41] : memref<1x48xf32, #tpu.memory_space<vmem>>, vector<1x48xf32>
    %119 = vector.broadcast %118 : vector<1x48xf32> to vector<16x48xf32>
    %120 = arith.addf %117, %119 : vector<16x48xf32>
    %c0_42 = arith.constant 0 : index
    %c0_43 = arith.constant 0 : index
    %121 = vector.load %arg10[%c0_42, %c0_43] : memref<1x48xf32, #tpu.memory_space<vmem>>, vector<1x48xf32>
    %c0_44 = arith.constant 0 : index
    %c0_45 = arith.constant 0 : index
    %122 = vector.load %arg11[%c0_44, %c0_45] : memref<1x48xf32, #tpu.memory_space<vmem>>, vector<1x48xf32>
    %cst_46 = arith.constant dense<0.000000e+00> : vector<16xf32>
    %123 = vector.multi_reduction <add>, %120, %cst_46 [1] : vector<16x48xf32> to vector<16xf32>
    %124 = vector.shape_cast %123 : vector<16xf32> to vector<16x1xf32>
    %cst_47 = arith.constant 4.800000e+01 : f32
    %125 = vector.broadcast %cst_47 : f32 to vector<16x1xf32>
    %126 = arith.divf %124, %125 : vector<16x1xf32>
    %127 = vector.broadcast %126 : vector<16x1xf32> to vector<16x48xf32>
    %128 = arith.subf %120, %127 : vector<16x48xf32>
    %129 = vector.broadcast %126 : vector<16x1xf32> to vector<16x48xf32>
    %130 = arith.subf %120, %129 : vector<16x48xf32>
    %131 = arith.mulf %128, %130 : vector<16x48xf32>
    %cst_48 = arith.constant dense<0.000000e+00> : vector<16xf32>
    %132 = vector.multi_reduction <add>, %131, %cst_48 [1] : vector<16x48xf32> to vector<16xf32>
    %133 = vector.shape_cast %132 : vector<16xf32> to vector<16x1xf32>
    %cst_49 = arith.constant 4.800000e+01 : f32
    %134 = vector.broadcast %cst_49 : f32 to vector<16x1xf32>
    %135 = arith.divf %133, %134 : vector<16x1xf32>
    %136 = vector.broadcast %126 : vector<16x1xf32> to vector<16x48xf32>
    %137 = arith.subf %120, %136 : vector<16x48xf32>
    %cst_50 = arith.constant 9.99999997E-7 : f32
    %138 = vector.broadcast %cst_50 : f32 to vector<16x1xf32>
    %139 = arith.addf %135, %138 : vector<16x1xf32>
    %140 = math.rsqrt %139 : vector<16x1xf32>
    %141 = vector.broadcast %140 : vector<16x1xf32> to vector<16x48xf32>
    %142 = arith.mulf %137, %141 : vector<16x48xf32>
    %143 = vector.broadcast %121 : vector<1x48xf32> to vector<16x48xf32>
    %144 = arith.mulf %142, %143 : vector<16x48xf32>
    %145 = vector.broadcast %122 : vector<1x48xf32> to vector<16x48xf32>
    %146 = arith.addf %144, %145 : vector<16x48xf32>
    %147 = arith.truncf %146 : vector<16x48xf32> to vector<16x48xbf16>
    %c0_51 = arith.constant 0 : index
    %c0_52 = arith.constant 0 : index
    %148 = vector.load %arg12[%c0_51, %c0_52] : memref<48x192xbf16, #tpu.memory_space<vmem>>, vector<48x192xbf16>
    %cst_53 = arith.constant dense<0.000000e+00> : vector<16x192xf32>
    %149 = tpu.matmul %147, %148, %cst_53 {dimension_numbers = #tpu.dot_dimension_numbers<[1], [0], [0], [1], [0, 0, 1, 1], [], []>} : vector<16x48xbf16>, vector<48x192xbf16>, vector<16x192xf32> -> vector<16x192xf32>
    %c0_54 = arith.constant 0 : index
    %c0_55 = arith.constant 0 : index
    %150 = vector.load %arg13[%c0_54, %c0_55] : memref<1x192xf32, #tpu.memory_space<vmem>>, vector<1x192xf32>
    %151 = vector.broadcast %150 : vector<1x192xf32> to vector<16x192xf32>
    %152 = arith.addf %149, %151 : vector<16x192xf32>
    %cst_56 = arith.constant 5.000000e-01 : f32
    %153 = vector.broadcast %cst_56 : f32 to vector<16x192xf32>
    %154 = arith.mulf %153, %152 : vector<16x192xf32>
    %cst_57 = arith.constant 0.707106769 : f32
    %155 = vector.broadcast %cst_57 : f32 to vector<16x192xf32>
    %156 = arith.mulf %152, %155 : vector<16x192xf32>
    %cst_58 = arith.constant 0.000000e+00 : f32
    %157 = vector.broadcast %cst_58 : f32 to vector<16x192xf32>
    %158 = arith.cmpf oge, %156, %157 : vector<16x192xf32>
    %cst_59 = arith.constant 1.000000e+00 : f32
    %cst_60 = arith.constant -1.000000e+00 : f32
    %159 = vector.broadcast %cst_59 : f32 to vector<16x192xf32>
    %160 = vector.broadcast %cst_60 : f32 to vector<16x192xf32>
    %161 = arith.select %158, %159, %160 : vector<16x192xi1>, vector<16x192xf32>
    %162 = math.absf %156 : vector<16x192xf32>
    %cst_61 = arith.constant 0.327591091 : f32
    %163 = vector.broadcast %cst_61 : f32 to vector<16x192xf32>
    %164 = arith.mulf %163, %162 : vector<16x192xf32>
    %cst_62 = arith.constant 1.000000e+00 : f32
    %165 = vector.broadcast %cst_62 : f32 to vector<16x192xf32>
    %166 = arith.addf %165, %164 : vector<16x192xf32>
    %cst_63 = arith.constant 1.000000e+00 : f32
    %167 = vector.broadcast %cst_63 : f32 to vector<16x192xf32>
    %168 = arith.divf %167, %166 : vector<16x192xf32>
    %cst_64 = arith.constant 1.06140542 : f32
    %169 = vector.broadcast %cst_64 : f32 to vector<16x192xf32>
    %170 = arith.mulf %169, %168 : vector<16x192xf32>
    %cst_65 = arith.constant -1.45315206 : f32
    %171 = vector.broadcast %cst_65 : f32 to vector<16x192xf32>
    %172 = arith.addf %170, %171 : vector<16x192xf32>
    %173 = arith.mulf %172, %168 : vector<16x192xf32>
    %cst_66 = arith.constant 1.42141378 : f32
    %174 = vector.broadcast %cst_66 : f32 to vector<16x192xf32>
    %175 = arith.addf %173, %174 : vector<16x192xf32>
    %176 = arith.mulf %175, %168 : vector<16x192xf32>
    %cst_67 = arith.constant -0.284496725 : f32
    %177 = vector.broadcast %cst_67 : f32 to vector<16x192xf32>
    %178 = arith.addf %176, %177 : vector<16x192xf32>
    %179 = arith.mulf %178, %168 : vector<16x192xf32>
    %cst_68 = arith.constant 0.254829586 : f32
    %180 = vector.broadcast %cst_68 : f32 to vector<16x192xf32>
    %181 = arith.addf %179, %180 : vector<16x192xf32>
    %182 = arith.mulf %181, %168 : vector<16x192xf32>
    %cst_69 = arith.constant 0.000000e+00 : f32
    %183 = vector.broadcast %cst_69 : f32 to vector<16x192xf32>
    %184 = arith.subf %183, %162 : vector<16x192xf32>
    %185 = arith.mulf %184, %162 : vector<16x192xf32>
    %186 = math.exp %185 : vector<16x192xf32>
    %187 = arith.mulf %182, %186 : vector<16x192xf32>
    %cst_70 = arith.constant 1.000000e+00 : f32
    %188 = vector.broadcast %cst_70 : f32 to vector<16x192xf32>
    %189 = arith.subf %188, %187 : vector<16x192xf32>
    %190 = arith.mulf %161, %189 : vector<16x192xf32>
    %cst_71 = arith.constant 1.000000e+00 : f32
    %191 = vector.broadcast %cst_71 : f32 to vector<16x192xf32>
    %192 = arith.addf %191, %190 : vector<16x192xf32>
    %193 = arith.mulf %154, %192 : vector<16x192xf32>
    %194 = arith.truncf %193 : vector<16x192xf32> to vector<16x192xbf16>
    %c0_72 = arith.constant 0 : index
    %c0_73 = arith.constant 0 : index
    %195 = vector.load %arg14[%c0_72, %c0_73] : memref<192x48xbf16, #tpu.memory_space<vmem>>, vector<192x48xbf16>
    %cst_74 = arith.constant dense<0.000000e+00> : vector<16x48xf32>
    %196 = tpu.matmul %194, %195, %cst_74 {dimension_numbers = #tpu.dot_dimension_numbers<[1], [0], [0], [1], [0, 0, 1, 1], [], []>} : vector<16x192xbf16>, vector<192x48xbf16>, vector<16x48xf32> -> vector<16x48xf32>
    %c0_75 = arith.constant 0 : index
    %c0_76 = arith.constant 0 : index
    %197 = vector.load %arg15[%c0_75, %c0_76] : memref<1x48xf32, #tpu.memory_space<vmem>>, vector<1x48xf32>
    %198 = vector.broadcast %197 : vector<1x48xf32> to vector<16x48xf32>
    %199 = arith.addf %196, %198 : vector<16x48xf32>
    %200 = arith.addf %120, %199 : vector<16x48xf32>
    %c0_77 = arith.constant 0 : index
    %c0_78 = arith.constant 0 : index
    %201 = vector.load %arg16[%c0_77, %c0_78] : memref<16x48xf32, #tpu.memory_space<vmem>>, vector<16x48xf32>
    tpu.vector_store %arg16[%c0_77, %c0_78], %200 {strides = array<i32>} : memref<16x48xf32, #tpu.memory_space<vmem>>, vector<16x48xf32>,
    %c0_79 = arith.constant 0 : index
    %c0_80 = arith.constant 0 : index
    %202 = vector.load %arg2[%c0_79, %c0_80] : memref<2x16xf32, #tpu.memory_space<vmem>>, vector<2x16xf32>
    %cst_81 = arith.constant dense<0.000000e+00> : vector<2x16xf32>
    %203 = tpu.matmul %202, %110, %cst_81 {dimension_numbers = #tpu.dot_dimension_numbers<[1], [1], [0], [0], [0, 0, 1, 0], [], []>} : vector<2x16xf32>, vector<16x16xf32>, vector<2x16xf32> -> vector<2x16xf32>
    %c0_82 = arith.constant 0 : index
    %c0_83 = arith.constant 0 : index
    %204 = vector.load %arg3[%c0_82, %c0_83] : memref<16x8xf32, #tpu.memory_space<vmem>>, vector<16x8xf32>
    %cst_84 = arith.constant dense<0.000000e+00> : vector<2x8xf32>
    %205 = tpu.matmul %203, %204, %cst_84 {dimension_numbers = #tpu.dot_dimension_numbers<[1], [0], [0], [1], [0, 0, 1, 1], [], []>} : vector<2x16xf32>, vector<16x8xf32>, vector<2x8xf32> -> vector<2x8xf32>
    %cst_85 = arith.constant 0.333333343 : f32
    %206 = vector.broadcast %cst_85 : f32 to vector<2x8xf32>
    %207 = arith.mulf %205, %206 : vector<2x8xf32>
    %c0_86 = arith.constant 0 : index
    %c0_87 = arith.constant 0 : index
    %208 = vector.load %arg17[%c0_86, %c0_87] : memref<2x8xf32, #tpu.memory_space<vmem>>, vector<2x8xf32>
    tpu.vector_store %arg17[%c0_86, %c0_87], %207 {strides = array<i32>} : memref<2x8xf32, #tpu.memory_space<vmem>>, vector<2x8xf32>,
    return
  }
}

module attributes {stable_mosaic.version = 11 : i64} {
  func.func @_linear_kernel(%arg0: memref<32x48xf32, #tpu.memory_space<vmem>>, %arg1: memref<48x48xbf16, #tpu.memory_space<vmem>>, %arg2: memref<1x48xf32, #tpu.memory_space<vmem>>, %arg3: memref<32x48xf32, #tpu.memory_space<vmem>>) attributes {dimension_semantics = [], scalar_prefetch = 0 : i64, scratch_operands = 0 : i64, tpu.core_type = #tpu.core_type<tc>} {
    %c0 = arith.constant 0 : index
    %c0_0 = arith.constant 0 : index
    %0 = vector.load %arg0[%c0, %c0_0] : memref<32x48xf32, #tpu.memory_space<vmem>>, vector<32x48xf32>
    %1 = arith.truncf %0 : vector<32x48xf32> to vector<32x48xbf16>
    %c0_1 = arith.constant 0 : index
    %c0_2 = arith.constant 0 : index
    %2 = vector.load %arg1[%c0_1, %c0_2] : memref<48x48xbf16, #tpu.memory_space<vmem>>, vector<48x48xbf16>
    %cst = arith.constant dense<0.000000e+00> : vector<32x48xf32>
    %3 = tpu.matmul %1, %2, %cst {dimension_numbers = #tpu.dot_dimension_numbers<[1], [0], [0], [1], [0, 0, 1, 1], [], []>} : vector<32x48xbf16>, vector<48x48xbf16>, vector<32x48xf32> -> vector<32x48xf32>
    %c0_3 = arith.constant 0 : index
    %c0_4 = arith.constant 0 : index
    %4 = vector.load %arg2[%c0_3, %c0_4] : memref<1x48xf32, #tpu.memory_space<vmem>>, vector<1x48xf32>
    %5 = vector.broadcast %4 : vector<1x48xf32> to vector<32x48xf32>
    %6 = arith.addf %3, %5 : vector<32x48xf32>
    %c0_5 = arith.constant 0 : index
    %c0_6 = arith.constant 0 : index
    %7 = vector.load %arg3[%c0_5, %c0_6] : memref<32x48xf32, #tpu.memory_space<vmem>>, vector<32x48xf32>
    tpu.vector_store %arg3[%c0_5, %c0_6], %6 {strides = array<i32>} : memref<32x48xf32, #tpu.memory_space<vmem>>, vector<32x48xf32>,
    return
  }
}

module attributes {stable_mosaic.version = 11 : i64} {
  func.func @_block_kernel(%arg0: memref<32x48xf32, #tpu.memory_space<vmem>>, %arg1: memref<32x32xf32, #tpu.memory_space<vmem>>, %arg2: memref<2x32xf32, #tpu.memory_space<vmem>>, %arg3: memref<32x16xf32, #tpu.memory_space<vmem>>, %arg4: memref<1x48xf32, #tpu.memory_space<vmem>>, %arg5: memref<1x48xf32, #tpu.memory_space<vmem>>, %arg6: memref<48x144xbf16, #tpu.memory_space<vmem>>, %arg7: memref<1x144xf32, #tpu.memory_space<vmem>>, %arg8: memref<48x48xbf16, #tpu.memory_space<vmem>>, %arg9: memref<1x48xf32, #tpu.memory_space<vmem>>, %arg10: memref<1x48xf32, #tpu.memory_space<vmem>>, %arg11: memref<1x48xf32, #tpu.memory_space<vmem>>, %arg12: memref<48x192xbf16, #tpu.memory_space<vmem>>, %arg13: memref<1x192xf32, #tpu.memory_space<vmem>>, %arg14: memref<192x48xbf16, #tpu.memory_space<vmem>>, %arg15: memref<1x48xf32, #tpu.memory_space<vmem>>, %arg16: memref<32x48xf32, #tpu.memory_space<vmem>>, %arg17: memref<2x16xf32, #tpu.memory_space<vmem>>) attributes {dimension_semantics = [], scalar_prefetch = 0 : i64, scratch_operands = 0 : i64, tpu.core_type = #tpu.core_type<tc>} {
    %c0 = arith.constant 0 : index
    %c0_0 = arith.constant 0 : index
    %0 = vector.load %arg0[%c0, %c0_0] : memref<32x48xf32, #tpu.memory_space<vmem>>, vector<32x48xf32>
    %c0_1 = arith.constant 0 : index
    %c0_2 = arith.constant 0 : index
    %1 = vector.load %arg1[%c0_1, %c0_2] : memref<32x32xf32, #tpu.memory_space<vmem>>, vector<32x32xf32>
    %c0_3 = arith.constant 0 : index
    %c0_4 = arith.constant 0 : index
    %2 = vector.load %arg4[%c0_3, %c0_4] : memref<1x48xf32, #tpu.memory_space<vmem>>, vector<1x48xf32>
    %c0_5 = arith.constant 0 : index
    %c0_6 = arith.constant 0 : index
    %3 = vector.load %arg5[%c0_5, %c0_6] : memref<1x48xf32, #tpu.memory_space<vmem>>, vector<1x48xf32>
    %cst = arith.constant dense<0.000000e+00> : vector<32xf32>
    %4 = vector.multi_reduction <add>, %0, %cst [1] : vector<32x48xf32> to vector<32xf32>
    %5 = vector.shape_cast %4 : vector<32xf32> to vector<32x1xf32>
    %cst_7 = arith.constant 4.800000e+01 : f32
    %6 = vector.broadcast %cst_7 : f32 to vector<32x1xf32>
    %7 = arith.divf %5, %6 : vector<32x1xf32>
    %8 = vector.broadcast %7 : vector<32x1xf32> to vector<32x48xf32>
    %9 = arith.subf %0, %8 : vector<32x48xf32>
    %10 = vector.broadcast %7 : vector<32x1xf32> to vector<32x48xf32>
    %11 = arith.subf %0, %10 : vector<32x48xf32>
    %12 = arith.mulf %9, %11 : vector<32x48xf32>
    %cst_8 = arith.constant dense<0.000000e+00> : vector<32xf32>
    %13 = vector.multi_reduction <add>, %12, %cst_8 [1] : vector<32x48xf32> to vector<32xf32>
    %14 = vector.shape_cast %13 : vector<32xf32> to vector<32x1xf32>
    %cst_9 = arith.constant 4.800000e+01 : f32
    %15 = vector.broadcast %cst_9 : f32 to vector<32x1xf32>
    %16 = arith.divf %14, %15 : vector<32x1xf32>
    %17 = vector.broadcast %7 : vector<32x1xf32> to vector<32x48xf32>
    %18 = arith.subf %0, %17 : vector<32x48xf32>
    %cst_10 = arith.constant 9.99999997E-7 : f32
    %19 = vector.broadcast %cst_10 : f32 to vector<32x1xf32>
    %20 = arith.addf %16, %19 : vector<32x1xf32>
    %21 = math.rsqrt %20 : vector<32x1xf32>
    %22 = vector.broadcast %21 : vector<32x1xf32> to vector<32x48xf32>
    %23 = arith.mulf %18, %22 : vector<32x48xf32>
    %24 = vector.broadcast %2 : vector<1x48xf32> to vector<32x48xf32>
    %25 = arith.mulf %23, %24 : vector<32x48xf32>
    %26 = vector.broadcast %3 : vector<1x48xf32> to vector<32x48xf32>
    %27 = arith.addf %25, %26 : vector<32x48xf32>
    %28 = arith.truncf %27 : vector<32x48xf32> to vector<32x48xbf16>
    %c0_11 = arith.constant 0 : index
    %c0_12 = arith.constant 0 : index
    %29 = vector.load %arg6[%c0_11, %c0_12] : memref<48x144xbf16, #tpu.memory_space<vmem>>, vector<48x144xbf16>
    %cst_13 = arith.constant dense<0.000000e+00> : vector<32x144xf32>
    %30 = tpu.matmul %28, %29, %cst_13 {dimension_numbers = #tpu.dot_dimension_numbers<[1], [0], [0], [1], [0, 0, 1, 1], [], []>} : vector<32x48xbf16>, vector<48x144xbf16>, vector<32x144xf32> -> vector<32x144xf32>
    %c0_14 = arith.constant 0 : index
    %c0_15 = arith.constant 0 : index
    %31 = vector.load %arg7[%c0_14, %c0_15] : memref<1x144xf32, #tpu.memory_space<vmem>>, vector<1x144xf32>
    %32 = vector.broadcast %31 : vector<1x144xf32> to vector<32x144xf32>
    %33 = arith.addf %30, %32 : vector<32x144xf32>
    %cst_16 = arith.constant 0.000000e+00 : f32
    %34 = vector.broadcast %cst_16 : f32 to vector<32x48xf32>
    %cst_17 = arith.constant 0.000000e+00 : f32
    %35 = vector.broadcast %cst_17 : f32 to vector<32x32xf32>
    %36 = vector.extract_strided_slice %33 {offsets = [0, 0], sizes = [32, 16], strides = [1, 1]} : vector<32x144xf32> to vector<32x16xf32>
    %37 = arith.truncf %36 : vector<32x16xf32> to vector<32x16xbf16>
    %38 = vector.extract_strided_slice %33 {offsets = [0, 48], sizes = [32, 16], strides = [1, 1]} : vector<32x144xf32> to vector<32x16xf32>
    %39 = arith.truncf %38 : vector<32x16xf32> to vector<32x16xbf16>
    %40 = vector.extract_strided_slice %33 {offsets = [0, 96], sizes = [32, 16], strides = [1, 1]} : vector<32x144xf32> to vector<32x16xf32>
    %41 = arith.truncf %40 : vector<32x16xf32> to vector<32x16xbf16>
    %cst_18 = arith.constant dense<0.000000e+00> : vector<32x32xf32>
    %42 = tpu.matmul %37, %39, %cst_18 {dimension_numbers = #tpu.dot_dimension_numbers<[1], [1], [0], [0], [0, 0, 1, 0], [], []>} : vector<32x16xbf16>, vector<32x16xbf16>, vector<32x32xf32> -> vector<32x32xf32>
    %cst_19 = arith.constant 2.500000e-01 : f32
    %43 = vector.broadcast %cst_19 : f32 to vector<32x32xf32>
    %44 = arith.mulf %42, %43 : vector<32x32xf32>
    %45 = arith.addf %44, %1 : vector<32x32xf32>
    %cst_20 = arith.constant dense<0xFF800000> : vector<32xf32>
    %46 = vector.multi_reduction <maximumf>, %45, %cst_20 [1] : vector<32x32xf32> to vector<32xf32>
    %47 = vector.shape_cast %46 : vector<32xf32> to vector<32x1xf32>
    %48 = vector.broadcast %47 : vector<32x1xf32> to vector<32x32xf32>
    %49 = arith.subf %45, %48 : vector<32x32xf32>
    %50 = math.exp %49 : vector<32x32xf32>
    %cst_21 = arith.constant dense<0.000000e+00> : vector<32xf32>
    %51 = vector.multi_reduction <add>, %50, %cst_21 [1] : vector<32x32xf32> to vector<32xf32>
    %52 = vector.shape_cast %51 : vector<32xf32> to vector<32x1xf32>
    %53 = tpu.reciprocal %52 {approx = true} : vector<32x1xf32> -> vector<32x1xf32>
    %54 = vector.broadcast %53 : vector<32x1xf32> to vector<32x32xf32>
    %55 = arith.mulf %50, %54 : vector<32x32xf32>
    %56 = arith.addf %35, %55 : vector<32x32xf32>
    %57 = arith.truncf %55 : vector<32x32xf32> to vector<32x32xbf16>
    %cst_22 = arith.constant dense<0.000000e+00> : vector<32x16xf32>
    %58 = tpu.matmul %57, %41, %cst_22 {dimension_numbers = #tpu.dot_dimension_numbers<[1], [0], [0], [1], [0, 0, 1, 1], [], []>} : vector<32x32xbf16>, vector<32x16xbf16>, vector<32x16xf32> -> vector<32x16xf32>
    %59 = arith.truncf %58 : vector<32x16xf32> to vector<32x16xbf16>
    %c0_23 = arith.constant 0 : index
    %c0_24 = arith.constant 0 : index
    %60 = vector.load %arg8[%c0_23, %c0_24] : memref<48x48xbf16, #tpu.memory_space<vmem>>, vector<16x48xbf16>
    %cst_25 = arith.constant dense<0.000000e+00> : vector<32x48xf32>
    %61 = tpu.matmul %59, %60, %cst_25 {dimension_numbers = #tpu.dot_dimension_numbers<[1], [0], [0], [1], [0, 0, 1, 1], [], []>} : vector<32x16xbf16>, vector<16x48xbf16>, vector<32x48xf32> -> vector<32x48xf32>
    %62 = arith.addf %34, %61 : vector<32x48xf32>
    %63 = vector.extract_strided_slice %33 {offsets = [0, 16], sizes = [32, 16], strides = [1, 1]} : vector<32x144xf32> to vector<32x16xf32>
    %64 = arith.truncf %63 : vector<32x16xf32> to vector<32x16xbf16>
    %65 = vector.extract_strided_slice %33 {offsets = [0, 64], sizes = [32, 16], strides = [1, 1]} : vector<32x144xf32> to vector<32x16xf32>
    %66 = arith.truncf %65 : vector<32x16xf32> to vector<32x16xbf16>
    %67 = vector.extract_strided_slice %33 {offsets = [0, 112], sizes = [32, 16], strides = [1, 1]} : vector<32x144xf32> to vector<32x16xf32>
    %68 = arith.truncf %67 : vector<32x16xf32> to vector<32x16xbf16>
    %cst_26 = arith.constant dense<0.000000e+00> : vector<32x32xf32>
    %69 = tpu.matmul %64, %66, %cst_26 {dimension_numbers = #tpu.dot_dimension_numbers<[1], [1], [0], [0], [0, 0, 1, 0], [], []>} : vector<32x16xbf16>, vector<32x16xbf16>, vector<32x32xf32> -> vector<32x32xf32>
    %cst_27 = arith.constant 2.500000e-01 : f32
    %70 = vector.broadcast %cst_27 : f32 to vector<32x32xf32>
    %71 = arith.mulf %69, %70 : vector<32x32xf32>
    %72 = arith.addf %71, %1 : vector<32x32xf32>
    %cst_28 = arith.constant dense<0xFF800000> : vector<32xf32>
    %73 = vector.multi_reduction <maximumf>, %72, %cst_28 [1] : vector<32x32xf32> to vector<32xf32>
    %74 = vector.shape_cast %73 : vector<32xf32> to vector<32x1xf32>
    %75 = vector.broadcast %74 : vector<32x1xf32> to vector<32x32xf32>
    %76 = arith.subf %72, %75 : vector<32x32xf32>
    %77 = math.exp %76 : vector<32x32xf32>
    %cst_29 = arith.constant dense<0.000000e+00> : vector<32xf32>
    %78 = vector.multi_reduction <add>, %77, %cst_29 [1] : vector<32x32xf32> to vector<32xf32>
    %79 = vector.shape_cast %78 : vector<32xf32> to vector<32x1xf32>
    %80 = tpu.reciprocal %79 {approx = true} : vector<32x1xf32> -> vector<32x1xf32>
    %81 = vector.broadcast %80 : vector<32x1xf32> to vector<32x32xf32>
    %82 = arith.mulf %77, %81 : vector<32x32xf32>
    %83 = arith.addf %56, %82 : vector<32x32xf32>
    %84 = arith.truncf %82 : vector<32x32xf32> to vector<32x32xbf16>
    %cst_30 = arith.constant dense<0.000000e+00> : vector<32x16xf32>
    %85 = tpu.matmul %84, %68, %cst_30 {dimension_numbers = #tpu.dot_dimension_numbers<[1], [0], [0], [1], [0, 0, 1, 1], [], []>} : vector<32x32xbf16>, vector<32x16xbf16>, vector<32x16xf32> -> vector<32x16xf32>
    %86 = arith.truncf %85 : vector<32x16xf32> to vector<32x16xbf16>
    %c16 = arith.constant 16 : index
    %c0_31 = arith.constant 0 : index
    %87 = vector.load %arg8[%c16, %c0_31] : memref<48x48xbf16, #tpu.memory_space<vmem>>, vector<16x48xbf16>
    %cst_32 = arith.constant dense<0.000000e+00> : vector<32x48xf32>
    %88 = tpu.matmul %86, %87, %cst_32 {dimension_numbers = #tpu.dot_dimension_numbers<[1], [0], [0], [1], [0, 0, 1, 1], [], []>} : vector<32x16xbf16>, vector<16x48xbf16>, vector<32x48xf32> -> vector<32x48xf32>
    %89 = arith.addf %62, %88 : vector<32x48xf32>
    %90 = vector.extract_strided_slice %33 {offsets = [0, 32], sizes = [32, 16], strides = [1, 1]} : vector<32x144xf32> to vector<32x16xf32>
    %91 = arith.truncf %90 : vector<32x16xf32> to vector<32x16xbf16>
    %92 = vector.extract_strided_slice %33 {offsets = [0, 80], sizes = [32, 16], strides = [1, 1]} : vector<32x144xf32> to vector<32x16xf32>
    %93 = arith.truncf %92 : vector<32x16xf32> to vector<32x16xbf16>
    %94 = vector.extract_strided_slice %33 {offsets = [0, 128], sizes = [32, 16], strides = [1, 1]} : vector<32x144xf32> to vector<32x16xf32>
    %95 = arith.truncf %94 : vector<32x16xf32> to vector<32x16xbf16>
    %cst_33 = arith.constant dense<0.000000e+00> : vector<32x32xf32>
    %96 = tpu.matmul %91, %93, %cst_33 {dimension_numbers = #tpu.dot_dimension_numbers<[1], [1], [0], [0], [0, 0, 1, 0], [], []>} : vector<32x16xbf16>, vector<32x16xbf16>, vector<32x32xf32> -> vector<32x32xf32>
    %cst_34 = arith.constant 2.500000e-01 : f32
    %97 = vector.broadcast %cst_34 : f32 to vector<32x32xf32>
    %98 = arith.mulf %96, %97 : vector<32x32xf32>
    %99 = arith.addf %98, %1 : vector<32x32xf32>
    %cst_35 = arith.constant dense<0xFF800000> : vector<32xf32>
    %100 = vector.multi_reduction <maximumf>, %99, %cst_35 [1] : vector<32x32xf32> to vector<32xf32>
    %101 = vector.shape_cast %100 : vector<32xf32> to vector<32x1xf32>
    %102 = vector.broadcast %101 : vector<32x1xf32> to vector<32x32xf32>
    %103 = arith.subf %99, %102 : vector<32x32xf32>
    %104 = math.exp %103 : vector<32x32xf32>
    %cst_36 = arith.constant dense<0.000000e+00> : vector<32xf32>
    %105 = vector.multi_reduction <add>, %104, %cst_36 [1] : vector<32x32xf32> to vector<32xf32>
    %106 = vector.shape_cast %105 : vector<32xf32> to vector<32x1xf32>
    %107 = tpu.reciprocal %106 {approx = true} : vector<32x1xf32> -> vector<32x1xf32>
    %108 = vector.broadcast %107 : vector<32x1xf32> to vector<32x32xf32>
    %109 = arith.mulf %104, %108 : vector<32x32xf32>
    %110 = arith.addf %83, %109 : vector<32x32xf32>
    %111 = arith.truncf %109 : vector<32x32xf32> to vector<32x32xbf16>
    %cst_37 = arith.constant dense<0.000000e+00> : vector<32x16xf32>
    %112 = tpu.matmul %111, %95, %cst_37 {dimension_numbers = #tpu.dot_dimension_numbers<[1], [0], [0], [1], [0, 0, 1, 1], [], []>} : vector<32x32xbf16>, vector<32x16xbf16>, vector<32x16xf32> -> vector<32x16xf32>
    %113 = arith.truncf %112 : vector<32x16xf32> to vector<32x16xbf16>
    %c32 = arith.constant 32 : index
    %c0_38 = arith.constant 0 : index
    %114 = vector.load %arg8[%c32, %c0_38] : memref<48x48xbf16, #tpu.memory_space<vmem>>, vector<16x48xbf16>
    %cst_39 = arith.constant dense<0.000000e+00> : vector<32x48xf32>
    %115 = tpu.matmul %113, %114, %cst_39 {dimension_numbers = #tpu.dot_dimension_numbers<[1], [0], [0], [1], [0, 0, 1, 1], [], []>} : vector<32x16xbf16>, vector<16x48xbf16>, vector<32x48xf32> -> vector<32x48xf32>
    %116 = arith.addf %89, %115 : vector<32x48xf32>
    %117 = arith.addf %0, %116 : vector<32x48xf32>
    %c0_40 = arith.constant 0 : index
    %c0_41 = arith.constant 0 : index
    %118 = vector.load %arg9[%c0_40, %c0_41] : memref<1x48xf32, #tpu.memory_space<vmem>>, vector<1x48xf32>
    %119 = vector.broadcast %118 : vector<1x48xf32> to vector<32x48xf32>
    %120 = arith.addf %117, %119 : vector<32x48xf32>
    %c0_42 = arith.constant 0 : index
    %c0_43 = arith.constant 0 : index
    %121 = vector.load %arg10[%c0_42, %c0_43] : memref<1x48xf32, #tpu.memory_space<vmem>>, vector<1x48xf32>
    %c0_44 = arith.constant 0 : index
    %c0_45 = arith.constant 0 : index
    %122 = vector.load %arg11[%c0_44, %c0_45] : memref<1x48xf32, #tpu.memory_space<vmem>>, vector<1x48xf32>
    %cst_46 = arith.constant dense<0.000000e+00> : vector<32xf32>
    %123 = vector.multi_reduction <add>, %120, %cst_46 [1] : vector<32x48xf32> to vector<32xf32>
    %124 = vector.shape_cast %123 : vector<32xf32> to vector<32x1xf32>
    %cst_47 = arith.constant 4.800000e+01 : f32
    %125 = vector.broadcast %cst_47 : f32 to vector<32x1xf32>
    %126 = arith.divf %124, %125 : vector<32x1xf32>
    %127 = vector.broadcast %126 : vector<32x1xf32> to vector<32x48xf32>
    %128 = arith.subf %120, %127 : vector<32x48xf32>
    %129 = vector.broadcast %126 : vector<32x1xf32> to vector<32x48xf32>
    %130 = arith.subf %120, %129 : vector<32x48xf32>
    %131 = arith.mulf %128, %130 : vector<32x48xf32>
    %cst_48 = arith.constant dense<0.000000e+00> : vector<32xf32>
    %132 = vector.multi_reduction <add>, %131, %cst_48 [1] : vector<32x48xf32> to vector<32xf32>
    %133 = vector.shape_cast %132 : vector<32xf32> to vector<32x1xf32>
    %cst_49 = arith.constant 4.800000e+01 : f32
    %134 = vector.broadcast %cst_49 : f32 to vector<32x1xf32>
    %135 = arith.divf %133, %134 : vector<32x1xf32>
    %136 = vector.broadcast %126 : vector<32x1xf32> to vector<32x48xf32>
    %137 = arith.subf %120, %136 : vector<32x48xf32>
    %cst_50 = arith.constant 9.99999997E-7 : f32
    %138 = vector.broadcast %cst_50 : f32 to vector<32x1xf32>
    %139 = arith.addf %135, %138 : vector<32x1xf32>
    %140 = math.rsqrt %139 : vector<32x1xf32>
    %141 = vector.broadcast %140 : vector<32x1xf32> to vector<32x48xf32>
    %142 = arith.mulf %137, %141 : vector<32x48xf32>
    %143 = vector.broadcast %121 : vector<1x48xf32> to vector<32x48xf32>
    %144 = arith.mulf %142, %143 : vector<32x48xf32>
    %145 = vector.broadcast %122 : vector<1x48xf32> to vector<32x48xf32>
    %146 = arith.addf %144, %145 : vector<32x48xf32>
    %147 = arith.truncf %146 : vector<32x48xf32> to vector<32x48xbf16>
    %c0_51 = arith.constant 0 : index
    %c0_52 = arith.constant 0 : index
    %148 = vector.load %arg12[%c0_51, %c0_52] : memref<48x192xbf16, #tpu.memory_space<vmem>>, vector<48x192xbf16>
    %cst_53 = arith.constant dense<0.000000e+00> : vector<32x192xf32>
    %149 = tpu.matmul %147, %148, %cst_53 {dimension_numbers = #tpu.dot_dimension_numbers<[1], [0], [0], [1], [0, 0, 1, 1], [], []>} : vector<32x48xbf16>, vector<48x192xbf16>, vector<32x192xf32> -> vector<32x192xf32>
    %c0_54 = arith.constant 0 : index
    %c0_55 = arith.constant 0 : index
    %150 = vector.load %arg13[%c0_54, %c0_55] : memref<1x192xf32, #tpu.memory_space<vmem>>, vector<1x192xf32>
    %151 = vector.broadcast %150 : vector<1x192xf32> to vector<32x192xf32>
    %152 = arith.addf %149, %151 : vector<32x192xf32>
    %cst_56 = arith.constant 5.000000e-01 : f32
    %153 = vector.broadcast %cst_56 : f32 to vector<32x192xf32>
    %154 = arith.mulf %153, %152 : vector<32x192xf32>
    %cst_57 = arith.constant 0.707106769 : f32
    %155 = vector.broadcast %cst_57 : f32 to vector<32x192xf32>
    %156 = arith.mulf %152, %155 : vector<32x192xf32>
    %cst_58 = arith.constant 0.000000e+00 : f32
    %157 = vector.broadcast %cst_58 : f32 to vector<32x192xf32>
    %158 = arith.cmpf oge, %156, %157 : vector<32x192xf32>
    %cst_59 = arith.constant 1.000000e+00 : f32
    %cst_60 = arith.constant -1.000000e+00 : f32
    %159 = vector.broadcast %cst_59 : f32 to vector<32x192xf32>
    %160 = vector.broadcast %cst_60 : f32 to vector<32x192xf32>
    %161 = arith.select %158, %159, %160 : vector<32x192xi1>, vector<32x192xf32>
    %162 = math.absf %156 : vector<32x192xf32>
    %cst_61 = arith.constant 0.327591091 : f32
    %163 = vector.broadcast %cst_61 : f32 to vector<32x192xf32>
    %164 = arith.mulf %163, %162 : vector<32x192xf32>
    %cst_62 = arith.constant 1.000000e+00 : f32
    %165 = vector.broadcast %cst_62 : f32 to vector<32x192xf32>
    %166 = arith.addf %165, %164 : vector<32x192xf32>
    %cst_63 = arith.constant 1.000000e+00 : f32
    %167 = vector.broadcast %cst_63 : f32 to vector<32x192xf32>
    %168 = arith.divf %167, %166 : vector<32x192xf32>
    %cst_64 = arith.constant 1.06140542 : f32
    %169 = vector.broadcast %cst_64 : f32 to vector<32x192xf32>
    %170 = arith.mulf %169, %168 : vector<32x192xf32>
    %cst_65 = arith.constant -1.45315206 : f32
    %171 = vector.broadcast %cst_65 : f32 to vector<32x192xf32>
    %172 = arith.addf %170, %171 : vector<32x192xf32>
    %173 = arith.mulf %172, %168 : vector<32x192xf32>
    %cst_66 = arith.constant 1.42141378 : f32
    %174 = vector.broadcast %cst_66 : f32 to vector<32x192xf32>
    %175 = arith.addf %173, %174 : vector<32x192xf32>
    %176 = arith.mulf %175, %168 : vector<32x192xf32>
    %cst_67 = arith.constant -0.284496725 : f32
    %177 = vector.broadcast %cst_67 : f32 to vector<32x192xf32>
    %178 = arith.addf %176, %177 : vector<32x192xf32>
    %179 = arith.mulf %178, %168 : vector<32x192xf32>
    %cst_68 = arith.constant 0.254829586 : f32
    %180 = vector.broadcast %cst_68 : f32 to vector<32x192xf32>
    %181 = arith.addf %179, %180 : vector<32x192xf32>
    %182 = arith.mulf %181, %168 : vector<32x192xf32>
    %cst_69 = arith.constant 0.000000e+00 : f32
    %183 = vector.broadcast %cst_69 : f32 to vector<32x192xf32>
    %184 = arith.subf %183, %162 : vector<32x192xf32>
    %185 = arith.mulf %184, %162 : vector<32x192xf32>
    %186 = math.exp %185 : vector<32x192xf32>
    %187 = arith.mulf %182, %186 : vector<32x192xf32>
    %cst_70 = arith.constant 1.000000e+00 : f32
    %188 = vector.broadcast %cst_70 : f32 to vector<32x192xf32>
    %189 = arith.subf %188, %187 : vector<32x192xf32>
    %190 = arith.mulf %161, %189 : vector<32x192xf32>
    %cst_71 = arith.constant 1.000000e+00 : f32
    %191 = vector.broadcast %cst_71 : f32 to vector<32x192xf32>
    %192 = arith.addf %191, %190 : vector<32x192xf32>
    %193 = arith.mulf %154, %192 : vector<32x192xf32>
    %194 = arith.truncf %193 : vector<32x192xf32> to vector<32x192xbf16>
    %c0_72 = arith.constant 0 : index
    %c0_73 = arith.constant 0 : index
    %195 = vector.load %arg14[%c0_72, %c0_73] : memref<192x48xbf16, #tpu.memory_space<vmem>>, vector<192x48xbf16>
    %cst_74 = arith.constant dense<0.000000e+00> : vector<32x48xf32>
    %196 = tpu.matmul %194, %195, %cst_74 {dimension_numbers = #tpu.dot_dimension_numbers<[1], [0], [0], [1], [0, 0, 1, 1], [], []>} : vector<32x192xbf16>, vector<192x48xbf16>, vector<32x48xf32> -> vector<32x48xf32>
    %c0_75 = arith.constant 0 : index
    %c0_76 = arith.constant 0 : index
    %197 = vector.load %arg15[%c0_75, %c0_76] : memref<1x48xf32, #tpu.memory_space<vmem>>, vector<1x48xf32>
    %198 = vector.broadcast %197 : vector<1x48xf32> to vector<32x48xf32>
    %199 = arith.addf %196, %198 : vector<32x48xf32>
    %200 = arith.addf %120, %199 : vector<32x48xf32>
    %c0_77 = arith.constant 0 : index
    %c0_78 = arith.constant 0 : index
    %201 = vector.load %arg16[%c0_77, %c0_78] : memref<32x48xf32, #tpu.memory_space<vmem>>, vector<32x48xf32>
    tpu.vector_store %arg16[%c0_77, %c0_78], %200 {strides = array<i32>} : memref<32x48xf32, #tpu.memory_space<vmem>>, vector<32x48xf32>,
    %c0_79 = arith.constant 0 : index
    %c0_80 = arith.constant 0 : index
    %202 = vector.load %arg2[%c0_79, %c0_80] : memref<2x32xf32, #tpu.memory_space<vmem>>, vector<2x32xf32>
    %cst_81 = arith.constant dense<0.000000e+00> : vector<2x32xf32>
    %203 = tpu.matmul %202, %110, %cst_81 {dimension_numbers = #tpu.dot_dimension_numbers<[1], [1], [0], [0], [0, 0, 1, 0], [], []>} : vector<2x32xf32>, vector<32x32xf32>, vector<2x32xf32> -> vector<2x32xf32>
    %c0_82 = arith.constant 0 : index
    %c0_83 = arith.constant 0 : index
    %204 = vector.load %arg3[%c0_82, %c0_83] : memref<32x16xf32, #tpu.memory_space<vmem>>, vector<32x16xf32>
    %cst_84 = arith.constant dense<0.000000e+00> : vector<2x16xf32>
    %205 = tpu.matmul %203, %204, %cst_84 {dimension_numbers = #tpu.dot_dimension_numbers<[1], [0], [0], [1], [0, 0, 1, 1], [], []>} : vector<2x32xf32>, vector<32x16xf32>, vector<2x16xf32> -> vector<2x16xf32>
    %cst_85 = arith.constant 0.333333343 : f32
    %206 = vector.broadcast %cst_85 : f32 to vector<2x16xf32>
    %207 = arith.mulf %205, %206 : vector<2x16xf32>
    %c0_86 = arith.constant 0 : index
    %c0_87 = arith.constant 0 : index
    %208 = vector.load %arg17[%c0_86, %c0_87] : memref<2x16xf32, #tpu.memory_space<vmem>>, vector<2x16xf32>
    tpu.vector_store %arg17[%c0_86, %c0_87], %207 {strides = array<i32>} : memref<2x16xf32, #tpu.memory_space<vmem>>, vector<2x16xf32>,
    return
  }
}

module attributes {stable_mosaic.version = 11 : i64} {
  func.func @_linear_kernel(%arg0: memref<128x12xf32, #tpu.memory_space<vmem>>, %arg1: memref<12x48xbf16, #tpu.memory_space<vmem>>, %arg2: memref<1x48xf32, #tpu.memory_space<vmem>>, %arg3: memref<128x48xf32, #tpu.memory_space<vmem>>) attributes {dimension_semantics = [], scalar_prefetch = 0 : i64, scratch_operands = 0 : i64, tpu.core_type = #tpu.core_type<tc>} {
    %c0 = arith.constant 0 : index
    %c0_0 = arith.constant 0 : index
    %0 = vector.load %arg0[%c0, %c0_0] : memref<128x12xf32, #tpu.memory_space<vmem>>, vector<128x12xf32>
    %1 = arith.truncf %0 : vector<128x12xf32> to vector<128x12xbf16>
    %c0_1 = arith.constant 0 : index
    %c0_2 = arith.constant 0 : index
    %2 = vector.load %arg1[%c0_1, %c0_2] : memref<12x48xbf16, #tpu.memory_space<vmem>>, vector<12x48xbf16>
    %cst = arith.constant dense<0.000000e+00> : vector<128x48xf32>
    %3 = tpu.matmul %1, %2, %cst {dimension_numbers = #tpu.dot_dimension_numbers<[1], [0], [0], [1], [0, 0, 1, 1], [], []>} : vector<128x12xbf16>, vector<12x48xbf16>, vector<128x48xf32> -> vector<128x48xf32>
    %c0_3 = arith.constant 0 : index
    %c0_4 = arith.constant 0 : index
    %4 = vector.load %arg2[%c0_3, %c0_4] : memref<1x48xf32, #tpu.memory_space<vmem>>, vector<1x48xf32>
    %5 = vector.broadcast %4 : vector<1x48xf32> to vector<128x48xf32>
    %6 = arith.addf %3, %5 : vector<128x48xf32>
    %c0_5 = arith.constant 0 : index
    %c0_6 = arith.constant 0 : index
    %7 = vector.load %arg3[%c0_5, %c0_6] : memref<128x48xf32, #tpu.memory_space<vmem>>, vector<128x48xf32>
    tpu.vector_store %arg3[%c0_5, %c0_6], %6 {strides = array<i32>} : memref<128x48xf32, #tpu.memory_space<vmem>>, vector<128x48xf32>,
    return
  }
}

module attributes {stable_mosaic.version = 11 : i64} {
  func.func @_ln_head_kernel(%arg0: memref<2x48xf32, #tpu.memory_space<vmem>>, %arg1: memref<1x48xf32, #tpu.memory_space<vmem>>, %arg2: memref<1x48xf32, #tpu.memory_space<vmem>>, %arg3: memref<48x16xf32, #tpu.memory_space<vmem>>, %arg4: memref<1x16xf32, #tpu.memory_space<vmem>>, %arg5: memref<2x16xf32, #tpu.memory_space<vmem>>) attributes {dimension_semantics = [], scalar_prefetch = 0 : i64, scratch_operands = 0 : i64, tpu.core_type = #tpu.core_type<tc>} {
    %c0 = arith.constant 0 : index
    %c0_0 = arith.constant 0 : index
    %0 = vector.load %arg0[%c0, %c0_0] : memref<2x48xf32, #tpu.memory_space<vmem>>, vector<2x48xf32>
    %c0_1 = arith.constant 0 : index
    %c0_2 = arith.constant 0 : index
    %1 = vector.load %arg1[%c0_1, %c0_2] : memref<1x48xf32, #tpu.memory_space<vmem>>, vector<1x48xf32>
    %c0_3 = arith.constant 0 : index
    %c0_4 = arith.constant 0 : index
    %2 = vector.load %arg2[%c0_3, %c0_4] : memref<1x48xf32, #tpu.memory_space<vmem>>, vector<1x48xf32>
    %cst = arith.constant dense<0.000000e+00> : vector<2xf32>
    %3 = vector.multi_reduction <add>, %0, %cst [1] : vector<2x48xf32> to vector<2xf32>
    %4 = vector.shape_cast %3 : vector<2xf32> to vector<2x1xf32>
    %cst_5 = arith.constant 4.800000e+01 : f32
    %5 = vector.broadcast %cst_5 : f32 to vector<2x1xf32>
    %6 = arith.divf %4, %5 : vector<2x1xf32>
    %7 = vector.broadcast %6 : vector<2x1xf32> to vector<2x48xf32>
    %8 = arith.subf %0, %7 : vector<2x48xf32>
    %9 = vector.broadcast %6 : vector<2x1xf32> to vector<2x48xf32>
    %10 = arith.subf %0, %9 : vector<2x48xf32>
    %11 = arith.mulf %8, %10 : vector<2x48xf32>
    %cst_6 = arith.constant dense<0.000000e+00> : vector<2xf32>
    %12 = vector.multi_reduction <add>, %11, %cst_6 [1] : vector<2x48xf32> to vector<2xf32>
    %13 = vector.shape_cast %12 : vector<2xf32> to vector<2x1xf32>
    %cst_7 = arith.constant 4.800000e+01 : f32
    %14 = vector.broadcast %cst_7 : f32 to vector<2x1xf32>
    %15 = arith.divf %13, %14 : vector<2x1xf32>
    %16 = vector.broadcast %6 : vector<2x1xf32> to vector<2x48xf32>
    %17 = arith.subf %0, %16 : vector<2x48xf32>
    %cst_8 = arith.constant 9.99999997E-7 : f32
    %18 = vector.broadcast %cst_8 : f32 to vector<2x1xf32>
    %19 = arith.addf %15, %18 : vector<2x1xf32>
    %20 = math.rsqrt %19 : vector<2x1xf32>
    %21 = vector.broadcast %20 : vector<2x1xf32> to vector<2x48xf32>
    %22 = arith.mulf %17, %21 : vector<2x48xf32>
    %23 = vector.broadcast %1 : vector<1x48xf32> to vector<2x48xf32>
    %24 = arith.mulf %22, %23 : vector<2x48xf32>
    %25 = vector.broadcast %2 : vector<1x48xf32> to vector<2x48xf32>
    %26 = arith.addf %24, %25 : vector<2x48xf32>
    %c0_9 = arith.constant 0 : index
    %c0_10 = arith.constant 0 : index
    %27 = vector.load %arg3[%c0_9, %c0_10] : memref<48x16xf32, #tpu.memory_space<vmem>>, vector<48x16xf32>
    %cst_11 = arith.constant dense<0.000000e+00> : vector<2x16xf32>
    %28 = tpu.matmul %26, %27, %cst_11 {dimension_numbers = #tpu.dot_dimension_numbers<[1], [0], [0], [1], [0, 0, 1, 1], [], []>} : vector<2x48xf32>, vector<48x16xf32>, vector<2x16xf32> -> vector<2x16xf32>
    %c0_12 = arith.constant 0 : index
    %c0_13 = arith.constant 0 : index
    %29 = vector.load %arg4[%c0_12, %c0_13] : memref<1x16xf32, #tpu.memory_space<vmem>>, vector<1x16xf32>
    %30 = vector.broadcast %29 : vector<1x16xf32> to vector<2x16xf32>
    %31 = arith.addf %28, %30 : vector<2x16xf32>
    %c0_14 = arith.constant 0 : index
    %c0_15 = arith.constant 0 : index
    %32 = vector.load %arg5[%c0_14, %c0_15] : memref<2x16xf32, #tpu.memory_space<vmem>>, vector<2x16xf32>
    tpu.vector_store %arg5[%c0_14, %c0_15], %31 {strides = array<i32>} : memref<2x16xf32, #tpu.memory_space<vmem>>, vector<2x16xf32>,
    return
  }
}

module attributes {stable_mosaic.version = 11 : i64} {
  func.func @_block_kernel(%arg0: memref<64x48xf32, #tpu.memory_space<vmem>>, %arg1: memref<64x64xf32, #tpu.memory_space<vmem>>, %arg2: memref<2x64xf32, #tpu.memory_space<vmem>>, %arg3: memref<64x32xf32, #tpu.memory_space<vmem>>, %arg4: memref<1x48xf32, #tpu.memory_space<vmem>>, %arg5: memref<1x48xf32, #tpu.memory_space<vmem>>, %arg6: memref<48x144xbf16, #tpu.memory_space<vmem>>, %arg7: memref<1x144xf32, #tpu.memory_space<vmem>>, %arg8: memref<48x48xbf16, #tpu.memory_space<vmem>>, %arg9: memref<1x48xf32, #tpu.memory_space<vmem>>, %arg10: memref<1x48xf32, #tpu.memory_space<vmem>>, %arg11: memref<1x48xf32, #tpu.memory_space<vmem>>, %arg12: memref<48x192xbf16, #tpu.memory_space<vmem>>, %arg13: memref<1x192xf32, #tpu.memory_space<vmem>>, %arg14: memref<192x48xbf16, #tpu.memory_space<vmem>>, %arg15: memref<1x48xf32, #tpu.memory_space<vmem>>, %arg16: memref<64x48xf32, #tpu.memory_space<vmem>>, %arg17: memref<2x32xf32, #tpu.memory_space<vmem>>) attributes {dimension_semantics = [], scalar_prefetch = 0 : i64, scratch_operands = 0 : i64, tpu.core_type = #tpu.core_type<tc>} {
    %c0 = arith.constant 0 : index
    %c0_0 = arith.constant 0 : index
    %0 = vector.load %arg0[%c0, %c0_0] : memref<64x48xf32, #tpu.memory_space<vmem>>, vector<64x48xf32>
    %c0_1 = arith.constant 0 : index
    %c0_2 = arith.constant 0 : index
    %1 = vector.load %arg1[%c0_1, %c0_2] : memref<64x64xf32, #tpu.memory_space<vmem>>, vector<64x64xf32>
    %c0_3 = arith.constant 0 : index
    %c0_4 = arith.constant 0 : index
    %2 = vector.load %arg4[%c0_3, %c0_4] : memref<1x48xf32, #tpu.memory_space<vmem>>, vector<1x48xf32>
    %c0_5 = arith.constant 0 : index
    %c0_6 = arith.constant 0 : index
    %3 = vector.load %arg5[%c0_5, %c0_6] : memref<1x48xf32, #tpu.memory_space<vmem>>, vector<1x48xf32>
    %cst = arith.constant dense<0.000000e+00> : vector<64xf32>
    %4 = vector.multi_reduction <add>, %0, %cst [1] : vector<64x48xf32> to vector<64xf32>
    %5 = vector.shape_cast %4 : vector<64xf32> to vector<64x1xf32>
    %cst_7 = arith.constant 4.800000e+01 : f32
    %6 = vector.broadcast %cst_7 : f32 to vector<64x1xf32>
    %7 = arith.divf %5, %6 : vector<64x1xf32>
    %8 = vector.broadcast %7 : vector<64x1xf32> to vector<64x48xf32>
    %9 = arith.subf %0, %8 : vector<64x48xf32>
    %10 = vector.broadcast %7 : vector<64x1xf32> to vector<64x48xf32>
    %11 = arith.subf %0, %10 : vector<64x48xf32>
    %12 = arith.mulf %9, %11 : vector<64x48xf32>
    %cst_8 = arith.constant dense<0.000000e+00> : vector<64xf32>
    %13 = vector.multi_reduction <add>, %12, %cst_8 [1] : vector<64x48xf32> to vector<64xf32>
    %14 = vector.shape_cast %13 : vector<64xf32> to vector<64x1xf32>
    %cst_9 = arith.constant 4.800000e+01 : f32
    %15 = vector.broadcast %cst_9 : f32 to vector<64x1xf32>
    %16 = arith.divf %14, %15 : vector<64x1xf32>
    %17 = vector.broadcast %7 : vector<64x1xf32> to vector<64x48xf32>
    %18 = arith.subf %0, %17 : vector<64x48xf32>
    %cst_10 = arith.constant 9.99999997E-7 : f32
    %19 = vector.broadcast %cst_10 : f32 to vector<64x1xf32>
    %20 = arith.addf %16, %19 : vector<64x1xf32>
    %21 = math.rsqrt %20 : vector<64x1xf32>
    %22 = vector.broadcast %21 : vector<64x1xf32> to vector<64x48xf32>
    %23 = arith.mulf %18, %22 : vector<64x48xf32>
    %24 = vector.broadcast %2 : vector<1x48xf32> to vector<64x48xf32>
    %25 = arith.mulf %23, %24 : vector<64x48xf32>
    %26 = vector.broadcast %3 : vector<1x48xf32> to vector<64x48xf32>
    %27 = arith.addf %25, %26 : vector<64x48xf32>
    %28 = arith.truncf %27 : vector<64x48xf32> to vector<64x48xbf16>
    %c0_11 = arith.constant 0 : index
    %c0_12 = arith.constant 0 : index
    %29 = vector.load %arg6[%c0_11, %c0_12] : memref<48x144xbf16, #tpu.memory_space<vmem>>, vector<48x144xbf16>
    %cst_13 = arith.constant dense<0.000000e+00> : vector<64x144xf32>
    %30 = tpu.matmul %28, %29, %cst_13 {dimension_numbers = #tpu.dot_dimension_numbers<[1], [0], [0], [1], [0, 0, 1, 1], [], []>} : vector<64x48xbf16>, vector<48x144xbf16>, vector<64x144xf32> -> vector<64x144xf32>
    %c0_14 = arith.constant 0 : index
    %c0_15 = arith.constant 0 : index
    %31 = vector.load %arg7[%c0_14, %c0_15] : memref<1x144xf32, #tpu.memory_space<vmem>>, vector<1x144xf32>
    %32 = vector.broadcast %31 : vector<1x144xf32> to vector<64x144xf32>
    %33 = arith.addf %30, %32 : vector<64x144xf32>
    %cst_16 = arith.constant 0.000000e+00 : f32
    %34 = vector.broadcast %cst_16 : f32 to vector<64x48xf32>
    %cst_17 = arith.constant 0.000000e+00 : f32
    %35 = vector.broadcast %cst_17 : f32 to vector<64x64xf32>
    %36 = vector.extract_strided_slice %33 {offsets = [0, 0], sizes = [64, 16], strides = [1, 1]} : vector<64x144xf32> to vector<64x16xf32>
    %37 = arith.truncf %36 : vector<64x16xf32> to vector<64x16xbf16>
    %38 = vector.extract_strided_slice %33 {offsets = [0, 48], sizes = [64, 16], strides = [1, 1]} : vector<64x144xf32> to vector<64x16xf32>
    %39 = arith.truncf %38 : vector<64x16xf32> to vector<64x16xbf16>
    %40 = vector.extract_strided_slice %33 {offsets = [0, 96], sizes = [64, 16], strides = [1, 1]} : vector<64x144xf32> to vector<64x16xf32>
    %41 = arith.truncf %40 : vector<64x16xf32> to vector<64x16xbf16>
    %cst_18 = arith.constant dense<0.000000e+00> : vector<64x64xf32>
    %42 = tpu.matmul %37, %39, %cst_18 {dimension_numbers = #tpu.dot_dimension_numbers<[1], [1], [0], [0], [0, 0, 1, 0], [], []>} : vector<64x16xbf16>, vector<64x16xbf16>, vector<64x64xf32> -> vector<64x64xf32>
    %cst_19 = arith.constant 2.500000e-01 : f32
    %43 = vector.broadcast %cst_19 : f32 to vector<64x64xf32>
    %44 = arith.mulf %42, %43 : vector<64x64xf32>
    %45 = arith.addf %44, %1 : vector<64x64xf32>
    %cst_20 = arith.constant dense<0xFF800000> : vector<64xf32>
    %46 = vector.multi_reduction <maximumf>, %45, %cst_20 [1] : vector<64x64xf32> to vector<64xf32>
    %47 = vector.shape_cast %46 : vector<64xf32> to vector<64x1xf32>
    %48 = vector.broadcast %47 : vector<64x1xf32> to vector<64x64xf32>
    %49 = arith.subf %45, %48 : vector<64x64xf32>
    %50 = math.exp %49 : vector<64x64xf32>
    %cst_21 = arith.constant dense<0.000000e+00> : vector<64xf32>
    %51 = vector.multi_reduction <add>, %50, %cst_21 [1] : vector<64x64xf32> to vector<64xf32>
    %52 = vector.shape_cast %51 : vector<64xf32> to vector<64x1xf32>
    %53 = tpu.reciprocal %52 {approx = true} : vector<64x1xf32> -> vector<64x1xf32>
    %54 = vector.broadcast %53 : vector<64x1xf32> to vector<64x64xf32>
    %55 = arith.mulf %50, %54 : vector<64x64xf32>
    %56 = arith.addf %35, %55 : vector<64x64xf32>
    %57 = arith.truncf %55 : vector<64x64xf32> to vector<64x64xbf16>
    %cst_22 = arith.constant dense<0.000000e+00> : vector<64x16xf32>
    %58 = tpu.matmul %57, %41, %cst_22 {dimension_numbers = #tpu.dot_dimension_numbers<[1], [0], [0], [1], [0, 0, 1, 1], [], []>} : vector<64x64xbf16>, vector<64x16xbf16>, vector<64x16xf32> -> vector<64x16xf32>
    %59 = arith.truncf %58 : vector<64x16xf32> to vector<64x16xbf16>
    %c0_23 = arith.constant 0 : index
    %c0_24 = arith.constant 0 : index
    %60 = vector.load %arg8[%c0_23, %c0_24] : memref<48x48xbf16, #tpu.memory_space<vmem>>, vector<16x48xbf16>
    %cst_25 = arith.constant dense<0.000000e+00> : vector<64x48xf32>
    %61 = tpu.matmul %59, %60, %cst_25 {dimension_numbers = #tpu.dot_dimension_numbers<[1], [0], [0], [1], [0, 0, 1, 1], [], []>} : vector<64x16xbf16>, vector<16x48xbf16>, vector<64x48xf32> -> vector<64x48xf32>
    %62 = arith.addf %34, %61 : vector<64x48xf32>
    %63 = vector.extract_strided_slice %33 {offsets = [0, 16], sizes = [64, 16], strides = [1, 1]} : vector<64x144xf32> to vector<64x16xf32>
    %64 = arith.truncf %63 : vector<64x16xf32> to vector<64x16xbf16>
    %65 = vector.extract_strided_slice %33 {offsets = [0, 64], sizes = [64, 16], strides = [1, 1]} : vector<64x144xf32> to vector<64x16xf32>
    %66 = arith.truncf %65 : vector<64x16xf32> to vector<64x16xbf16>
    %67 = vector.extract_strided_slice %33 {offsets = [0, 112], sizes = [64, 16], strides = [1, 1]} : vector<64x144xf32> to vector<64x16xf32>
    %68 = arith.truncf %67 : vector<64x16xf32> to vector<64x16xbf16>
    %cst_26 = arith.constant dense<0.000000e+00> : vector<64x64xf32>
    %69 = tpu.matmul %64, %66, %cst_26 {dimension_numbers = #tpu.dot_dimension_numbers<[1], [1], [0], [0], [0, 0, 1, 0], [], []>} : vector<64x16xbf16>, vector<64x16xbf16>, vector<64x64xf32> -> vector<64x64xf32>
    %cst_27 = arith.constant 2.500000e-01 : f32
    %70 = vector.broadcast %cst_27 : f32 to vector<64x64xf32>
    %71 = arith.mulf %69, %70 : vector<64x64xf32>
    %72 = arith.addf %71, %1 : vector<64x64xf32>
    %cst_28 = arith.constant dense<0xFF800000> : vector<64xf32>
    %73 = vector.multi_reduction <maximumf>, %72, %cst_28 [1] : vector<64x64xf32> to vector<64xf32>
    %74 = vector.shape_cast %73 : vector<64xf32> to vector<64x1xf32>
    %75 = vector.broadcast %74 : vector<64x1xf32> to vector<64x64xf32>
    %76 = arith.subf %72, %75 : vector<64x64xf32>
    %77 = math.exp %76 : vector<64x64xf32>
    %cst_29 = arith.constant dense<0.000000e+00> : vector<64xf32>
    %78 = vector.multi_reduction <add>, %77, %cst_29 [1] : vector<64x64xf32> to vector<64xf32>
    %79 = vector.shape_cast %78 : vector<64xf32> to vector<64x1xf32>
    %80 = tpu.reciprocal %79 {approx = true} : vector<64x1xf32> -> vector<64x1xf32>
    %81 = vector.broadcast %80 : vector<64x1xf32> to vector<64x64xf32>
    %82 = arith.mulf %77, %81 : vector<64x64xf32>
    %83 = arith.addf %56, %82 : vector<64x64xf32>
    %84 = arith.truncf %82 : vector<64x64xf32> to vector<64x64xbf16>
    %cst_30 = arith.constant dense<0.000000e+00> : vector<64x16xf32>
    %85 = tpu.matmul %84, %68, %cst_30 {dimension_numbers = #tpu.dot_dimension_numbers<[1], [0], [0], [1], [0, 0, 1, 1], [], []>} : vector<64x64xbf16>, vector<64x16xbf16>, vector<64x16xf32> -> vector<64x16xf32>
    %86 = arith.truncf %85 : vector<64x16xf32> to vector<64x16xbf16>
    %c16 = arith.constant 16 : index
    %c0_31 = arith.constant 0 : index
    %87 = vector.load %arg8[%c16, %c0_31] : memref<48x48xbf16, #tpu.memory_space<vmem>>, vector<16x48xbf16>
    %cst_32 = arith.constant dense<0.000000e+00> : vector<64x48xf32>
    %88 = tpu.matmul %86, %87, %cst_32 {dimension_numbers = #tpu.dot_dimension_numbers<[1], [0], [0], [1], [0, 0, 1, 1], [], []>} : vector<64x16xbf16>, vector<16x48xbf16>, vector<64x48xf32> -> vector<64x48xf32>
    %89 = arith.addf %62, %88 : vector<64x48xf32>
    %90 = vector.extract_strided_slice %33 {offsets = [0, 32], sizes = [64, 16], strides = [1, 1]} : vector<64x144xf32> to vector<64x16xf32>
    %91 = arith.truncf %90 : vector<64x16xf32> to vector<64x16xbf16>
    %92 = vector.extract_strided_slice %33 {offsets = [0, 80], sizes = [64, 16], strides = [1, 1]} : vector<64x144xf32> to vector<64x16xf32>
    %93 = arith.truncf %92 : vector<64x16xf32> to vector<64x16xbf16>
    %94 = vector.extract_strided_slice %33 {offsets = [0, 128], sizes = [64, 16], strides = [1, 1]} : vector<64x144xf32> to vector<64x16xf32>
    %95 = arith.truncf %94 : vector<64x16xf32> to vector<64x16xbf16>
    %cst_33 = arith.constant dense<0.000000e+00> : vector<64x64xf32>
    %96 = tpu.matmul %91, %93, %cst_33 {dimension_numbers = #tpu.dot_dimension_numbers<[1], [1], [0], [0], [0, 0, 1, 0], [], []>} : vector<64x16xbf16>, vector<64x16xbf16>, vector<64x64xf32> -> vector<64x64xf32>
    %cst_34 = arith.constant 2.500000e-01 : f32
    %97 = vector.broadcast %cst_34 : f32 to vector<64x64xf32>
    %98 = arith.mulf %96, %97 : vector<64x64xf32>
    %99 = arith.addf %98, %1 : vector<64x64xf32>
    %cst_35 = arith.constant dense<0xFF800000> : vector<64xf32>
    %100 = vector.multi_reduction <maximumf>, %99, %cst_35 [1] : vector<64x64xf32> to vector<64xf32>
    %101 = vector.shape_cast %100 : vector<64xf32> to vector<64x1xf32>
    %102 = vector.broadcast %101 : vector<64x1xf32> to vector<64x64xf32>
    %103 = arith.subf %99, %102 : vector<64x64xf32>
    %104 = math.exp %103 : vector<64x64xf32>
    %cst_36 = arith.constant dense<0.000000e+00> : vector<64xf32>
    %105 = vector.multi_reduction <add>, %104, %cst_36 [1] : vector<64x64xf32> to vector<64xf32>
    %106 = vector.shape_cast %105 : vector<64xf32> to vector<64x1xf32>
    %107 = tpu.reciprocal %106 {approx = true} : vector<64x1xf32> -> vector<64x1xf32>
    %108 = vector.broadcast %107 : vector<64x1xf32> to vector<64x64xf32>
    %109 = arith.mulf %104, %108 : vector<64x64xf32>
    %110 = arith.addf %83, %109 : vector<64x64xf32>
    %111 = arith.truncf %109 : vector<64x64xf32> to vector<64x64xbf16>
    %cst_37 = arith.constant dense<0.000000e+00> : vector<64x16xf32>
    %112 = tpu.matmul %111, %95, %cst_37 {dimension_numbers = #tpu.dot_dimension_numbers<[1], [0], [0], [1], [0, 0, 1, 1], [], []>} : vector<64x64xbf16>, vector<64x16xbf16>, vector<64x16xf32> -> vector<64x16xf32>
    %113 = arith.truncf %112 : vector<64x16xf32> to vector<64x16xbf16>
    %c32 = arith.constant 32 : index
    %c0_38 = arith.constant 0 : index
    %114 = vector.load %arg8[%c32, %c0_38] : memref<48x48xbf16, #tpu.memory_space<vmem>>, vector<16x48xbf16>
    %cst_39 = arith.constant dense<0.000000e+00> : vector<64x48xf32>
    %115 = tpu.matmul %113, %114, %cst_39 {dimension_numbers = #tpu.dot_dimension_numbers<[1], [0], [0], [1], [0, 0, 1, 1], [], []>} : vector<64x16xbf16>, vector<16x48xbf16>, vector<64x48xf32> -> vector<64x48xf32>
    %116 = arith.addf %89, %115 : vector<64x48xf32>
    %117 = arith.addf %0, %116 : vector<64x48xf32>
    %c0_40 = arith.constant 0 : index
    %c0_41 = arith.constant 0 : index
    %118 = vector.load %arg9[%c0_40, %c0_41] : memref<1x48xf32, #tpu.memory_space<vmem>>, vector<1x48xf32>
    %119 = vector.broadcast %118 : vector<1x48xf32> to vector<64x48xf32>
    %120 = arith.addf %117, %119 : vector<64x48xf32>
    %c0_42 = arith.constant 0 : index
    %c0_43 = arith.constant 0 : index
    %121 = vector.load %arg10[%c0_42, %c0_43] : memref<1x48xf32, #tpu.memory_space<vmem>>, vector<1x48xf32>
    %c0_44 = arith.constant 0 : index
    %c0_45 = arith.constant 0 : index
    %122 = vector.load %arg11[%c0_44, %c0_45] : memref<1x48xf32, #tpu.memory_space<vmem>>, vector<1x48xf32>
    %cst_46 = arith.constant dense<0.000000e+00> : vector<64xf32>
    %123 = vector.multi_reduction <add>, %120, %cst_46 [1] : vector<64x48xf32> to vector<64xf32>
    %124 = vector.shape_cast %123 : vector<64xf32> to vector<64x1xf32>
    %cst_47 = arith.constant 4.800000e+01 : f32
    %125 = vector.broadcast %cst_47 : f32 to vector<64x1xf32>
    %126 = arith.divf %124, %125 : vector<64x1xf32>
    %127 = vector.broadcast %126 : vector<64x1xf32> to vector<64x48xf32>
    %128 = arith.subf %120, %127 : vector<64x48xf32>
    %129 = vector.broadcast %126 : vector<64x1xf32> to vector<64x48xf32>
    %130 = arith.subf %120, %129 : vector<64x48xf32>
    %131 = arith.mulf %128, %130 : vector<64x48xf32>
    %cst_48 = arith.constant dense<0.000000e+00> : vector<64xf32>
    %132 = vector.multi_reduction <add>, %131, %cst_48 [1] : vector<64x48xf32> to vector<64xf32>
    %133 = vector.shape_cast %132 : vector<64xf32> to vector<64x1xf32>
    %cst_49 = arith.constant 4.800000e+01 : f32
    %134 = vector.broadcast %cst_49 : f32 to vector<64x1xf32>
    %135 = arith.divf %133, %134 : vector<64x1xf32>
    %136 = vector.broadcast %126 : vector<64x1xf32> to vector<64x48xf32>
    %137 = arith.subf %120, %136 : vector<64x48xf32>
    %cst_50 = arith.constant 9.99999997E-7 : f32
    %138 = vector.broadcast %cst_50 : f32 to vector<64x1xf32>
    %139 = arith.addf %135, %138 : vector<64x1xf32>
    %140 = math.rsqrt %139 : vector<64x1xf32>
    %141 = vector.broadcast %140 : vector<64x1xf32> to vector<64x48xf32>
    %142 = arith.mulf %137, %141 : vector<64x48xf32>
    %143 = vector.broadcast %121 : vector<1x48xf32> to vector<64x48xf32>
    %144 = arith.mulf %142, %143 : vector<64x48xf32>
    %145 = vector.broadcast %122 : vector<1x48xf32> to vector<64x48xf32>
    %146 = arith.addf %144, %145 : vector<64x48xf32>
    %147 = arith.truncf %146 : vector<64x48xf32> to vector<64x48xbf16>
    %c0_51 = arith.constant 0 : index
    %c0_52 = arith.constant 0 : index
    %148 = vector.load %arg12[%c0_51, %c0_52] : memref<48x192xbf16, #tpu.memory_space<vmem>>, vector<48x192xbf16>
    %cst_53 = arith.constant dense<0.000000e+00> : vector<64x192xf32>
    %149 = tpu.matmul %147, %148, %cst_53 {dimension_numbers = #tpu.dot_dimension_numbers<[1], [0], [0], [1], [0, 0, 1, 1], [], []>} : vector<64x48xbf16>, vector<48x192xbf16>, vector<64x192xf32> -> vector<64x192xf32>
    %c0_54 = arith.constant 0 : index
    %c0_55 = arith.constant 0 : index
    %150 = vector.load %arg13[%c0_54, %c0_55] : memref<1x192xf32, #tpu.memory_space<vmem>>, vector<1x192xf32>
    %151 = vector.broadcast %150 : vector<1x192xf32> to vector<64x192xf32>
    %152 = arith.addf %149, %151 : vector<64x192xf32>
    %cst_56 = arith.constant 5.000000e-01 : f32
    %153 = vector.broadcast %cst_56 : f32 to vector<64x192xf32>
    %154 = arith.mulf %153, %152 : vector<64x192xf32>
    %cst_57 = arith.constant 0.707106769 : f32
    %155 = vector.broadcast %cst_57 : f32 to vector<64x192xf32>
    %156 = arith.mulf %152, %155 : vector<64x192xf32>
    %cst_58 = arith.constant 0.000000e+00 : f32
    %157 = vector.broadcast %cst_58 : f32 to vector<64x192xf32>
    %158 = arith.cmpf oge, %156, %157 : vector<64x192xf32>
    %cst_59 = arith.constant 1.000000e+00 : f32
    %cst_60 = arith.constant -1.000000e+00 : f32
    %159 = vector.broadcast %cst_59 : f32 to vector<64x192xf32>
    %160 = vector.broadcast %cst_60 : f32 to vector<64x192xf32>
    %161 = arith.select %158, %159, %160 : vector<64x192xi1>, vector<64x192xf32>
    %162 = math.absf %156 : vector<64x192xf32>
    %cst_61 = arith.constant 0.327591091 : f32
    %163 = vector.broadcast %cst_61 : f32 to vector<64x192xf32>
    %164 = arith.mulf %163, %162 : vector<64x192xf32>
    %cst_62 = arith.constant 1.000000e+00 : f32
    %165 = vector.broadcast %cst_62 : f32 to vector<64x192xf32>
    %166 = arith.addf %165, %164 : vector<64x192xf32>
    %cst_63 = arith.constant 1.000000e+00 : f32
    %167 = vector.broadcast %cst_63 : f32 to vector<64x192xf32>
    %168 = arith.divf %167, %166 : vector<64x192xf32>
    %cst_64 = arith.constant 1.06140542 : f32
    %169 = vector.broadcast %cst_64 : f32 to vector<64x192xf32>
    %170 = arith.mulf %169, %168 : vector<64x192xf32>
    %cst_65 = arith.constant -1.45315206 : f32
    %171 = vector.broadcast %cst_65 : f32 to vector<64x192xf32>
    %172 = arith.addf %170, %171 : vector<64x192xf32>
    %173 = arith.mulf %172, %168 : vector<64x192xf32>
    %cst_66 = arith.constant 1.42141378 : f32
    %174 = vector.broadcast %cst_66 : f32 to vector<64x192xf32>
    %175 = arith.addf %173, %174 : vector<64x192xf32>
    %176 = arith.mulf %175, %168 : vector<64x192xf32>
    %cst_67 = arith.constant -0.284496725 : f32
    %177 = vector.broadcast %cst_67 : f32 to vector<64x192xf32>
    %178 = arith.addf %176, %177 : vector<64x192xf32>
    %179 = arith.mulf %178, %168 : vector<64x192xf32>
    %cst_68 = arith.constant 0.254829586 : f32
    %180 = vector.broadcast %cst_68 : f32 to vector<64x192xf32>
    %181 = arith.addf %179, %180 : vector<64x192xf32>
    %182 = arith.mulf %181, %168 : vector<64x192xf32>
    %cst_69 = arith.constant 0.000000e+00 : f32
    %183 = vector.broadcast %cst_69 : f32 to vector<64x192xf32>
    %184 = arith.subf %183, %162 : vector<64x192xf32>
    %185 = arith.mulf %184, %162 : vector<64x192xf32>
    %186 = math.exp %185 : vector<64x192xf32>
    %187 = arith.mulf %182, %186 : vector<64x192xf32>
    %cst_70 = arith.constant 1.000000e+00 : f32
    %188 = vector.broadcast %cst_70 : f32 to vector<64x192xf32>
    %189 = arith.subf %188, %187 : vector<64x192xf32>
    %190 = arith.mulf %161, %189 : vector<64x192xf32>
    %cst_71 = arith.constant 1.000000e+00 : f32
    %191 = vector.broadcast %cst_71 : f32 to vector<64x192xf32>
    %192 = arith.addf %191, %190 : vector<64x192xf32>
    %193 = arith.mulf %154, %192 : vector<64x192xf32>
    %194 = arith.truncf %193 : vector<64x192xf32> to vector<64x192xbf16>
    %c0_72 = arith.constant 0 : index
    %c0_73 = arith.constant 0 : index
    %195 = vector.load %arg14[%c0_72, %c0_73] : memref<192x48xbf16, #tpu.memory_space<vmem>>, vector<192x48xbf16>
    %cst_74 = arith.constant dense<0.000000e+00> : vector<64x48xf32>
    %196 = tpu.matmul %194, %195, %cst_74 {dimension_numbers = #tpu.dot_dimension_numbers<[1], [0], [0], [1], [0, 0, 1, 1], [], []>} : vector<64x192xbf16>, vector<192x48xbf16>, vector<64x48xf32> -> vector<64x48xf32>
    %c0_75 = arith.constant 0 : index
    %c0_76 = arith.constant 0 : index
    %197 = vector.load %arg15[%c0_75, %c0_76] : memref<1x48xf32, #tpu.memory_space<vmem>>, vector<1x48xf32>
    %198 = vector.broadcast %197 : vector<1x48xf32> to vector<64x48xf32>
    %199 = arith.addf %196, %198 : vector<64x48xf32>
    %200 = arith.addf %120, %199 : vector<64x48xf32>
    %c0_77 = arith.constant 0 : index
    %c0_78 = arith.constant 0 : index
    %201 = vector.load %arg16[%c0_77, %c0_78] : memref<64x48xf32, #tpu.memory_space<vmem>>, vector<64x48xf32>
    tpu.vector_store %arg16[%c0_77, %c0_78], %200 {strides = array<i32>} : memref<64x48xf32, #tpu.memory_space<vmem>>, vector<64x48xf32>,
    %c0_79 = arith.constant 0 : index
    %c0_80 = arith.constant 0 : index
    %202 = vector.load %arg2[%c0_79, %c0_80] : memref<2x64xf32, #tpu.memory_space<vmem>>, vector<2x64xf32>
    %cst_81 = arith.constant dense<0.000000e+00> : vector<2x64xf32>
    %203 = tpu.matmul %202, %110, %cst_81 {dimension_numbers = #tpu.dot_dimension_numbers<[1], [1], [0], [0], [0, 0, 1, 0], [], []>} : vector<2x64xf32>, vector<64x64xf32>, vector<2x64xf32> -> vector<2x64xf32>
    %c0_82 = arith.constant 0 : index
    %c0_83 = arith.constant 0 : index
    %204 = vector.load %arg3[%c0_82, %c0_83] : memref<64x32xf32, #tpu.memory_space<vmem>>, vector<64x32xf32>
    %cst_84 = arith.constant dense<0.000000e+00> : vector<2x32xf32>
    %205 = tpu.matmul %203, %204, %cst_84 {dimension_numbers = #tpu.dot_dimension_numbers<[1], [0], [0], [1], [0, 0, 1, 1], [], []>} : vector<2x64xf32>, vector<64x32xf32>, vector<2x32xf32> -> vector<2x32xf32>
    %cst_85 = arith.constant 0.333333343 : f32
    %206 = vector.broadcast %cst_85 : f32 to vector<2x32xf32>
    %207 = arith.mulf %205, %206 : vector<2x32xf32>
    %c0_86 = arith.constant 0 : index
    %c0_87 = arith.constant 0 : index
    %208 = vector.load %arg17[%c0_86, %c0_87] : memref<2x32xf32, #tpu.memory_space<vmem>>, vector<2x32xf32>
    tpu.vector_store %arg17[%c0_86, %c0_87], %207 {strides = array<i32>} : memref<2x32xf32, #tpu.memory_space<vmem>>, vector<2x32xf32>,
    return
  }
}

</mosaic_0001>

<llo_original>
// kernel: _lambda_.7
$region0: #{_lambda_.7}
  #allocation0 [shape = 'u32[]', space=smem, size = 0x4, offset = 0x4, fixed_abs, tag = 'smem constant byte address 0x4 - core index']
  #allocation1 [shape = 'u32[72,128]{1,0:T(1,128)}', space=vmem, size = 0x9000, scoped, tag = 'internal scratch']
  %s0 = inlined_call_operand.vmem [shape: f32[8,192], index: 0, kind: input, shape index: {}]
  %s1 = inlined_call_operand.vmem [shape: bf16[192,48], index: 1, kind: input, shape index: {}]
  %s2 = inlined_call_operand.vmem [shape: f32[1,48], index: 2, kind: input, shape index: {}]
  %s3 = inlined_call_operand.vmem [shape: f32[8,48], index: 3, kind: output, shape index: {}]
  %s4 = sld [smem:[#allocation0]]
  $region22: #{_lambda_.7} parent=0
    _
  %s6 = ssub.s32 1, %s4
  %s7 = scalar_select 0, %s6, %s4
  // Predicated region
  $region2: #{_lambda_.7} parent=0 // pred_check
    _
  $region3: #{_lambda_.7} parent=0 // pred_check_branch
    %9 = sbr.rel (0) target = $region5
  $region4: #{_lambda_.7} parent=0 // pred_region
    _
  $region5: #{_lambda_.7} parent=0 // pred_fallthru
    _
  // Predicated region
  $region6: #{_lambda_.7} parent=0 // pred_check
    _
  $region7: #{_lambda_.7} parent=0 // pred_check_branch
    %11 = sbr.rel (0) target = $region9
  $region8: #{_lambda_.7} parent=0 // pred_region
    _
  $region9: #{_lambda_.7} parent=0 // pred_fallthru
    _
  // Predicated region
  $region10: #{_lambda_.7} parent=0 // pred_check
    _
  $region11: #{_lambda_.7} parent=0 // pred_check_branch
    %13 = sbr.rel (0) target = $region13
  $region12: #{_lambda_.7} parent=0 // pred_region
    _
  $region13: #{_lambda_.7} parent=0 // pred_fallthru
    _
  %v15 = vld [vmem:[%s0] sm:$0xff]
  %v16 = vld [vmem:[%s0 + $0x8] sm:$0xff]
  %v17 = vpack.c.bf16 %v15, %v15
  %v18 = vpack.c.bf16 %v16, %v16
  %v19 = vld [vmem:[%s1] sm:$0xf]
  %v20 = vld [vmem:[%s1 + $0x4] sm:$0xf]
  %v21 = vld [vmem:[%s1 + $0x8] sm:$0xf]
  %v22 = vld [vmem:[%s1 + $0xc] sm:$0xf]
  %v23 = vld [vmem:[%s1 + $0x10] sm:$0xf]
  %v24 = vld [vmem:[%s1 + $0x14] sm:$0xf]
  %v25 = vld [vmem:[%s1 + $0x18] sm:$0xf]
  %v26 = vld [vmem:[%s1 + $0x1c] sm:$0xf]
  %v27 = vld [vmem:[%s1 + $0x20] sm:$0xf]
  %v28 = vld [vmem:[%s1 + $0x24] sm:$0xf]
  %v29 = vld [vmem:[%s1 + $0x28] sm:$0xf]
  %v30 = vld [vmem:[%s1 + $0x2c] sm:$0xf]
  %v31 = vld [vmem:[%s1 + $0x30] sm:$0xf]
  %v32 = vld [vmem:[%s1 + $0x34] sm:$0xf]
  %v33 = vld [vmem:[%s1 + $0x38] sm:$0xf]
  %v34 = vld [vmem:[%s1 + $0x3c] sm:$0xf]
  %v35 = vld [vmem:[%s1 + $0x40] sm:$0xf]
  %v36 = vld [vmem:[%s1 + $0x44] sm:$0xf]
  %v37 = vld [vmem:[%s1 + $0x48] sm:$0xf]
  %v38 = vld [vmem:[%s1 + $0x4c] sm:$0xf]
  %v39 = vld [vmem:[%s1 + $0x50] sm:$0xf]
  %v40 = vld [vmem:[%s1 + $0x54] sm:$0xf]
  %v41 = vld [vmem:[%s1 + $0x58] sm:$0xf]
  %v42 = vld [vmem:[%s1 + $0x5c] sm:$0xf]
  %v43 = vld [vmem:[%s2] sm:$0x1]
  %v45 = vperm.slane %v43, 0
  %v71 = vunpack.c.l.b16 %v19
  %v72 = vunpack.c.l.b16 %v20
  %v73 = vunpack.c.l.b16 %v21
  %v74 = vunpack.c.l.b16 %v22
  %v75 = vunpack.c.l.b16 %v23
  %v76 = vunpack.c.l.b16 %v24
  %v77 = vunpack.c.l.b16 %v25
  %v78 = vunpack.c.l.b16 %v26
  %v79 = vunpack.c.l.b16 %v27
  %v80 = vunpack.c.l.b16 %v28
  %v81 = vunpack.c.l.b16 %v29
  %v82 = vunpack.c.l.b16 %v30
  %v83 = vunpack.c.l.b16 %v31
  %v84 = vunpack.c.l.b16 %v32
  %v85 = vunpack.c.l.b16 %v33
  %v86 = vunpack.c.l.b16 %v34
  %v87 = vunpack.c.l.b16 %v35
  %v88 = vunpack.c.l.b16 %v36
  %v89 = vunpack.c.l.b16 %v37
  %v90 = vunpack.c.l.b16 %v38
  %v91 = vunpack.c.l.b16 %v39
  %v92 = vunpack.c.l.b16 %v40
  %v93 = vunpack.c.l.b16 %v41
  %v94 = vunpack.c.l.b16 %v42
  %v95 = vpack.c.b16 %v72, %v71
  %v96 = vpack.c.b16 %v74, %v73
  %v97 = vpack.c.b16 %v76, %v75
  %v98 = vpack.c.b16 %v78, %v77
  %v99 = vpack.c.b16 %v80, %v79
  %v100 = vpack.c.b16 %v82, %v81
  %v101 = vpack.c.b16 %v84, %v83
  %v102 = vpack.c.b16 %v86, %v85
  %v103 = vpack.c.b16 %v88, %v87
  %v104 = vpack.c.b16 %v90, %v89
  %v105 = vpack.c.b16 %v92, %v91
  %v106 = vpack.c.b16 %v94, %v93
  %vm119 = vcmask 523264
  %v121 = vsel %vm119, %v18, 0
  %123 = vmatpush.bf16.msra.mxu0 %v102
  %124 = vmatpush.bf16.msra.mxu0 %v101
  %125 = vmatpush.bf16.msra.mxu0 %v100
  %126 = vmatpush.bf16.msra.mxu0 %v99
  %127 = vmatpush.bf16.msra.mxu0 %v98
  %128 = vmatpush.bf16.msra.mxu0 %v97
  %129 = vmatpush.bf16.msra.mxu0 %v96
  %130 = vmatpush.bf16.msra.mxu0 %v95
  %131 = vmatmul.bf16.gmra.mxu0 %v17
  %v132 = vpop.f32.mrf.mxu0
  %v133 = vadd.f32 %v45, %v132
  %v134 = vpop.f32.mrf.mxu0
  %135 = vdwg.mxu0
  %136 = vmatpush.bf16.msra.mxu0 0
  %137 = vmatpush.bf16.msra.mxu0 0
  %138 = vmatpush.bf16.msra.mxu0 0
  %139 = vmatpush.bf16.msra.mxu0 0
  %140 = vmatpush.bf16.msra.mxu0 %v106
  %141 = vmatpush.bf16.msra.mxu0 %v105
  %142 = vmatpush.bf16.msra.mxu0 %v104
  %143 = vmatpush.bf16.msra.mxu0 %v103
  %144 = vmatmul.bf16.gmra.mxu0 %v121
  %v145 = vpop.f32.mrf.mxu0
  %v146 = vadd.f32 %v133, %v145
  %v147 = vpop.f32.mrf.mxu0
  %148 = vdwg.mxu0
  %vm149 = vcmask 392192
  %150 = vst.msk [vmem:[%s3] sm:$0xff] %vm149, %v146
  // Predicated region
  $region14: #{_lambda_.7} parent=0 // pred_check
    _
  $region15: #{_lambda_.7} parent=0 // pred_check_branch
    %152 = sbr.rel (0) target = $region17
  $region16: #{_lambda_.7} parent=0 // pred_region
    _
  $region17: #{_lambda_.7} parent=0 // pred_fallthru
    _
  // Predicated region
  $region18: #{_lambda_.7} parent=0 // pred_check
    _
  $region19: #{_lambda_.7} parent=0 // pred_check_branch
    %154 = sbr.rel (0) target = $region21
  $region20: #{_lambda_.7} parent=0 // pred_region
    _
  $region21: #{_lambda_.7} parent=0 // pred_fallthru
    _

// kernel: _lambda_.8
$region0: #{_lambda_.8}
  #allocation0 [shape = 'u32[]', space=smem, size = 0x4, offset = 0x4, fixed_abs, tag = 'smem constant byte address 0x4 - core index']
  #allocation1 [shape = 'u32[72,128]{1,0:T(1,128)}', space=vmem, size = 0x9000, scoped, tag = 'internal scratch']
  %s0 = inlined_call_operand.vmem [shape: f32[16,48], index: 0, kind: input, shape index: {}]
  %s1 = inlined_call_operand.vmem [shape: f32[16,16], index: 1, kind: input, shape index: {}]
  %s2 = inlined_call_operand.vmem [shape: f32[2,16], index: 2, kind: input, shape index: {}]
  %s3 = inlined_call_operand.vmem [shape: f32[16,8], index: 3, kind: input, shape index: {}]
  %s4 = inlined_call_operand.vmem [shape: f32[1,48], index: 4, kind: input, shape index: {}, may-alias: {4,10}]
  %s5 = inlined_call_operand.vmem [shape: f32[1,48], index: 5, kind: input, shape index: {}, may-alias: {5,9,11,15}]
  %s6 = inlined_call_operand.vmem [shape: bf16[48,144], index: 6, kind: input, shape index: {}]
  %s7 = inlined_call_operand.vmem [shape: f32[1,144], index: 7, kind: input, shape index: {}]
  %s8 = inlined_call_operand.vmem [shape: bf16[48,48], index: 8, kind: input, shape index: {}]
  %s9 = inlined_call_operand.vmem [shape: f32[1,48], index: 9, kind: input, shape index: {}, may-alias: {5,9,11,15}]
  %s10 = inlined_call_operand.vmem [shape: f32[1,48], index: 10, kind: input, shape index: {}, may-alias: {4,10}]
  %s11 = inlined_call_operand.vmem [shape: f32[1,48], index: 11, kind: input, shape index: {}, may-alias: {5,9,11,15}]
  %s12 = inlined_call_operand.vmem [shape: bf16[48,192], index: 12, kind: input, shape index: {}]
  %s13 = inlined_call_operand.vmem [shape: f32[1,192], index: 13, kind: input, shape index: {}]
  %s14 = inlined_call_operand.vmem [shape: bf16[192,48], index: 14, kind: input, shape index: {}]
  %s15 = inlined_call_operand.vmem [shape: f32[1,48], index: 15, kind: input, shape index: {}, may-alias: {5,9,11,15}]
  %s16 = inlined_call_operand.vmem [shape: f32[16,48], index: 16, kind: output, shape index: {0}]
  %s17 = inlined_call_operand.vmem [shape: f32[2,8], index: 17, kind: output, shape index: {1}]
  %18 = xla_tuple %s16, %s17
  %s19 = sld [smem:[#allocation0]]
  $region82: #{_lambda_.8} parent=0
    _
  %s21 = ssub.s32 1, %s19
  %s22 = scalar_select 0, %s21, %s19
  // Predicated region
  $region2: #{_lambda_.8} parent=0 // pred_check
    _
  $region3: #{_lambda_.8} parent=0 // pred_check_branch
    %24 = sbr.rel (0) target = $region5
  $region4: #{_lambda_.8} parent=0 // pred_region
    _
  $region5: #{_lambda_.8} parent=0 // pred_fallthru
    _
  // Predicated region
  $region6: #{_lambda_.8} parent=0 // pred_check
    _
  $region7: #{_lambda_.8} parent=0 // pred_check_branch
    %26 = sbr.rel (0) target = $region9
  $region8: #{_lambda_.8} parent=0 // pred_region
    _
  $region9: #{_lambda_.8} parent=0 // pred_fallthru
    _
  // Predicated region
  $region10: #{_lambda_.8} parent=0 // pred_check
    _
  $region11: #{_lambda_.8} parent=0 // pred_check_branch
    %28 = sbr.rel (0) target = $region13
  $region12: #{_lambda_.8} parent=0 // pred_region
    _
  $region13: #{_lambda_.8} parent=0 // pred_fallthru
    _
  // Predicated region
  $region14: #{_lambda_.8} parent=0 // pred_check
    _
  $region15: #{_lambda_.8} parent=0 // pred_check_branch
    %30 = sbr.rel (0) target = $region17
  $region16: #{_lambda_.8} parent=0 // pred_region
    _
  $region17: #{_lambda_.8} parent=0 // pred_fallthru
    _
  // Predicated region
  $region18: #{_lambda_.8} parent=0 // pred_check
    _
  $region19: #{_lambda_.8} parent=0 // pred_check_branch
    %32 = sbr.rel (0) target = $region21
  $region20: #{_lambda_.8} parent=0 // pred_region
    _
  $region21: #{_lambda_.8} parent=0 // pred_fallthru
    _
  // Predicated region
  $region22: #{_lambda_.8} parent=0 // pred_check
    _
  $region23: #{_lambda_.8} parent=0 // pred_check_branch
    %34 = sbr.rel (0) target = $region25
  $region24: #{_lambda_.8} parent=0 // pred_region
    _
  $region25: #{_lambda_.8} parent=0 // pred_fallthru
    _
  // Predicated region
  $region26: #{_lambda_.8} parent=0 // pred_check
    _
  $region27: #{_lambda_.8} parent=0 // pred_check_branch
    %36 = sbr.rel (0) target = $region29
  $region28: #{_lambda_.8} parent=0 // pred_region
    _
  $region29: #{_lambda_.8} parent=0 // pred_fallthru
    _
  // Predicated region
  $region30: #{_lambda_.8} parent=0 // pred_check
    _
  $region31: #{_lambda_.8} parent=0 // pred_check_branch
    %38 = sbr.rel (0) target = $region33
  $region32: #{_lambda_.8} parent=0 // pred_region
    _
  $region33: #{_lambda_.8} parent=0 // pred_fallthru
    _
  // Predicated region
  $region34: #{_lambda_.8} parent=0 // pred_check
    _
  $region35: #{_lambda_.8} parent=0 // pred_check_branch
    %40 = sbr.rel (0) target = $region37
  $region36: #{_lambda_.8} parent=0 // pred_region
    _
  $region37: #{_lambda_.8} parent=0 // pred_fallthru
    _
  // Predicated region
  $region38: #{_lambda_.8} parent=0 // pred_check
    _
  $region39: #{_lambda_.8} parent=0 // pred_check_branch
    %42 = sbr.rel (0) target = $region41
  $region40: #{_lambda_.8} parent=0 // pred_region
    _
  $region41: #{_lambda_.8} parent=0 // pred_fallthru
    _
  // Predicated region
  $region42: #{_lambda_.8} parent=0 // pred_check
    _
  $region43: #{_lambda_.8} parent=0 // pred_check_branch
    %44 = sbr.rel (0) target = $region45
  $region44: #{_lambda_.8} parent=0 // pred_region
    _
  $region45: #{_lambda_.8} parent=0 // pred_fallthru
    _
  // Predicated region
  $region46: #{_lambda_.8} parent=0 // pred_check
    _
  $region47: #{_lambda_.8} parent=0 // pred_check_branch
    %46 = sbr.rel (0) target = $region49
  $region48: #{_lambda_.8} parent=0 // pred_region
    _
  $region49: #{_lambda_.8} parent=0 // pred_fallthru
    _
  // Predicated region
  $region50: #{_lambda_.8} parent=0 // pred_check
    _
  $region51: #{_lambda_.8} parent=0 // pred_check_branch
    %48 = sbr.rel (0) target = $region53
  $region52: #{_lambda_.8} parent=0 // pred_region
    _
  $region53: #{_lambda_.8} parent=0 // pred_fallthru
    _
  // Predicated region
  $region54: #{_lambda_.8} parent=0 // pred_check
    _
  $region55: #{_lambda_.8} parent=0 // pred_check_branch
    %50 = sbr.rel (0) target = $region57
  $region56: #{_lambda_.8} parent=0 // pred_region
    _
  $region57: #{_lambda_.8} parent=0 // pred_fallthru
    _
  // Predicated region
  $region58: #{_lambda_.8} parent=0 // pred_check
    _
  $region59: #{_lambda_.8} parent=0 // pred_check_branch
    %52 = sbr.rel (0) target = $region61
  $region60: #{_lambda_.8} parent=0 // pred_region
    _
  $region61: #{_lambda_.8} parent=0 // pred_fallthru
    _
  // Predicated region
  $region62: #{_lambda_.8} parent=0 // pred_check
    _
  $region63: #{_lambda_.8} parent=0 // pred_check_branch
    %54 = sbr.rel (0) target = $region65
  $region64: #{_lambda_.8} parent=0 // pred_region
    _
  $region65: #{_lambda_.8} parent=0 // pred_fallthru
    _
  %v56 = vld [vmem:[%s0] sm:$0xff]
  %v57 = vld [vmem:[%s0 + $0x8] sm:$0xff]
  %v58 = vld [vmem:[%s1] sm:$0xff]
  %v59 = vld [vmem:[%s1 + $0x8] sm:$0xff]
  %v60 = vld [vmem:[%s4] sm:$0x1]
  %v61 = vld [vmem:[%s5] sm:$0x1]
  %vm62 = vcmask 392192
  %v63 = vsel %vm62, %v56, 0.0
  %64 = vadd.xlane.f32.xlu0 %v63
  %v65 = vpop.xlane.xlu0 %64
  %v66 = vsel %vm62, %v57, 0.0
  %67 = vadd.xlane.f32.xlu0 %v66
  %v68 = vpop.xlane.xlu0 %67
  %v69 = vrcp.pop 48.0
  %v70 = vmul.f32 48.0, %v69
  %v71 = vsub.f32 1.0, %v70
  %v72 = vmul.f32 %v69, %v71
  %v73 = vadd.f32 %v69, %v72
  %vm74 = vweird.f32 %v69
  %v75 = vsel %vm74, %v69, %v73
  %v76 = vmul.f32 %v65, %v75
  %v77 = vmul.f32 %v68, %v75
  %v78 = vsub.f32 %v56, %v76
  %v79 = vsub.f32 %v57, %v77
  %v80 = vmul.f32 %v78, %v78
  %v81 = vmul.f32 %v79, %v79
  %v82 = vsel %vm62, %v80, 0.0
  %83 = vadd.xlane.f32.xlu0 %v82
  %v84 = vpop.xlane.xlu0 %83
  %v85 = vsel %vm62, %v81, 0.0
  %86 = vadd.xlane.f32.xlu0 %v85
  %v87 = vpop.xlane.xlu0 %86
  %v88 = vmul.f32 %v84, %v75
  %v89 = vmul.f32 %v87, %v75
  %v90 = vadd.f32 %v88, 1e-06
  %v91 = vadd.f32 %v89, 1e-06
  %v92 = vrsqrt.pop %v90
  %v93 = vmul.f32 %v92, %v90
  %v94 = vmul.f32 %v93, %v92
  %v95 = vmul.f32 0.5, %v94
  %v96 = vsub.f32 1.5, %v95
  %v97 = vmul.f32 %v92, %v96
  %vm98 = vweird.f32 %v90
  %vm99 = vweird.f32 %v92
  %vm100 = vmor %vm98, %vm99
  %v101 = vsel %vm100, %v92, %v97
  %v102 = vrsqrt.pop %v91
  %v103 = vmul.f32 %v102, %v91
  %v104 = vmul.f32 %v103, %v102
  %v105 = vmul.f32 0.5, %v104
  %v106 = vsub.f32 1.5, %v105
  %v107 = vmul.f32 %v102, %v106
  %vm108 = vweird.f32 %v91
  %vm109 = vweird.f32 %v102
  %vm110 = vmor %vm108, %vm109
  %v111 = vsel %vm110, %v102, %v107
  %v112 = vmul.f32 %v78, %v101
  %v113 = vmul.f32 %v79, %v111
  %v115 = vperm.slane %v60, 0
  %v117 = vmul.f32 %v112, %v115
  %v118 = vmul.f32 %v113, %v115
  %v120 = vperm.slane %v61, 0
  %v122 = vadd.f32 %v117, %v120
  %v123 = vadd.f32 %v118, %v120
  %v124 = vpack.c.bf16 %v123, %v122
  %v125 = vld [vmem:[%s6] sm:$0xff]
  %v126 = vld [vmem:[%s6 + $0x8] sm:$0xff]
  %v127 = vld [vmem:[%s6 + $0x10] sm:$0xff]
  %v128 = vld [vmem:[%s6 + $0x18] sm:$0xff]
  %v129 = vld [vmem:[%s6 + $0x20] sm:$0xff]
  %v130 = vld [vmem:[%s6 + $0x28] sm:$0xff]
  %v131 = vld [vmem:[%s7] sm:$0x3]
  %v133 = vperm.slane %v131, 0
  %v134 = vperm.slane %v131, 1
  %v143 = vunpack.c.l.b16 %v125
  %v144 = vunpack.c.h.b16 %v125
  %v145 = vunpack.c.l.b16 %v126
  %v146 = vunpack.c.h.b16 %v126
  %v147 = vunpack.c.l.b16 %v127
  %v148 = vunpack.c.h.b16 %v127
  %v149 = vunpack.c.l.b16 %v128
  %v150 = vunpack.c.h.b16 %v128
  %v151 = vunpack.c.l.b16 %v129
  %v152 = vunpack.c.h.b16 %v129
  %v153 = vunpack.c.l.b16 %v130
  %v154 = vunpack.c.h.b16 %v130
  %v155 = vpack.c.b16 %v145, %v143
  %v156 = vpack.c.b16 %v146, %v144
  %v157 = vpack.c.b16 %v149, %v147
  %v158 = vpack.c.b16 %v150, %v148
  %v159 = vpack.c.b16 %v153, %v151
  %v160 = vpack.c.b16 %v154, %v152
  %v168 = vsel %vm62, %v124, 0
  %170 = vmatpush.bf16.msra.mxu0 0
  %171 = vmatpush.bf16.msra.mxu0 0
  %172 = vmatpush.bf16.msra.mxu0 0
  %173 = vmatpush.bf16.msra.mxu0 0
  %174 = vmatpush.bf16.msra.mxu0 0
  %175 = vmatpush.bf16.msra.mxu0 %v159
  %176 = vmatpush.bf16.msra.mxu0 %v157
  %177 = vmatpush.bf16.msra.mxu0 %v155
  %178 = vmatmul.bf16.gmra.mxu0 %v168
  %v179 = vpop.f32.mrf.mxu0
  %v180 = vadd.f32 %v133, %v179
  %v181 = vpop.f32.mrf.mxu0
  %v182 = vadd.f32 %v133, %v181
  %183 = vdwg.mxu0
  %184 = vmatpush.bf16.msra.mxu0 0
  %185 = vmatpush.bf16.msra.mxu0 0
  %186 = vmatpush.bf16.msra.mxu0 0
  %187 = vmatpush.bf16.msra.mxu0 0
  %188 = vmatpush.bf16.msra.mxu0 0
  %189 = vmatpush.bf16.msra.mxu0 %v160
  %190 = vmatpush.bf16.msra.mxu0 %v158
  %191 = vmatpush.bf16.msra.mxu0 %v156
  %192 = vmatmul.bf16.gmra.mxu0 %v168
  %v193 = vpop.f32.mrf.mxu0
  %v194 = vadd.f32 %v134, %v193
  %v195 = vpop.f32.mrf.mxu0
  %v196 = vadd.f32 %v134, %v195
  %197 = vdwg.mxu0
  %v198 = vpack.c.bf16 %v182, %v180
  %200 = vrot.lane.b32.xlu0 %v198, 80
  %v201 = vpop.permute.xlu0 %200
  %vm202 = vcmask 130048
  %v204 = vsel %vm202, %v198, 0
  %v207 = vsel %vm202, %v201, 0
  %209 = vmatpush.bf16.xpose.msra.mxu0 0
  %210 = vmatpush.bf16.xpose.msra.mxu0 0
  %211 = vmatpush.bf16.xpose.msra.mxu0 0
  %212 = vmatpush.bf16.xpose.msra.mxu0 0
  %213 = vmatpush.bf16.xpose.msra.mxu0 0
  %214 = vmatpush.bf16.xpose.msra.mxu0 0
  %215 = vmatpush.bf16.xpose.msra.mxu0 0
  %216 = vmatpush.bf16.xpose.msra.mxu0 %v207
  %217 = vmatmul.bf16.gmra.mxu0 %v204
  %v218 = vpop.f32.mrf.mxu0
  %v219 = vadd.f32 0.0, %v218
  %v220 = vpop.f32.mrf.mxu0
  %v221 = vadd.f32 0.0, %v220
  %222 = vdwg.mxu0
  %v223 = vmul.f32 %v219, 0.25
  %v224 = vmul.f32 %v221, 0.25
  %v225 = vadd.f32 %v223, %v58
  %v226 = vadd.f32 %v224, %v59
  %v227 = vsel %vm202, %v225, -inf
  %228 = vmax.xlane.f32.xlu0 %v227
  %v229 = vpop.xlane.xlu0 %228
  %v230 = vsel %vm202, %v226, -inf
  %231 = vmax.xlane.f32.xlu0 %v230
  %v232 = vpop.xlane.xlu0 %231
  %v233 = vsub.f32 %v225, %v229
  %v234 = vsub.f32 %v226, %v232
  %v235 = vmul.f32 %v233, 1.442695
  %v236 = vpow.pop %v235
  %v237 = vmul.f32 %v234, 1.442695
  %v238 = vpow.pop %v237
  %v239 = vsel %vm202, %v236, 0.0
  %240 = vadd.xlane.f32.xlu0 %v239
  %v241 = vpop.xlane.xlu0 %240
  %v242 = vsel %vm202, %v238, 0.0
  %243 = vadd.xlane.f32.xlu0 %v242
  %v244 = vpop.xlane.xlu0 %243
  %v245 = vrcp.pop %v241
  %v246 = vrcp.pop %v244
  %v247 = vmul.f32 %v236, %v245
  %v248 = vmul.f32 %v238, %v246
  %v249 = vadd.f32 %v247, 0.0
  %v250 = vadd.f32 %v248, 0.0
  %v251 = vpack.c.bf16 %v248, %v247
  %252 = vrot.lane.b32.xlu0 %v198, 32
  %v253 = vpop.permute.xlu0 %252
  %v256 = vsel %vm202, %v251, 0
  %258 = vmatpush.bf16.msra.mxu0 0
  %259 = vmatpush.bf16.msra.mxu0 0
  %260 = vmatpush.bf16.msra.mxu0 0
  %261 = vmatpush.bf16.msra.mxu0 0
  %262 = vmatpush.bf16.msra.mxu0 0
  %263 = vmatpush.bf16.msra.mxu0 0
  %264 = vmatpush.bf16.msra.mxu0 0
  %265 = vmatpush.bf16.msra.mxu0 %v253
  %266 = vmatmul.bf16.gmra.mxu0 %v256
  %v267 = vpop.f32.mrf.mxu0
  %v268 = vadd.f32 0.0, %v267
  %v269 = vpop.f32.mrf.mxu0
  %v270 = vadd.f32 0.0, %v269
  %271 = vdwg.mxu0
  %v272 = vpack.c.bf16 %v270, %v268
  %v273 = vld [vmem:[%s8] sm:$0xf]
  %v274 = vld [vmem:[%s8 + $0x4] sm:$0xf]
  %275 = vrot.lane.b32.xlu0 %v198, 112
  %v276 = vpop.permute.xlu0 %275
  %277 = vrot.lane.b32.xlu0 %v198, 64
  %v278 = vpop.permute.xlu0 %277
  %v280 = vsel %vm202, %v276, 0
  %v283 = vsel %vm202, %v278, 0
  %285 = vmatpush.bf16.xpose.msra.mxu0 0
  %286 = vmatpush.bf16.xpose.msra.mxu0 0
  %287 = vmatpush.bf16.xpose.msra.mxu0 0
  %288 = vmatpush.bf16.xpose.msra.mxu0 0
  %289 = vmatpush.bf16.xpose.msra.mxu0 0
  %290 = vmatpush.bf16.xpose.msra.mxu0 0
  %291 = vmatpush.bf16.xpose.msra.mxu0 0
  %292 = vmatpush.bf16.xpose.msra.mxu0 %v283
  %293 = vmatmul.bf16.gmra.mxu0 %v280
  %v294 = vpop.f32.mrf.mxu0
  %v295 = vadd.f32 0.0, %v294
  %v296 = vpop.f32.mrf.mxu0
  %v297 = vadd.f32 0.0, %v296
  %298 = vdwg.mxu0
  %v299 = vmul.f32 %v295, 0.25
  %v300 = vmul.f32 %v297, 0.25
  %v301 = vadd.f32 %v299, %v58
  %v302 = vadd.f32 %v300, %v59
  %v303 = vsel %vm202, %v301, -inf
  %304 = vmax.xlane.f32.xlu0 %v303
  %v305 = vpop.xlane.xlu0 %304
  %v306 = vsel %vm202, %v302, -inf
  %307 = vmax.xlane.f32.xlu0 %v306
  %v308 = vpop.xlane.xlu0 %307
  %v309 = vsub.f32 %v301, %v305
  %v310 = vsub.f32 %v302, %v308
  %v311 = vmul.f32 %v309, 1.442695
  %v312 = vpow.pop %v311
  %v313 = vmul.f32 %v310, 1.442695
  %v314 = vpow.pop %v313
  %v315 = vsel %vm202, %v312, 0.0
  %316 = vadd.xlane.f32.xlu0 %v315
  %v317 = vpop.xlane.xlu0 %316
  %v318 = vsel %vm202, %v314, 0.0
  %319 = vadd.xlane.f32.xlu0 %v318
  %v320 = vpop.xlane.xlu0 %319
  %v321 = vrcp.pop %v317
  %v322 = vrcp.pop %v320
  %v323 = vmul.f32 %v312, %v321
  %v324 = vmul.f32 %v314, %v322
  %v325 = vadd.f32 %v249, %v323
  %v326 = vadd.f32 %v250, %v324
  %v327 = vpack.c.bf16 %v324, %v323
  %328 = vrot.lane.b32.xlu0 %v198, 16
  %v329 = vpop.permute.xlu0 %328
  %v332 = vsel %vm202, %v327, 0
  %334 = vmatpush.bf16.msra.mxu0 0
  %335 = vmatpush.bf16.msra.mxu0 0
  %336 = vmatpush.bf16.msra.mxu0 0
  %337 = vmatpush.bf16.msra.mxu0 0
  %338 = vmatpush.bf16.msra.mxu0 0
  %339 = vmatpush.bf16.msra.mxu0 0
  %340 = vmatpush.bf16.msra.mxu0 0
  %341 = vmatpush.bf16.msra.mxu0 %v329
  %342 = vmatmul.bf16.gmra.mxu0 %v332
  %v343 = vpop.f32.mrf.mxu0
  %v344 = vadd.f32 0.0, %v343
  %v345 = vpop.f32.mrf.mxu0
  %v346 = vadd.f32 0.0, %v345
  %347 = vdwg.mxu0
  %v348 = vpack.c.bf16 %v346, %v344
  %v349 = vld [vmem:[%s8 + $0x8] sm:$0xf]
  %v350 = vld [vmem:[%s8 + $0xc] sm:$0xf]
  %v353 = vunpack.c.l.b16 %v349
  %v354 = vunpack.c.l.b16 %v350
  %v355 = vpack.c.b16 %v354, %v353
  %v358 = vsel %vm202, %v348, 0
  %360 = vmatpush.bf16.msra.mxu0 0
  %361 = vmatpush.bf16.msra.mxu0 0
  %362 = vmatpush.bf16.msra.mxu0 0
  %363 = vmatpush.bf16.msra.mxu0 0
  %364 = vmatpush.bf16.msra.mxu0 0
  %365 = vmatpush.bf16.msra.mxu0 0
  %366 = vmatpush.bf16.msra.mxu0 0
  %367 = vmatpush.bf16.msra.mxu0 %v355
  %368 = vmatmul.bf16.gmra.mxu0 %v358
  %v369 = vpop.f32.mrf.mxu0
  %v370 = vadd.f32 0.0, %v369
  %v371 = vpop.f32.mrf.mxu0
  %v372 = vadd.f32 0.0, %v371
  %373 = vdwg.mxu0
  %v376 = vunpack.c.l.b16 %v273
  %v377 = vunpack.c.l.b16 %v274
  %v378 = vpack.c.b16 %v377, %v376
  %v381 = vsel %vm202, %v272, 0
  %383 = vmatpush.bf16.msra.mxu0 0
  %384 = vmatpush.bf16.msra.mxu0 0
  %385 = vmatpush.bf16.msra.mxu0 0
  %386 = vmatpush.bf16.msra.mxu0 0
  %387 = vmatpush.bf16.msra.mxu0 0
  %388 = vmatpush.bf16.msra.mxu0 0
  %389 = vmatpush.bf16.msra.mxu0 0
  %390 = vmatpush.bf16.msra.mxu0 %v378
  %391 = vmatmul.bf16.gmra.mxu0 %v381
  %v392 = vpop.f32.mrf.mxu0
  %v393 = vadd.f32 %v370, %v392
  %v394 = vpop.f32.mrf.mxu0
  %v395 = vadd.f32 %v372, %v394
  %396 = vdwg.mxu0
  %v397 = vpack.c.bf16 %v196, %v194
  %398 = vrot.lane.b32.xlu0 %v198, 96
  %v399 = vpop.permute.xlu0 %398
  %400 = vrot.lane.b32.xlu0 %v198, 48
  %v401 = vpop.permute.xlu0 %400
  %v403 = vsel %vm202, %v399, 0
  %v406 = vsel %vm202, %v401, 0
  %408 = vmatpush.bf16.xpose.msra.mxu0 0
  %409 = vmatpush.bf16.xpose.msra.mxu0 0
  %410 = vmatpush.bf16.xpose.msra.mxu0 0
  %411 = vmatpush.bf16.xpose.msra.mxu0 0
  %412 = vmatpush.bf16.xpose.msra.mxu0 0
  %413 = vmatpush.bf16.xpose.msra.mxu0 0
  %414 = vmatpush.bf16.xpose.msra.mxu0 0
  %415 = vmatpush.bf16.xpose.msra.mxu0 %v406
  %416 = vmatmul.bf16.gmra.mxu0 %v403
  %v417 = vpop.f32.mrf.mxu0
  %v418 = vadd.f32 0.0, %v417
  %v419 = vpop.f32.mrf.mxu0
  %v420 = vadd.f32 0.0, %v419
  %421 = vdwg.mxu0
  %v422 = vmul.f32 %v418, 0.25
  %v423 = vmul.f32 %v420, 0.25
  %v424 = vadd.f32 %v422, %v58
  %v425 = vadd.f32 %v423, %v59
  %v426 = vsel %vm202, %v424, -inf
  %427 = vmax.xlane.f32.xlu0 %v426
  %v428 = vpop.xlane.xlu0 %427
  %v429 = vsel %vm202, %v425, -inf
  %430 = vmax.xlane.f32.xlu0 %v429
  %v431 = vpop.xlane.xlu0 %430
  %v432 = vsub.f32 %v424, %v428
  %v433 = vsub.f32 %v425, %v431
  %v434 = vmul.f32 %v432, 1.442695
  %v435 = vpow.pop %v434
  %v436 = vmul.f32 %v433, 1.442695
  %v437 = vpow.pop %v436
  %v438 = vsel %vm202, %v435, 0.0
  %439 = vadd.xlane.f32.xlu0 %v438
  %v440 = vpop.xlane.xlu0 %439
  %v441 = vsel %vm202, %v437, 0.0
  %442 = vadd.xlane.f32.xlu0 %v441
  %v443 = vpop.xlane.xlu0 %442
  %v444 = vrcp.pop %v440
  %v445 = vrcp.pop %v443
  %v446 = vmul.f32 %v435, %v444
  %v447 = vmul.f32 %v437, %v445
  %v448 = vadd.f32 %v325, %v446
  %v449 = vadd.f32 %v326, %v447
  %v450 = vpack.c.bf16 %v447, %v446
  %v452 = vsel %vm202, %v450, 0
  %454 = vmatpush.bf16.msra.mxu0 0
  %455 = vmatpush.bf16.msra.mxu0 0
  %456 = vmatpush.bf16.msra.mxu0 0
  %457 = vmatpush.bf16.msra.mxu0 0
  %458 = vmatpush.bf16.msra.mxu0 0
  %459 = vmatpush.bf16.msra.mxu0 0
  %460 = vmatpush.bf16.msra.mxu0 0
  %461 = vmatpush.bf16.msra.mxu0 %v397
  %462 = vmatmul.bf16.gmra.mxu0 %v452
  %v463 = vpop.f32.mrf.mxu0
  %v464 = vadd.f32 0.0, %v463
  %v465 = vpop.f32.mrf.mxu0
  %v466 = vadd.f32 0.0, %v465
  %467 = vdwg.mxu0
  %v468 = vpack.c.bf16 %v466, %v464
  %v469 = vld [vmem:[%s8 + $0x10] sm:$0xf]
  %v470 = vld [vmem:[%s8 + $0x14] sm:$0xf]
  %v473 = vunpack.c.l.b16 %v469
  %v474 = vunpack.c.l.b16 %v470
  %v475 = vpack.c.b16 %v474, %v473
  %v478 = vsel %vm202, %v468, 0
  %480 = vmatpush.bf16.msra.mxu0 0
  %481 = vmatpush.bf16.msra.mxu0 0
  %482 = vmatpush.bf16.msra.mxu0 0
  %483 = vmatpush.bf16.msra.mxu0 0
  %484 = vmatpush.bf16.msra.mxu0 0
  %485 = vmatpush.bf16.msra.mxu0 0
  %486 = vmatpush.bf16.msra.mxu0 0
  %487 = vmatpush.bf16.msra.mxu0 %v475
  %488 = vmatmul.bf16.gmra.mxu0 %v478
  %v489 = vpop.f32.mrf.mxu0
  %v490 = vadd.f32 0.0, %v489
  %v491 = vpop.f32.mrf.mxu0
  %v492 = vadd.f32 0.0, %v491
  %493 = vdwg.mxu0
  %v494 = vadd.f32 %v393, %v490
  %v495 = vadd.f32 %v395, %v492
  %v496 = vadd.f32 %v56, %v494
  %v497 = vadd.f32 %v57, %v495
  %v498 = vld [vmem:[%s9] sm:$0x1]
  %v500 = vperm.slane %v498, 0
  %v502 = vadd.f32 %v496, %v500
  %v503 = vadd.f32 %v497, %v500
  %v504 = vld [vmem:[%s10] sm:$0x1]
  %v505 = vld [vmem:[%s11] sm:$0x1]
  %v506 = vsel %vm62, %v502, 0.0
  %507 = vadd.xlane.f32.xlu0 %v506
  %v508 = vpop.xlane.xlu0 %507
  %v509 = vsel %vm62, %v503, 0.0
  %510 = vadd.xlane.f32.xlu0 %v509
  %v511 = vpop.xlane.xlu0 %510
  %v512 = vmul.f32 %v508, %v75
  %v513 = vmul.f32 %v511, %v75
  %v514 = vsub.f32 %v502, %v512
  %v515 = vsub.f32 %v503, %v513
  %v516 = vmul.f32 %v514, %v514
  %v517 = vmul.f32 %v515, %v515
  %v518 = vsel %vm62, %v516, 0.0
  %519 = vadd.xlane.f32.xlu0 %v518
  %v520 = vpop.xlane.xlu0 %519
  %v521 = vsel %vm62, %v517, 0.0
  %522 = vadd.xlane.f32.xlu0 %v521
  %v523 = vpop.xlane.xlu0 %522
  %v524 = vmul.f32 %v520, %v75
  %v525 = vmul.f32 %v523, %v75
  %v526 = vadd.f32 %v524, 1e-06
  %v527 = vadd.f32 %v525, 1e-06
  %v528 = vrsqrt.pop %v526
  %v529 = vmul.f32 %v528, %v526
  %v530 = vmul.f32 %v529, %v528
  %v531 = vmul.f32 0.5, %v530
  %v532 = vsub.f32 1.5, %v531
  %v533 = vmul.f32 %v528, %v532
  %vm534 = vweird.f32 %v526
  %vm535 = vweird.f32 %v528
  %vm536 = vmor %vm534, %vm535
  %v537 = vsel %vm536, %v528, %v533
  %v538 = vrsqrt.pop %v527
  %v539 = vmul.f32 %v538, %v527
  %v540 = vmul.f32 %v539, %v538
  %v541 = vmul.f32 0.5, %v540
  %v542 = vsub.f32 1.5, %v541
  %v543 = vmul.f32 %v538, %v542
  %vm544 = vweird.f32 %v527
  %vm545 = vweird.f32 %v538
  %vm546 = vmor %vm544, %vm545
  %v547 = vsel %vm546, %v538, %v543
  %v548 = vmul.f32 %v514, %v537
  %v549 = vmul.f32 %v515, %v547
  %v551 = vperm.slane %v504, 0
  %v553 = vmul.f32 %v548, %v551
  %v554 = vmul.f32 %v549, %v551
  %v556 = vperm.slane %v505, 0
  %v558 = vadd.f32 %v553, %v556
  %v559 = vadd.f32 %v554, %v556
  %v560 = vpack.c.bf16 %v559, %v558
  %v561 = vld [vmem:[%s12] sm:$0xff]
  %v562 = vld [vmem:[%s12 + $0x8] sm:$0xff]
  %v563 = vld [vmem:[%s12 + $0x10] sm:$0xff]
  %v564 = vld [vmem:[%s12 + $0x18] sm:$0xff]
  %v565 = vld [vmem:[%s12 + $0x20] sm:$0xff]
  %v566 = vld [vmem:[%s12 + $0x28] sm:$0xff]
  %v567 = vld [vmem:[%s13] sm:$0x3]
  %v569 = vperm.slane %v567, 0
  %v570 = vperm.slane %v567, 1
  %v579 = vunpack.c.l.b16 %v561
  %v580 = vunpack.c.h.b16 %v561
  %v581 = vunpack.c.l.b16 %v562
  %v582 = vunpack.c.h.b16 %v562
  %v583 = vunpack.c.l.b16 %v563
  %v584 = vunpack.c.h.b16 %v563
  %v585 = vunpack.c.l.b16 %v564
  %v586 = vunpack.c.h.b16 %v564
  %v587 = vunpack.c.l.b16 %v565
  %v588 = vunpack.c.h.b16 %v565
  %v589 = vunpack.c.l.b16 %v566
  %v590 = vunpack.c.h.b16 %v566
  %v591 = vpack.c.b16 %v581, %v579
  %v592 = vpack.c.b16 %v582, %v580
  %v593 = vpack.c.b16 %v585, %v583
  %v594 = vpack.c.b16 %v586, %v584
  %v595 = vpack.c.b16 %v589, %v587
  %v596 = vpack.c.b16 %v590, %v588
  %v604 = vsel %vm62, %v560, 0
  %606 = vmatpush.bf16.msra.mxu0 0
  %607 = vmatpush.bf16.msra.mxu0 0
  %608 = vmatpush.bf16.msra.mxu0 0
  %609 = vmatpush.bf16.msra.mxu0 0
  %610 = vmatpush.bf16.msra.mxu0 0
  %611 = vmatpush.bf16.msra.mxu0 %v595
  %612 = vmatpush.bf16.msra.mxu0 %v593
  %613 = vmatpush.bf16.msra.mxu0 %v591
  %614 = vmatmul.bf16.gmra.mxu0 %v604
  %v615 = vpop.f32.mrf.mxu0
  %v616 = vadd.f32 %v569, %v615
  %v617 = vpop.f32.mrf.mxu0
  %v618 = vadd.f32 %v569, %v617
  %619 = vdwg.mxu0
  %620 = vmatpush.bf16.msra.mxu0 0
  %621 = vmatpush.bf16.msra.mxu0 0
  %622 = vmatpush.bf16.msra.mxu0 0
  %623 = vmatpush.bf16.msra.mxu0 0
  %624 = vmatpush.bf16.msra.mxu0 0
  %625 = vmatpush.bf16.msra.mxu0 %v596
  %626 = vmatpush.bf16.msra.mxu0 %v594
  %627 = vmatpush.bf16.msra.mxu0 %v592
  %628 = vmatmul.bf16.gmra.mxu0 %v604
  %v629 = vpop.f32.mrf.mxu0
  %v630 = vadd.f32 %v570, %v629
  %v631 = vpop.f32.mrf.mxu0
  %v632 = vadd.f32 %v570, %v631
  %633 = vdwg.mxu0
  %v634 = vmul.f32 %v616, 0.5
  %v635 = vmul.f32 %v630, 0.5
  %v636 = vmul.f32 %v618, 0.5
  %v637 = vmul.f32 %v632, 0.5
  %v638 = vmul.f32 %v616, 0.70710677
  %v639 = vmul.f32 %v630, 0.70710677
  %v640 = vmul.f32 %v618, 0.70710677
  %v641 = vmul.f32 %v632, 0.70710677
  %vm642 = vcmp.ge.f32.partialorder %v638, 0.0
  %vm643 = vcmp.ge.f32.partialorder %v639, 0.0
  %vm644 = vcmp.ge.f32.partialorder %v640, 0.0
  %vm645 = vcmp.ge.f32.partialorder %v641, 0.0
  %v646 = vsel %vm642, 1.0, -1.0
  %v647 = vsel %vm643, 1.0, -1.0
  %v648 = vsel %vm644, 1.0, -1.0
  %v649 = vsel %vm645, 1.0, -1.0
  %v650 = vand.u32 2147483647, %v638
  %v651 = vand.u32 2147483647, %v639
  %v652 = vand.u32 2147483647, %v640
  %v653 = vand.u32 2147483647, %v641
  %v654 = vmul.f32 %v650, 0.3275911
  %v655 = vmul.f32 %v651, 0.3275911
  %v656 = vmul.f32 %v652, 0.3275911
  %v657 = vmul.f32 %v653, 0.3275911
  %v658 = vadd.f32 %v654, 1.0
  %v659 = vadd.f32 %v655, 1.0
  %v660 = vadd.f32 %v656, 1.0
  %v661 = vadd.f32 %v657, 1.0
  %v662 = vrcp.pop %v658
  %v663 = vmul.f32 %v658, %v662
  %v664 = vsub.f32 1.0, %v663
  %v665 = vmul.f32 %v662, %v664
  %v666 = vadd.f32 %v662, %v665
  %vm667 = vweird.f32 %v658
  %vm668 = vweird.f32 %v662
  %vm669 = vmor %vm667, %vm668
  %v670 = vsel %vm669, %v662, %v666
  %v671 = vand.u32 2147483647, %v658
  %vm672 = vcmp.eq.f32.partialorder %v671, 8.507059e+37
  %v673 = vand.u32 %v658, 2147483648
  %v674 = vor.u32 1.1754944e-38, %v673
  %v675 = vsel %vm672, %v674, %v670
  %v676 = vmul.f32 1.0, %v675
  %v677 = vrcp.pop %v659
  %v678 = vmul.f32 %v659, %v677
  %v679 = vsub.f32 1.0, %v678
  %v680 = vmul.f32 %v677, %v679
  %v681 = vadd.f32 %v677, %v680
  %vm682 = vweird.f32 %v659
  %vm683 = vweird.f32 %v677
  %vm684 = vmor %vm682, %vm683
  %v685 = vsel %vm684, %v677, %v681
  %v686 = vand.u32 2147483647, %v659
  %vm687 = vcmp.eq.f32.partialorder %v686, 8.507059e+37
  %v688 = vand.u32 %v659, 2147483648
  %v689 = vor.u32 1.1754944e-38, %v688
  %v690 = vsel %vm687, %v689, %v685
  %v691 = vmul.f32 1.0, %v690
  %v692 = vrcp.pop %v660
  %v693 = vmul.f32 %v660, %v692
  %v694 = vsub.f32 1.0, %v693
  %v695 = vmul.f32 %v692, %v694
  %v696 = vadd.f32 %v692, %v695
  %vm697 = vweird.f32 %v660
  %vm698 = vweird.f32 %v692
  %vm699 = vmor %vm697, %vm698
  %v700 = vsel %vm699, %v692, %v696
  %v701 = vand.u32 2147483647, %v660
  %vm702 = vcmp.eq.f32.partialorder %v701, 8.507059e+37
  %v703 = vand.u32 %v660, 2147483648
  %v704 = vor.u32 1.1754944e-38, %v703
  %v705 = vsel %vm702, %v704, %v700
  %v706 = vmul.f32 1.0, %v705
  %v707 = vrcp.pop %v661
  %v708 = vmul.f32 %v661, %v707
  %v709 = vsub.f32 1.0, %v708
  %v710 = vmul.f32 %v707, %v709
  %v711 = vadd.f32 %v707, %v710
  %vm712 = vweird.f32 %v661
  %vm713 = vweird.f32 %v707
  %vm714 = vmor %vm712, %vm713
  %v715 = vsel %vm714, %v707, %v711
  %v716 = vand.u32 2147483647, %v661
  %vm717 = vcmp.eq.f32.partialorder %v716, 8.507059e+37
  %v718 = vand.u32 %v661, 2147483648
  %v719 = vor.u32 1.1754944e-38, %v718
  %v720 = vsel %vm717, %v719, %v715
  %v721 = vmul.f32 1.0, %v720
  %v722 = vmul.f32 %v676, 1.0614054
  %v723 = vmul.f32 %v691, 1.0614054
  %v724 = vmul.f32 %v706, 1.0614054
  %v725 = vmul.f32 %v721, 1.0614054
  %v726 = vadd.f32 %v722, -1.4531521
  %v727 = vadd.f32 %v723, -1.4531521
  %v728 = vadd.f32 %v724, -1.4531521
  %v729 = vadd.f32 %v725, -1.4531521
  %v730 = vmul.f32 %v726, %v676
  %v731 = vmul.f32 %v727, %v691
  %v732 = vmul.f32 %v728, %v706
  %v733 = vmul.f32 %v729, %v721
  %v734 = vadd.f32 %v730, 1.4214138
  %v735 = vadd.f32 %v731, 1.4214138
  %v736 = vadd.f32 %v732, 1.4214138
  %v737 = vadd.f32 %v733, 1.4214138
  %v738 = vmul.f32 %v734, %v676
  %v739 = vmul.f32 %v735, %v691
  %v740 = vmul.f32 %v736, %v706
  %v741 = vmul.f32 %v737, %v721
  %v742 = vadd.f32 %v738, -0.28449672
  %v743 = vadd.f32 %v739, -0.28449672
  %v744 = vadd.f32 %v740, -0.28449672
  %v745 = vadd.f32 %v741, -0.28449672
  %v746 = vmul.f32 %v742, %v676
  %v747 = vmul.f32 %v743, %v691
  %v748 = vmul.f32 %v744, %v706
  %v749 = vmul.f32 %v745, %v721
  %v750 = vadd.f32 %v746, 0.2548296
  %v751 = vadd.f32 %v747, 0.2548296
  %v752 = vadd.f32 %v748, 0.2548296
  %v753 = vadd.f32 %v749, 0.2548296
  %v754 = vmul.f32 %v750, %v676
  %v755 = vmul.f32 %v751, %v691
  %v756 = vmul.f32 %v752, %v706
  %v757 = vmul.f32 %v753, %v721
  %v758 = vsub.f32 0.0, %v650
  %v759 = vsub.f32 0.0, %v651
  %v760 = vsub.f32 0.0, %v652
  %v761 = vsub.f32 0.0, %v653
  %v762 = vmul.f32 %v758, %v650
  %v763 = vmul.f32 %v759, %v651
  %v764 = vmul.f32 %v760, %v652
  %v765 = vmul.f32 %v761, %v653
  %v766 = vmul.f32 %v762, 1.442695
  %v767 = vpow.pop %v766
  %v768 = vmul.f32 %v763, 1.442695
  %v769 = vpow.pop %v768
  %v770 = vmul.f32 %v764, 1.442695
  %v771 = vpow.pop %v770
  %v772 = vmul.f32 %v765, 1.442695
  %v773 = vpow.pop %v772
  %v774 = vmul.f32 %v754, %v767
  %v775 = vmul.f32 %v755, %v769
  %v776 = vmul.f32 %v756, %v771
  %v777 = vmul.f32 %v757, %v773
  %v778 = vsub.f32 1.0, %v774
  %v779 = vsub.f32 1.0, %v775
  %v780 = vsub.f32 1.0, %v776
  %v781 = vsub.f32 1.0, %v777
  %v782 = vmul.f32 %v646, %v778
  %v783 = vmul.f32 %v647, %v779
  %v784 = vmul.f32 %v648, %v780
  %v785 = vmul.f32 %v649, %v781
  %v786 = vadd.f32 %v782, 1.0
  %v787 = vadd.f32 %v783, 1.0
  %v788 = vadd.f32 %v784, 1.0
  %v789 = vadd.f32 %v785, 1.0
  %v790 = vmul.f32 %v634, %v786
  %v791 = vmul.f32 %v635, %v787
  %v792 = vmul.f32 %v636, %v788
  %v793 = vmul.f32 %v637, %v789
  %v794 = vpack.c.bf16 %v792, %v790
  %v795 = vpack.c.bf16 %v793, %v791
  %v796 = vld [vmem:[%s14] sm:$0xf]
  %v797 = vld [vmem:[%s14 + $0x4] sm:$0xf]
  %v798 = vld [vmem:[%s14 + $0x8] sm:$0xf]
  %v799 = vld [vmem:[%s14 + $0xc] sm:$0xf]
  %v800 = vld [vmem:[%s14 + $0x10] sm:$0xf]
  %v801 = vld [vmem:[%s14 + $0x14] sm:$0xf]
  %v802 = vld [vmem:[%s14 + $0x18] sm:$0xf]
  %v803 = vld [vmem:[%s14 + $0x1c] sm:$0xf]
  %v804 = vld [vmem:[%s14 + $0x20] sm:$0xf]
  %v805 = vld [vmem:[%s14 + $0x24] sm:$0xf]
  %v806 = vld [vmem:[%s14 + $0x28] sm:$0xf]
  %v807 = vld [vmem:[%s14 + $0x2c] sm:$0xf]
  %v808 = vld [vmem:[%s14 + $0x30] sm:$0xf]
  %v809 = vld [vmem:[%s14 + $0x34] sm:$0xf]
  %v810 = vld [vmem:[%s14 + $0x38] sm:$0xf]
  %v811 = vld [vmem:[%s14 + $0x3c] sm:$0xf]
  %v812 = vld [vmem:[%s14 + $0x40] sm:$0xf]
  %v813 = vld [vmem:[%s14 + $0x44] sm:$0xf]
  %v814 = vld [vmem:[%s14 + $0x48] sm:$0xf]
  %v815 = vld [vmem:[%s14 + $0x4c] sm:$0xf]
  %v816 = vld [vmem:[%s14 + $0x50] sm:$0xf]
  %v817 = vld [vmem:[%s14 + $0x54] sm:$0xf]
  %v818 = vld [vmem:[%s14 + $0x58] sm:$0xf]
  %v819 = vld [vmem:[%s14 + $0x5c] sm:$0xf]
  %v820 = vld [vmem:[%s15] sm:$0x1]
  %v822 = vperm.slane %v820, 0
  %v848 = vunpack.c.l.b16 %v796
  %v849 = vunpack.c.l.b16 %v797
  %v850 = vunpack.c.l.b16 %v798
  %v851 = vunpack.c.l.b16 %v799
  %v852 = vunpack.c.l.b16 %v800
  %v853 = vunpack.c.l.b16 %v801
  %v854 = vunpack.c.l.b16 %v802
  %v855 = vunpack.c.l.b16 %v803
  %v856 = vunpack.c.l.b16 %v804
  %v857 = vunpack.c.l.b16 %v805
  %v858 = vunpack.c.l.b16 %v806
  %v859 = vunpack.c.l.b16 %v807
  %v860 = vunpack.c.l.b16 %v808
  %v861 = vunpack.c.l.b16 %v809
  %v862 = vunpack.c.l.b16 %v810
  %v863 = vunpack.c.l.b16 %v811
  %v864 = vunpack.c.l.b16 %v812
  %v865 = vunpack.c.l.b16 %v813
  %v866 = vunpack.c.l.b16 %v814
  %v867 = vunpack.c.l.b16 %v815
  %v868 = vunpack.c.l.b16 %v816
  %v869 = vunpack.c.l.b16 %v817
  %v870 = vunpack.c.l.b16 %v818
  %v871 = vunpack.c.l.b16 %v819
  %v872 = vpack.c.b16 %v849, %v848
  %v873 = vpack.c.b16 %v851, %v850
  %v874 = vpack.c.b16 %v853, %v852
  %v875 = vpack.c.b16 %v855, %v854
  %v876 = vpack.c.b16 %v857, %v856
  %v877 = vpack.c.b16 %v859, %v858
  %v878 = vpack.c.b16 %v861, %v860
  %v879 = vpack.c.b16 %v863, %v862
  %v880 = vpack.c.b16 %v865, %v864
  %v881 = vpack.c.b16 %v867, %v866
  %v882 = vpack.c.b16 %v869, %v868
  %v883 = vpack.c.b16 %v871, %v870
  %vm896 = vcmask 523264
  %v898 = vsel %vm896, %v795, 0
  %900 = vmatpush.bf16.msra.mxu0 %v879
  %901 = vmatpush.bf16.msra.mxu0 %v878
  %902 = vmatpush.bf16.msra.mxu0 %v877
  %903 = vmatpush.bf16.msra.mxu0 %v876
  %904 = vmatpush.bf16.msra.mxu0 %v875
  %905 = vmatpush.bf16.msra.mxu0 %v874
  %906 = vmatpush.bf16.msra.mxu0 %v873
  %907 = vmatpush.bf16.msra.mxu0 %v872
  %908 = vmatmul.bf16.gmra.mxu0 %v794
  %v909 = vpop.f32.mrf.mxu0
  %v910 = vadd.f32 %v822, %v909
  %v911 = vpop.f32.mrf.mxu0
  %v912 = vadd.f32 %v822, %v911
  %913 = vdwg.mxu0
  %914 = vmatpush.bf16.msra.mxu0 0
  %915 = vmatpush.bf16.msra.mxu0 0
  %916 = vmatpush.bf16.msra.mxu0 0
  %917 = vmatpush.bf16.msra.mxu0 0
  %918 = vmatpush.bf16.msra.mxu0 %v883
  %919 = vmatpush.bf16.msra.mxu0 %v882
  %920 = vmatpush.bf16.msra.mxu0 %v881
  %921 = vmatpush.bf16.msra.mxu0 %v880
  %922 = vmatmul.bf16.gmra.mxu0 %v898
  %v923 = vpop.f32.mrf.mxu0
  %v924 = vadd.f32 %v910, %v923
  %v925 = vpop.f32.mrf.mxu0
  %v926 = vadd.f32 %v912, %v925
  %927 = vdwg.mxu0
  %v928 = vadd.f32 %v502, %v924
  %v929 = vadd.f32 %v503, %v926
  %930 = vst.msk [vmem:[%s16] sm:$0xff] %vm62, %v928
  %931 = vst.msk [vmem:[%s16 + $0x8] sm:$0xff] %vm62, %v929
  %v932 = vld [vmem:[%s2] sm:$0x3]
  %v934 = vsel %vm202, %v932, 0
  %v937 = vsel %vm202, %v448, 0
  %v940 = vsel %vm202, %v449, 0
  %942 = vmatpush.xpose.msra.mxu0 0.0
  %943 = vmatpush.xpose.msra.mxu0 0.0
  %944 = vmatpush.xpose.msra.mxu0 0.0
  %945 = vmatpush.xpose.msra.mxu0 0.0
  %946 = vmatpush.xpose.msra.mxu0 0.0
  %947 = vmatpush.xpose.msra.mxu0 0.0
  %948 = vmatpush.xpose.msra.mxu0 0.0
  %949 = vmatpush.xpose.msra.mxu0 0.0
  %950 = vmatpush.xpose.msra.mxu0 0.0
  %951 = vmatpush.xpose.msra.mxu0 0.0
  %952 = vmatpush.xpose.msra.mxu0 0.0
  %953 = vmatpush.xpose.msra.mxu0 0.0
  %954 = vmatpush.xpose.msra.mxu0 0.0
  %955 = vmatpush.xpose.msra.mxu0 0.0
  %956 = vmatpush.xpose.msra.mxu0 %v940
  %957 = vmatpush.xpose.msra.mxu0 %v937
  %958 = vmatmul.f32.gmra.mxu0 %v934
  %v959 = vpop.f32.mrf.mxu0
  %v960 = vadd.f32 0.0, %v959
  %961 = vdwg.mxu0
  %v962 = vld [vmem:[%s3] sm:$0xff]
  %v963 = vld [vmem:[%s3 + $0x8] sm:$0xff]
  %v965 = vsel %vm202, %v960, 0
  %967 = vmatpush.msra.mxu0 0.0
  %968 = vmatpush.msra.mxu0 0.0
  %969 = vmatpush.msra.mxu0 0.0
  %970 = vmatpush.msra.mxu0 0.0
  %971 = vmatpush.msra.mxu0 0.0
  %972 = vmatpush.msra.mxu0 0.0
  %973 = vmatpush.msra.mxu0 0.0
  %974 = vmatpush.msra.mxu0 0.0
  %975 = vmatpush.msra.mxu0 0.0
  %976 = vmatpush.msra.mxu0 0.0
  %977 = vmatpush.msra.mxu0 0.0
  %978 = vmatpush.msra.mxu0 0.0
  %979 = vmatpush.msra.mxu0 0.0
  %980 = vmatpush.msra.mxu0 0.0
  %981 = vmatpush.msra.mxu0 %v963
  %982 = vmatpush.msra.mxu0 %v962
  %983 = vmatmul.f32.gmra.mxu0 %v965
  %v984 = vpop.f32.mrf.mxu0
  %v985 = vadd.f32 0.0, %v984
  %986 = vdwg.mxu0
  %v987 = vmul.f32 %v985, 0.33333334
  %vm988 = vcmask 58368
  %989 = vst.msk [vmem:[%s17] sm:$0x3] %vm988, %v987
  // Predicated region
  $region66: #{_lambda_.8} parent=0 // pred_check
    _
  $region67: #{_lambda_.8} parent=0 // pred_check_branch
    %991 = sbr.rel (0) target = $region69
  $region68: #{_lambda_.8} parent=0 // pred_region
    _
  $region69: #{_lambda_.8} parent=0 // pred_fallthru
    _
  // Predicated region
  $region70: #{_lambda_.8} parent=0 // pred_check
    _
  $region71: #{_lambda_.8} parent=0 // pred_check_branch
    %993 = sbr.rel (0) target = $region73
  $region72: #{_lambda_.8} parent=0 // pred_region
    _
  $region73: #{_lambda_.8} parent=0 // pred_fallthru
    _
  // Predicated region
  $region74: #{_lambda_.8} parent=0 // pred_check
    _
  $region75: #{_lambda_.8} parent=0 // pred_check_branch
    %995 = sbr.rel (0) target = $region77
  $region76: #{_lambda_.8} parent=0 // pred_region
    _
  $region77: #{_lambda_.8} parent=0 // pred_fallthru
    _
  // Predicated region
  $region78: #{_lambda_.8} parent=0 // pred_check
    _
  $region79: #{_lambda_.8} parent=0 // pred_check_branch
    %997 = sbr.rel (0) target = $region81
  $region80: #{_lambda_.8} parent=0 // pred_region
    _
  $region81: #{_lambda_.8} parent=0 // pred_fallthru
    _

// kernel: _lambda_.9
$region0: #{_lambda_.9}
  #allocation0 [shape = 'u32[]', space=smem, size = 0x4, offset = 0x4, fixed_abs, tag = 'smem constant byte address 0x4 - core index']
  #allocation1 [shape = 'u32[72,128]{1,0:T(1,128)}', space=vmem, size = 0x9000, scoped, tag = 'internal scratch']
  %s0 = inlined_call_operand.vmem [shape: f32[32,48], index: 0, kind: input, shape index: {}]
  %s1 = inlined_call_operand.vmem [shape: bf16[48,48], index: 1, kind: input, shape index: {}]
  %s2 = inlined_call_operand.vmem [shape: f32[1,48], index: 2, kind: input, shape index: {}]
  %s3 = inlined_call_operand.vmem [shape: f32[32,48], index: 3, kind: output, shape index: {}]
  %s4 = sld [smem:[#allocation0]]
  $region22: #{_lambda_.9} parent=0
    _
  %s6 = ssub.s32 1, %s4
  %s7 = scalar_select 0, %s6, %s4
  // Predicated region
  $region2: #{_lambda_.9} parent=0 // pred_check
    _
  $region3: #{_lambda_.9} parent=0 // pred_check_branch
    %9 = sbr.rel (0) target = $region5
  $region4: #{_lambda_.9} parent=0 // pred_region
    _
  $region5: #{_lambda_.9} parent=0 // pred_fallthru
    _
  // Predicated region
  $region6: #{_lambda_.9} parent=0 // pred_check
    _
  $region7: #{_lambda_.9} parent=0 // pred_check_branch
    %11 = sbr.rel (0) target = $region9
  $region8: #{_lambda_.9} parent=0 // pred_region
    _
  $region9: #{_lambda_.9} parent=0 // pred_fallthru
    _
  // Predicated region
  $region10: #{_lambda_.9} parent=0 // pred_check
    _
  $region11: #{_lambda_.9} parent=0 // pred_check_branch
    %13 = sbr.rel (0) target = $region13
  $region12: #{_lambda_.9} parent=0 // pred_region
    _
  $region13: #{_lambda_.9} parent=0 // pred_fallthru
    _
  %v15 = vld [vmem:[%s0] sm:$0xff]
  %v16 = vld [vmem:[%s0 + $0x8] sm:$0xff]
  %v17 = vld [vmem:[%s0 + $0x10] sm:$0xff]
  %v18 = vld [vmem:[%s0 + $0x18] sm:$0xff]
  %v19 = vpack.c.bf16 %v16, %v15
  %v20 = vpack.c.bf16 %v18, %v17
  %v21 = vld [vmem:[%s1] sm:$0xf]
  %v22 = vld [vmem:[%s1 + $0x4] sm:$0xf]
  %v23 = vld [vmem:[%s1 + $0x8] sm:$0xf]
  %v24 = vld [vmem:[%s1 + $0xc] sm:$0xf]
  %v25 = vld [vmem:[%s1 + $0x10] sm:$0xf]
  %v26 = vld [vmem:[%s1 + $0x14] sm:$0xf]
  %v27 = vld [vmem:[%s2] sm:$0x1]
  %v29 = vperm.slane %v27, 0
  %v37 = vunpack.c.l.b16 %v21
  %v38 = vunpack.c.l.b16 %v22
  %v39 = vunpack.c.l.b16 %v23
  %v40 = vunpack.c.l.b16 %v24
  %v41 = vunpack.c.l.b16 %v25
  %v42 = vunpack.c.l.b16 %v26
  %v43 = vpack.c.b16 %v38, %v37
  %v44 = vpack.c.b16 %v40, %v39
  %v45 = vpack.c.b16 %v42, %v41
  %vm49 = vcmask 392192
  %v51 = vsel %vm49, %v19, 0
  %v54 = vsel %vm49, %v20, 0
  %56 = vmatpush.bf16.msra.mxu0 0
  %57 = vmatpush.bf16.msra.mxu0 0
  %58 = vmatpush.bf16.msra.mxu0 0
  %59 = vmatpush.bf16.msra.mxu0 0
  %60 = vmatpush.bf16.msra.mxu0 0
  %61 = vmatpush.bf16.msra.mxu0 %v45
  %62 = vmatpush.bf16.msra.mxu0 %v44
  %63 = vmatpush.bf16.msra.mxu0 %v43
  %64 = vmatmul.bf16.gmra.mxu0 %v51
  %v65 = vpop.f32.mrf.mxu0
  %v66 = vadd.f32 %v29, %v65
  %v67 = vpop.f32.mrf.mxu0
  %v68 = vadd.f32 %v29, %v67
  %69 = vmatmul.bf16.gmra.mxu0 %v54
  %v70 = vpop.f32.mrf.mxu0
  %v71 = vadd.f32 %v29, %v70
  %v72 = vpop.f32.mrf.mxu0
  %v73 = vadd.f32 %v29, %v72
  %74 = vdwg.mxu0
  %75 = vst.msk [vmem:[%s3] sm:$0xff] %vm49, %v66
  %76 = vst.msk [vmem:[%s3 + $0x8] sm:$0xff] %vm49, %v68
  %77 = vst.msk [vmem:[%s3 + $0x10] sm:$0xff] %vm49, %v71
  %78 = vst.msk [vmem:[%s3 + $0x18] sm:$0xff] %vm49, %v73
  // Predicated region
  $region14: #{_lambda_.9} parent=0 // pred_check
    _
  $region15: #{_lambda_.9} parent=0 // pred_check_branch
    %80 = sbr.rel (0) target = $region17
  $region16: #{_lambda_.9} parent=0 // pred_region
    _
  $region17: #{_lambda_.9} parent=0 // pred_fallthru
    _
  // Predicated region
  $region18: #{_lambda_.9} parent=0 // pred_check
    _
  $region19: #{_lambda_.9} parent=0 // pred_check_branch
    %82 = sbr.rel (0) target = $region21
  $region20: #{_lambda_.9} parent=0 // pred_region
    _
  $region21: #{_lambda_.9} parent=0 // pred_fallthru
    _

// kernel: _lambda_.10
$region0: #{_lambda_.10}
  #allocation0 [shape = 'u32[]', space=smem, size = 0x4, offset = 0x4, fixed_abs, tag = 'smem constant byte address 0x4 - core index']
  #allocation1 [shape = 'u32[72,128]{1,0:T(1,128)}', space=vmem, size = 0x9000, scoped, tag = 'internal scratch']
  %s0 = inlined_call_operand.vmem [shape: f32[32,48], index: 0, kind: input, shape index: {}]
  %s1 = inlined_call_operand.vmem [shape: f32[32,32], index: 1, kind: input, shape index: {}]
  %s2 = inlined_call_operand.vmem [shape: f32[2,32], index: 2, kind: input, shape index: {}]
  %s3 = inlined_call_operand.vmem [shape: f32[32,16], index: 3, kind: input, shape index: {}]
  %s4 = inlined_call_operand.vmem [shape: f32[1,48], index: 4, kind: input, shape index: {}, may-alias: {4,10}]
  %s5 = inlined_call_operand.vmem [shape: f32[1,48], index: 5, kind: input, shape index: {}, may-alias: {5,9,11,15}]
  %s6 = inlined_call_operand.vmem [shape: bf16[48,144], index: 6, kind: input, shape index: {}]
  %s7 = inlined_call_operand.vmem [shape: f32[1,144], index: 7, kind: input, shape index: {}]
  %s8 = inlined_call_operand.vmem [shape: bf16[48,48], index: 8, kind: input, shape index: {}]
  %s9 = inlined_call_operand.vmem [shape: f32[1,48], index: 9, kind: input, shape index: {}, may-alias: {5,9,11,15}]
  %s10 = inlined_call_operand.vmem [shape: f32[1,48], index: 10, kind: input, shape index: {}, may-alias: {4,10}]
  %s11 = inlined_call_operand.vmem [shape: f32[1,48], index: 11, kind: input, shape index: {}, may-alias: {5,9,11,15}]
  %s12 = inlined_call_operand.vmem [shape: bf16[48,192], index: 12, kind: input, shape index: {}]
  %s13 = inlined_call_operand.vmem [shape: f32[1,192], index: 13, kind: input, shape index: {}]
  %s14 = inlined_call_operand.vmem [shape: bf16[192,48], index: 14, kind: input, shape index: {}]
  %s15 = inlined_call_operand.vmem [shape: f32[1,48], index: 15, kind: input, shape index: {}, may-alias: {5,9,11,15}]
  %s16 = inlined_call_operand.vmem [shape: f32[32,48], index: 16, kind: output, shape index: {0}]
  %s17 = inlined_call_operand.vmem [shape: f32[2,16], index: 17, kind: output, shape index: {1}]
  %18 = xla_tuple %s16, %s17
  %s19 = sld [smem:[#allocation0]]
  $region82: #{_lambda_.10} parent=0
    _
  %s21 = ssub.s32 1, %s19
  %s22 = scalar_select 0, %s21, %s19
  // Predicated region
  $region2: #{_lambda_.10} parent=0 // pred_check
    _
  $region3: #{_lambda_.10} parent=0 // pred_check_branch
    %24 = sbr.rel (0) target = $region5
  $region4: #{_lambda_.10} parent=0 // pred_region
    _
  $region5: #{_lambda_.10} parent=0 // pred_fallthru
    _
  // Predicated region
  $region6: #{_lambda_.10} parent=0 // pred_check
    _
  $region7: #{_lambda_.10} parent=0 // pred_check_branch
    %26 = sbr.rel (0) target = $region9
  $region8: #{_lambda_.10} parent=0 // pred_region
    _
  $region9: #{_lambda_.10} parent=0 // pred_fallthru
    _
  // Predicated region
  $region10: #{_lambda_.10} parent=0 // pred_check
    _
  $region11: #{_lambda_.10} parent=0 // pred_check_branch
    %28 = sbr.rel (0) target = $region13
  $region12: #{_lambda_.10} parent=0 // pred_region
    _
  $region13: #{_lambda_.10} parent=0 // pred_fallthru
    _
  // Predicated region
  $region14: #{_lambda_.10} parent=0 // pred_check
    _
  $region15: #{_lambda_.10} parent=0 // pred_check_branch
    %30 = sbr.rel (0) target = $region17
  $region16: #{_lambda_.10} parent=0 // pred_region
    _
  $region17: #{_lambda_.10} parent=0 // pred_fallthru
    _
  // Predicated region
  $region18: #{_lambda_.10} parent=0 // pred_check
    _
  $region19: #{_lambda_.10} parent=0 // pred_check_branch
    %32 = sbr.rel (0) target = $region21
  $region20: #{_lambda_.10} parent=0 // pred_region
    _
  $region21: #{_lambda_.10} parent=0 // pred_fallthru
    _
  // Predicated region
  $region22: #{_lambda_.10} parent=0 // pred_check
    _
  $region23: #{_lambda_.10} parent=0 // pred_check_branch
    %34 = sbr.rel (0) target = $region25
  $region24: #{_lambda_.10} parent=0 // pred_region
    _
  $region25: #{_lambda_.10} parent=0 // pred_fallthru
    _
  // Predicated region
  $region26: #{_lambda_.10} parent=0 // pred_check
    _
  $region27: #{_lambda_.10} parent=0 // pred_check_branch
    %36 = sbr.rel (0) target = $region29
  $region28: #{_lambda_.10} parent=0 // pred_region
    _
  $region29: #{_lambda_.10} parent=0 // pred_fallthru
    _
  // Predicated region
  $region30: #{_lambda_.10} parent=0 // pred_check
    _
  $region31: #{_lambda_.10} parent=0 // pred_check_branch
    %38 = sbr.rel (0) target = $region33
  $region32: #{_lambda_.10} parent=0 // pred_region
    _
  $region33: #{_lambda_.10} parent=0 // pred_fallthru
    _
  // Predicated region
  $region34: #{_lambda_.10} parent=0 // pred_check
    _
  $region35: #{_lambda_.10} parent=0 // pred_check_branch
    %40 = sbr.rel (0) target = $region37
  $region36: #{_lambda_.10} parent=0 // pred_region
    _
  $region37: #{_lambda_.10} parent=0 // pred_fallthru
    _
  // Predicated region
  $region38: #{_lambda_.10} parent=0 // pred_check
    _
  $region39: #{_lambda_.10} parent=0 // pred_check_branch
    %42 = sbr.rel (0) target = $region41
  $region40: #{_lambda_.10} parent=0 // pred_region
    _
  $region41: #{_lambda_.10} parent=0 // pred_fallthru
    _
  // Predicated region
  $region42: #{_lambda_.10} parent=0 // pred_check
    _
  $region43: #{_lambda_.10} parent=0 // pred_check_branch
    %44 = sbr.rel (0) target = $region45
  $region44: #{_lambda_.10} parent=0 // pred_region
    _
  $region45: #{_lambda_.10} parent=0 // pred_fallthru
    _
  // Predicated region
  $region46: #{_lambda_.10} parent=0 // pred_check
    _
  $region47: #{_lambda_.10} parent=0 // pred_check_branch
    %46 = sbr.rel (0) target = $region49
  $region48: #{_lambda_.10} parent=0 // pred_region
    _
  $region49: #{_lambda_.10} parent=0 // pred_fallthru
    _
  // Predicated region
  $region50: #{_lambda_.10} parent=0 // pred_check
    _
  $region51: #{_lambda_.10} parent=0 // pred_check_branch
    %48 = sbr.rel (0) target = $region53
  $region52: #{_lambda_.10} parent=0 // pred_region
    _
  $region53: #{_lambda_.10} parent=0 // pred_fallthru
    _
  // Predicated region
  $region54: #{_lambda_.10} parent=0 // pred_check
    _
  $region55: #{_lambda_.10} parent=0 // pred_check_branch
    %50 = sbr.rel (0) target = $region57
  $region56: #{_lambda_.10} parent=0 // pred_region
    _
  $region57: #{_lambda_.10} parent=0 // pred_fallthru
    _
  // Predicated region
  $region58: #{_lambda_.10} parent=0 // pred_check
    _
  $region59: #{_lambda_.10} parent=0 // pred_check_branch
    %52 = sbr.rel (0) target = $region61
  $region60: #{_lambda_.10} parent=0 // pred_region
    _
  $region61: #{_lambda_.10} parent=0 // pred_fallthru
    _
  // Predicated region
  $region62: #{_lambda_.10} parent=0 // pred_check
    _
  $region63: #{_lambda_.10} parent=0 // pred_check_branch
    %54 = sbr.rel (0) target = $region65
  $region64: #{_lambda_.10} parent=0 // pred_region
    _
  $region65: #{_lambda_.10} parent=0 // pred_fallthru
    _
  %v56 = vld [vmem:[%s0] sm:$0xff]
  %v57 = vld [vmem:[%s0 + $0x8] sm:$0xff]
  %v58 = vld [vmem:[%s0 + $0x10] sm:$0xff]
  %v59 = vld [vmem:[%s0 + $0x18] sm:$0xff]
  %v60 = vld [vmem:[%s1] sm:$0xff]
  %v61 = vld [vmem:[%s1 + $0x8] sm:$0xff]
  %v62 = vld [vmem:[%s1 + $0x10] sm:$0xff]
  %v63 = vld [vmem:[%s1 + $0x18] sm:$0xff]
  %v64 = vld [vmem:[%s4] sm:$0x1]
  %v65 = vld [vmem:[%s5] sm:$0x1]
  %vm66 = vcmask 392192
  %v67 = vsel %vm66, %v56, 0.0
  %68 = vadd.xlane.f32.xlu0 %v67
  %v69 = vpop.xlane.xlu0 %68
  %v70 = vsel %vm66, %v57, 0.0
  %71 = vadd.xlane.f32.xlu0 %v70
  %v72 = vpop.xlane.xlu0 %71
  %v73 = vsel %vm66, %v58, 0.0
  %74 = vadd.xlane.f32.xlu0 %v73
  %v75 = vpop.xlane.xlu0 %74
  %v76 = vsel %vm66, %v59, 0.0
  %77 = vadd.xlane.f32.xlu0 %v76
  %v78 = vpop.xlane.xlu0 %77
  %v79 = vrcp.pop 48.0
  %v80 = vmul.f32 48.0, %v79
  %v81 = vsub.f32 1.0, %v80
  %v82 = vmul.f32 %v79, %v81
  %v83 = vadd.f32 %v79, %v82
  %vm84 = vweird.f32 %v79
  %v85 = vsel %vm84, %v79, %v83
  %v86 = vmul.f32 %v69, %v85
  %v87 = vmul.f32 %v72, %v85
  %v88 = vmul.f32 %v75, %v85
  %v89 = vmul.f32 %v78, %v85
  %v90 = vsub.f32 %v56, %v86
  %v91 = vsub.f32 %v57, %v87
  %v92 = vsub.f32 %v58, %v88
  %v93 = vsub.f32 %v59, %v89
  %v94 = vmul.f32 %v90, %v90
  %v95 = vmul.f32 %v91, %v91
  %v96 = vmul.f32 %v92, %v92
  %v97 = vmul.f32 %v93, %v93
  %v98 = vsel %vm66, %v94, 0.0
  %99 = vadd.xlane.f32.xlu0 %v98
  %v100 = vpop.xlane.xlu0 %99
  %v101 = vsel %vm66, %v95, 0.0
  %102 = vadd.xlane.f32.xlu0 %v101
  %v103 = vpop.xlane.xlu0 %102
  %v104 = vsel %vm66, %v96, 0.0
  %105 = vadd.xlane.f32.xlu0 %v104
  %v106 = vpop.xlane.xlu0 %105
  %v107 = vsel %vm66, %v97, 0.0
  %108 = vadd.xlane.f32.xlu0 %v107
  %v109 = vpop.xlane.xlu0 %108
  %v110 = vmul.f32 %v100, %v85
  %v111 = vmul.f32 %v103, %v85
  %v112 = vmul.f32 %v106, %v85
  %v113 = vmul.f32 %v109, %v85
  %v114 = vadd.f32 %v110, 1e-06
  %v115 = vadd.f32 %v111, 1e-06
  %v116 = vadd.f32 %v112, 1e-06
  %v117 = vadd.f32 %v113, 1e-06
  %v118 = vrsqrt.pop %v114
  %v119 = vmul.f32 %v118, %v114
  %v120 = vmul.f32 %v119, %v118
  %v121 = vmul.f32 0.5, %v120
  %v122 = vsub.f32 1.5, %v121
  %v123 = vmul.f32 %v118, %v122
  %vm124 = vweird.f32 %v114
  %vm125 = vweird.f32 %v118
  %vm126 = vmor %vm124, %vm125
  %v127 = vsel %vm126, %v118, %v123
  %v128 = vrsqrt.pop %v115
  %v129 = vmul.f32 %v128, %v115
  %v130 = vmul.f32 %v129, %v128
  %v131 = vmul.f32 0.5, %v130
  %v132 = vsub.f32 1.5, %v131
  %v133 = vmul.f32 %v128, %v132
  %vm134 = vweird.f32 %v115
  %vm135 = vweird.f32 %v128
  %vm136 = vmor %vm134, %vm135
  %v137 = vsel %vm136, %v128, %v133
  %v138 = vrsqrt.pop %v116
  %v139 = vmul.f32 %v138, %v116
  %v140 = vmul.f32 %v139, %v138
  %v141 = vmul.f32 0.5, %v140
  %v142 = vsub.f32 1.5, %v141
  %v143 = vmul.f32 %v138, %v142
  %vm144 = vweird.f32 %v116
  %vm145 = vweird.f32 %v138
  %vm146 = vmor %vm144, %vm145
  %v147 = vsel %vm146, %v138, %v143
  %v148 = vrsqrt.pop %v117
  %v149 = vmul.f32 %v148, %v117
  %v150 = vmul.f32 %v149, %v148
  %v151 = vmul.f32 0.5, %v150
  %v152 = vsub.f32 1.5, %v151
  %v153 = vmul.f32 %v148, %v152
  %vm154 = vweird.f32 %v117
  %vm155 = vweird.f32 %v148
  %vm156 = vmor %vm154, %vm155
  %v157 = vsel %vm156, %v148, %v153
  %v158 = vmul.f32 %v90, %v127
  %v159 = vmul.f32 %v91, %v137
  %v160 = vmul.f32 %v92, %v147
  %v161 = vmul.f32 %v93, %v157
  %v163 = vperm.slane %v64, 0
  %v165 = vmul.f32 %v158, %v163
  %v166 = vmul.f32 %v159, %v163
  %v167 = vmul.f32 %v160, %v163
  %v168 = vmul.f32 %v161, %v163
  %v170 = vperm.slane %v65, 0
  %v172 = vadd.f32 %v165, %v170
  %v173 = vadd.f32 %v166, %v170
  %v174 = vadd.f32 %v167, %v170
  %v175 = vadd.f32 %v168, %v170
  %v176 = vpack.c.bf16 %v173, %v172
  %v177 = vpack.c.bf16 %v175, %v174
  %v178 = vld [vmem:[%s6] sm:$0xff]
  %v179 = vld [vmem:[%s6 + $0x8] sm:$0xff]
  %v180 = vld [vmem:[%s6 + $0x10] sm:$0xff]
  %v181 = vld [vmem:[%s6 + $0x18] sm:$0xff]
  %v182 = vld [vmem:[%s6 + $0x20] sm:$0xff]
  %v183 = vld [vmem:[%s6 + $0x28] sm:$0xff]
  %v184 = vld [vmem:[%s7] sm:$0x3]
  %v186 = vperm.slane %v184, 0
  %v187 = vperm.slane %v184, 1
  %v196 = vunpack.c.l.b16 %v178
  %v197 = vunpack.c.h.b16 %v178
  %v198 = vunpack.c.l.b16 %v179
  %v199 = vunpack.c.h.b16 %v179
  %v200 = vunpack.c.l.b16 %v180
  %v201 = vunpack.c.h.b16 %v180
  %v202 = vunpack.c.l.b16 %v181
  %v203 = vunpack.c.h.b16 %v181
  %v204 = vunpack.c.l.b16 %v182
  %v205 = vunpack.c.h.b16 %v182
  %v206 = vunpack.c.l.b16 %v183
  %v207 = vunpack.c.h.b16 %v183
  %v208 = vpack.c.b16 %v198, %v196
  %v209 = vpack.c.b16 %v199, %v197
  %v210 = vpack.c.b16 %v202, %v200
  %v211 = vpack.c.b16 %v203, %v201
  %v212 = vpack.c.b16 %v206, %v204
  %v213 = vpack.c.b16 %v207, %v205
  %v221 = vsel %vm66, %v176, 0
  %v224 = vsel %vm66, %v177, 0
  %226 = vmatpush.bf16.msra.mxu0 0
  %227 = vmatpush.bf16.msra.mxu0 0
  %228 = vmatpush.bf16.msra.mxu0 0
  %229 = vmatpush.bf16.msra.mxu0 0
  %230 = vmatpush.bf16.msra.mxu0 0
  %231 = vmatpush.bf16.msra.mxu0 %v212
  %232 = vmatpush.bf16.msra.mxu0 %v210
  %233 = vmatpush.bf16.msra.mxu0 %v208
  %234 = vmatmul.bf16.gmra.mxu0 %v221
  %v235 = vpop.f32.mrf.mxu0
  %v236 = vadd.f32 %v186, %v235
  %v237 = vpop.f32.mrf.mxu0
  %v238 = vadd.f32 %v186, %v237
  %239 = vmatmul.bf16.gmra.mxu0 %v224
  %v240 = vpop.f32.mrf.mxu0
  %v241 = vadd.f32 %v186, %v240
  %v242 = vpop.f32.mrf.mxu0
  %v243 = vadd.f32 %v186, %v242
  %244 = vdwg.mxu0
  %245 = vmatpush.bf16.msra.mxu0 0
  %246 = vmatpush.bf16.msra.mxu0 0
  %247 = vmatpush.bf16.msra.mxu0 0
  %248 = vmatpush.bf16.msra.mxu0 0
  %249 = vmatpush.bf16.msra.mxu0 0
  %250 = vmatpush.bf16.msra.mxu0 %v213
  %251 = vmatpush.bf16.msra.mxu0 %v211
  %252 = vmatpush.bf16.msra.mxu0 %v209
  %253 = vmatmul.bf16.gmra.mxu0 %v221
  %v254 = vpop.f32.mrf.mxu0
  %v255 = vadd.f32 %v187, %v254
  %v256 = vpop.f32.mrf.mxu0
  %v257 = vadd.f32 %v187, %v256
  %258 = vmatmul.bf16.gmra.mxu0 %v224
  %v259 = vpop.f32.mrf.mxu0
  %v260 = vadd.f32 %v187, %v259
  %v261 = vpop.f32.mrf.mxu0
  %v262 = vadd.f32 %v187, %v261
  %263 = vdwg.mxu0
  %v264 = vpack.c.bf16 %v238, %v236
  %v265 = vpack.c.bf16 %v243, %v241
  %268 = vrot.lane.b32.xlu0 %v264, 80
  %v269 = vpop.permute.xlu0 %268
  %270 = vrot.lane.b32.xlu0 %v265, 80
  %v271 = vpop.permute.xlu0 %270
  %vm272 = vcmask 130048
  %v274 = vsel %vm272, %v264, 0
  %v277 = vsel %vm272, %v265, 0
  %v280 = vsel %vm272, %v269, 0
  %v283 = vsel %vm272, %v271, 0
  %285 = vmatpush.bf16.xpose.msra.mxu0 0
  %286 = vmatpush.bf16.xpose.msra.mxu0 0
  %287 = vmatpush.bf16.xpose.msra.mxu0 0
  %288 = vmatpush.bf16.xpose.msra.mxu0 0
  %289 = vmatpush.bf16.xpose.msra.mxu0 0
  %290 = vmatpush.bf16.xpose.msra.mxu0 0
  %291 = vmatpush.bf16.xpose.msra.mxu0 %v283
  %292 = vmatpush.bf16.xpose.msra.mxu0 %v280
  %293 = vmatmul.bf16.gmra.mxu0 %v274
  %v294 = vpop.f32.mrf.mxu0
  %v295 = vadd.f32 0.0, %v294
  %v296 = vpop.f32.mrf.mxu0
  %v297 = vadd.f32 0.0, %v296
  %298 = vmatmul.bf16.gmra.mxu0 %v277
  %v299 = vpop.f32.mrf.mxu0
  %v300 = vadd.f32 0.0, %v299
  %v301 = vpop.f32.mrf.mxu0
  %v302 = vadd.f32 0.0, %v301
  %303 = vdwg.mxu0
  %v304 = vmul.f32 %v295, 0.25
  %v305 = vmul.f32 %v297, 0.25
  %v306 = vmul.f32 %v300, 0.25
  %v307 = vmul.f32 %v302, 0.25
  %v308 = vadd.f32 %v304, %v60
  %v309 = vadd.f32 %v305, %v61
  %v310 = vadd.f32 %v306, %v62
  %v311 = vadd.f32 %v307, %v63
  %vm312 = vcmask 261120
  %v313 = vsel %vm312, %v308, -inf
  %314 = vmax.xlane.f32.xlu0 %v313
  %v315 = vpop.xlane.xlu0 %314
  %v316 = vsel %vm312, %v309, -inf
  %317 = vmax.xlane.f32.xlu0 %v316
  %v318 = vpop.xlane.xlu0 %317
  %v319 = vsel %vm312, %v310, -inf
  %320 = vmax.xlane.f32.xlu0 %v319
  %v321 = vpop.xlane.xlu0 %320
  %v322 = vsel %vm312, %v311, -inf
  %323 = vmax.xlane.f32.xlu0 %v322
  %v324 = vpop.xlane.xlu0 %323
  %v325 = vsub.f32 %v308, %v315
  %v326 = vsub.f32 %v309, %v318
  %v327 = vsub.f32 %v310, %v321
  %v328 = vsub.f32 %v311, %v324
  %v329 = vmul.f32 %v325, 1.442695
  %v330 = vpow.pop %v329
  %v331 = vmul.f32 %v326, 1.442695
  %v332 = vpow.pop %v331
  %v333 = vmul.f32 %v327, 1.442695
  %v334 = vpow.pop %v333
  %v335 = vmul.f32 %v328, 1.442695
  %v336 = vpow.pop %v335
  %v337 = vsel %vm312, %v330, 0.0
  %338 = vadd.xlane.f32.xlu0 %v337
  %v339 = vpop.xlane.xlu0 %338
  %v340 = vsel %vm312, %v332, 0.0
  %341 = vadd.xlane.f32.xlu0 %v340
  %v342 = vpop.xlane.xlu0 %341
  %v343 = vsel %vm312, %v334, 0.0
  %344 = vadd.xlane.f32.xlu0 %v343
  %v345 = vpop.xlane.xlu0 %344
  %v346 = vsel %vm312, %v336, 0.0
  %347 = vadd.xlane.f32.xlu0 %v346
  %v348 = vpop.xlane.xlu0 %347
  %v349 = vrcp.pop %v339
  %v350 = vrcp.pop %v342
  %v351 = vrcp.pop %v345
  %v352 = vrcp.pop %v348
  %v353 = vmul.f32 %v330, %v349
  %v354 = vmul.f32 %v332, %v350
  %v355 = vmul.f32 %v334, %v351
  %v356 = vmul.f32 %v336, %v352
  %v357 = vadd.f32 %v353, 0.0
  %v358 = vadd.f32 %v354, 0.0
  %v359 = vadd.f32 %v355, 0.0
  %v360 = vadd.f32 %v356, 0.0
  %v361 = vpack.c.bf16 %v354, %v353
  %v362 = vpack.c.bf16 %v356, %v355
  %363 = vrot.lane.b32.xlu0 %v264, 32
  %v364 = vpop.permute.xlu0 %363
  %365 = vrot.lane.b32.xlu0 %v265, 32
  %v366 = vpop.permute.xlu0 %365
  %v370 = vsel %vm312, %v361, 0
  %v373 = vsel %vm312, %v362, 0
  %375 = vmatpush.bf16.msra.mxu0 0
  %376 = vmatpush.bf16.msra.mxu0 0
  %377 = vmatpush.bf16.msra.mxu0 0
  %378 = vmatpush.bf16.msra.mxu0 0
  %379 = vmatpush.bf16.msra.mxu0 0
  %380 = vmatpush.bf16.msra.mxu0 0
  %381 = vmatpush.bf16.msra.mxu0 %v366
  %382 = vmatpush.bf16.msra.mxu0 %v364
  %383 = vmatmul.bf16.gmra.mxu0 %v370
  %v384 = vpop.f32.mrf.mxu0
  %v385 = vadd.f32 0.0, %v384
  %v386 = vpop.f32.mrf.mxu0
  %v387 = vadd.f32 0.0, %v386
  %388 = vmatmul.bf16.gmra.mxu0 %v373
  %v389 = vpop.f32.mrf.mxu0
  %v390 = vadd.f32 0.0, %v389
  %v391 = vpop.f32.mrf.mxu0
  %v392 = vadd.f32 0.0, %v391
  %393 = vdwg.mxu0
  %v394 = vpack.c.bf16 %v387, %v385
  %v395 = vpack.c.bf16 %v392, %v390
  %v396 = vld [vmem:[%s8] sm:$0xf]
  %v397 = vld [vmem:[%s8 + $0x4] sm:$0xf]
  %398 = vrot.lane.b32.xlu0 %v264, 112
  %v399 = vpop.permute.xlu0 %398
  %400 = vrot.lane.b32.xlu0 %v265, 112
  %v401 = vpop.permute.xlu0 %400
  %402 = vrot.lane.b32.xlu0 %v264, 64
  %v403 = vpop.permute.xlu0 %402
  %404 = vrot.lane.b32.xlu0 %v265, 64
  %v405 = vpop.permute.xlu0 %404
  %v407 = vsel %vm272, %v399, 0
  %v410 = vsel %vm272, %v401, 0
  %v413 = vsel %vm272, %v403, 0
  %v416 = vsel %vm272, %v405, 0
  %418 = vmatpush.bf16.xpose.msra.mxu0 0
  %419 = vmatpush.bf16.xpose.msra.mxu0 0
  %420 = vmatpush.bf16.xpose.msra.mxu0 0
  %421 = vmatpush.bf16.xpose.msra.mxu0 0
  %422 = vmatpush.bf16.xpose.msra.mxu0 0
  %423 = vmatpush.bf16.xpose.msra.mxu0 0
  %424 = vmatpush.bf16.xpose.msra.mxu0 %v416
  %425 = vmatpush.bf16.xpose.msra.mxu0 %v413
  %426 = vmatmul.bf16.gmra.mxu0 %v407
  %v427 = vpop.f32.mrf.mxu0
  %v428 = vadd.f32 0.0, %v427
  %v429 = vpop.f32.mrf.mxu0
  %v430 = vadd.f32 0.0, %v429
  %431 = vmatmul.bf16.gmra.mxu0 %v410
  %v432 = vpop.f32.mrf.mxu0
  %v433 = vadd.f32 0.0, %v432
  %v434 = vpop.f32.mrf.mxu0
  %v435 = vadd.f32 0.0, %v434
  %436 = vdwg.mxu0
  %v437 = vmul.f32 %v428, 0.25
  %v438 = vmul.f32 %v430, 0.25
  %v439 = vmul.f32 %v433, 0.25
  %v440 = vmul.f32 %v435, 0.25
  %v441 = vadd.f32 %v437, %v60
  %v442 = vadd.f32 %v438, %v61
  %v443 = vadd.f32 %v439, %v62
  %v444 = vadd.f32 %v440, %v63
  %v445 = vsel %vm312, %v441, -inf
  %446 = vmax.xlane.f32.xlu0 %v445
  %v447 = vpop.xlane.xlu0 %446
  %v448 = vsel %vm312, %v442, -inf
  %449 = vmax.xlane.f32.xlu0 %v448
  %v450 = vpop.xlane.xlu0 %449
  %v451 = vsel %vm312, %v443, -inf
  %452 = vmax.xlane.f32.xlu0 %v451
  %v453 = vpop.xlane.xlu0 %452
  %v454 = vsel %vm312, %v444, -inf
  %455 = vmax.xlane.f32.xlu0 %v454
  %v456 = vpop.xlane.xlu0 %455
  %v457 = vsub.f32 %v441, %v447
  %v458 = vsub.f32 %v442, %v450
  %v459 = vsub.f32 %v443, %v453
  %v460 = vsub.f32 %v444, %v456
  %v461 = vmul.f32 %v457, 1.442695
  %v462 = vpow.pop %v461
  %v463 = vmul.f32 %v458, 1.442695
  %v464 = vpow.pop %v463
  %v465 = vmul.f32 %v459, 1.442695
  %v466 = vpow.pop %v465
  %v467 = vmul.f32 %v460, 1.442695
  %v468 = vpow.pop %v467
  %v469 = vsel %vm312, %v462, 0.0
  %470 = vadd.xlane.f32.xlu0 %v469
  %v471 = vpop.xlane.xlu0 %470
  %v472 = vsel %vm312, %v464, 0.0
  %473 = vadd.xlane.f32.xlu0 %v472
  %v474 = vpop.xlane.xlu0 %473
  %v475 = vsel %vm312, %v466, 0.0
  %476 = vadd.xlane.f32.xlu0 %v475
  %v477 = vpop.xlane.xlu0 %476
  %v478 = vsel %vm312, %v468, 0.0
  %479 = vadd.xlane.f32.xlu0 %v478
  %v480 = vpop.xlane.xlu0 %479
  %v481 = vrcp.pop %v471
  %v482 = vrcp.pop %v474
  %v483 = vrcp.pop %v477
  %v484 = vrcp.pop %v480
  %v485 = vmul.f32 %v462, %v481
  %v486 = vmul.f32 %v464, %v482
  %v487 = vmul.f32 %v466, %v483
  %v488 = vmul.f32 %v468, %v484
  %v489 = vadd.f32 %v357, %v485
  %v490 = vadd.f32 %v358, %v486
  %v491 = vadd.f32 %v359, %v487
  %v492 = vadd.f32 %v360, %v488
  %v493 = vpack.c.bf16 %v486, %v485
  %v494 = vpack.c.bf16 %v488, %v487
  %495 = vrot.lane.b32.xlu0 %v264, 16
  %v496 = vpop.permute.xlu0 %495
  %497 = vrot.lane.b32.xlu0 %v265, 16
  %v498 = vpop.permute.xlu0 %497
  %v502 = vsel %vm312, %v493, 0
  %v505 = vsel %vm312, %v494, 0
  %507 = vmatpush.bf16.msra.mxu0 0
  %508 = vmatpush.bf16.msra.mxu0 0
  %509 = vmatpush.bf16.msra.mxu0 0
  %510 = vmatpush.bf16.msra.mxu0 0
  %511 = vmatpush.bf16.msra.mxu0 0
  %512 = vmatpush.bf16.msra.mxu0 0
  %513 = vmatpush.bf16.msra.mxu0 %v498
  %514 = vmatpush.bf16.msra.mxu0 %v496
  %515 = vmatmul.bf16.gmra.mxu0 %v502
  %v516 = vpop.f32.mrf.mxu0
  %v517 = vadd.f32 0.0, %v516
  %v518 = vpop.f32.mrf.mxu0
  %v519 = vadd.f32 0.0, %v518
  %520 = vmatmul.bf16.gmra.mxu0 %v505
  %v521 = vpop.f32.mrf.mxu0
  %v522 = vadd.f32 0.0, %v521
  %v523 = vpop.f32.mrf.mxu0
  %v524 = vadd.f32 0.0, %v523
  %525 = vdwg.mxu0
  %v526 = vpack.c.bf16 %v519, %v517
  %v527 = vpack.c.bf16 %v524, %v522
  %v528 = vld [vmem:[%s8 + $0x8] sm:$0xf]
  %v529 = vld [vmem:[%s8 + $0xc] sm:$0xf]
  %v532 = vunpack.c.l.b16 %v528
  %v533 = vunpack.c.l.b16 %v529
  %v534 = vpack.c.b16 %v533, %v532
  %v537 = vsel %vm272, %v526, 0
  %v540 = vsel %vm272, %v527, 0
  %542 = vmatpush.bf16.msra.mxu0 0
  %543 = vmatpush.bf16.msra.mxu0 0
  %544 = vmatpush.bf16.msra.mxu0 0
  %545 = vmatpush.bf16.msra.mxu0 0
  %546 = vmatpush.bf16.msra.mxu0 0
  %547 = vmatpush.bf16.msra.mxu0 0
  %548 = vmatpush.bf16.msra.mxu0 0
  %549 = vmatpush.bf16.msra.mxu0 %v534
  %550 = vmatmul.bf16.gmra.mxu0 %v537
  %v551 = vpop.f32.mrf.mxu0
  %v552 = vadd.f32 0.0, %v551
  %v553 = vpop.f32.mrf.mxu0
  %v554 = vadd.f32 0.0, %v553
  %555 = vmatmul.bf16.gmra.mxu0 %v540
  %v556 = vpop.f32.mrf.mxu0
  %v557 = vadd.f32 0.0, %v556
  %v558 = vpop.f32.mrf.mxu0
  %v559 = vadd.f32 0.0, %v558
  %560 = vdwg.mxu0
  %v563 = vunpack.c.l.b16 %v396
  %v564 = vunpack.c.l.b16 %v397
  %v565 = vpack.c.b16 %v564, %v563
  %v568 = vsel %vm272, %v394, 0
  %v571 = vsel %vm272, %v395, 0
  %573 = vmatpush.bf16.msra.mxu0 0
  %574 = vmatpush.bf16.msra.mxu0 0
  %575 = vmatpush.bf16.msra.mxu0 0
  %576 = vmatpush.bf16.msra.mxu0 0
  %577 = vmatpush.bf16.msra.mxu0 0
  %578 = vmatpush.bf16.msra.mxu0 0
  %579 = vmatpush.bf16.msra.mxu0 0
  %580 = vmatpush.bf16.msra.mxu0 %v565
  %581 = vmatmul.bf16.gmra.mxu0 %v568
  %v582 = vpop.f32.mrf.mxu0
  %v583 = vadd.f32 %v552, %v582
  %v584 = vpop.f32.mrf.mxu0
  %v585 = vadd.f32 %v554, %v584
  %586 = vmatmul.bf16.gmra.mxu0 %v571
  %v587 = vpop.f32.mrf.mxu0
  %v588 = vadd.f32 %v557, %v587
  %v589 = vpop.f32.mrf.mxu0
  %v590 = vadd.f32 %v559, %v589
  %591 = vdwg.mxu0
  %v592 = vpack.c.bf16 %v257, %v255
  %v593 = vpack.c.bf16 %v262, %v260
  %594 = vrot.lane.b32.xlu0 %v264, 96
  %v595 = vpop.permute.xlu0 %594
  %596 = vrot.lane.b32.xlu0 %v265, 96
  %v597 = vpop.permute.xlu0 %596
  %598 = vrot.lane.b32.xlu0 %v264, 48
  %v599 = vpop.permute.xlu0 %598
  %600 = vrot.lane.b32.xlu0 %v265, 48
  %v601 = vpop.permute.xlu0 %600
  %v603 = vsel %vm272, %v595, 0
  %v606 = vsel %vm272, %v597, 0
  %v609 = vsel %vm272, %v599, 0
  %v612 = vsel %vm272, %v601, 0
  %614 = vmatpush.bf16.xpose.msra.mxu0 0
  %615 = vmatpush.bf16.xpose.msra.mxu0 0
  %616 = vmatpush.bf16.xpose.msra.mxu0 0
  %617 = vmatpush.bf16.xpose.msra.mxu0 0
  %618 = vmatpush.bf16.xpose.msra.mxu0 0
  %619 = vmatpush.bf16.xpose.msra.mxu0 0
  %620 = vmatpush.bf16.xpose.msra.mxu0 %v612
  %621 = vmatpush.bf16.xpose.msra.mxu0 %v609
  %622 = vmatmul.bf16.gmra.mxu0 %v603
  %v623 = vpop.f32.mrf.mxu0
  %v624 = vadd.f32 0.0, %v623
  %v625 = vpop.f32.mrf.mxu0
  %v626 = vadd.f32 0.0, %v625
  %627 = vmatmul.bf16.gmra.mxu0 %v606
  %v628 = vpop.f32.mrf.mxu0
  %v629 = vadd.f32 0.0, %v628
  %v630 = vpop.f32.mrf.mxu0
  %v631 = vadd.f32 0.0, %v630
  %632 = vdwg.mxu0
  %v633 = vmul.f32 %v624, 0.25
  %v634 = vmul.f32 %v626, 0.25
  %v635 = vmul.f32 %v629, 0.25
  %v636 = vmul.f32 %v631, 0.25
  %v637 = vadd.f32 %v633, %v60
  %v638 = vadd.f32 %v634, %v61
  %v639 = vadd.f32 %v635, %v62
  %v640 = vadd.f32 %v636, %v63
  %v641 = vsel %vm312, %v637, -inf
  %642 = vmax.xlane.f32.xlu0 %v641
  %v643 = vpop.xlane.xlu0 %642
  %v644 = vsel %vm312, %v638, -inf
  %645 = vmax.xlane.f32.xlu0 %v644
  %v646 = vpop.xlane.xlu0 %645
  %v647 = vsel %vm312, %v639, -inf
  %648 = vmax.xlane.f32.xlu0 %v647
  %v649 = vpop.xlane.xlu0 %648
  %v650 = vsel %vm312, %v640, -inf
  %651 = vmax.xlane.f32.xlu0 %v650
  %v652 = vpop.xlane.xlu0 %651
  %v653 = vsub.f32 %v637, %v643
  %v654 = vsub.f32 %v638, %v646
  %v655 = vsub.f32 %v639, %v649
  %v656 = vsub.f32 %v640, %v652
  %v657 = vmul.f32 %v653, 1.442695
  %v658 = vpow.pop %v657
  %v659 = vmul.f32 %v654, 1.442695
  %v660 = vpow.pop %v659
  %v661 = vmul.f32 %v655, 1.442695
  %v662 = vpow.pop %v661
  %v663 = vmul.f32 %v656, 1.442695
  %v664 = vpow.pop %v663
  %v665 = vsel %vm312, %v658, 0.0
  %666 = vadd.xlane.f32.xlu0 %v665
  %v667 = vpop.xlane.xlu0 %666
  %v668 = vsel %vm312, %v660, 0.0
  %669 = vadd.xlane.f32.xlu0 %v668
  %v670 = vpop.xlane.xlu0 %669
  %v671 = vsel %vm312, %v662, 0.0
  %672 = vadd.xlane.f32.xlu0 %v671
  %v673 = vpop.xlane.xlu0 %672
  %v674 = vsel %vm312, %v664, 0.0
  %675 = vadd.xlane.f32.xlu0 %v674
  %v676 = vpop.xlane.xlu0 %675
  %v677 = vrcp.pop %v667
  %v678 = vrcp.pop %v670
  %v679 = vrcp.pop %v673
  %v680 = vrcp.pop %v676
  %v681 = vmul.f32 %v658, %v677
  %v682 = vmul.f32 %v660, %v678
  %v683 = vmul.f32 %v662, %v679
  %v684 = vmul.f32 %v664, %v680
  %v685 = vadd.f32 %v489, %v681
  %v686 = vadd.f32 %v490, %v682
  %v687 = vadd.f32 %v491, %v683
  %v688 = vadd.f32 %v492, %v684
  %v689 = vpack.c.bf16 %v682, %v681
  %v690 = vpack.c.bf16 %v684, %v683
  %v692 = vsel %vm312, %v689, 0
  %v695 = vsel %vm312, %v690, 0
  %697 = vmatpush.bf16.msra.mxu0 0
  %698 = vmatpush.bf16.msra.mxu0 0
  %699 = vmatpush.bf16.msra.mxu0 0
  %700 = vmatpush.bf16.msra.mxu0 0
  %701 = vmatpush.bf16.msra.mxu0 0
  %702 = vmatpush.bf16.msra.mxu0 0
  %703 = vmatpush.bf16.msra.mxu0 %v593
  %704 = vmatpush.bf16.msra.mxu0 %v592
  %705 = vmatmul.bf16.gmra.mxu0 %v692
  %v706 = vpop.f32.mrf.mxu0
  %v707 = vadd.f32 0.0, %v706
  %v708 = vpop.f32.mrf.mxu0
  %v709 = vadd.f32 0.0, %v708
  %710 = vmatmul.bf16.gmra.mxu0 %v695
  %v711 = vpop.f32.mrf.mxu0
  %v712 = vadd.f32 0.0, %v711
  %v713 = vpop.f32.mrf.mxu0
  %v714 = vadd.f32 0.0, %v713
  %715 = vdwg.mxu0
  %v716 = vpack.c.bf16 %v709, %v707
  %v717 = vpack.c.bf16 %v714, %v712
  %v718 = vld [vmem:[%s8 + $0x10] sm:$0xf]
  %v719 = vld [vmem:[%s8 + $0x14] sm:$0xf]
  %v722 = vunpack.c.l.b16 %v718
  %v723 = vunpack.c.l.b16 %v719
  %v724 = vpack.c.b16 %v723, %v722
  %v727 = vsel %vm272, %v716, 0
  %v730 = vsel %vm272, %v717, 0
  %732 = vmatpush.bf16.msra.mxu0 0
  %733 = vmatpush.bf16.msra.mxu0 0
  %734 = vmatpush.bf16.msra.mxu0 0
  %735 = vmatpush.bf16.msra.mxu0 0
  %736 = vmatpush.bf16.msra.mxu0 0
  %737 = vmatpush.bf16.msra.mxu0 0
  %738 = vmatpush.bf16.msra.mxu0 0
  %739 = vmatpush.bf16.msra.mxu0 %v724
  %740 = vmatmul.bf16.gmra.mxu0 %v727
  %v741 = vpop.f32.mrf.mxu0
  %v742 = vadd.f32 0.0, %v741
  %v743 = vpop.f32.mrf.mxu0
  %v744 = vadd.f32 0.0, %v743
  %745 = vmatmul.bf16.gmra.mxu0 %v730
  %v746 = vpop.f32.mrf.mxu0
  %v747 = vadd.f32 0.0, %v746
  %v748 = vpop.f32.mrf.mxu0
  %v749 = vadd.f32 0.0, %v748
  %750 = vdwg.mxu0
  %v751 = vadd.f32 %v583, %v742
  %v752 = vadd.f32 %v585, %v744
  %v753 = vadd.f32 %v588, %v747
  %v754 = vadd.f32 %v590, %v749
  %v755 = vadd.f32 %v56, %v751
  %v756 = vadd.f32 %v57, %v752
  %v757 = vadd.f32 %v58, %v753
  %v758 = vadd.f32 %v59, %v754
  %v759 = vld [vmem:[%s9] sm:$0x1]
  %v761 = vperm.slane %v759, 0
  %v763 = vadd.f32 %v755, %v761
  %v764 = vadd.f32 %v756, %v761
  %v765 = vadd.f32 %v757, %v761
  %v766 = vadd.f32 %v758, %v761
  %v767 = vld [vmem:[%s10] sm:$0x1]
  %v768 = vld [vmem:[%s11] sm:$0x1]
  %v769 = vsel %vm66, %v763, 0.0
  %770 = vadd.xlane.f32.xlu0 %v769
  %v771 = vpop.xlane.xlu0 %770
  %v772 = vsel %vm66, %v764, 0.0
  %773 = vadd.xlane.f32.xlu0 %v772
  %v774 = vpop.xlane.xlu0 %773
  %v775 = vsel %vm66, %v765, 0.0
  %776 = vadd.xlane.f32.xlu0 %v775
  %v777 = vpop.xlane.xlu0 %776
  %v778 = vsel %vm66, %v766, 0.0
  %779 = vadd.xlane.f32.xlu0 %v778
  %v780 = vpop.xlane.xlu0 %779
  %v781 = vmul.f32 %v771, %v85
  %v782 = vmul.f32 %v774, %v85
  %v783 = vmul.f32 %v777, %v85
  %v784 = vmul.f32 %v780, %v85
  %v785 = vsub.f32 %v763, %v781
  %v786 = vsub.f32 %v764, %v782
  %v787 = vsub.f32 %v765, %v783
  %v788 = vsub.f32 %v766, %v784
  %v789 = vmul.f32 %v785, %v785
  %v790 = vmul.f32 %v786, %v786
  %v791 = vmul.f32 %v787, %v787
  %v792 = vmul.f32 %v788, %v788
  %v793 = vsel %vm66, %v789, 0.0
  %794 = vadd.xlane.f32.xlu0 %v793
  %v795 = vpop.xlane.xlu0 %794
  %v796 = vsel %vm66, %v790, 0.0
  %797 = vadd.xlane.f32.xlu0 %v796
  %v798 = vpop.xlane.xlu0 %797
  %v799 = vsel %vm66, %v791, 0.0
  %800 = vadd.xlane.f32.xlu0 %v799
  %v801 = vpop.xlane.xlu0 %800
  %v802 = vsel %vm66, %v792, 0.0
  %803 = vadd.xlane.f32.xlu0 %v802
  %v804 = vpop.xlane.xlu0 %803
  %v805 = vmul.f32 %v795, %v85
  %v806 = vmul.f32 %v798, %v85
  %v807 = vmul.f32 %v801, %v85
  %v808 = vmul.f32 %v804, %v85
  %v809 = vadd.f32 %v805, 1e-06
  %v810 = vadd.f32 %v806, 1e-06
  %v811 = vadd.f32 %v807, 1e-06
  %v812 = vadd.f32 %v808, 1e-06
  %v813 = vrsqrt.pop %v809
  %v814 = vmul.f32 %v813, %v809
  %v815 = vmul.f32 %v814, %v813
  %v816 = vmul.f32 0.5, %v815
  %v817 = vsub.f32 1.5, %v816
  %v818 = vmul.f32 %v813, %v817
  %vm819 = vweird.f32 %v809
  %vm820 = vweird.f32 %v813
  %vm821 = vmor %vm819, %vm820
  %v822 = vsel %vm821, %v813, %v818
  %v823 = vrsqrt.pop %v810
  %v824 = vmul.f32 %v823, %v810
  %v825 = vmul.f32 %v824, %v823
  %v826 = vmul.f32 0.5, %v825
  %v827 = vsub.f32 1.5, %v826
  %v828 = vmul.f32 %v823, %v827
  %vm829 = vweird.f32 %v810
  %vm830 = vweird.f32 %v823
  %vm831 = vmor %vm829, %vm830
  %v832 = vsel %vm831, %v823, %v828
  %v833 = vrsqrt.pop %v811
  %v834 = vmul.f32 %v833, %v811
  %v835 = vmul.f32 %v834, %v833
  %v836 = vmul.f32 0.5, %v835
  %v837 = vsub.f32 1.5, %v836
  %v838 = vmul.f32 %v833, %v837
  %vm839 = vweird.f32 %v811
  %vm840 = vweird.f32 %v833
  %vm841 = vmor %vm839, %vm840
  %v842 = vsel %vm841, %v833, %v838
  %v843 = vrsqrt.pop %v812
  %v844 = vmul.f32 %v843, %v812
  %v845 = vmul.f32 %v844, %v843
  %v846 = vmul.f32 0.5, %v845
  %v847 = vsub.f32 1.5, %v846
  %v848 = vmul.f32 %v843, %v847
  %vm849 = vweird.f32 %v812
  %vm850 = vweird.f32 %v843
  %vm851 = vmor %vm849, %vm850
  %v852 = vsel %vm851, %v843, %v848
  %v853 = vmul.f32 %v785, %v822
  %v854 = vmul.f32 %v786, %v832
  %v855 = vmul.f32 %v787, %v842
  %v856 = vmul.f32 %v788, %v852
  %v858 = vperm.slane %v767, 0
  %v860 = vmul.f32 %v853, %v858
  %v861 = vmul.f32 %v854, %v858
  %v862 = vmul.f32 %v855, %v858
  %v863 = vmul.f32 %v856, %v858
  %v865 = vperm.slane %v768, 0
  %v867 = vadd.f32 %v860, %v865
  %v868 = vadd.f32 %v861, %v865
  %v869 = vadd.f32 %v862, %v865
  %v870 = vadd.f32 %v863, %v865
  %v871 = vpack.c.bf16 %v868, %v867
  %v872 = vpack.c.bf16 %v870, %v869
  %v873 = vld [vmem:[%s12] sm:$0xff]
  %v874 = vld [vmem:[%s12 + $0x8] sm:$0xff]
  %v875 = vld [vmem:[%s12 + $0x10] sm:$0xff]
  %v876 = vld [vmem:[%s12 + $0x18] sm:$0xff]
  %v877 = vld [vmem:[%s12 + $0x20] sm:$0xff]
  %v878 = vld [vmem:[%s12 + $0x28] sm:$0xff]
  %v879 = vld [vmem:[%s13] sm:$0x3]
  %v881 = vperm.slane %v879, 0
  %v882 = vperm.slane %v879, 1
  %v891 = vunpack.c.l.b16 %v873
  %v892 = vunpack.c.h.b16 %v873
  %v893 = vunpack.c.l.b16 %v874
  %v894 = vunpack.c.h.b16 %v874
  %v895 = vunpack.c.l.b16 %v875
  %v896 = vunpack.c.h.b16 %v875
  %v897 = vunpack.c.l.b16 %v876
  %v898 = vunpack.c.h.b16 %v876
  %v899 = vunpack.c.l.b16 %v877
  %v900 = vunpack.c.h.b16 %v877
  %v901 = vunpack.c.l.b16 %v878
  %v902 = vunpack.c.h.b16 %v878
  %v903 = vpack.c.b16 %v893, %v891
  %v904 = vpack.c.b16 %v894, %v892
  %v905 = vpack.c.b16 %v897, %v895
  %v906 = vpack.c.b16 %v898, %v896
  %v907 = vpack.c.b16 %v901, %v899
  %v908 = vpack.c.b16 %v902, %v900
  %v916 = vsel %vm66, %v871, 0
  %v919 = vsel %vm66, %v872, 0
  %921 = vmatpush.bf16.msra.mxu0 0
  %922 = vmatpush.bf16.msra.mxu0 0
  %923 = vmatpush.bf16.msra.mxu0 0
  %924 = vmatpush.bf16.msra.mxu0 0
  %925 = vmatpush.bf16.msra.mxu0 0
  %926 = vmatpush.bf16.msra.mxu0 %v907
  %927 = vmatpush.bf16.msra.mxu0 %v905
  %928 = vmatpush.bf16.msra.mxu0 %v903
  %929 = vmatmul.bf16.gmra.mxu0 %v916
  %v930 = vpop.f32.mrf.mxu0
  %v931 = vadd.f32 %v881, %v930
  %v932 = vpop.f32.mrf.mxu0
  %v933 = vadd.f32 %v881, %v932
  %934 = vmatmul.bf16.gmra.mxu0 %v919
  %v935 = vpop.f32.mrf.mxu0
  %v936 = vadd.f32 %v881, %v935
  %v937 = vpop.f32.mrf.mxu0
  %v938 = vadd.f32 %v881, %v937
  %939 = vdwg.mxu0
  %940 = vmatpush.bf16.msra.mxu0 0
  %941 = vmatpush.bf16.msra.mxu0 0
  %942 = vmatpush.bf16.msra.mxu0 0
  %943 = vmatpush.bf16.msra.mxu0 0
  %944 = vmatpush.bf16.msra.mxu0 0
  %945 = vmatpush.bf16.msra.mxu0 %v908
  %946 = vmatpush.bf16.msra.mxu0 %v906
  %947 = vmatpush.bf16.msra.mxu0 %v904
  %948 = vmatmul.bf16.gmra.mxu0 %v916
  %v949 = vpop.f32.mrf.mxu0
  %v950 = vadd.f32 %v882, %v949
  %v951 = vpop.f32.mrf.mxu0
  %v952 = vadd.f32 %v882, %v951
  %953 = vmatmul.bf16.gmra.mxu0 %v919
  %v954 = vpop.f32.mrf.mxu0
  %v955 = vadd.f32 %v882, %v954
  %v956 = vpop.f32.mrf.mxu0
  %v957 = vadd.f32 %v882, %v956
  %958 = vdwg.mxu0
  %v959 = vmul.f32 %v931, 0.5
  %v960 = vmul.f32 %v950, 0.5
  %v961 = vmul.f32 %v933, 0.5
  %v962 = vmul.f32 %v952, 0.5
  %v963 = vmul.f32 %v936, 0.5
  %v964 = vmul.f32 %v955, 0.5
  %v965 = vmul.f32 %v938, 0.5
  %v966 = vmul.f32 %v957, 0.5
  %v967 = vmul.f32 %v931, 0.70710677
  %v968 = vmul.f32 %v950, 0.70710677
  %v969 = vmul.f32 %v933, 0.70710677
  %v970 = vmul.f32 %v952, 0.70710677
  %v971 = vmul.f32 %v936, 0.70710677
  %v972 = vmul.f32 %v955, 0.70710677
  %v973 = vmul.f32 %v938, 0.70710677
  %v974 = vmul.f32 %v957, 0.70710677
  %vm975 = vcmp.ge.f32.partialorder %v967, 0.0
  %vm976 = vcmp.ge.f32.partialorder %v968, 0.0
  %vm977 = vcmp.ge.f32.partialorder %v969, 0.0
  %vm978 = vcmp.ge.f32.partialorder %v970, 0.0
  %vm979 = vcmp.ge.f32.partialorder %v971, 0.0
  %vm980 = vcmp.ge.f32.partialorder %v972, 0.0
  %vm981 = vcmp.ge.f32.partialorder %v973, 0.0
  %vm982 = vcmp.ge.f32.partialorder %v974, 0.0
  %v983 = vsel %vm975, 1.0, -1.0
  %v984 = vsel %vm976, 1.0, -1.0
  %v985 = vsel %vm977, 1.0, -1.0
  %v986 = vsel %vm978, 1.0, -1.0
  %v987 = vsel %vm979, 1.0, -1.0
  %v988 = vsel %vm980, 1.0, -1.0
  %v989 = vsel %vm981, 1.0, -1.0
  %v990 = vsel %vm982, 1.0, -1.0
  %v991 = vand.u32 2147483647, %v967
  %v992 = vand.u32 2147483647, %v968
  %v993 = vand.u32 2147483647, %v969
  %v994 = vand.u32 2147483647, %v970
  %v995 = vand.u32 2147483647, %v971
  %v996 = vand.u32 2147483647, %v972
  %v997 = vand.u32 2147483647, %v973
  %v998 = vand.u32 2147483647, %v974
  %v999 = vmul.f32 %v991, 0.3275911
  %v1000 = vmul.f32 %v992, 0.3275911
  %v1001 = vmul.f32 %v993, 0.3275911
  %v1002 = vmul.f32 %v994, 0.3275911
  %v1003 = vmul.f32 %v995, 0.3275911
  %v1004 = vmul.f32 %v996, 0.3275911
  %v1005 = vmul.f32 %v997, 0.3275911
  %v1006 = vmul.f32 %v998, 0.3275911
  %v1007 = vadd.f32 %v999, 1.0
  %v1008 = vadd.f32 %v1000, 1.0
  %v1009 = vadd.f32 %v1001, 1.0
  %v1010 = vadd.f32 %v1002, 1.0
  %v1011 = vadd.f32 %v1003, 1.0
  %v1012 = vadd.f32 %v1004, 1.0
  %v1013 = vadd.f32 %v1005, 1.0
  %v1014 = vadd.f32 %v1006, 1.0
  %v1015 = vrcp.pop %v1007
  %v1016 = vmul.f32 %v1007, %v1015
  %v1017 = vsub.f32 1.0, %v1016
  %v1018 = vmul.f32 %v1015, %v1017
  %v1019 = vadd.f32 %v1015, %v1018
  %vm1020 = vweird.f32 %v1007
  %vm1021 = vweird.f32 %v1015
  %vm1022 = vmor %vm1020, %vm1021
  %v1023 = vsel %vm1022, %v1015, %v1019
  %v1024 = vand.u32 2147483647, %v1007
  %vm1025 = vcmp.eq.f32.partialorder %v1024, 8.507059e+37
  %v1026 = vand.u32 %v1007, 2147483648
  %v1027 = vor.u32 1.1754944e-38, %v1026
  %v1028 = vsel %vm1025, %v1027, %v1023
  %v1029 = vmul.f32 1.0, %v1028
  %v1030 = vrcp.pop %v1008
  %v1031 = vmul.f32 %v1008, %v1030
  %v1032 = vsub.f32 1.0, %v1031
  %v1033 = vmul.f32 %v1030, %v1032
  %v1034 = vadd.f32 %v1030, %v1033
  %vm1035 = vweird.f32 %v1008
  %vm1036 = vweird.f32 %v1030
  %vm1037 = vmor %vm1035, %vm1036
  %v1038 = vsel %vm1037, %v1030, %v1034
  %v1039 = vand.u32 2147483647, %v1008
  %vm1040 = vcmp.eq.f32.partialorder %v1039, 8.507059e+37
  %v1041 = vand.u32 %v1008, 2147483648
  %v1042 = vor.u32 1.1754944e-38, %v1041
  %v1043 = vsel %vm1040, %v1042, %v1038
  %v1044 = vmul.f32 1.0, %v1043
  %v1045 = vrcp.pop %v1009
  %v1046 = vmul.f32 %v1009, %v1045
  %v1047 = vsub.f32 1.0, %v1046
  %v1048 = vmul.f32 %v1045, %v1047
  %v1049 = vadd.f32 %v1045, %v1048
  %vm1050 = vweird.f32 %v1009
  %vm1051 = vweird.f32 %v1045
  %vm1052 = vmor %vm1050, %vm1051
  %v1053 = vsel %vm1052, %v1045, %v1049
  %v1054 = vand.u32 2147483647, %v1009
  %vm1055 = vcmp.eq.f32.partialorder %v1054, 8.507059e+37
  %v1056 = vand.u32 %v1009, 2147483648
  %v1057 = vor.u32 1.1754944e-38, %v1056
  %v1058 = vsel %vm1055, %v1057, %v1053
  %v1059 = vmul.f32 1.0, %v1058
  %v1060 = vrcp.pop %v1010
  %v1061 = vmul.f32 %v1010, %v1060
  %v1062 = vsub.f32 1.0, %v1061
  %v1063 = vmul.f32 %v1060, %v1062
  %v1064 = vadd.f32 %v1060, %v1063
  %vm1065 = vweird.f32 %v1010
  %vm1066 = vweird.f32 %v1060
  %vm1067 = vmor %vm1065, %vm1066
  %v1068 = vsel %vm1067, %v1060, %v1064
  %v1069 = vand.u32 2147483647, %v1010
  %vm1070 = vcmp.eq.f32.partialorder %v1069, 8.507059e+37
  %v1071 = vand.u32 %v1010, 2147483648
  %v1072 = vor.u32 1.1754944e-38, %v1071
  %v1073 = vsel %vm1070, %v1072, %v1068
  %v1074 = vmul.f32 1.0, %v1073
  %v1075 = vrcp.pop %v1011
  %v1076 = vmul.f32 %v1011, %v1075
  %v1077 = vsub.f32 1.0, %v1076
  %v1078 = vmul.f32 %v1075, %v1077
  %v1079 = vadd.f32 %v1075, %v1078
  %vm1080 = vweird.f32 %v1011
  %vm1081 = vweird.f32 %v1075
  %vm1082 = vmor %vm1080, %vm1081
  %v1083 = vsel %vm1082, %v1075, %v1079
  %v1084 = vand.u32 2147483647, %v1011
  %vm1085 = vcmp.eq.f32.partialorder %v1084, 8.507059e+37
  %v1086 = vand.u32 %v1011, 2147483648
  %v1087 = vor.u32 1.1754944e-38, %v1086
  %v1088 = vsel %vm1085, %v1087, %v1083
  %v1089 = vmul.f32 1.0, %v1088
  %v1090 = vrcp.pop %v1012
  %v1091 = vmul.f32 %v1012, %v1090
  %v1092 = vsub.f32 1.0, %v1091
  %v1093 = vmul.f32 %v1090, %v1092
  %v1094 = vadd.f32 %v1090, %v1093
  %vm1095 = vweird.f32 %v1012
  %vm1096 = vweird.f32 %v1090
  %vm1097 = vmor %vm1095, %vm1096
  %v1098 = vsel %vm1097, %v1090, %v1094
  %v1099 = vand.u32 2147483647, %v1012
  %vm1100 = vcmp.eq.f32.partialorder %v1099, 8.507059e+37
  %v1101 = vand.u32 %v1012, 2147483648
  %v1102 = vor.u32 1.1754944e-38, %v1101
  %v1103 = vsel %vm1100, %v1102, %v1098
  %v1104 = vmul.f32 1.0, %v1103
  %v1105 = vrcp.pop %v1013
  %v1106 = vmul.f32 %v1013, %v1105
  %v1107 = vsub.f32 1.0, %v1106
  %v1108 = vmul.f32 %v1105, %v1107
  %v1109 = vadd.f32 %v1105, %v1108
  %vm1110 = vweird.f32 %v1013
  %vm1111 = vweird.f32 %v1105
  %vm1112 = vmor %vm1110, %vm1111
  %v1113 = vsel %vm1112, %v1105, %v1109
  %v1114 = vand.u32 2147483647, %v1013
  %vm1115 = vcmp.eq.f32.partialorder %v1114, 8.507059e+37
  %v1116 = vand.u32 %v1013, 2147483648
  %v1117 = vor.u32 1.1754944e-38, %v1116
  %v1118 = vsel %vm1115, %v1117, %v1113
  %v1119 = vmul.f32 1.0, %v1118
  %v1120 = vrcp.pop %v1014
  %v1121 = vmul.f32 %v1014, %v1120
  %v1122 = vsub.f32 1.0, %v1121
  %v1123 = vmul.f32 %v1120, %v1122
  %v1124 = vadd.f32 %v1120, %v1123
  %vm1125 = vweird.f32 %v1014
  %vm1126 = vweird.f32 %v1120
  %vm1127 = vmor %vm1125, %vm1126
  %v1128 = vsel %vm1127, %v1120, %v1124
  %v1129 = vand.u32 2147483647, %v1014
  %vm1130 = vcmp.eq.f32.partialorder %v1129, 8.507059e+37
  %v1131 = vand.u32 %v1014, 2147483648
  %v1132 = vor.u32 1.1754944e-38, %v1131
  %v1133 = vsel %vm1130, %v1132, %v1128
  %v1134 = vmul.f32 1.0, %v1133
  %v1135 = vmul.f32 %v1029, 1.0614054
  %v1136 = vmul.f32 %v1044, 1.0614054
  %v1137 = vmul.f32 %v1059, 1.0614054
  %v1138 = vmul.f32 %v1074, 1.0614054
  %v1139 = vmul.f32 %v1089, 1.0614054
  %v1140 = vmul.f32 %v1104, 1.0614054
  %v1141 = vmul.f32 %v1119, 1.0614054
  %v1142 = vmul.f32 %v1134, 1.0614054
  %v1143 = vadd.f32 %v1135, -1.4531521
  %v1144 = vadd.f32 %v1136, -1.4531521
  %v1145 = vadd.f32 %v1137, -1.4531521
  %v1146 = vadd.f32 %v1138, -1.4531521
  %v1147 = vadd.f32 %v1139, -1.4531521
  %v1148 = vadd.f32 %v1140, -1.4531521
  %v1149 = vadd.f32 %v1141, -1.4531521
  %v1150 = vadd.f32 %v1142, -1.4531521
  %v1151 = vmul.f32 %v1143, %v1029
  %v1152 = vmul.f32 %v1144, %v1044
  %v1153 = vmul.f32 %v1145, %v1059
  %v1154 = vmul.f32 %v1146, %v1074
  %v1155 = vmul.f32 %v1147, %v1089
  %v1156 = vmul.f32 %v1148, %v1104
  %v1157 = vmul.f32 %v1149, %v1119
  %v1158 = vmul.f32 %v1150, %v1134
  %v1159 = vadd.f32 %v1151, 1.4214138
  %v1160 = vadd.f32 %v1152, 1.4214138
  %v1161 = vadd.f32 %v1153, 1.4214138
  %v1162 = vadd.f32 %v1154, 1.4214138
  %v1163 = vadd.f32 %v1155, 1.4214138
  %v1164 = vadd.f32 %v1156, 1.4214138
  %v1165 = vadd.f32 %v1157, 1.4214138
  %v1166 = vadd.f32 %v1158, 1.4214138
  %v1167 = vmul.f32 %v1159, %v1029
  %v1168 = vmul.f32 %v1160, %v1044
  %v1169 = vmul.f32 %v1161, %v1059
  %v1170 = vmul.f32 %v1162, %v1074
  %v1171 = vmul.f32 %v1163, %v1089
  %v1172 = vmul.f32 %v1164, %v1104
  %v1173 = vmul.f32 %v1165, %v1119
  %v1174 = vmul.f32 %v1166, %v1134
  %v1175 = vadd.f32 %v1167, -0.28449672
  %v1176 = vadd.f32 %v1168, -0.28449672
  %v1177 = vadd.f32 %v1169, -0.28449672
  %v1178 = vadd.f32 %v1170, -0.28449672
  %v1179 = vadd.f32 %v1171, -0.28449672
  %v1180 = vadd.f32 %v1172, -0.28449672
  %v1181 = vadd.f32 %v1173, -0.28449672
  %v1182 = vadd.f32 %v1174, -0.28449672
  %v1183 = vmul.f32 %v1175, %v1029
  %v1184 = vmul.f32 %v1176, %v1044
  %v1185 = vmul.f32 %v1177, %v1059
  %v1186 = vmul.f32 %v1178, %v1074
  %v1187 = vmul.f32 %v1179, %v1089
  %v1188 = vmul.f32 %v1180, %v1104
  %v1189 = vmul.f32 %v1181, %v1119
  %v1190 = vmul.f32 %v1182, %v1134
  %v1191 = vadd.f32 %v1183, 0.2548296
  %v1192 = vadd.f32 %v1184, 0.2548296
  %v1193 = vadd.f32 %v1185, 0.2548296
  %v1194 = vadd.f32 %v1186, 0.2548296
  %v1195 = vadd.f32 %v1187, 0.2548296
  %v1196 = vadd.f32 %v1188, 0.2548296
  %v1197 = vadd.f32 %v1189, 0.2548296
  %v1198 = vadd.f32 %v1190, 0.2548296
  %v1199 = vmul.f32 %v1191, %v1029
  %v1200 = vmul.f32 %v1192, %v1044
  %v1201 = vmul.f32 %v1193, %v1059
  %v1202 = vmul.f32 %v1194, %v1074
  %v1203 = vmul.f32 %v1195, %v1089
  %v1204 = vmul.f32 %v1196, %v1104
  %v1205 = vmul.f32 %v1197, %v1119
  %v1206 = vmul.f32 %v1198, %v1134
  %v1207 = vsub.f32 0.0, %v991
  %v1208 = vsub.f32 0.0, %v992
  %v1209 = vsub.f32 0.0, %v993
  %v1210 = vsub.f32 0.0, %v994
  %v1211 = vsub.f32 0.0, %v995
  %v1212 = vsub.f32 0.0, %v996
  %v1213 = vsub.f32 0.0, %v997
  %v1214 = vsub.f32 0.0, %v998
  %v1215 = vmul.f32 %v1207, %v991
  %v1216 = vmul.f32 %v1208, %v992
  %v1217 = vmul.f32 %v1209, %v993
  %v1218 = vmul.f32 %v1210, %v994
  %v1219 = vmul.f32 %v1211, %v995
  %v1220 = vmul.f32 %v1212, %v996
  %v1221 = vmul.f32 %v1213, %v997
  %v1222 = vmul.f32 %v1214, %v998
  %v1223 = vmul.f32 %v1215, 1.442695
  %v1224 = vpow.pop %v1223
  %v1225 = vmul.f32 %v1216, 1.442695
  %v1226 = vpow.pop %v1225
  %v1227 = vmul.f32 %v1217, 1.442695
  %v1228 = vpow.pop %v1227
  %v1229 = vmul.f32 %v1218, 1.442695
  %v1230 = vpow.pop %v1229
  %v1231 = vmul.f32 %v1219, 1.442695
  %v1232 = vpow.pop %v1231
  %v1233 = vmul.f32 %v1220, 1.442695
  %v1234 = vpow.pop %v1233
  %v1235 = vmul.f32 %v1221, 1.442695
  %v1236 = vpow.pop %v1235
  %v1237 = vmul.f32 %v1222, 1.442695
  %v1238 = vpow.pop %v1237
  %v1239 = vmul.f32 %v1199, %v1224
  %v1240 = vmul.f32 %v1200, %v1226
  %v1241 = vmul.f32 %v1201, %v1228
  %v1242 = vmul.f32 %v1202, %v1230
  %v1243 = vmul.f32 %v1203, %v1232
  %v1244 = vmul.f32 %v1204, %v1234
  %v1245 = vmul.f32 %v1205, %v1236
  %v1246 = vmul.f32 %v1206, %v1238
  %v1247 = vsub.f32 1.0, %v1239
  %v1248 = vsub.f32 1.0, %v1240
  %v1249 = vsub.f32 1.0, %v1241
  %v1250 = vsub.f32 1.0, %v1242
  %v1251 = vsub.f32 1.0, %v1243
  %v1252 = vsub.f32 1.0, %v1244
  %v1253 = vsub.f32 1.0, %v1245
  %v1254 = vsub.f32 1.0, %v1246
  %v1255 = vmul.f32 %v983, %v1247
  %v1256 = vmul.f32 %v984, %v1248
  %v1257 = vmul.f32 %v985, %v1249
  %v1258 = vmul.f32 %v986, %v1250
  %v1259 = vmul.f32 %v987, %v1251
  %v1260 = vmul.f32 %v988, %v1252
  %v1261 = vmul.f32 %v989, %v1253
  %v1262 = vmul.f32 %v990, %v1254
  %v1263 = vadd.f32 %v1255, 1.0
  %v1264 = vadd.f32 %v1256, 1.0
  %v1265 = vadd.f32 %v1257, 1.0
  %v1266 = vadd.f32 %v1258, 1.0
  %v1267 = vadd.f32 %v1259, 1.0
  %v1268 = vadd.f32 %v1260, 1.0
  %v1269 = vadd.f32 %v1261, 1.0
  %v1270 = vadd.f32 %v1262, 1.0
  %v1271 = vmul.f32 %v959, %v1263
  %v1272 = vmul.f32 %v960, %v1264
  %v1273 = vmul.f32 %v961, %v1265
  %v1274 = vmul.f32 %v962, %v1266
  %v1275 = vmul.f32 %v963, %v1267
  %v1276 = vmul.f32 %v964, %v1268
  %v1277 = vmul.f32 %v965, %v1269
  %v1278 = vmul.f32 %v966, %v1270
  %v1279 = vpack.c.bf16 %v1273, %v1271
  %v1280 = vpack.c.bf16 %v1274, %v1272
  %v1281 = vpack.c.bf16 %v1277, %v1275
  %v1282 = vpack.c.bf16 %v1278, %v1276
  %v1283 = vld [vmem:[%s14] sm:$0xf]
  %v1284 = vld [vmem:[%s14 + $0x4] sm:$0xf]
  %v1285 = vld [vmem:[%s14 + $0x8] sm:$0xf]
  %v1286 = vld [vmem:[%s14 + $0xc] sm:$0xf]
  %v1287 = vld [vmem:[%s14 + $0x10] sm:$0xf]
  %v1288 = vld [vmem:[%s14 + $0x14] sm:$0xf]
  %v1289 = vld [vmem:[%s14 + $0x18] sm:$0xf]
  %v1290 = vld [vmem:[%s14 + $0x1c] sm:$0xf]
  %v1291 = vld [vmem:[%s14 + $0x20] sm:$0xf]
  %v1292 = vld [vmem:[%s14 + $0x24] sm:$0xf]
  %v1293 = vld [vmem:[%s14 + $0x28] sm:$0xf]
  %v1294 = vld [vmem:[%s14 + $0x2c] sm:$0xf]
  %v1295 = vld [vmem:[%s14 + $0x30] sm:$0xf]
  %v1296 = vld [vmem:[%s14 + $0x34] sm:$0xf]
  %v1297 = vld [vmem:[%s14 + $0x38] sm:$0xf]
  %v1298 = vld [vmem:[%s14 + $0x3c] sm:$0xf]
  %v1299 = vld [vmem:[%s14 + $0x40] sm:$0xf]
  %v1300 = vld [vmem:[%s14 + $0x44] sm:$0xf]
  %v1301 = vld [vmem:[%s14 + $0x48] sm:$0xf]
  %v1302 = vld [vmem:[%s14 + $0x4c] sm:$0xf]
  %v1303 = vld [vmem:[%s14 + $0x50] sm:$0xf]
  %v1304 = vld [vmem:[%s14 + $0x54] sm:$0xf]
  %v1305 = vld [vmem:[%s14 + $0x58] sm:$0xf]
  %v1306 = vld [vmem:[%s14 + $0x5c] sm:$0xf]
  %v1307 = vld [vmem:[%s15] sm:$0x1]
  %v1309 = vperm.slane %v1307, 0
  %v1335 = vunpack.c.l.b16 %v1283
  %v1336 = vunpack.c.l.b16 %v1284
  %v1337 = vunpack.c.l.b16 %v1285
  %v1338 = vunpack.c.l.b16 %v1286
  %v1339 = vunpack.c.l.b16 %v1287
  %v1340 = vunpack.c.l.b16 %v1288
  %v1341 = vunpack.c.l.b16 %v1289
  %v1342 = vunpack.c.l.b16 %v1290
  %v1343 = vunpack.c.l.b16 %v1291
  %v1344 = vunpack.c.l.b16 %v1292
  %v1345 = vunpack.c.l.b16 %v1293
  %v1346 = vunpack.c.l.b16 %v1294
  %v1347 = vunpack.c.l.b16 %v1295
  %v1348 = vunpack.c.l.b16 %v1296
  %v1349 = vunpack.c.l.b16 %v1297
  %v1350 = vunpack.c.l.b16 %v1298
  %v1351 = vunpack.c.l.b16 %v1299
  %v1352 = vunpack.c.l.b16 %v1300
  %v1353 = vunpack.c.l.b16 %v1301
  %v1354 = vunpack.c.l.b16 %v1302
  %v1355 = vunpack.c.l.b16 %v1303
  %v1356 = vunpack.c.l.b16 %v1304
  %v1357 = vunpack.c.l.b16 %v1305
  %v1358 = vunpack.c.l.b16 %v1306
  %v1359 = vpack.c.b16 %v1336, %v1335
  %v1360 = vpack.c.b16 %v1338, %v1337
  %v1361 = vpack.c.b16 %v1340, %v1339
  %v1362 = vpack.c.b16 %v1342, %v1341
  %v1363 = vpack.c.b16 %v1344, %v1343
  %v1364 = vpack.c.b16 %v1346, %v1345
  %v1365 = vpack.c.b16 %v1348, %v1347
  %v1366 = vpack.c.b16 %v1350, %v1349
  %v1367 = vpack.c.b16 %v1352, %v1351
  %v1368 = vpack.c.b16 %v1354, %v1353
  %v1369 = vpack.c.b16 %v1356, %v1355
  %v1370 = vpack.c.b16 %v1358, %v1357
  %vm1383 = vcmask 523264
  %v1385 = vsel %vm1383, %v1280, 0
  %v1388 = vsel %vm1383, %v1282, 0
  %1390 = vmatpush.bf16.msra.mxu0 %v1366
  %1391 = vmatpush.bf16.msra.mxu0 %v1365
  %1392 = vmatpush.bf16.msra.mxu0 %v1364
  %1393 = vmatpush.bf16.msra.mxu0 %v1363
  %1394 = vmatpush.bf16.msra.mxu0 %v1362
  %1395 = vmatpush.bf16.msra.mxu0 %v1361
  %1396 = vmatpush.bf16.msra.mxu0 %v1360
  %1397 = vmatpush.bf16.msra.mxu0 %v1359
  %1398 = vmatmul.bf16.gmra.mxu0 %v1279
  %v1399 = vpop.f32.mrf.mxu0
  %v1400 = vadd.f32 %v1309, %v1399
  %v1401 = vpop.f32.mrf.mxu0
  %v1402 = vadd.f32 %v1309, %v1401
  %1403 = vmatmul.bf16.gmra.mxu0 %v1281
  %v1404 = vpop.f32.mrf.mxu0
  %v1405 = vadd.f32 %v1309, %v1404
  %v1406 = vpop.f32.mrf.mxu0
  %v1407 = vadd.f32 %v1309, %v1406
  %1408 = vdwg.mxu0
  %1409 = vmatpush.bf16.msra.mxu0 0
  %1410 = vmatpush.bf16.msra.mxu0 0
  %1411 = vmatpush.bf16.msra.mxu0 0
  %1412 = vmatpush.bf16.msra.mxu0 0
  %1413 = vmatpush.bf16.msra.mxu0 %v1370
  %1414 = vmatpush.bf16.msra.mxu0 %v1369
  %1415 = vmatpush.bf16.msra.mxu0 %v1368
  %1416 = vmatpush.bf16.msra.mxu0 %v1367
  %1417 = vmatmul.bf16.gmra.mxu0 %v1385
  %v1418 = vpop.f32.mrf.mxu0
  %v1419 = vadd.f32 %v1400, %v1418
  %v1420 = vpop.f32.mrf.mxu0
  %v1421 = vadd.f32 %v1402, %v1420
  %1422 = vmatmul.bf16.gmra.mxu0 %v1388
  %v1423 = vpop.f32.mrf.mxu0
  %v1424 = vadd.f32 %v1405, %v1423
  %v1425 = vpop.f32.mrf.mxu0
  %v1426 = vadd.f32 %v1407, %v1425
  %1427 = vdwg.mxu0
  %v1428 = vadd.f32 %v763, %v1419
  %v1429 = vadd.f32 %v764, %v1421
  %v1430 = vadd.f32 %v765, %v1424
  %v1431 = vadd.f32 %v766, %v1426
  %1432 = vst.msk [vmem:[%s16] sm:$0xff] %vm66, %v1428
  %1433 = vst.msk [vmem:[%s16 + $0x8] sm:$0xff] %vm66, %v1429
  %1434 = vst.msk [vmem:[%s16 + $0x10] sm:$0xff] %vm66, %v1430
  %1435 = vst.msk [vmem:[%s16 + $0x18] sm:$0xff] %vm66, %v1431
  %v1436 = vld [vmem:[%s2] sm:$0x3]
  %v1438 = vsel %vm312, %v1436, 0
  %v1441 = vsel %vm312, %v685, 0
  %v1444 = vsel %vm312, %v686, 0
  %v1447 = vsel %vm312, %v687, 0
  %v1450 = vsel %vm312, %v688, 0
  %1452 = vmatpush.xpose.msra.mxu0 0.0
  %1453 = vmatpush.xpose.msra.mxu0 0.0
  %1454 = vmatpush.xpose.msra.mxu0 0.0
  %1455 = vmatpush.xpose.msra.mxu0 0.0
  %1456 = vmatpush.xpose.msra.mxu0 0.0
  %1457 = vmatpush.xpose.msra.mxu0 0.0
  %1458 = vmatpush.xpose.msra.mxu0 0.0
  %1459 = vmatpush.xpose.msra.mxu0 0.0
  %1460 = vmatpush.xpose.msra.mxu0 0.0
  %1461 = vmatpush.xpose.msra.mxu0 0.0
  %1462 = vmatpush.xpose.msra.mxu0 0.0
  %1463 = vmatpush.xpose.msra.mxu0 0.0
  %1464 = vmatpush.xpose.msra.mxu0 %v1450
  %1465 = vmatpush.xpose.msra.mxu0 %v1447
  %1466 = vmatpush.xpose.msra.mxu0 %v1444
  %1467 = vmatpush.xpose.msra.mxu0 %v1441
  %1468 = vmatmul.f32.gmra.mxu0 %v1438
  %v1469 = vpop.f32.mrf.mxu0
  %v1470 = vadd.f32 0.0, %v1469
  %1471 = vdwg.mxu0
  %v1472 = vld [vmem:[%s3] sm:$0xff]
  %v1473 = vld [vmem:[%s3 + $0x8] sm:$0xff]
  %v1474 = vld [vmem:[%s3 + $0x10] sm:$0xff]
  %v1475 = vld [vmem:[%s3 + $0x18] sm:$0xff]
  %v1477 = vsel %vm312, %v1470, 0
  %1479 = vmatpush.msra.mxu0 0.0
  %1480 = vmatpush.msra.mxu0 0.0
  %1481 = vmatpush.msra.mxu0 0.0
  %1482 = vmatpush.msra.mxu0 0.0
  %1483 = vmatpush.msra.mxu0 0.0
  %1484 = vmatpush.msra.mxu0 0.0
  %1485 = vmatpush.msra.mxu0 0.0
  %1486 = vmatpush.msra.mxu0 0.0
  %1487 = vmatpush.msra.mxu0 0.0
  %1488 = vmatpush.msra.mxu0 0.0
  %1489 = vmatpush.msra.mxu0 0.0
  %1490 = vmatpush.msra.mxu0 0.0
  %1491 = vmatpush.msra.mxu0 %v1475
  %1492 = vmatpush.msra.mxu0 %v1474
  %1493 = vmatpush.msra.mxu0 %v1473
  %1494 = vmatpush.msra.mxu0 %v1472
  %1495 = vmatmul.f32.gmra.mxu0 %v1477
  %v1496 = vpop.f32.mrf.mxu0
  %v1497 = vadd.f32 0.0, %v1496
  %1498 = vdwg.mxu0
  %v1499 = vmul.f32 %v1497, 0.33333334
  %vm1500 = vcmask 123904
  %1501 = vst.msk [vmem:[%s17] sm:$0x3] %vm1500, %v1499
  // Predicated region
  $region66: #{_lambda_.10} parent=0 // pred_check
    _
  $region67: #{_lambda_.10} parent=0 // pred_check_branch
    %1503 = sbr.rel (0) target = $region69
  $region68: #{_lambda_.10} parent=0 // pred_region
    _
  $region69: #{_lambda_.10} parent=0 // pred_fallthru
    _
  // Predicated region
  $region70: #{_lambda_.10} parent=0 // pred_check
    _
  $region71: #{_lambda_.10} parent=0 // pred_check_branch
    %1505 = sbr.rel (0) target = $region73
  $region72: #{_lambda_.10} parent=0 // pred_region
    _
  $region73: #{_lambda_.10} parent=0 // pred_fallthru
    _
  // Predicated region
  $region74: #{_lambda_.10} parent=0 // pred_check
    _
  $region75: #{_lambda_.10} parent=0 // pred_check_branch
    %1507 = sbr.rel (0) target = $region77
  $region76: #{_lambda_.10} parent=0 // pred_region
    _
  $region77: #{_lambda_.10} parent=0 // pred_fallthru
    _
  // Predicated region
  $region78: #{_lambda_.10} parent=0 // pred_check
    _
  $region79: #{_lambda_.10} parent=0 // pred_check_branch
    %1509 = sbr.rel (0) target = $region81
  $region80: #{_lambda_.10} parent=0 // pred_region
    _
  $region81: #{_lambda_.10} parent=0 // pred_fallthru
    _

// kernel: _lambda_.11
$region0: #{_lambda_.11}
  #allocation0 [shape = 'u32[]', space=smem, size = 0x4, offset = 0x4, fixed_abs, tag = 'smem constant byte address 0x4 - core index']
  #allocation1 [shape = 'u32[72,128]{1,0:T(1,128)}', space=vmem, size = 0x9000, scoped, tag = 'internal scratch']
  %s0 = inlined_call_operand.vmem [shape: f32[128,12], index: 0, kind: input, shape index: {}]
  %s1 = inlined_call_operand.vmem [shape: bf16[12,48], index: 1, kind: input, shape index: {}]
  %s2 = inlined_call_operand.vmem [shape: f32[1,48], index: 2, kind: input, shape index: {}]
  %s3 = inlined_call_operand.vmem [shape: f32[128,48], index: 3, kind: output, shape index: {}]
  %s4 = sld [smem:[#allocation0]]
  $region22: #{_lambda_.11} parent=0
    _
  %s6 = ssub.s32 1, %s4
  %s7 = scalar_select 0, %s6, %s4
  // Predicated region
  $region2: #{_lambda_.11} parent=0 // pred_check
    _
  $region3: #{_lambda_.11} parent=0 // pred_check_branch
    %9 = sbr.rel (0) target = $region5
  $region4: #{_lambda_.11} parent=0 // pred_region
    _
  $region5: #{_lambda_.11} parent=0 // pred_fallthru
    _
  // Predicated region
  $region6: #{_lambda_.11} parent=0 // pred_check
    _
  $region7: #{_lambda_.11} parent=0 // pred_check_branch
    %11 = sbr.rel (0) target = $region9
  $region8: #{_lambda_.11} parent=0 // pred_region
    _
  $region9: #{_lambda_.11} parent=0 // pred_fallthru
    _
  // Predicated region
  $region10: #{_lambda_.11} parent=0 // pred_check
    _
  $region11: #{_lambda_.11} parent=0 // pred_check_branch
    %13 = sbr.rel (0) target = $region13
  $region12: #{_lambda_.11} parent=0 // pred_region
    _
  $region13: #{_lambda_.11} parent=0 // pred_fallthru
    _
  %v15 = vld [vmem:[%s0] sm:$0xff]
  %v16 = vld [vmem:[%s0 + $0x8] sm:$0xff]
  %v17 = vld [vmem:[%s0 + $0x10] sm:$0xff]
  %v18 = vld [vmem:[%s0 + $0x18] sm:$0xff]
  %v19 = vld [vmem:[%s0 + $0x20] sm:$0xff]
  %v20 = vld [vmem:[%s0 + $0x28] sm:$0xff]
  %v21 = vld [vmem:[%s0 + $0x30] sm:$0xff]
  %v22 = vld [vmem:[%s0 + $0x38] sm:$0xff]
  %v23 = vld [vmem:[%s0 + $0x40] sm:$0xff]
  %v24 = vld [vmem:[%s0 + $0x48] sm:$0xff]
  %v25 = vld [vmem:[%s0 + $0x50] sm:$0xff]
  %v26 = vld [vmem:[%s0 + $0x58] sm:$0xff]
  %v27 = vld [vmem:[%s0 + $0x60] sm:$0xff]
  %v28 = vld [vmem:[%s0 + $0x68] sm:$0xff]
  %v29 = vld [vmem:[%s0 + $0x70] sm:$0xff]
  %v30 = vld [vmem:[%s0 + $0x78] sm:$0xff]
  %v31 = vpack.c.bf16 %v16, %v15
  %v32 = vpack.c.bf16 %v18, %v17
  %v33 = vpack.c.bf16 %v20, %v19
  %v34 = vpack.c.bf16 %v22, %v21
  %v35 = vpack.c.bf16 %v24, %v23
  %v36 = vpack.c.bf16 %v26, %v25
  %v37 = vpack.c.bf16 %v28, %v27
  %v38 = vpack.c.bf16 %v30, %v29
  %v39 = vld [vmem:[%s1] sm:$0xf]
  %v40 = vld [vmem:[%s1 + $0x4] sm:$0x3]
  %v41 = vld [vmem:[%s2] sm:$0x1]
  %v43 = vperm.slane %v41, 0
  %v47 = vunpack.c.l.b16 %v39
  %v48 = vunpack.c.l.b16 %v40
  %v49 = vpack.c.b16 %v48, %v47
  %vm50 = vcmask 97280
  %v52 = vsel %vm50, %v31, 0
  %v55 = vsel %vm50, %v32, 0
  %v58 = vsel %vm50, %v33, 0
  %v61 = vsel %vm50, %v34, 0
  %v64 = vsel %vm50, %v35, 0
  %v67 = vsel %vm50, %v36, 0
  %v70 = vsel %vm50, %v37, 0
  %v73 = vsel %vm50, %v38, 0
  %vm75 = vcmask 1045504
  %v77 = vsel %vm75, %v49, 0
  %79 = vmatpush.bf16.msra.mxu0 0
  %80 = vmatpush.bf16.msra.mxu0 0
  %81 = vmatpush.bf16.msra.mxu0 0
  %82 = vmatpush.bf16.msra.mxu0 0
  %83 = vmatpush.bf16.msra.mxu0 0
  %84 = vmatpush.bf16.msra.mxu0 0
  %85 = vmatpush.bf16.msra.mxu0 0
  %86 = vmatpush.bf16.msra.mxu0 %v77
  %87 = vmatmul.bf16.gmra.mxu0 %v52
  %v88 = vpop.f32.mrf.mxu0
  %v89 = vadd.f32 %v43, %v88
  %v90 = vpop.f32.mrf.mxu0
  %v91 = vadd.f32 %v43, %v90
  %92 = vmatmul.bf16.gmra.mxu0 %v55
  %v93 = vpop.f32.mrf.mxu0
  %v94 = vadd.f32 %v43, %v93
  %v95 = vpop.f32.mrf.mxu0
  %v96 = vadd.f32 %v43, %v95
  %97 = vmatmul.bf16.gmra.mxu0 %v58
  %v98 = vpop.f32.mrf.mxu0
  %v99 = vadd.f32 %v43, %v98
  %v100 = vpop.f32.mrf.mxu0
  %v101 = vadd.f32 %v43, %v100
  %102 = vmatmul.bf16.gmra.mxu0 %v61
  %v103 = vpop.f32.mrf.mxu0
  %v104 = vadd.f32 %v43, %v103
  %v105 = vpop.f32.mrf.mxu0
  %v106 = vadd.f32 %v43, %v105
  %107 = vmatmul.bf16.gmra.mxu0 %v64
  %v108 = vpop.f32.mrf.mxu0
  %v109 = vadd.f32 %v43, %v108
  %v110 = vpop.f32.mrf.mxu0
  %v111 = vadd.f32 %v43, %v110
  %112 = vmatmul.bf16.gmra.mxu0 %v67
  %v113 = vpop.f32.mrf.mxu0
  %v114 = vadd.f32 %v43, %v113
  %v115 = vpop.f32.mrf.mxu0
  %v116 = vadd.f32 %v43, %v115
  %117 = vmatmul.bf16.gmra.mxu0 %v70
  %v118 = vpop.f32.mrf.mxu0
  %v119 = vadd.f32 %v43, %v118
  %v120 = vpop.f32.mrf.mxu0
  %v121 = vadd.f32 %v43, %v120
  %122 = vmatmul.bf16.gmra.mxu0 %v73
  %v123 = vpop.f32.mrf.mxu0
  %v124 = vadd.f32 %v43, %v123
  %v125 = vpop.f32.mrf.mxu0
  %v126 = vadd.f32 %v43, %v125
  %127 = vdwg.mxu0
  %vm128 = vcmask 392192
  %129 = vst.msk [vmem:[%s3] sm:$0xff] %vm128, %v89
  %130 = vst.msk [vmem:[%s3 + $0x8] sm:$0xff] %vm128, %v91
  %131 = vst.msk [vmem:[%s3 + $0x10] sm:$0xff] %vm128, %v94
  %132 = vst.msk [vmem:[%s3 + $0x18] sm:$0xff] %vm128, %v96
  %133 = vst.msk [vmem:[%s3 + $0x20] sm:$0xff] %vm128, %v99
  %134 = vst.msk [vmem:[%s3 + $0x28] sm:$0xff] %vm128, %v101
  %135 = vst.msk [vmem:[%s3 + $0x30] sm:$0xff] %vm128, %v104
  %136 = vst.msk [vmem:[%s3 + $0x38] sm:$0xff] %vm128, %v106
  %137 = vst.msk [vmem:[%s3 + $0x40] sm:$0xff] %vm128, %v109
  %138 = vst.msk [vmem:[%s3 + $0x48] sm:$0xff] %vm128, %v111
  %139 = vst.msk [vmem:[%s3 + $0x50] sm:$0xff] %vm128, %v114
  %140 = vst.msk [vmem:[%s3 + $0x58] sm:$0xff] %vm128, %v116
  %141 = vst.msk [vmem:[%s3 + $0x60] sm:$0xff] %vm128, %v119
  %142 = vst.msk [vmem:[%s3 + $0x68] sm:$0xff] %vm128, %v121
  %143 = vst.msk [vmem:[%s3 + $0x70] sm:$0xff] %vm128, %v124
  %144 = vst.msk [vmem:[%s3 + $0x78] sm:$0xff] %vm128, %v126
  // Predicated region
  $region14: #{_lambda_.11} parent=0 // pred_check
    _
  $region15: #{_lambda_.11} parent=0 // pred_check_branch
    %146 = sbr.rel (0) target = $region17
  $region16: #{_lambda_.11} parent=0 // pred_region
    _
  $region17: #{_lambda_.11} parent=0 // pred_fallthru
    _
  // Predicated region
  $region18: #{_lambda_.11} parent=0 // pred_check
    _
  $region19: #{_lambda_.11} parent=0 // pred_check_branch
    %148 = sbr.rel (0) target = $region21
  $region20: #{_lambda_.11} parent=0 // pred_region
    _
  $region21: #{_lambda_.11} parent=0 // pred_fallthru
    _

// kernel: _lambda_.13
$region0: #{_lambda_.13}
  #allocation0 [shape = 'u32[]', space=smem, size = 0x4, offset = 0x4, fixed_abs, tag = 'smem constant byte address 0x4 - core index']
  #allocation1 [shape = 'u32[72,128]{1,0:T(1,128)}', space=vmem, size = 0x9000, scoped, tag = 'internal scratch']
  %s0 = inlined_call_operand.vmem [shape: f32[2,48], index: 0, kind: input, shape index: {}]
  %s1 = inlined_call_operand.vmem [shape: f32[1,48], index: 1, kind: input, shape index: {}]
  %s2 = inlined_call_operand.vmem [shape: f32[1,48], index: 2, kind: input, shape index: {}]
  %s3 = inlined_call_operand.vmem [shape: f32[48,16], index: 3, kind: input, shape index: {}]
  %s4 = inlined_call_operand.vmem [shape: f32[1,16], index: 4, kind: input, shape index: {}]
  %s5 = inlined_call_operand.hbm [shape: f32[2,16], index: 5, kind: output, shape index: {}]
  %s6 = sld [smem:[#allocation0]]
  $region30: #{_lambda_.13} parent=0
    _
  %s8 = ssub.s32 1, %s6
  %s9 = scalar_select 0, %s8, %s6
  $region1: #{_lambda_.13} parent=0
    #allocation2 [shape = 'u8[1024]{0}', space=vmem, size = 0x400, scoped, tag = 'output window, operand 0, single buffered']
    #allocation3 [shape = 's32[1]{0}', space=sflag, size = 0x4, scoped, tag = 'scoped memory for _lambda_.13']
    %10 = vsyncpa [#allocation3], 0
    // Predicated region
    $region2: #{_lambda_.13} parent=1 // pred_check
      _
    $region3: #{_lambda_.13} parent=1 // pred_check_branch
      %12 = sbr.rel (0) target = $region5
    $region4: #{_lambda_.13} parent=1 // pred_region
      _
    $region5: #{_lambda_.13} parent=1 // pred_fallthru
      _
    // Predicated region
    $region6: #{_lambda_.13} parent=1 // pred_check
      _
    $region7: #{_lambda_.13} parent=1 // pred_check_branch
      %14 = sbr.rel (0) target = $region9
    $region8: #{_lambda_.13} parent=1 // pred_region
      _
    $region9: #{_lambda_.13} parent=1 // pred_fallthru
      _
    // Predicated region
    $region10: #{_lambda_.13} parent=1 // pred_check
      _
    $region11: #{_lambda_.13} parent=1 // pred_check_branch
      %16 = sbr.rel (0) target = $region13
    $region12: #{_lambda_.13} parent=1 // pred_region
      _
    $region13: #{_lambda_.13} parent=1 // pred_fallthru
      _
    // Predicated region
    $region14: #{_lambda_.13} parent=1 // pred_check
      _
    $region15: #{_lambda_.13} parent=1 // pred_check_branch
      %18 = sbr.rel (0) target = $region17
    $region16: #{_lambda_.13} parent=1 // pred_region
      _
    $region17: #{_lambda_.13} parent=1 // pred_fallthru
      _
    // Predicated region
    $region18: #{_lambda_.13} parent=1 // pred_check
      _
    $region19: #{_lambda_.13} parent=1 // pred_check_branch
      %20 = sbr.rel (0) target = $region21
    $region20: #{_lambda_.13} parent=1 // pred_region
      _
    $region21: #{_lambda_.13} parent=1 // pred_fallthru
      _
    %v21 = vld [vmem:[%s0] sm:$0x3]
    %v22 = vld [vmem:[%s1] sm:$0x1]
    %v23 = vld [vmem:[%s2] sm:$0x1]
    %vm24 = vcmask 386048
    %v25 = vsel %vm24, %v21, 0.0
    %26 = vadd.xlane.f32.xlu0 %v25
    %v27 = vpop.xlane.xlu0 %26
    %v28 = vrcp.pop 48.0
    %v29 = vmul.f32 48.0, %v28
    %v30 = vsub.f32 1.0, %v29
    %v31 = vmul.f32 %v28, %v30
    %v32 = vadd.f32 %v28, %v31
    %vm33 = vweird.f32 %v28
    %v34 = vsel %vm33, %v28, %v32
    %v35 = vmul.f32 %v27, %v34
    %v36 = vsub.f32 %v21, %v35
    %v37 = vmul.f32 %v36, %v36
    %v38 = vsel %vm24, %v37, 0.0
    %39 = vadd.xlane.f32.xlu0 %v38
    %v40 = vpop.xlane.xlu0 %39
    %v41 = vmul.f32 %v40, %v34
    %v42 = vadd.f32 %v41, 1e-06
    %v43 = vrsqrt.pop %v42
    %v44 = vmul.f32 %v43, %v42
    %v45 = vmul.f32 %v44, %v43
    %v46 = vmul.f32 0.5, %v45
    %v47 = vsub.f32 1.5, %v46
    %v48 = vmul.f32 %v43, %v47
    %vm49 = vweird.f32 %v42
    %vm50 = vweird.f32 %v43
    %vm51 = vmor %vm49, %vm50
    %v52 = vsel %vm51, %v43, %v48
    %v53 = vmul.f32 %v36, %v52
    %v55 = vperm.slane %v22, 0
    %v57 = vmul.f32 %v53, %v55
    %v59 = vperm.slane %v23, 0
    %v61 = vadd.f32 %v57, %v59
    %v62 = vld [vmem:[%s3] sm:$0xff]
    %v63 = vld [vmem:[%s3 + $0x8] sm:$0xff]
    %v64 = vld [vmem:[%s3 + $0x10] sm:$0xff]
    %v65 = vld [vmem:[%s3 + $0x18] sm:$0xff]
    %v66 = vld [vmem:[%s3 + $0x20] sm:$0xff]
    %v67 = vld [vmem:[%s3 + $0x28] sm:$0xff]
    %v68 = vld [vmem:[%s4] sm:$0x1]
    %v70 = vperm.slane %v68, 0
    %vm72 = vcmask 392192
    %v74 = vsel %vm72, %v61, 0
    %76 = vmatpush.msra.mxu0 0.0
    %77 = vmatpush.msra.mxu0 0.0
    %78 = vmatpush.msra.mxu0 0.0
    %79 = vmatpush.msra.mxu0 0.0
    %80 = vmatpush.msra.mxu0 0.0
    %81 = vmatpush.msra.mxu0 0.0
    %82 = vmatpush.msra.mxu0 0.0
    %83 = vmatpush.msra.mxu0 0.0
    %84 = vmatpush.msra.mxu0 0.0
    %85 = vmatpush.msra.mxu0 0.0
    %86 = vmatpush.msra.mxu0 %v67
    %87 = vmatpush.msra.mxu0 %v66
    %88 = vmatpush.msra.mxu0 %v65
    %89 = vmatpush.msra.mxu0 %v64
    %90 = vmatpush.msra.mxu0 %v63
    %91 = vmatpush.msra.mxu0 %v62
    %92 = vmatmul.f32.gmra.mxu0 %v74
    %v93 = vpop.f32.mrf.mxu0
    %v94 = vadd.f32 %v70, %v93
    %95 = vdwg.mxu0
    %vm96 = vcmask 123904
    %97 = vst.msk [vmem:[#allocation2] sm:$0x3] %vm96, %v94
    // Predicated region
    $region22: #{_lambda_.13} parent=1 // pred_check
      _
    $region23: #{_lambda_.13} parent=1 // pred_check_branch
      %99 = sbr.rel (0) target = $region25
    $region24: #{_lambda_.13} parent=1 // pred_region
      %101 = vsyncadd [#allocation3], 0
      %s103 = sshll.u32 [#allocation2], 4
      %s104 = int_to_ptr.vmem [resolvable:$true] %s103
      %s105 = sshll.u32 %s5, 4
      %s106 = int_to_ptr.hbm [resolvable:$true] %s105
      %108 = dma.vmem_to_hbm [thread:$0]  %s104, 32, %s106, [#allocation3]
    $region25: #{_lambda_.13} parent=1 // pred_fallthru
      _
    // Predicated region
    $region26: #{_lambda_.13} parent=1 // pred_check
      _
    $region27: #{_lambda_.13} parent=1 // pred_check_branch
      %110 = sbr.rel (0) target = $region29
    $region28: #{_lambda_.13} parent=1 // pred_region
      %112 = dma.done [#allocation3], 32
    $region29: #{_lambda_.13} parent=1 // pred_fallthru
      _
    %113 = vsyncpa [#allocation3], 1

// kernel: _lambda_.12
$region0: #{_lambda_.12}
  #allocation0 [shape = 'u32[]', space=smem, size = 0x4, offset = 0x4, fixed_abs, tag = 'smem constant byte address 0x4 - core index']
  #allocation1 [shape = 'u32[72,128]{1,0:T(1,128)}', space=vmem, size = 0x9000, scoped, tag = 'internal scratch']
  %s0 = inlined_call_operand.vmem [shape: f32[64,48], index: 0, kind: input, shape index: {}]
  %s1 = inlined_call_operand.vmem [shape: f32[64,64], index: 1, kind: input, shape index: {}]
  %s2 = inlined_call_operand.vmem [shape: f32[2,64], index: 2, kind: input, shape index: {}]
  %s3 = inlined_call_operand.vmem [shape: f32[64,32], index: 3, kind: input, shape index: {}]
  %s4 = inlined_call_operand.vmem [shape: f32[1,48], index: 4, kind: input, shape index: {}, may-alias: {4,10}]
  %s5 = inlined_call_operand.vmem [shape: f32[1,48], index: 5, kind: input, shape index: {}, may-alias: {5,9,11,15}]
  %s6 = inlined_call_operand.vmem [shape: bf16[48,144], index: 6, kind: input, shape index: {}]
  %s7 = inlined_call_operand.vmem [shape: f32[1,144], index: 7, kind: input, shape index: {}]
  %s8 = inlined_call_operand.vmem [shape: bf16[48,48], index: 8, kind: input, shape index: {}]
  %s9 = inlined_call_operand.vmem [shape: f32[1,48], index: 9, kind: input, shape index: {}, may-alias: {5,9,11,15}]
  %s10 = inlined_call_operand.vmem [shape: f32[1,48], index: 10, kind: input, shape index: {}, may-alias: {4,10}]
  %s11 = inlined_call_operand.vmem [shape: f32[1,48], index: 11, kind: input, shape index: {}, may-alias: {5,9,11,15}]
  %s12 = inlined_call_operand.vmem [shape: bf16[48,192], index: 12, kind: input, shape index: {}]
  %s13 = inlined_call_operand.vmem [shape: f32[1,192], index: 13, kind: input, shape index: {}]
  %s14 = inlined_call_operand.vmem [shape: bf16[192,48], index: 14, kind: input, shape index: {}]
  %s15 = inlined_call_operand.vmem [shape: f32[1,48], index: 15, kind: input, shape index: {}, may-alias: {5,9,11,15}]
  %s16 = inlined_call_operand.vmem [shape: f32[64,48], index: 16, kind: output, shape index: {0}]
  %s17 = inlined_call_operand.hbm [shape: f32[2,32], index: 17, kind: output, shape index: {1}]
  %18 = xla_tuple %s16, %s17
  %s19 = sld [smem:[#allocation0]]
  $region82: #{_lambda_.12} parent=0
    _
  %s21 = ssub.s32 1, %s19
  %s22 = scalar_select 0, %s21, %s19
  $region1: #{_lambda_.12} parent=0
    #allocation2 [shape = 'u8[1024]{0}', space=vmem, size = 0x400, scoped, tag = 'output window, operand 1, single buffered']
    #allocation3 [shape = 's32[1]{0}', space=sflag, size = 0x4, scoped, tag = 'scoped memory for _lambda_.12']
    %23 = vsyncpa [#allocation3], 0
    // Predicated region
    $region2: #{_lambda_.12} parent=1 // pred_check
      _
    $region3: #{_lambda_.12} parent=1 // pred_check_branch
      %25 = sbr.rel (0) target = $region5
    $region4: #{_lambda_.12} parent=1 // pred_region
      _
    $region5: #{_lambda_.12} parent=1 // pred_fallthru
      _
    // Predicated region
    $region6: #{_lambda_.12} parent=1 // pred_check
      _
    $region7: #{_lambda_.12} parent=1 // pred_check_branch
      %27 = sbr.rel (0) target = $region9
    $region8: #{_lambda_.12} parent=1 // pred_region
      _
    $region9: #{_lambda_.12} parent=1 // pred_fallthru
      _
    // Predicated region
    $region10: #{_lambda_.12} parent=1 // pred_check
      _
    $region11: #{_lambda_.12} parent=1 // pred_check_branch
      %29 = sbr.rel (0) target = $region13
    $region12: #{_lambda_.12} parent=1 // pred_region
      _
    $region13: #{_lambda_.12} parent=1 // pred_fallthru
      _
    // Predicated region
    $region14: #{_lambda_.12} parent=1 // pred_check
      _
    $region15: #{_lambda_.12} parent=1 // pred_check_branch
      %31 = sbr.rel (0) target = $region17
    $region16: #{_lambda_.12} parent=1 // pred_region
      _
    $region17: #{_lambda_.12} parent=1 // pred_fallthru
      _
    // Predicated region
    $region18: #{_lambda_.12} parent=1 // pred_check
      _
    $region19: #{_lambda_.12} parent=1 // pred_check_branch
      %33 = sbr.rel (0) target = $region21
    $region20: #{_lambda_.12} parent=1 // pred_region
      _
    $region21: #{_lambda_.12} parent=1 // pred_fallthru
      _
    // Predicated region
    $region22: #{_lambda_.12} parent=1 // pred_check
      _
    $region23: #{_lambda_.12} parent=1 // pred_check_branch
      %35 = sbr.rel (0) target = $region25
    $region24: #{_lambda_.12} parent=1 // pred_region
      _
    $region25: #{_lambda_.12} parent=1 // pred_fallthru
      _
    // Predicated region
    $region26: #{_lambda_.12} parent=1 // pred_check
      _
    $region27: #{_lambda_.12} parent=1 // pred_check_branch
      %37 = sbr.rel (0) target = $region29
    $region28: #{_lambda_.12} parent=1 // pred_region
      _
    $region29: #{_lambda_.12} parent=1 // pred_fallthru
      _
    // Predicated region
    $region30: #{_lambda_.12} parent=1 // pred_check
      _
    $region31: #{_lambda_.12} parent=1 // pred_check_branch
      %39 = sbr.rel (0) target = $region33
    $region32: #{_lambda_.12} parent=1 // pred_region
      _
    $region33: #{_lambda_.12} parent=1 // pred_fallthru
      _
    // Predicated region
    $region34: #{_lambda_.12} parent=1 // pred_check
      _
    $region35: #{_lambda_.12} parent=1 // pred_check_branch
      %41 = sbr.rel (0) target = $region37
    $region36: #{_lambda_.12} parent=1 // pred_region
      _
    $region37: #{_lambda_.12} parent=1 // pred_fallthru
      _
    // Predicated region
    $region38: #{_lambda_.12} parent=1 // pred_check
      _
    $region39: #{_lambda_.12} parent=1 // pred_check_branch
      %43 = sbr.rel (0) target = $region41
    $region40: #{_lambda_.12} parent=1 // pred_region
      _
    $region41: #{_lambda_.12} parent=1 // pred_fallthru
      _
    // Predicated region
    $region42: #{_lambda_.12} parent=1 // pred_check
      _
    $region43: #{_lambda_.12} parent=1 // pred_check_branch
      %45 = sbr.rel (0) target = $region45
    $region44: #{_lambda_.12} parent=1 // pred_region
      _
    $region45: #{_lambda_.12} parent=1 // pred_fallthru
      _
    // Predicated region
    $region46: #{_lambda_.12} parent=1 // pred_check
      _
    $region47: #{_lambda_.12} parent=1 // pred_check_branch
      %47 = sbr.rel (0) target = $region49
    $region48: #{_lambda_.12} parent=1 // pred_region
      _
    $region49: #{_lambda_.12} parent=1 // pred_fallthru
      _
    // Predicated region
    $region50: #{_lambda_.12} parent=1 // pred_check
      _
    $region51: #{_lambda_.12} parent=1 // pred_check_branch
      %49 = sbr.rel (0) target = $region53
    $region52: #{_lambda_.12} parent=1 // pred_region
      _
    $region53: #{_lambda_.12} parent=1 // pred_fallthru
      _
    // Predicated region
    $region54: #{_lambda_.12} parent=1 // pred_check
      _
    $region55: #{_lambda_.12} parent=1 // pred_check_branch
      %51 = sbr.rel (0) target = $region57
    $region56: #{_lambda_.12} parent=1 // pred_region
      _
    $region57: #{_lambda_.12} parent=1 // pred_fallthru
      _
    // Predicated region
    $region58: #{_lambda_.12} parent=1 // pred_check
      _
    $region59: #{_lambda_.12} parent=1 // pred_check_branch
      %53 = sbr.rel (0) target = $region61
    $region60: #{_lambda_.12} parent=1 // pred_region
      _
    $region61: #{_lambda_.12} parent=1 // pred_fallthru
      _
    // Predicated region
    $region62: #{_lambda_.12} parent=1 // pred_check
      _
    $region63: #{_lambda_.12} parent=1 // pred_check_branch
      %55 = sbr.rel (0) target = $region65
    $region64: #{_lambda_.12} parent=1 // pred_region
      _
    $region65: #{_lambda_.12} parent=1 // pred_fallthru
      _
    %v57 = vld [vmem:[%s0] sm:$0xff]
    %v58 = vld [vmem:[%s0 + $0x8] sm:$0xff]
    %v59 = vld [vmem:[%s0 + $0x10] sm:$0xff]
    %v60 = vld [vmem:[%s0 + $0x18] sm:$0xff]
    %v61 = vld [vmem:[%s0 + $0x20] sm:$0xff]
    %v62 = vld [vmem:[%s0 + $0x28] sm:$0xff]
    %v63 = vld [vmem:[%s0 + $0x30] sm:$0xff]
    %v64 = vld [vmem:[%s0 + $0x38] sm:$0xff]
    %v65 = vld [vmem:[%s1] sm:$0xff]
    %v66 = vld [vmem:[%s1 + $0x8] sm:$0xff]
    %v67 = vld [vmem:[%s1 + $0x10] sm:$0xff]
    %v68 = vld [vmem:[%s1 + $0x18] sm:$0xff]
    %v69 = vld [vmem:[%s1 + $0x20] sm:$0xff]
    %v70 = vld [vmem:[%s1 + $0x28] sm:$0xff]
    %v71 = vld [vmem:[%s1 + $0x30] sm:$0xff]
    %v72 = vld [vmem:[%s1 + $0x38] sm:$0xff]
    %v73 = vld [vmem:[%s4] sm:$0x1]
    %v74 = vld [vmem:[%s5] sm:$0x1]
    %vm75 = vcmask 392192
    %v76 = vsel %vm75, %v57, 0.0
    %77 = vadd.xlane.f32.xlu0 %v76
    %v78 = vpop.xlane.xlu0 %77
    %v79 = vsel %vm75, %v58, 0.0
    %80 = vadd.xlane.f32.xlu0 %v79
    %v81 = vpop.xlane.xlu0 %80
    %v82 = vsel %vm75, %v59, 0.0
    %83 = vadd.xlane.f32.xlu0 %v82
    %v84 = vpop.xlane.xlu0 %83
    %v85 = vsel %vm75, %v60, 0.0
    %86 = vadd.xlane.f32.xlu0 %v85
    %v87 = vpop.xlane.xlu0 %86
    %v88 = vsel %vm75, %v61, 0.0
    %89 = vadd.xlane.f32.xlu0 %v88
    %v90 = vpop.xlane.xlu0 %89
    %v91 = vsel %vm75, %v62, 0.0
    %92 = vadd.xlane.f32.xlu0 %v91
    %v93 = vpop.xlane.xlu0 %92
    %v94 = vsel %vm75, %v63, 0.0
    %95 = vadd.xlane.f32.xlu0 %v94
    %v96 = vpop.xlane.xlu0 %95
    %v97 = vsel %vm75, %v64, 0.0
    %98 = vadd.xlane.f32.xlu0 %v97
    %v99 = vpop.xlane.xlu0 %98
    %v100 = vrcp.pop 48.0
    %v101 = vmul.f32 48.0, %v100
    %v102 = vsub.f32 1.0, %v101
    %v103 = vmul.f32 %v100, %v102
    %v104 = vadd.f32 %v100, %v103
    %vm105 = vweird.f32 %v100
    %v106 = vsel %vm105, %v100, %v104
    %v107 = vmul.f32 %v78, %v106
    %v108 = vmul.f32 %v81, %v106
    %v109 = vmul.f32 %v84, %v106
    %v110 = vmul.f32 %v87, %v106
    %v111 = vmul.f32 %v90, %v106
    %v112 = vmul.f32 %v93, %v106
    %v113 = vmul.f32 %v96, %v106
    %v114 = vmul.f32 %v99, %v106
    %v115 = vsub.f32 %v57, %v107
    %v116 = vsub.f32 %v58, %v108
    %v117 = vsub.f32 %v59, %v109
    %v118 = vsub.f32 %v60, %v110
    %v119 = vsub.f32 %v61, %v111
    %v120 = vsub.f32 %v62, %v112
    %v121 = vsub.f32 %v63, %v113
    %v122 = vsub.f32 %v64, %v114
    %v123 = vmul.f32 %v115, %v115
    %v124 = vmul.f32 %v116, %v116
    %v125 = vmul.f32 %v117, %v117
    %v126 = vmul.f32 %v118, %v118
    %v127 = vmul.f32 %v119, %v119
    %v128 = vmul.f32 %v120, %v120
    %v129 = vmul.f32 %v121, %v121
    %v130 = vmul.f32 %v122, %v122
    %v131 = vsel %vm75, %v123, 0.0
    %132 = vadd.xlane.f32.xlu0 %v131
    %v133 = vpop.xlane.xlu0 %132
    %v134 = vsel %vm75, %v124, 0.0
    %135 = vadd.xlane.f32.xlu0 %v134
    %v136 = vpop.xlane.xlu0 %135
    %v137 = vsel %vm75, %v125, 0.0
    %138 = vadd.xlane.f32.xlu0 %v137
    %v139 = vpop.xlane.xlu0 %138
    %v140 = vsel %vm75, %v126, 0.0
    %141 = vadd.xlane.f32.xlu0 %v140
    %v142 = vpop.xlane.xlu0 %141
    %v143 = vsel %vm75, %v127, 0.0
    %144 = vadd.xlane.f32.xlu0 %v143
    %v145 = vpop.xlane.xlu0 %144
    %v146 = vsel %vm75, %v128, 0.0
    %147 = vadd.xlane.f32.xlu0 %v146
    %v148 = vpop.xlane.xlu0 %147
    %v149 = vsel %vm75, %v129, 0.0
    %150 = vadd.xlane.f32.xlu0 %v149
    %v151 = vpop.xlane.xlu0 %150
    %v152 = vsel %vm75, %v130, 0.0
    %153 = vadd.xlane.f32.xlu0 %v152
    %v154 = vpop.xlane.xlu0 %153
    %v155 = vmul.f32 %v133, %v106
    %v156 = vmul.f32 %v136, %v106
    %v157 = vmul.f32 %v139, %v106
    %v158 = vmul.f32 %v142, %v106
    %v159 = vmul.f32 %v145, %v106
    %v160 = vmul.f32 %v148, %v106
    %v161 = vmul.f32 %v151, %v106
    %v162 = vmul.f32 %v154, %v106
    %v163 = vadd.f32 %v155, 1e-06
    %v164 = vadd.f32 %v156, 1e-06
    %v165 = vadd.f32 %v157, 1e-06
    %v166 = vadd.f32 %v158, 1e-06
    %v167 = vadd.f32 %v159, 1e-06
    %v168 = vadd.f32 %v160, 1e-06
    %v169 = vadd.f32 %v161, 1e-06
    %v170 = vadd.f32 %v162, 1e-06
    %v171 = vrsqrt.pop %v163
    %v172 = vmul.f32 %v171, %v163
    %v173 = vmul.f32 %v172, %v171
    %v174 = vmul.f32 0.5, %v173
    %v175 = vsub.f32 1.5, %v174
    %v176 = vmul.f32 %v171, %v175
    %vm177 = vweird.f32 %v163
    %vm178 = vweird.f32 %v171
    %vm179 = vmor %vm177, %vm178
    %v180 = vsel %vm179, %v171, %v176
    %v181 = vrsqrt.pop %v164
    %v182 = vmul.f32 %v181, %v164
    %v183 = vmul.f32 %v182, %v181
    %v184 = vmul.f32 0.5, %v183
    %v185 = vsub.f32 1.5, %v184
    %v186 = vmul.f32 %v181, %v185
    %vm187 = vweird.f32 %v164
    %vm188 = vweird.f32 %v181
    %vm189 = vmor %vm187, %vm188
    %v190 = vsel %vm189, %v181, %v186
    %v191 = vrsqrt.pop %v165
    %v192 = vmul.f32 %v191, %v165
    %v193 = vmul.f32 %v192, %v191
    %v194 = vmul.f32 0.5, %v193
    %v195 = vsub.f32 1.5, %v194
    %v196 = vmul.f32 %v191, %v195
    %vm197 = vweird.f32 %v165
    %vm198 = vweird.f32 %v191
    %vm199 = vmor %vm197, %vm198
    %v200 = vsel %vm199, %v191, %v196
    %v201 = vrsqrt.pop %v166
    %v202 = vmul.f32 %v201, %v166
    %v203 = vmul.f32 %v202, %v201
    %v204 = vmul.f32 0.5, %v203
    %v205 = vsub.f32 1.5, %v204
    %v206 = vmul.f32 %v201, %v205
    %vm207 = vweird.f32 %v166
    %vm208 = vweird.f32 %v201
    %vm209 = vmor %vm207, %vm208
    %v210 = vsel %vm209, %v201, %v206
    %v211 = vrsqrt.pop %v167
    %v212 = vmul.f32 %v211, %v167
    %v213 = vmul.f32 %v212, %v211
    %v214 = vmul.f32 0.5, %v213
    %v215 = vsub.f32 1.5, %v214
    %v216 = vmul.f32 %v211, %v215
    %vm217 = vweird.f32 %v167
    %vm218 = vweird.f32 %v211
    %vm219 = vmor %vm217, %vm218
    %v220 = vsel %vm219, %v211, %v216
    %v221 = vrsqrt.pop %v168
    %v222 = vmul.f32 %v221, %v168
    %v223 = vmul.f32 %v222, %v221
    %v224 = vmul.f32 0.5, %v223
    %v225 = vsub.f32 1.5, %v224
    %v226 = vmul.f32 %v221, %v225
    %vm227 = vweird.f32 %v168
    %vm228 = vweird.f32 %v221
    %vm229 = vmor %vm227, %vm228
    %v230 = vsel %vm229, %v221, %v226
    %v231 = vrsqrt.pop %v169
    %v232 = vmul.f32 %v231, %v169
    %v233 = vmul.f32 %v232, %v231
    %v234 = vmul.f32 0.5, %v233
    %v235 = vsub.f32 1.5, %v234
    %v236 = vmul.f32 %v231, %v235
    %vm237 = vweird.f32 %v169
    %vm238 = vweird.f32 %v231
    %vm239 = vmor %vm237, %vm238
    %v240 = vsel %vm239, %v231, %v236
    %v241 = vrsqrt.pop %v170
    %v242 = vmul.f32 %v241, %v170
    %v243 = vmul.f32 %v242, %v241
    %v244 = vmul.f32 0.5, %v243
    %v245 = vsub.f32 1.5, %v244
    %v246 = vmul.f32 %v241, %v245
    %vm247 = vweird.f32 %v170
    %vm248 = vweird.f32 %v241
    %vm249 = vmor %vm247, %vm248
    %v250 = vsel %vm249, %v241, %v246
    %v251 = vmul.f32 %v115, %v180
    %v252 = vmul.f32 %v116, %v190
    %v253 = vmul.f32 %v117, %v200
    %v254 = vmul.f32 %v118, %v210
    %v255 = vmul.f32 %v119, %v220
    %v256 = vmul.f32 %v120, %v230
    %v257 = vmul.f32 %v121, %v240
    %v258 = vmul.f32 %v122, %v250
    %v260 = vperm.slane %v73, 0
    %v262 = vmul.f32 %v251, %v260
    %v263 = vmul.f32 %v252, %v260
    %v264 = vmul.f32 %v253, %v260
    %v265 = vmul.f32 %v254, %v260
    %v266 = vmul.f32 %v255, %v260
    %v267 = vmul.f32 %v256, %v260
    %v268 = vmul.f32 %v257, %v260
    %v269 = vmul.f32 %v258, %v260
    %v271 = vperm.slane %v74, 0
    %v273 = vadd.f32 %v262, %v271
    %v274 = vadd.f32 %v263, %v271
    %v275 = vadd.f32 %v264, %v271
    %v276 = vadd.f32 %v265, %v271
    %v277 = vadd.f32 %v266, %v271
    %v278 = vadd.f32 %v267, %v271
    %v279 = vadd.f32 %v268, %v271
    %v280 = vadd.f32 %v269, %v271
    %v281 = vpack.c.bf16 %v274, %v273
    %v282 = vpack.c.bf16 %v276, %v275
    %v283 = vpack.c.bf16 %v278, %v277
    %v284 = vpack.c.bf16 %v280, %v279
    %v285 = vld [vmem:[%s6] sm:$0xff]
    %v286 = vld [vmem:[%s6 + $0x8] sm:$0xff]
    %v287 = vld [vmem:[%s6 + $0x10] sm:$0xff]
    %v288 = vld [vmem:[%s6 + $0x18] sm:$0xff]
    %v289 = vld [vmem:[%s6 + $0x20] sm:$0xff]
    %v290 = vld [vmem:[%s6 + $0x28] sm:$0xff]
    %v291 = vld [vmem:[%s7] sm:$0x3]
    %v293 = vperm.slane %v291, 0
    %v294 = vperm.slane %v291, 1
    %v303 = vunpack.c.l.b16 %v285
    %v304 = vunpack.c.h.b16 %v285
    %v305 = vunpack.c.l.b16 %v286
    %v306 = vunpack.c.h.b16 %v286
    %v307 = vunpack.c.l.b16 %v287
    %v308 = vunpack.c.h.b16 %v287
    %v309 = vunpack.c.l.b16 %v288
    %v310 = vunpack.c.h.b16 %v288
    %v311 = vunpack.c.l.b16 %v289
    %v312 = vunpack.c.h.b16 %v289
    %v313 = vunpack.c.l.b16 %v290
    %v314 = vunpack.c.h.b16 %v290
    %v315 = vpack.c.b16 %v305, %v303
    %v316 = vpack.c.b16 %v306, %v304
    %v317 = vpack.c.b16 %v309, %v307
    %v318 = vpack.c.b16 %v310, %v308
    %v319 = vpack.c.b16 %v313, %v311
    %v320 = vpack.c.b16 %v314, %v312
    %v328 = vsel %vm75, %v281, 0
    %v331 = vsel %vm75, %v282, 0
    %v334 = vsel %vm75, %v283, 0
    %v337 = vsel %vm75, %v284, 0
    %339 = vmatpush.bf16.msra.mxu0 0
    %340 = vmatpush.bf16.msra.mxu0 0
    %341 = vmatpush.bf16.msra.mxu0 0
    %342 = vmatpush.bf16.msra.mxu0 0
    %343 = vmatpush.bf16.msra.mxu0 0
    %344 = vmatpush.bf16.msra.mxu0 %v319
    %345 = vmatpush.bf16.msra.mxu0 %v317
    %346 = vmatpush.bf16.msra.mxu0 %v315
    %347 = vmatmul.bf16.gmra.mxu0 %v328
    %v348 = vpop.f32.mrf.mxu0
    %v349 = vadd.f32 %v293, %v348
    %v350 = vpop.f32.mrf.mxu0
    %v351 = vadd.f32 %v293, %v350
    %352 = vmatmul.bf16.gmra.mxu0 %v331
    %v353 = vpop.f32.mrf.mxu0
    %v354 = vadd.f32 %v293, %v353
    %v355 = vpop.f32.mrf.mxu0
    %v356 = vadd.f32 %v293, %v355
    %357 = vmatmul.bf16.gmra.mxu0 %v334
    %v358 = vpop.f32.mrf.mxu0
    %v359 = vadd.f32 %v293, %v358
    %v360 = vpop.f32.mrf.mxu0
    %v361 = vadd.f32 %v293, %v360
    %362 = vmatmul.bf16.gmra.mxu0 %v337
    %v363 = vpop.f32.mrf.mxu0
    %v364 = vadd.f32 %v293, %v363
    %v365 = vpop.f32.mrf.mxu0
    %v366 = vadd.f32 %v293, %v365
    %367 = vdwg.mxu0
    %368 = vmatpush.bf16.msra.mxu0 0
    %369 = vmatpush.bf16.msra.mxu0 0
    %370 = vmatpush.bf16.msra.mxu0 0
    %371 = vmatpush.bf16.msra.mxu0 0
    %372 = vmatpush.bf16.msra.mxu0 0
    %373 = vmatpush.bf16.msra.mxu0 %v320
    %374 = vmatpush.bf16.msra.mxu0 %v318
    %375 = vmatpush.bf16.msra.mxu0 %v316
    %376 = vmatmul.bf16.gmra.mxu0 %v328
    %v377 = vpop.f32.mrf.mxu0
    %v378 = vadd.f32 %v294, %v377
    %v379 = vpop.f32.mrf.mxu0
    %v380 = vadd.f32 %v294, %v379
    %381 = vmatmul.bf16.gmra.mxu0 %v331
    %v382 = vpop.f32.mrf.mxu0
    %v383 = vadd.f32 %v294, %v382
    %v384 = vpop.f32.mrf.mxu0
    %v385 = vadd.f32 %v294, %v384
    %386 = vmatmul.bf16.gmra.mxu0 %v334
    %v387 = vpop.f32.mrf.mxu0
    %v388 = vadd.f32 %v294, %v387
    %v389 = vpop.f32.mrf.mxu0
    %v390 = vadd.f32 %v294, %v389
    %391 = vmatmul.bf16.gmra.mxu0 %v337
    %v392 = vpop.f32.mrf.mxu0
    %v393 = vadd.f32 %v294, %v392
    %v394 = vpop.f32.mrf.mxu0
    %v395 = vadd.f32 %v294, %v394
    %396 = vdwg.mxu0
    %v397 = vpack.c.bf16 %v351, %v349
    %v398 = vpack.c.bf16 %v356, %v354
    %v399 = vpack.c.bf16 %v361, %v359
    %v400 = vpack.c.bf16 %v366, %v364
    %405 = vrot.lane.b32.xlu0 %v397, 80
    %v406 = vpop.permute.xlu0 %405
    %407 = vrot.lane.b32.xlu0 %v398, 80
    %v408 = vpop.permute.xlu0 %407
    %409 = vrot.lane.b32.xlu0 %v399, 80
    %v410 = vpop.permute.xlu0 %409
    %411 = vrot.lane.b32.xlu0 %v400, 80
    %v412 = vpop.permute.xlu0 %411
    %vm413 = vcmask 130048
    %v415 = vsel %vm413, %v397, 0
    %v418 = vsel %vm413, %v398, 0
    %v421 = vsel %vm413, %v399, 0
    %v424 = vsel %vm413, %v400, 0
    %v427 = vsel %vm413, %v406, 0
    %v430 = vsel %vm413, %v408, 0
    %v433 = vsel %vm413, %v410, 0
    %v436 = vsel %vm413, %v412, 0
    %438 = vmatpush.bf16.xpose.msra.mxu0 0
    %439 = vmatpush.bf16.xpose.msra.mxu0 0
    %440 = vmatpush.bf16.xpose.msra.mxu0 0
    %441 = vmatpush.bf16.xpose.msra.mxu0 0
    %442 = vmatpush.bf16.xpose.msra.mxu0 %v436
    %443 = vmatpush.bf16.xpose.msra.mxu0 %v433
    %444 = vmatpush.bf16.xpose.msra.mxu0 %v430
    %445 = vmatpush.bf16.xpose.msra.mxu0 %v427
    %446 = vmatmul.bf16.gmra.mxu0 %v415
    %v447 = vpop.f32.mrf.mxu0
    %v448 = vadd.f32 0.0, %v447
    %v449 = vpop.f32.mrf.mxu0
    %v450 = vadd.f32 0.0, %v449
    %451 = vmatmul.bf16.gmra.mxu0 %v418
    %v452 = vpop.f32.mrf.mxu0
    %v453 = vadd.f32 0.0, %v452
    %v454 = vpop.f32.mrf.mxu0
    %v455 = vadd.f32 0.0, %v454
    %456 = vmatmul.bf16.gmra.mxu0 %v421
    %v457 = vpop.f32.mrf.mxu0
    %v458 = vadd.f32 0.0, %v457
    %v459 = vpop.f32.mrf.mxu0
    %v460 = vadd.f32 0.0, %v459
    %461 = vmatmul.bf16.gmra.mxu0 %v424
    %v462 = vpop.f32.mrf.mxu0
    %v463 = vadd.f32 0.0, %v462
    %v464 = vpop.f32.mrf.mxu0
    %v465 = vadd.f32 0.0, %v464
    %466 = vdwg.mxu0
    %v467 = vmul.f32 %v448, 0.25
    %v468 = vmul.f32 %v450, 0.25
    %v469 = vmul.f32 %v453, 0.25
    %v470 = vmul.f32 %v455, 0.25
    %v471 = vmul.f32 %v458, 0.25
    %v472 = vmul.f32 %v460, 0.25
    %v473 = vmul.f32 %v463, 0.25
    %v474 = vmul.f32 %v465, 0.25
    %v475 = vadd.f32 %v467, %v65
    %v476 = vadd.f32 %v468, %v66
    %v477 = vadd.f32 %v469, %v67
    %v478 = vadd.f32 %v470, %v68
    %v479 = vadd.f32 %v471, %v69
    %v480 = vadd.f32 %v472, %v70
    %v481 = vadd.f32 %v473, %v71
    %v482 = vadd.f32 %v474, %v72
    %vm483 = vcmask 523264
    %v484 = vsel %vm483, %v475, -inf
    %485 = vmax.xlane.f32.xlu0 %v484
    %v486 = vpop.xlane.xlu0 %485
    %v487 = vsel %vm483, %v476, -inf
    %488 = vmax.xlane.f32.xlu0 %v487
    %v489 = vpop.xlane.xlu0 %488
    %v490 = vsel %vm483, %v477, -inf
    %491 = vmax.xlane.f32.xlu0 %v490
    %v492 = vpop.xlane.xlu0 %491
    %v493 = vsel %vm483, %v478, -inf
    %494 = vmax.xlane.f32.xlu0 %v493
    %v495 = vpop.xlane.xlu0 %494
    %v496 = vsel %vm483, %v479, -inf
    %497 = vmax.xlane.f32.xlu0 %v496
    %v498 = vpop.xlane.xlu0 %497
    %v499 = vsel %vm483, %v480, -inf
    %500 = vmax.xlane.f32.xlu0 %v499
    %v501 = vpop.xlane.xlu0 %500
    %v502 = vsel %vm483, %v481, -inf
    %503 = vmax.xlane.f32.xlu0 %v502
    %v504 = vpop.xlane.xlu0 %503
    %v505 = vsel %vm483, %v482, -inf
    %506 = vmax.xlane.f32.xlu0 %v505
    %v507 = vpop.xlane.xlu0 %506
    %v508 = vsub.f32 %v475, %v486
    %v509 = vsub.f32 %v476, %v489
    %v510 = vsub.f32 %v477, %v492
    %v511 = vsub.f32 %v478, %v495
    %v512 = vsub.f32 %v479, %v498
    %v513 = vsub.f32 %v480, %v501
    %v514 = vsub.f32 %v481, %v504
    %v515 = vsub.f32 %v482, %v507
    %v516 = vmul.f32 %v508, 1.442695
    %v517 = vpow.pop %v516
    %v518 = vmul.f32 %v509, 1.442695
    %v519 = vpow.pop %v518
    %v520 = vmul.f32 %v510, 1.442695
    %v521 = vpow.pop %v520
    %v522 = vmul.f32 %v511, 1.442695
    %v523 = vpow.pop %v522
    %v524 = vmul.f32 %v512, 1.442695
    %v525 = vpow.pop %v524
    %v526 = vmul.f32 %v513, 1.442695
    %v527 = vpow.pop %v526
    %v528 = vmul.f32 %v514, 1.442695
    %v529 = vpow.pop %v528
    %v530 = vmul.f32 %v515, 1.442695
    %v531 = vpow.pop %v530
    %v532 = vsel %vm483, %v517, 0.0
    %533 = vadd.xlane.f32.xlu0 %v532
    %v534 = vpop.xlane.xlu0 %533
    %v535 = vsel %vm483, %v519, 0.0
    %536 = vadd.xlane.f32.xlu0 %v535
    %v537 = vpop.xlane.xlu0 %536
    %v538 = vsel %vm483, %v521, 0.0
    %539 = vadd.xlane.f32.xlu0 %v538
    %v540 = vpop.xlane.xlu0 %539
    %v541 = vsel %vm483, %v523, 0.0
    %542 = vadd.xlane.f32.xlu0 %v541
    %v543 = vpop.xlane.xlu0 %542
    %v544 = vsel %vm483, %v525, 0.0
    %545 = vadd.xlane.f32.xlu0 %v544
    %v546 = vpop.xlane.xlu0 %545
    %v547 = vsel %vm483, %v527, 0.0
    %548 = vadd.xlane.f32.xlu0 %v547
    %v549 = vpop.xlane.xlu0 %548
    %v550 = vsel %vm483, %v529, 0.0
    %551 = vadd.xlane.f32.xlu0 %v550
    %v552 = vpop.xlane.xlu0 %551
    %v553 = vsel %vm483, %v531, 0.0
    %554 = vadd.xlane.f32.xlu0 %v553
    %v555 = vpop.xlane.xlu0 %554
    %v556 = vrcp.pop %v534
    %v557 = vrcp.pop %v537
    %v558 = vrcp.pop %v540
    %v559 = vrcp.pop %v543
    %v560 = vrcp.pop %v546
    %v561 = vrcp.pop %v549
    %v562 = vrcp.pop %v552
    %v563 = vrcp.pop %v555
    %v564 = vmul.f32 %v517, %v556
    %v565 = vmul.f32 %v519, %v557
    %v566 = vmul.f32 %v521, %v558
    %v567 = vmul.f32 %v523, %v559
    %v568 = vmul.f32 %v525, %v560
    %v569 = vmul.f32 %v527, %v561
    %v570 = vmul.f32 %v529, %v562
    %v571 = vmul.f32 %v531, %v563
    %v572 = vadd.f32 %v564, 0.0
    %v573 = vadd.f32 %v565, 0.0
    %v574 = vadd.f32 %v566, 0.0
    %v575 = vadd.f32 %v567, 0.0
    %v576 = vadd.f32 %v568, 0.0
    %v577 = vadd.f32 %v569, 0.0
    %v578 = vadd.f32 %v570, 0.0
    %v579 = vadd.f32 %v571, 0.0
    %v580 = vpack.c.bf16 %v565, %v564
    %v581 = vpack.c.bf16 %v567, %v566
    %v582 = vpack.c.bf16 %v569, %v568
    %v583 = vpack.c.bf16 %v571, %v570
    %584 = vrot.lane.b32.xlu0 %v397, 32
    %v585 = vpop.permute.xlu0 %584
    %586 = vrot.lane.b32.xlu0 %v398, 32
    %v587 = vpop.permute.xlu0 %586
    %588 = vrot.lane.b32.xlu0 %v399, 32
    %v589 = vpop.permute.xlu0 %588
    %590 = vrot.lane.b32.xlu0 %v400, 32
    %v591 = vpop.permute.xlu0 %590
    %v597 = vsel %vm483, %v580, 0
    %v600 = vsel %vm483, %v581, 0
    %v603 = vsel %vm483, %v582, 0
    %v606 = vsel %vm483, %v583, 0
    %608 = vmatpush.bf16.msra.mxu0 0
    %609 = vmatpush.bf16.msra.mxu0 0
    %610 = vmatpush.bf16.msra.mxu0 0
    %611 = vmatpush.bf16.msra.mxu0 0
    %612 = vmatpush.bf16.msra.mxu0 %v591
    %613 = vmatpush.bf16.msra.mxu0 %v589
    %614 = vmatpush.bf16.msra.mxu0 %v587
    %615 = vmatpush.bf16.msra.mxu0 %v585
    %616 = vmatmul.bf16.gmra.mxu0 %v597
    %v617 = vpop.f32.mrf.mxu0
    %v618 = vadd.f32 0.0, %v617
    %v619 = vpop.f32.mrf.mxu0
    %v620 = vadd.f32 0.0, %v619
    %621 = vmatmul.bf16.gmra.mxu0 %v600
    %v622 = vpop.f32.mrf.mxu0
    %v623 = vadd.f32 0.0, %v622
    %v624 = vpop.f32.mrf.mxu0
    %v625 = vadd.f32 0.0, %v624
    %626 = vmatmul.bf16.gmra.mxu0 %v603
    %v627 = vpop.f32.mrf.mxu0
    %v628 = vadd.f32 0.0, %v627
    %v629 = vpop.f32.mrf.mxu0
    %v630 = vadd.f32 0.0, %v629
    %631 = vmatmul.bf16.gmra.mxu0 %v606
    %v632 = vpop.f32.mrf.mxu0
    %v633 = vadd.f32 0.0, %v632
    %v634 = vpop.f32.mrf.mxu0
    %v635 = vadd.f32 0.0, %v634
    %636 = vdwg.mxu0
    %v637 = vpack.c.bf16 %v620, %v618
    %v638 = vpack.c.bf16 %v625, %v623
    %v639 = vpack.c.bf16 %v630, %v628
    %v640 = vpack.c.bf16 %v635, %v633
    %v641 = vld [vmem:[%s8] sm:$0xf]
    %v642 = vld [vmem:[%s8 + $0x4] sm:$0xf]
    %643 = vrot.lane.b32.xlu0 %v397, 112
    %v644 = vpop.permute.xlu0 %643
    %645 = vrot.lane.b32.xlu0 %v398, 112
    %v646 = vpop.permute.xlu0 %645
    %647 = vrot.lane.b32.xlu0 %v399, 112
    %v648 = vpop.permute.xlu0 %647
    %649 = vrot.lane.b32.xlu0 %v400, 112
    %v650 = vpop.permute.xlu0 %649
    %651 = vrot.lane.b32.xlu0 %v397, 64
    %v652 = vpop.permute.xlu0 %651
    %653 = vrot.lane.b32.xlu0 %v398, 64
    %v654 = vpop.permute.xlu0 %653
    %655 = vrot.lane.b32.xlu0 %v399, 64
    %v656 = vpop.permute.xlu0 %655
    %657 = vrot.lane.b32.xlu0 %v400, 64
    %v658 = vpop.permute.xlu0 %657
    %v660 = vsel %vm413, %v644, 0
    %v663 = vsel %vm413, %v646, 0
    %v666 = vsel %vm413, %v648, 0
    %v669 = vsel %vm413, %v650, 0
    %v672 = vsel %vm413, %v652, 0
    %v675 = vsel %vm413, %v654, 0
    %v678 = vsel %vm413, %v656, 0
    %v681 = vsel %vm413, %v658, 0
    %683 = vmatpush.bf16.xpose.msra.mxu0 0
    %684 = vmatpush.bf16.xpose.msra.mxu0 0
    %685 = vmatpush.bf16.xpose.msra.mxu0 0
    %686 = vmatpush.bf16.xpose.msra.mxu0 0
    %687 = vmatpush.bf16.xpose.msra.mxu0 %v681
    %688 = vmatpush.bf16.xpose.msra.mxu0 %v678
    %689 = vmatpush.bf16.xpose.msra.mxu0 %v675
    %690 = vmatpush.bf16.xpose.msra.mxu0 %v672
    %691 = vmatmul.bf16.gmra.mxu0 %v660
    %v692 = vpop.f32.mrf.mxu0
    %v693 = vadd.f32 0.0, %v692
    %v694 = vpop.f32.mrf.mxu0
    %v695 = vadd.f32 0.0, %v694
    %696 = vmatmul.bf16.gmra.mxu0 %v663
    %v697 = vpop.f32.mrf.mxu0
    %v698 = vadd.f32 0.0, %v697
    %v699 = vpop.f32.mrf.mxu0
    %v700 = vadd.f32 0.0, %v699
    %701 = vmatmul.bf16.gmra.mxu0 %v666
    %v702 = vpop.f32.mrf.mxu0
    %v703 = vadd.f32 0.0, %v702
    %v704 = vpop.f32.mrf.mxu0
    %v705 = vadd.f32 0.0, %v704
    %706 = vmatmul.bf16.gmra.mxu0 %v669
    %v707 = vpop.f32.mrf.mxu0
    %v708 = vadd.f32 0.0, %v707
    %v709 = vpop.f32.mrf.mxu0
    %v710 = vadd.f32 0.0, %v709
    %711 = vdwg.mxu0
    %v712 = vmul.f32 %v693, 0.25
    %v713 = vmul.f32 %v695, 0.25
    %v714 = vmul.f32 %v698, 0.25
    %v715 = vmul.f32 %v700, 0.25
    %v716 = vmul.f32 %v703, 0.25
    %v717 = vmul.f32 %v705, 0.25
    %v718 = vmul.f32 %v708, 0.25
    %v719 = vmul.f32 %v710, 0.25
    %v720 = vadd.f32 %v712, %v65
    %v721 = vadd.f32 %v713, %v66
    %v722 = vadd.f32 %v714, %v67
    %v723 = vadd.f32 %v715, %v68
    %v724 = vadd.f32 %v716, %v69
    %v725 = vadd.f32 %v717, %v70
    %v726 = vadd.f32 %v718, %v71
    %v727 = vadd.f32 %v719, %v72
    %v728 = vsel %vm483, %v720, -inf
    %729 = vmax.xlane.f32.xlu0 %v728
    %v730 = vpop.xlane.xlu0 %729
    %v731 = vsel %vm483, %v721, -inf
    %732 = vmax.xlane.f32.xlu0 %v731
    %v733 = vpop.xlane.xlu0 %732
    %v734 = vsel %vm483, %v722, -inf
    %735 = vmax.xlane.f32.xlu0 %v734
    %v736 = vpop.xlane.xlu0 %735
    %v737 = vsel %vm483, %v723, -inf
    %738 = vmax.xlane.f32.xlu0 %v737
    %v739 = vpop.xlane.xlu0 %738
    %v740 = vsel %vm483, %v724, -inf
    %741 = vmax.xlane.f32.xlu0 %v740
    %v742 = vpop.xlane.xlu0 %741
    %v743 = vsel %vm483, %v725, -inf
    %744 = vmax.xlane.f32.xlu0 %v743
    %v745 = vpop.xlane.xlu0 %744
    %v746 = vsel %vm483, %v726, -inf
    %747 = vmax.xlane.f32.xlu0 %v746
    %v748 = vpop.xlane.xlu0 %747
    %v749 = vsel %vm483, %v727, -inf
    %750 = vmax.xlane.f32.xlu0 %v749
    %v751 = vpop.xlane.xlu0 %750
    %v752 = vsub.f32 %v720, %v730
    %v753 = vsub.f32 %v721, %v733
    %v754 = vsub.f32 %v722, %v736
    %v755 = vsub.f32 %v723, %v739
    %v756 = vsub.f32 %v724, %v742
    %v757 = vsub.f32 %v725, %v745
    %v758 = vsub.f32 %v726, %v748
    %v759 = vsub.f32 %v727, %v751
    %v760 = vmul.f32 %v752, 1.442695
    %v761 = vpow.pop %v760
    %v762 = vmul.f32 %v753, 1.442695
    %v763 = vpow.pop %v762
    %v764 = vmul.f32 %v754, 1.442695
    %v765 = vpow.pop %v764
    %v766 = vmul.f32 %v755, 1.442695
    %v767 = vpow.pop %v766
    %v768 = vmul.f32 %v756, 1.442695
    %v769 = vpow.pop %v768
    %v770 = vmul.f32 %v757, 1.442695
    %v771 = vpow.pop %v770
    %v772 = vmul.f32 %v758, 1.442695
    %v773 = vpow.pop %v772
    %v774 = vmul.f32 %v759, 1.442695
    %v775 = vpow.pop %v774
    %v776 = vsel %vm483, %v761, 0.0
    %777 = vadd.xlane.f32.xlu0 %v776
    %v778 = vpop.xlane.xlu0 %777
    %v779 = vsel %vm483, %v763, 0.0
    %780 = vadd.xlane.f32.xlu0 %v779
    %v781 = vpop.xlane.xlu0 %780
    %v782 = vsel %vm483, %v765, 0.0
    %783 = vadd.xlane.f32.xlu0 %v782
    %v784 = vpop.xlane.xlu0 %783
    %v785 = vsel %vm483, %v767, 0.0
    %786 = vadd.xlane.f32.xlu0 %v785
    %v787 = vpop.xlane.xlu0 %786
    %v788 = vsel %vm483, %v769, 0.0
    %789 = vadd.xlane.f32.xlu0 %v788
    %v790 = vpop.xlane.xlu0 %789
    %v791 = vsel %vm483, %v771, 0.0
    %792 = vadd.xlane.f32.xlu0 %v791
    %v793 = vpop.xlane.xlu0 %792
    %v794 = vsel %vm483, %v773, 0.0
    %795 = vadd.xlane.f32.xlu0 %v794
    %v796 = vpop.xlane.xlu0 %795
    %v797 = vsel %vm483, %v775, 0.0
    %798 = vadd.xlane.f32.xlu0 %v797
    %v799 = vpop.xlane.xlu0 %798
    %v800 = vrcp.pop %v778
    %v801 = vrcp.pop %v781
    %v802 = vrcp.pop %v784
    %v803 = vrcp.pop %v787
    %v804 = vrcp.pop %v790
    %v805 = vrcp.pop %v793
    %v806 = vrcp.pop %v796
    %v807 = vrcp.pop %v799
    %v808 = vmul.f32 %v761, %v800
    %v809 = vmul.f32 %v763, %v801
    %v810 = vmul.f32 %v765, %v802
    %v811 = vmul.f32 %v767, %v803
    %v812 = vmul.f32 %v769, %v804
    %v813 = vmul.f32 %v771, %v805
    %v814 = vmul.f32 %v773, %v806
    %v815 = vmul.f32 %v775, %v807
    %v816 = vadd.f32 %v572, %v808
    %v817 = vadd.f32 %v573, %v809
    %v818 = vadd.f32 %v574, %v810
    %v819 = vadd.f32 %v575, %v811
    %v820 = vadd.f32 %v576, %v812
    %v821 = vadd.f32 %v577, %v813
    %v822 = vadd.f32 %v578, %v814
    %v823 = vadd.f32 %v579, %v815
    %v824 = vpack.c.bf16 %v809, %v808
    %v825 = vpack.c.bf16 %v811, %v810
    %v826 = vpack.c.bf16 %v813, %v812
    %v827 = vpack.c.bf16 %v815, %v814
    %828 = vrot.lane.b32.xlu0 %v397, 16
    %v829 = vpop.permute.xlu0 %828
    %830 = vrot.lane.b32.xlu0 %v398, 16
    %v831 = vpop.permute.xlu0 %830
    %832 = vrot.lane.b32.xlu0 %v399, 16
    %v833 = vpop.permute.xlu0 %832
    %834 = vrot.lane.b32.xlu0 %v400, 16
    %v835 = vpop.permute.xlu0 %834
    %v841 = vsel %vm483, %v824, 0
    %v844 = vsel %vm483, %v825, 0
    %v847 = vsel %vm483, %v826, 0
    %v850 = vsel %vm483, %v827, 0
    %852 = vmatpush.bf16.msra.mxu0 0
    %853 = vmatpush.bf16.msra.mxu0 0
    %854 = vmatpush.bf16.msra.mxu0 0
    %855 = vmatpush.bf16.msra.mxu0 0
    %856 = vmatpush.bf16.msra.mxu0 %v835
    %857 = vmatpush.bf16.msra.mxu0 %v833
    %858 = vmatpush.bf16.msra.mxu0 %v831
    %859 = vmatpush.bf16.msra.mxu0 %v829
    %860 = vmatmul.bf16.gmra.mxu0 %v841
    %v861 = vpop.f32.mrf.mxu0
    %v862 = vadd.f32 0.0, %v861
    %v863 = vpop.f32.mrf.mxu0
    %v864 = vadd.f32 0.0, %v863
    %865 = vmatmul.bf16.gmra.mxu0 %v844
    %v866 = vpop.f32.mrf.mxu0
    %v867 = vadd.f32 0.0, %v866
    %v868 = vpop.f32.mrf.mxu0
    %v869 = vadd.f32 0.0, %v868
    %870 = vmatmul.bf16.gmra.mxu0 %v847
    %v871 = vpop.f32.mrf.mxu0
    %v872 = vadd.f32 0.0, %v871
    %v873 = vpop.f32.mrf.mxu0
    %v874 = vadd.f32 0.0, %v873
    %875 = vmatmul.bf16.gmra.mxu0 %v850
    %v876 = vpop.f32.mrf.mxu0
    %v877 = vadd.f32 0.0, %v876
    %v878 = vpop.f32.mrf.mxu0
    %v879 = vadd.f32 0.0, %v878
    %880 = vdwg.mxu0
    %v881 = vpack.c.bf16 %v864, %v862
    %v882 = vpack.c.bf16 %v869, %v867
    %v883 = vpack.c.bf16 %v874, %v872
    %v884 = vpack.c.bf16 %v879, %v877
    %v885 = vld [vmem:[%s8 + $0x8] sm:$0xf]
    %v886 = vld [vmem:[%s8 + $0xc] sm:$0xf]
    %v889 = vunpack.c.l.b16 %v885
    %v890 = vunpack.c.l.b16 %v886
    %v891 = vpack.c.b16 %v890, %v889
    %v894 = vsel %vm413, %v881, 0
    %v897 = vsel %vm413, %v882, 0
    %v900 = vsel %vm413, %v883, 0
    %v903 = vsel %vm413, %v884, 0
    %905 = vmatpush.bf16.msra.mxu0 0
    %906 = vmatpush.bf16.msra.mxu0 0
    %907 = vmatpush.bf16.msra.mxu0 0
    %908 = vmatpush.bf16.msra.mxu0 0
    %909 = vmatpush.bf16.msra.mxu0 0
    %910 = vmatpush.bf16.msra.mxu0 0
    %911 = vmatpush.bf16.msra.mxu0 0
    %912 = vmatpush.bf16.msra.mxu0 %v891
    %913 = vmatmul.bf16.gmra.mxu0 %v894
    %v914 = vpop.f32.mrf.mxu0
    %v915 = vadd.f32 0.0, %v914
    %v916 = vpop.f32.mrf.mxu0
    %v917 = vadd.f32 0.0, %v916
    %918 = vmatmul.bf16.gmra.mxu0 %v897
    %v919 = vpop.f32.mrf.mxu0
    %v920 = vadd.f32 0.0, %v919
    %v921 = vpop.f32.mrf.mxu0
    %v922 = vadd.f32 0.0, %v921
    %923 = vmatmul.bf16.gmra.mxu0 %v900
    %v924 = vpop.f32.mrf.mxu0
    %v925 = vadd.f32 0.0, %v924
    %v926 = vpop.f32.mrf.mxu0
    %v927 = vadd.f32 0.0, %v926
    %928 = vmatmul.bf16.gmra.mxu0 %v903
    %v929 = vpop.f32.mrf.mxu0
    %v930 = vadd.f32 0.0, %v929
    %v931 = vpop.f32.mrf.mxu0
    %v932 = vadd.f32 0.0, %v931
    %933 = vdwg.mxu0
    %v936 = vunpack.c.l.b16 %v641
    %v937 = vunpack.c.l.b16 %v642
    %v938 = vpack.c.b16 %v937, %v936
    %v941 = vsel %vm413, %v637, 0
    %v944 = vsel %vm413, %v638, 0
    %v947 = vsel %vm413, %v639, 0
    %v950 = vsel %vm413, %v640, 0
    %952 = vmatpush.bf16.msra.mxu0 0
    %953 = vmatpush.bf16.msra.mxu0 0
    %954 = vmatpush.bf16.msra.mxu0 0
    %955 = vmatpush.bf16.msra.mxu0 0
    %956 = vmatpush.bf16.msra.mxu0 0
    %957 = vmatpush.bf16.msra.mxu0 0
    %958 = vmatpush.bf16.msra.mxu0 0
    %959 = vmatpush.bf16.msra.mxu0 %v938
    %960 = vmatmul.bf16.gmra.mxu0 %v941
    %v961 = vpop.f32.mrf.mxu0
    %v962 = vadd.f32 %v915, %v961
    %v963 = vpop.f32.mrf.mxu0
    %v964 = vadd.f32 %v917, %v963
    %965 = vmatmul.bf16.gmra.mxu0 %v944
    %v966 = vpop.f32.mrf.mxu0
    %v967 = vadd.f32 %v920, %v966
    %v968 = vpop.f32.mrf.mxu0
    %v969 = vadd.f32 %v922, %v968
    %970 = vmatmul.bf16.gmra.mxu0 %v947
    %v971 = vpop.f32.mrf.mxu0
    %v972 = vadd.f32 %v925, %v971
    %v973 = vpop.f32.mrf.mxu0
    %v974 = vadd.f32 %v927, %v973
    %975 = vmatmul.bf16.gmra.mxu0 %v950
    %v976 = vpop.f32.mrf.mxu0
    %v977 = vadd.f32 %v930, %v976
    %v978 = vpop.f32.mrf.mxu0
    %v979 = vadd.f32 %v932, %v978
    %980 = vdwg.mxu0
    %v981 = vpack.c.bf16 %v380, %v378
    %v982 = vpack.c.bf16 %v385, %v383
    %v983 = vpack.c.bf16 %v390, %v388
    %v984 = vpack.c.bf16 %v395, %v393
    %985 = vrot.lane.b32.xlu0 %v397, 96
    %v986 = vpop.permute.xlu0 %985
    %987 = vrot.lane.b32.xlu0 %v398, 96
    %v988 = vpop.permute.xlu0 %987
    %989 = vrot.lane.b32.xlu0 %v399, 96
    %v990 = vpop.permute.xlu0 %989
    %991 = vrot.lane.b32.xlu0 %v400, 96
    %v992 = vpop.permute.xlu0 %991
    %993 = vrot.lane.b32.xlu0 %v397, 48
    %v994 = vpop.permute.xlu0 %993
    %995 = vrot.lane.b32.xlu0 %v398, 48
    %v996 = vpop.permute.xlu0 %995
    %997 = vrot.lane.b32.xlu0 %v399, 48
    %v998 = vpop.permute.xlu0 %997
    %999 = vrot.lane.b32.xlu0 %v400, 48
    %v1000 = vpop.permute.xlu0 %999
    %v1002 = vsel %vm413, %v986, 0
    %v1005 = vsel %vm413, %v988, 0
    %v1008 = vsel %vm413, %v990, 0
    %v1011 = vsel %vm413, %v992, 0
    %v1014 = vsel %vm413, %v994, 0
    %v1017 = vsel %vm413, %v996, 0
    %v1020 = vsel %vm413, %v998, 0
    %v1023 = vsel %vm413, %v1000, 0
    %1025 = vmatpush.bf16.xpose.msra.mxu0 0
    %1026 = vmatpush.bf16.xpose.msra.mxu0 0
    %1027 = vmatpush.bf16.xpose.msra.mxu0 0
    %1028 = vmatpush.bf16.xpose.msra.mxu0 0
    %1029 = vmatpush.bf16.xpose.msra.mxu0 %v1023
    %1030 = vmatpush.bf16.xpose.msra.mxu0 %v1020
    %1031 = vmatpush.bf16.xpose.msra.mxu0 %v1017
    %1032 = vmatpush.bf16.xpose.msra.mxu0 %v1014
    %1033 = vmatmul.bf16.gmra.mxu0 %v1002
    %v1034 = vpop.f32.mrf.mxu0
    %v1035 = vadd.f32 0.0, %v1034
    %v1036 = vpop.f32.mrf.mxu0
    %v1037 = vadd.f32 0.0, %v1036
    %1038 = vmatmul.bf16.gmra.mxu0 %v1005
    %v1039 = vpop.f32.mrf.mxu0
    %v1040 = vadd.f32 0.0, %v1039
    %v1041 = vpop.f32.mrf.mxu0
    %v1042 = vadd.f32 0.0, %v1041
    %1043 = vmatmul.bf16.gmra.mxu0 %v1008
    %v1044 = vpop.f32.mrf.mxu0
    %v1045 = vadd.f32 0.0, %v1044
    %v1046 = vpop.f32.mrf.mxu0
    %v1047 = vadd.f32 0.0, %v1046
    %1048 = vmatmul.bf16.gmra.mxu0 %v1011
    %v1049 = vpop.f32.mrf.mxu0
    %v1050 = vadd.f32 0.0, %v1049
    %v1051 = vpop.f32.mrf.mxu0
    %v1052 = vadd.f32 0.0, %v1051
    %1053 = vdwg.mxu0
    %v1054 = vmul.f32 %v1035, 0.25
    %v1055 = vmul.f32 %v1037, 0.25
    %v1056 = vmul.f32 %v1040, 0.25
    %v1057 = vmul.f32 %v1042, 0.25
    %v1058 = vmul.f32 %v1045, 0.25
    %v1059 = vmul.f32 %v1047, 0.25
    %v1060 = vmul.f32 %v1050, 0.25
    %v1061 = vmul.f32 %v1052, 0.25
    %v1062 = vadd.f32 %v1054, %v65
    %v1063 = vadd.f32 %v1055, %v66
    %v1064 = vadd.f32 %v1056, %v67
    %v1065 = vadd.f32 %v1057, %v68
    %v1066 = vadd.f32 %v1058, %v69
    %v1067 = vadd.f32 %v1059, %v70
    %v1068 = vadd.f32 %v1060, %v71
    %v1069 = vadd.f32 %v1061, %v72
    %v1070 = vsel %vm483, %v1062, -inf
    %1071 = vmax.xlane.f32.xlu0 %v1070
    %v1072 = vpop.xlane.xlu0 %1071
    %v1073 = vsel %vm483, %v1063, -inf
    %1074 = vmax.xlane.f32.xlu0 %v1073
    %v1075 = vpop.xlane.xlu0 %1074
    %v1076 = vsel %vm483, %v1064, -inf
    %1077 = vmax.xlane.f32.xlu0 %v1076
    %v1078 = vpop.xlane.xlu0 %1077
    %v1079 = vsel %vm483, %v1065, -inf
    %1080 = vmax.xlane.f32.xlu0 %v1079
    %v1081 = vpop.xlane.xlu0 %1080
    %v1082 = vsel %vm483, %v1066, -inf
    %1083 = vmax.xlane.f32.xlu0 %v1082
    %v1084 = vpop.xlane.xlu0 %1083
    %v1085 = vsel %vm483, %v1067, -inf
    %1086 = vmax.xlane.f32.xlu0 %v1085
    %v1087 = vpop.xlane.xlu0 %1086
    %v1088 = vsel %vm483, %v1068, -inf
    %1089 = vmax.xlane.f32.xlu0 %v1088
    %v1090 = vpop.xlane.xlu0 %1089
    %v1091 = vsel %vm483, %v1069, -inf
    %1092 = vmax.xlane.f32.xlu0 %v1091
    %v1093 = vpop.xlane.xlu0 %1092
    %v1094 = vsub.f32 %v1062, %v1072
    %v1095 = vsub.f32 %v1063, %v1075
    %v1096 = vsub.f32 %v1064, %v1078
    %v1097 = vsub.f32 %v1065, %v1081
    %v1098 = vsub.f32 %v1066, %v1084
    %v1099 = vsub.f32 %v1067, %v1087
    %v1100 = vsub.f32 %v1068, %v1090
    %v1101 = vsub.f32 %v1069, %v1093
    %v1102 = vmul.f32 %v1094, 1.442695
    %v1103 = vpow.pop %v1102
    %v1104 = vmul.f32 %v1095, 1.442695
    %v1105 = vpow.pop %v1104
    %v1106 = vmul.f32 %v1096, 1.442695
    %v1107 = vpow.pop %v1106
    %v1108 = vmul.f32 %v1097, 1.442695
    %v1109 = vpow.pop %v1108
    %v1110 = vmul.f32 %v1098, 1.442695
    %v1111 = vpow.pop %v1110
    %v1112 = vmul.f32 %v1099, 1.442695
    %v1113 = vpow.pop %v1112
    %v1114 = vmul.f32 %v1100, 1.442695
    %v1115 = vpow.pop %v1114
    %v1116 = vmul.f32 %v1101, 1.442695
    %v1117 = vpow.pop %v1116
    %v1118 = vsel %vm483, %v1103, 0.0
    %1119 = vadd.xlane.f32.xlu0 %v1118
    %v1120 = vpop.xlane.xlu0 %1119
    %v1121 = vsel %vm483, %v1105, 0.0
    %1122 = vadd.xlane.f32.xlu0 %v1121
    %v1123 = vpop.xlane.xlu0 %1122
    %v1124 = vsel %vm483, %v1107, 0.0
    %1125 = vadd.xlane.f32.xlu0 %v1124
    %v1126 = vpop.xlane.xlu0 %1125
    %v1127 = vsel %vm483, %v1109, 0.0
    %1128 = vadd.xlane.f32.xlu0 %v1127
    %v1129 = vpop.xlane.xlu0 %1128
    %v1130 = vsel %vm483, %v1111, 0.0
    %1131 = vadd.xlane.f32.xlu0 %v1130
    %v1132 = vpop.xlane.xlu0 %1131
    %v1133 = vsel %vm483, %v1113, 0.0
    %1134 = vadd.xlane.f32.xlu0 %v1133
    %v1135 = vpop.xlane.xlu0 %1134
    %v1136 = vsel %vm483, %v1115, 0.0
    %1137 = vadd.xlane.f32.xlu0 %v1136
    %v1138 = vpop.xlane.xlu0 %1137
    %v1139 = vsel %vm483, %v1117, 0.0
    %1140 = vadd.xlane.f32.xlu0 %v1139
    %v1141 = vpop.xlane.xlu0 %1140
    %v1142 = vrcp.pop %v1120
    %v1143 = vrcp.pop %v1123
    %v1144 = vrcp.pop %v1126
    %v1145 = vrcp.pop %v1129
    %v1146 = vrcp.pop %v1132
    %v1147 = vrcp.pop %v1135
    %v1148 = vrcp.pop %v1138
    %v1149 = vrcp.pop %v1141
    %v1150 = vmul.f32 %v1103, %v1142
    %v1151 = vmul.f32 %v1105, %v1143
    %v1152 = vmul.f32 %v1107, %v1144
    %v1153 = vmul.f32 %v1109, %v1145
    %v1154 = vmul.f32 %v1111, %v1146
    %v1155 = vmul.f32 %v1113, %v1147
    %v1156 = vmul.f32 %v1115, %v1148
    %v1157 = vmul.f32 %v1117, %v1149
    %v1158 = vadd.f32 %v816, %v1150
    %v1159 = vadd.f32 %v817, %v1151
    %v1160 = vadd.f32 %v818, %v1152
    %v1161 = vadd.f32 %v819, %v1153
    %v1162 = vadd.f32 %v820, %v1154
    %v1163 = vadd.f32 %v821, %v1155
    %v1164 = vadd.f32 %v822, %v1156
    %v1165 = vadd.f32 %v823, %v1157
    %v1166 = vpack.c.bf16 %v1151, %v1150
    %v1167 = vpack.c.bf16 %v1153, %v1152
    %v1168 = vpack.c.bf16 %v1155, %v1154
    %v1169 = vpack.c.bf16 %v1157, %v1156
    %v1171 = vsel %vm483, %v1166, 0
    %v1174 = vsel %vm483, %v1167, 0
    %v1177 = vsel %vm483, %v1168, 0
    %v1180 = vsel %vm483, %v1169, 0
    %1182 = vmatpush.bf16.msra.mxu0 0
    %1183 = vmatpush.bf16.msra.mxu0 0
    %1184 = vmatpush.bf16.msra.mxu0 0
    %1185 = vmatpush.bf16.msra.mxu0 0
    %1186 = vmatpush.bf16.msra.mxu0 %v984
    %1187 = vmatpush.bf16.msra.mxu0 %v983
    %1188 = vmatpush.bf16.msra.mxu0 %v982
    %1189 = vmatpush.bf16.msra.mxu0 %v981
    %1190 = vmatmul.bf16.gmra.mxu0 %v1171
    %v1191 = vpop.f32.mrf.mxu0
    %v1192 = vadd.f32 0.0, %v1191
    %v1193 = vpop.f32.mrf.mxu0
    %v1194 = vadd.f32 0.0, %v1193
    %1195 = vmatmul.bf16.gmra.mxu0 %v1174
    %v1196 = vpop.f32.mrf.mxu0
    %v1197 = vadd.f32 0.0, %v1196
    %v1198 = vpop.f32.mrf.mxu0
    %v1199 = vadd.f32 0.0, %v1198
    %1200 = vmatmul.bf16.gmra.mxu0 %v1177
    %v1201 = vpop.f32.mrf.mxu0
    %v1202 = vadd.f32 0.0, %v1201
    %v1203 = vpop.f32.mrf.mxu0
    %v1204 = vadd.f32 0.0, %v1203
    %1205 = vmatmul.bf16.gmra.mxu0 %v1180
    %v1206 = vpop.f32.mrf.mxu0
    %v1207 = vadd.f32 0.0, %v1206
    %v1208 = vpop.f32.mrf.mxu0
    %v1209 = vadd.f32 0.0, %v1208
    %1210 = vdwg.mxu0
    %v1211 = vpack.c.bf16 %v1194, %v1192
    %v1212 = vpack.c.bf16 %v1199, %v1197
    %v1213 = vpack.c.bf16 %v1204, %v1202
    %v1214 = vpack.c.bf16 %v1209, %v1207
    %v1215 = vld [vmem:[%s8 + $0x10] sm:$0xf]
    %v1216 = vld [vmem:[%s8 + $0x14] sm:$0xf]
    %v1219 = vunpack.c.l.b16 %v1215
    %v1220 = vunpack.c.l.b16 %v1216
    %v1221 = vpack.c.b16 %v1220, %v1219
    %v1224 = vsel %vm413, %v1211, 0
    %v1227 = vsel %vm413, %v1212, 0
    %v1230 = vsel %vm413, %v1213, 0
    %v1233 = vsel %vm413, %v1214, 0
    %1235 = vmatpush.bf16.msra.mxu0 0
    %1236 = vmatpush.bf16.msra.mxu0 0
    %1237 = vmatpush.bf16.msra.mxu0 0
    %1238 = vmatpush.bf16.msra.mxu0 0
    %1239 = vmatpush.bf16.msra.mxu0 0
    %1240 = vmatpush.bf16.msra.mxu0 0
    %1241 = vmatpush.bf16.msra.mxu0 0
    %1242 = vmatpush.bf16.msra.mxu0 %v1221
    %1243 = vmatmul.bf16.gmra.mxu0 %v1224
    %v1244 = vpop.f32.mrf.mxu0
    %v1245 = vadd.f32 0.0, %v1244
    %v1246 = vpop.f32.mrf.mxu0
    %v1247 = vadd.f32 0.0, %v1246
    %1248 = vmatmul.bf16.gmra.mxu0 %v1227
    %v1249 = vpop.f32.mrf.mxu0
    %v1250 = vadd.f32 0.0, %v1249
    %v1251 = vpop.f32.mrf.mxu0
    %v1252 = vadd.f32 0.0, %v1251
    %1253 = vmatmul.bf16.gmra.mxu0 %v1230
    %v1254 = vpop.f32.mrf.mxu0
    %v1255 = vadd.f32 0.0, %v1254
    %v1256 = vpop.f32.mrf.mxu0
    %v1257 = vadd.f32 0.0, %v1256
    %1258 = vmatmul.bf16.gmra.mxu0 %v1233
    %v1259 = vpop.f32.mrf.mxu0
    %v1260 = vadd.f32 0.0, %v1259
    %v1261 = vpop.f32.mrf.mxu0
    %v1262 = vadd.f32 0.0, %v1261
    %1263 = vdwg.mxu0
    %v1264 = vadd.f32 %v962, %v1245
    %v1265 = vadd.f32 %v964, %v1247
    %v1266 = vadd.f32 %v967, %v1250
    %v1267 = vadd.f32 %v969, %v1252
    %v1268 = vadd.f32 %v972, %v1255
    %v1269 = vadd.f32 %v974, %v1257
    %v1270 = vadd.f32 %v977, %v1260
    %v1271 = vadd.f32 %v979, %v1262
    %v1272 = vadd.f32 %v57, %v1264
    %v1273 = vadd.f32 %v58, %v1265
    %v1274 = vadd.f32 %v59, %v1266
    %v1275 = vadd.f32 %v60, %v1267
    %v1276 = vadd.f32 %v61, %v1268
    %v1277 = vadd.f32 %v62, %v1269
    %v1278 = vadd.f32 %v63, %v1270
    %v1279 = vadd.f32 %v64, %v1271
    %v1280 = vld [vmem:[%s9] sm:$0x1]
    %v1282 = vperm.slane %v1280, 0
    %v1284 = vadd.f32 %v1272, %v1282
    %v1285 = vadd.f32 %v1273, %v1282
    %v1286 = vadd.f32 %v1274, %v1282
    %v1287 = vadd.f32 %v1275, %v1282
    %v1288 = vadd.f32 %v1276, %v1282
    %v1289 = vadd.f32 %v1277, %v1282
    %v1290 = vadd.f32 %v1278, %v1282
    %v1291 = vadd.f32 %v1279, %v1282
    %v1292 = vld [vmem:[%s10] sm:$0x1]
    %v1293 = vld [vmem:[%s11] sm:$0x1]
    %v1294 = vsel %vm75, %v1284, 0.0
    %1295 = vadd.xlane.f32.xlu0 %v1294
    %v1296 = vpop.xlane.xlu0 %1295
    %v1297 = vsel %vm75, %v1285, 0.0
    %1298 = vadd.xlane.f32.xlu0 %v1297
    %v1299 = vpop.xlane.xlu0 %1298
    %v1300 = vsel %vm75, %v1286, 0.0
    %1301 = vadd.xlane.f32.xlu0 %v1300
    %v1302 = vpop.xlane.xlu0 %1301
    %v1303 = vsel %vm75, %v1287, 0.0
    %1304 = vadd.xlane.f32.xlu0 %v1303
    %v1305 = vpop.xlane.xlu0 %1304
    %v1306 = vsel %vm75, %v1288, 0.0
    %1307 = vadd.xlane.f32.xlu0 %v1306
    %v1308 = vpop.xlane.xlu0 %1307
    %v1309 = vsel %vm75, %v1289, 0.0
    %1310 = vadd.xlane.f32.xlu0 %v1309
    %v1311 = vpop.xlane.xlu0 %1310
    %v1312 = vsel %vm75, %v1290, 0.0
    %1313 = vadd.xlane.f32.xlu0 %v1312
    %v1314 = vpop.xlane.xlu0 %1313
    %v1315 = vsel %vm75, %v1291, 0.0
    %1316 = vadd.xlane.f32.xlu0 %v1315
    %v1317 = vpop.xlane.xlu0 %1316
    %v1318 = vmul.f32 %v1296, %v106
    %v1319 = vmul.f32 %v1299, %v106
    %v1320 = vmul.f32 %v1302, %v106
    %v1321 = vmul.f32 %v1305, %v106
    %v1322 = vmul.f32 %v1308, %v106
    %v1323 = vmul.f32 %v1311, %v106
    %v1324 = vmul.f32 %v1314, %v106
    %v1325 = vmul.f32 %v1317, %v106
    %v1326 = vsub.f32 %v1284, %v1318
    %v1327 = vsub.f32 %v1285, %v1319
    %v1328 = vsub.f32 %v1286, %v1320
    %v1329 = vsub.f32 %v1287, %v1321
    %v1330 = vsub.f32 %v1288, %v1322
    %v1331 = vsub.f32 %v1289, %v1323
    %v1332 = vsub.f32 %v1290, %v1324
    %v1333 = vsub.f32 %v1291, %v1325
    %v1334 = vmul.f32 %v1326, %v1326
    %v1335 = vmul.f32 %v1327, %v1327
    %v1336 = vmul.f32 %v1328, %v1328
    %v1337 = vmul.f32 %v1329, %v1329
    %v1338 = vmul.f32 %v1330, %v1330
    %v1339 = vmul.f32 %v1331, %v1331
    %v1340 = vmul.f32 %v1332, %v1332
    %v1341 = vmul.f32 %v1333, %v1333
    %v1342 = vsel %vm75, %v1334, 0.0
    %1343 = vadd.xlane.f32.xlu0 %v1342
    %v1344 = vpop.xlane.xlu0 %1343
    %v1345 = vsel %vm75, %v1335, 0.0
    %1346 = vadd.xlane.f32.xlu0 %v1345
    %v1347 = vpop.xlane.xlu0 %1346
    %v1348 = vsel %vm75, %v1336, 0.0
    %1349 = vadd.xlane.f32.xlu0 %v1348
    %v1350 = vpop.xlane.xlu0 %1349
    %v1351 = vsel %vm75, %v1337, 0.0
    %1352 = vadd.xlane.f32.xlu0 %v1351
    %v1353 = vpop.xlane.xlu0 %1352
    %v1354 = vsel %vm75, %v1338, 0.0
    %1355 = vadd.xlane.f32.xlu0 %v1354
    %v1356 = vpop.xlane.xlu0 %1355
    %v1357 = vsel %vm75, %v1339, 0.0
    %1358 = vadd.xlane.f32.xlu0 %v1357
    %v1359 = vpop.xlane.xlu0 %1358
    %v1360 = vsel %vm75, %v1340, 0.0
    %1361 = vadd.xlane.f32.xlu0 %v1360
    %v1362 = vpop.xlane.xlu0 %1361
    %v1363 = vsel %vm75, %v1341, 0.0
    %1364 = vadd.xlane.f32.xlu0 %v1363
    %v1365 = vpop.xlane.xlu0 %1364
    %v1366 = vmul.f32 %v1344, %v106
    %v1367 = vmul.f32 %v1347, %v106
    %v1368 = vmul.f32 %v1350, %v106
    %v1369 = vmul.f32 %v1353, %v106
    %v1370 = vmul.f32 %v1356, %v106
    %v1371 = vmul.f32 %v1359, %v106
    %v1372 = vmul.f32 %v1362, %v106
    %v1373 = vmul.f32 %v1365, %v106
    %v1374 = vadd.f32 %v1366, 1e-06
    %v1375 = vadd.f32 %v1367, 1e-06
    %v1376 = vadd.f32 %v1368, 1e-06
    %v1377 = vadd.f32 %v1369, 1e-06
    %v1378 = vadd.f32 %v1370, 1e-06
    %v1379 = vadd.f32 %v1371, 1e-06
    %v1380 = vadd.f32 %v1372, 1e-06
    %v1381 = vadd.f32 %v1373, 1e-06
    %v1382 = vrsqrt.pop %v1374
    %v1383 = vmul.f32 %v1382, %v1374
    %v1384 = vmul.f32 %v1383, %v1382
    %v1385 = vmul.f32 0.5, %v1384
    %v1386 = vsub.f32 1.5, %v1385
    %v1387 = vmul.f32 %v1382, %v1386
    %vm1388 = vweird.f32 %v1374
    %vm1389 = vweird.f32 %v1382
    %vm1390 = vmor %vm1388, %vm1389
    %v1391 = vsel %vm1390, %v1382, %v1387
    %v1392 = vrsqrt.pop %v1375
    %v1393 = vmul.f32 %v1392, %v1375
    %v1394 = vmul.f32 %v1393, %v1392
    %v1395 = vmul.f32 0.5, %v1394
    %v1396 = vsub.f32 1.5, %v1395
    %v1397 = vmul.f32 %v1392, %v1396
    %vm1398 = vweird.f32 %v1375
    %vm1399 = vweird.f32 %v1392
    %vm1400 = vmor %vm1398, %vm1399
    %v1401 = vsel %vm1400, %v1392, %v1397
    %v1402 = vrsqrt.pop %v1376
    %v1403 = vmul.f32 %v1402, %v1376
    %v1404 = vmul.f32 %v1403, %v1402
    %v1405 = vmul.f32 0.5, %v1404
    %v1406 = vsub.f32 1.5, %v1405
    %v1407 = vmul.f32 %v1402, %v1406
    %vm1408 = vweird.f32 %v1376
    %vm1409 = vweird.f32 %v1402
    %vm1410 = vmor %vm1408, %vm1409
    %v1411 = vsel %vm1410, %v1402, %v1407
    %v1412 = vrsqrt.pop %v1377
    %v1413 = vmul.f32 %v1412, %v1377
    %v1414 = vmul.f32 %v1413, %v1412
    %v1415 = vmul.f32 0.5, %v1414
    %v1416 = vsub.f32 1.5, %v1415
    %v1417 = vmul.f32 %v1412, %v1416
    %vm1418 = vweird.f32 %v1377
    %vm1419 = vweird.f32 %v1412
    %vm1420 = vmor %vm1418, %vm1419
    %v1421 = vsel %vm1420, %v1412, %v1417
    %v1422 = vrsqrt.pop %v1378
    %v1423 = vmul.f32 %v1422, %v1378
    %v1424 = vmul.f32 %v1423, %v1422
    %v1425 = vmul.f32 0.5, %v1424
    %v1426 = vsub.f32 1.5, %v1425
    %v1427 = vmul.f32 %v1422, %v1426
    %vm1428 = vweird.f32 %v1378
    %vm1429 = vweird.f32 %v1422
    %vm1430 = vmor %vm1428, %vm1429
    %v1431 = vsel %vm1430, %v1422, %v1427
    %v1432 = vrsqrt.pop %v1379
    %v1433 = vmul.f32 %v1432, %v1379
    %v1434 = vmul.f32 %v1433, %v1432
    %v1435 = vmul.f32 0.5, %v1434
    %v1436 = vsub.f32 1.5, %v1435
    %v1437 = vmul.f32 %v1432, %v1436
    %vm1438 = vweird.f32 %v1379
    %vm1439 = vweird.f32 %v1432
    %vm1440 = vmor %vm1438, %vm1439
    %v1441 = vsel %vm1440, %v1432, %v1437
    %v1442 = vrsqrt.pop %v1380
    %v1443 = vmul.f32 %v1442, %v1380
    %v1444 = vmul.f32 %v1443, %v1442
    %v1445 = vmul.f32 0.5, %v1444
    %v1446 = vsub.f32 1.5, %v1445
    %v1447 = vmul.f32 %v1442, %v1446
    %vm1448 = vweird.f32 %v1380
    %vm1449 = vweird.f32 %v1442
    %vm1450 = vmor %vm1448, %vm1449
    %v1451 = vsel %vm1450, %v1442, %v1447
    %v1452 = vrsqrt.pop %v1381
    %v1453 = vmul.f32 %v1452, %v1381
    %v1454 = vmul.f32 %v1453, %v1452
    %v1455 = vmul.f32 0.5, %v1454
    %v1456 = vsub.f32 1.5, %v1455
    %v1457 = vmul.f32 %v1452, %v1456
    %vm1458 = vweird.f32 %v1381
    %vm1459 = vweird.f32 %v1452
    %vm1460 = vmor %vm1458, %vm1459
    %v1461 = vsel %vm1460, %v1452, %v1457
    %v1462 = vmul.f32 %v1326, %v1391
    %v1463 = vmul.f32 %v1327, %v1401
    %v1464 = vmul.f32 %v1328, %v1411
    %v1465 = vmul.f32 %v1329, %v1421
    %v1466 = vmul.f32 %v1330, %v1431
    %v1467 = vmul.f32 %v1331, %v1441
    %v1468 = vmul.f32 %v1332, %v1451
    %v1469 = vmul.f32 %v1333, %v1461
    %v1471 = vperm.slane %v1292, 0
    %v1473 = vmul.f32 %v1462, %v1471
    %v1474 = vmul.f32 %v1463, %v1471
    %v1475 = vmul.f32 %v1464, %v1471
    %v1476 = vmul.f32 %v1465, %v1471
    %v1477 = vmul.f32 %v1466, %v1471
    %v1478 = vmul.f32 %v1467, %v1471
    %v1479 = vmul.f32 %v1468, %v1471
    %v1480 = vmul.f32 %v1469, %v1471
    %v1482 = vperm.slane %v1293, 0
    %v1484 = vadd.f32 %v1473, %v1482
    %v1485 = vadd.f32 %v1474, %v1482
    %v1486 = vadd.f32 %v1475, %v1482
    %v1487 = vadd.f32 %v1476, %v1482
    %v1488 = vadd.f32 %v1477, %v1482
    %v1489 = vadd.f32 %v1478, %v1482
    %v1490 = vadd.f32 %v1479, %v1482
    %v1491 = vadd.f32 %v1480, %v1482
    %v1492 = vpack.c.bf16 %v1485, %v1484
    %v1493 = vpack.c.bf16 %v1487, %v1486
    %v1494 = vpack.c.bf16 %v1489, %v1488
    %v1495 = vpack.c.bf16 %v1491, %v1490
    %v1496 = vld [vmem:[%s12] sm:$0xff]
    %v1497 = vld [vmem:[%s12 + $0x8] sm:$0xff]
    %v1498 = vld [vmem:[%s12 + $0x10] sm:$0xff]
    %v1499 = vld [vmem:[%s12 + $0x18] sm:$0xff]
    %v1500 = vld [vmem:[%s12 + $0x20] sm:$0xff]
    %v1501 = vld [vmem:[%s12 + $0x28] sm:$0xff]
    %v1502 = vld [vmem:[%s13] sm:$0x3]
    %v1504 = vperm.slane %v1502, 0
    %v1505 = vperm.slane %v1502, 1
    %v1514 = vunpack.c.l.b16 %v1496
    %v1515 = vunpack.c.h.b16 %v1496
    %v1516 = vunpack.c.l.b16 %v1497
    %v1517 = vunpack.c.h.b16 %v1497
    %v1518 = vunpack.c.l.b16 %v1498
    %v1519 = vunpack.c.h.b16 %v1498
    %v1520 = vunpack.c.l.b16 %v1499
    %v1521 = vunpack.c.h.b16 %v1499
    %v1522 = vunpack.c.l.b16 %v1500
    %v1523 = vunpack.c.h.b16 %v1500
    %v1524 = vunpack.c.l.b16 %v1501
    %v1525 = vunpack.c.h.b16 %v1501
    %v1526 = vpack.c.b16 %v1516, %v1514
    %v1527 = vpack.c.b16 %v1517, %v1515
    %v1528 = vpack.c.b16 %v1520, %v1518
    %v1529 = vpack.c.b16 %v1521, %v1519
    %v1530 = vpack.c.b16 %v1524, %v1522
    %v1531 = vpack.c.b16 %v1525, %v1523
    %v1539 = vsel %vm75, %v1492, 0
    %v1542 = vsel %vm75, %v1493, 0
    %v1545 = vsel %vm75, %v1494, 0
    %v1548 = vsel %vm75, %v1495, 0
    %1550 = vmatpush.bf16.msra.mxu0 0
    %1551 = vmatpush.bf16.msra.mxu0 0
    %1552 = vmatpush.bf16.msra.mxu0 0
    %1553 = vmatpush.bf16.msra.mxu0 0
    %1554 = vmatpush.bf16.msra.mxu0 0
    %1555 = vmatpush.bf16.msra.mxu0 %v1530
    %1556 = vmatpush.bf16.msra.mxu0 %v1528
    %1557 = vmatpush.bf16.msra.mxu0 %v1526
    %1558 = vmatmul.bf16.gmra.mxu0 %v1539
    %v1559 = vpop.f32.mrf.mxu0
    %v1560 = vadd.f32 %v1504, %v1559
    %v1561 = vpop.f32.mrf.mxu0
    %v1562 = vadd.f32 %v1504, %v1561
    %1563 = vmatmul.bf16.gmra.mxu0 %v1542
    %v1564 = vpop.f32.mrf.mxu0
    %v1565 = vadd.f32 %v1504, %v1564
    %v1566 = vpop.f32.mrf.mxu0
    %v1567 = vadd.f32 %v1504, %v1566
    %1568 = vmatmul.bf16.gmra.mxu0 %v1545
    %v1569 = vpop.f32.mrf.mxu0
    %v1570 = vadd.f32 %v1504, %v1569
    %v1571 = vpop.f32.mrf.mxu0
    %v1572 = vadd.f32 %v1504, %v1571
    %1573 = vmatmul.bf16.gmra.mxu0 %v1548
    %v1574 = vpop.f32.mrf.mxu0
    %v1575 = vadd.f32 %v1504, %v1574
    %v1576 = vpop.f32.mrf.mxu0
    %v1577 = vadd.f32 %v1504, %v1576
    %1578 = vdwg.mxu0
    %1579 = vmatpush.bf16.msra.mxu0 0
    %1580 = vmatpush.bf16.msra.mxu0 0
    %1581 = vmatpush.bf16.msra.mxu0 0
    %1582 = vmatpush.bf16.msra.mxu0 0
    %1583 = vmatpush.bf16.msra.mxu0 0
    %1584 = vmatpush.bf16.msra.mxu0 %v1531
    %1585 = vmatpush.bf16.msra.mxu0 %v1529
    %1586 = vmatpush.bf16.msra.mxu0 %v1527
    %1587 = vmatmul.bf16.gmra.mxu0 %v1539
    %v1588 = vpop.f32.mrf.mxu0
    %v1589 = vadd.f32 %v1505, %v1588
    %v1590 = vpop.f32.mrf.mxu0
    %v1591 = vadd.f32 %v1505, %v1590
    %1592 = vmatmul.bf16.gmra.mxu0 %v1542
    %v1593 = vpop.f32.mrf.mxu0
    %v1594 = vadd.f32 %v1505, %v1593
    %v1595 = vpop.f32.mrf.mxu0
    %v1596 = vadd.f32 %v1505, %v1595
    %1597 = vmatmul.bf16.gmra.mxu0 %v1545
    %v1598 = vpop.f32.mrf.mxu0
    %v1599 = vadd.f32 %v1505, %v1598
    %v1600 = vpop.f32.mrf.mxu0
    %v1601 = vadd.f32 %v1505, %v1600
    %1602 = vmatmul.bf16.gmra.mxu0 %v1548
    %v1603 = vpop.f32.mrf.mxu0
    %v1604 = vadd.f32 %v1505, %v1603
    %v1605 = vpop.f32.mrf.mxu0
    %v1606 = vadd.f32 %v1505, %v1605
    %1607 = vdwg.mxu0
    %v1608 = vmul.f32 %v1560, 0.5
    %v1609 = vmul.f32 %v1589, 0.5
    %v1610 = vmul.f32 %v1562, 0.5
    %v1611 = vmul.f32 %v1591, 0.5
    %v1612 = vmul.f32 %v1565, 0.5
    %v1613 = vmul.f32 %v1594, 0.5
    %v1614 = vmul.f32 %v1567, 0.5
    %v1615 = vmul.f32 %v1596, 0.5
    %v1616 = vmul.f32 %v1570, 0.5
    %v1617 = vmul.f32 %v1599, 0.5
    %v1618 = vmul.f32 %v1572, 0.5
    %v1619 = vmul.f32 %v1601, 0.5
    %v1620 = vmul.f32 %v1575, 0.5
    %v1621 = vmul.f32 %v1604, 0.5
    %v1622 = vmul.f32 %v1577, 0.5
    %v1623 = vmul.f32 %v1606, 0.5
    %v1624 = vmul.f32 %v1560, 0.70710677
    %v1625 = vmul.f32 %v1589, 0.70710677
    %v1626 = vmul.f32 %v1562, 0.70710677
    %v1627 = vmul.f32 %v1591, 0.70710677
    %v1628 = vmul.f32 %v1565, 0.70710677
    %v1629 = vmul.f32 %v1594, 0.70710677
    %v1630 = vmul.f32 %v1567, 0.70710677
    %v1631 = vmul.f32 %v1596, 0.70710677
    %v1632 = vmul.f32 %v1570, 0.70710677
    %v1633 = vmul.f32 %v1599, 0.70710677
    %v1634 = vmul.f32 %v1572, 0.70710677
    %v1635 = vmul.f32 %v1601, 0.70710677
    %v1636 = vmul.f32 %v1575, 0.70710677
    %v1637 = vmul.f32 %v1604, 0.70710677
    %v1638 = vmul.f32 %v1577, 0.70710677
    %v1639 = vmul.f32 %v1606, 0.70710677
    %vm1640 = vcmp.ge.f32.partialorder %v1624, 0.0
    %vm1641 = vcmp.ge.f32.partialorder %v1625, 0.0
    %vm1642 = vcmp.ge.f32.partialorder %v1626, 0.0
    %vm1643 = vcmp.ge.f32.partialorder %v1627, 0.0
    %vm1644 = vcmp.ge.f32.partialorder %v1628, 0.0
    %vm1645 = vcmp.ge.f32.partialorder %v1629, 0.0
    %vm1646 = vcmp.ge.f32.partialorder %v1630, 0.0
    %vm1647 = vcmp.ge.f32.partialorder %v1631, 0.0
    %vm1648 = vcmp.ge.f32.partialorder %v1632, 0.0
    %vm1649 = vcmp.ge.f32.partialorder %v1633, 0.0
    %vm1650 = vcmp.ge.f32.partialorder %v1634, 0.0
    %vm1651 = vcmp.ge.f32.partialorder %v1635, 0.0
    %vm1652 = vcmp.ge.f32.partialorder %v1636, 0.0
    %vm1653 = vcmp.ge.f32.partialorder %v1637, 0.0
    %vm1654 = vcmp.ge.f32.partialorder %v1638, 0.0
    %vm1655 = vcmp.ge.f32.partialorder %v1639, 0.0
    %v1656 = vsel %vm1640, 1.0, -1.0
    %v1657 = vsel %vm1641, 1.0, -1.0
    %v1658 = vsel %vm1642, 1.0, -1.0
    %v1659 = vsel %vm1643, 1.0, -1.0
    %v1660 = vsel %vm1644, 1.0, -1.0
    %v1661 = vsel %vm1645, 1.0, -1.0
    %v1662 = vsel %vm1646, 1.0, -1.0
    %v1663 = vsel %vm1647, 1.0, -1.0
    %v1664 = vsel %vm1648, 1.0, -1.0
    %v1665 = vsel %vm1649, 1.0, -1.0
    %v1666 = vsel %vm1650, 1.0, -1.0
    %v1667 = vsel %vm1651, 1.0, -1.0
    %v1668 = vsel %vm1652, 1.0, -1.0
    %v1669 = vsel %vm1653, 1.0, -1.0
    %v1670 = vsel %vm1654, 1.0, -1.0
    %v1671 = vsel %vm1655, 1.0, -1.0
    %v1672 = vand.u32 2147483647, %v1624
    %v1673 = vand.u32 2147483647, %v1625
    %v1674 = vand.u32 2147483647, %v1626
    %v1675 = vand.u32 2147483647, %v1627
    %v1676 = vand.u32 2147483647, %v1628
    %v1677 = vand.u32 2147483647, %v1629
    %v1678 = vand.u32 2147483647, %v1630
    %v1679 = vand.u32 2147483647, %v1631
    %v1680 = vand.u32 2147483647, %v1632
    %v1681 = vand.u32 2147483647, %v1633
    %v1682 = vand.u32 2147483647, %v1634
    %v1683 = vand.u32 2147483647, %v1635
    %v1684 = vand.u32 2147483647, %v1636
    %v1685 = vand.u32 2147483647, %v1637
    %v1686 = vand.u32 2147483647, %v1638
    %v1687 = vand.u32 2147483647, %v1639
    %v1688 = vmul.f32 %v1672, 0.3275911
    %v1689 = vmul.f32 %v1673, 0.3275911
    %v1690 = vmul.f32 %v1674, 0.3275911
    %v1691 = vmul.f32 %v1675, 0.3275911
    %v1692 = vmul.f32 %v1676, 0.3275911
    %v1693 = vmul.f32 %v1677, 0.3275911
    %v1694 = vmul.f32 %v1678, 0.3275911
    %v1695 = vmul.f32 %v1679, 0.3275911
    %v1696 = vmul.f32 %v1680, 0.3275911
    %v1697 = vmul.f32 %v1681, 0.3275911
    %v1698 = vmul.f32 %v1682, 0.3275911
    %v1699 = vmul.f32 %v1683, 0.3275911
    %v1700 = vmul.f32 %v1684, 0.3275911
    %v1701 = vmul.f32 %v1685, 0.3275911
    %v1702 = vmul.f32 %v1686, 0.3275911
    %v1703 = vmul.f32 %v1687, 0.3275911
    %v1704 = vadd.f32 %v1688, 1.0
    %v1705 = vadd.f32 %v1689, 1.0
    %v1706 = vadd.f32 %v1690, 1.0
    %v1707 = vadd.f32 %v1691, 1.0
    %v1708 = vadd.f32 %v1692, 1.0
    %v1709 = vadd.f32 %v1693, 1.0
    %v1710 = vadd.f32 %v1694, 1.0
    %v1711 = vadd.f32 %v1695, 1.0
    %v1712 = vadd.f32 %v1696, 1.0
    %v1713 = vadd.f32 %v1697, 1.0
    %v1714 = vadd.f32 %v1698, 1.0
    %v1715 = vadd.f32 %v1699, 1.0
    %v1716 = vadd.f32 %v1700, 1.0
    %v1717 = vadd.f32 %v1701, 1.0
    %v1718 = vadd.f32 %v1702, 1.0
    %v1719 = vadd.f32 %v1703, 1.0
    %v1720 = vrcp.pop %v1704
    %v1721 = vmul.f32 %v1704, %v1720
    %v1722 = vsub.f32 1.0, %v1721
    %v1723 = vmul.f32 %v1720, %v1722
    %v1724 = vadd.f32 %v1720, %v1723
    %vm1725 = vweird.f32 %v1704
    %vm1726 = vweird.f32 %v1720
    %vm1727 = vmor %vm1725, %vm1726
    %v1728 = vsel %vm1727, %v1720, %v1724
    %v1729 = vand.u32 2147483647, %v1704
    %vm1730 = vcmp.eq.f32.partialorder %v1729, 8.507059e+37
    %v1731 = vand.u32 %v1704, 2147483648
    %v1732 = vor.u32 1.1754944e-38, %v1731
    %v1733 = vsel %vm1730, %v1732, %v1728
    %v1734 = vmul.f32 1.0, %v1733
    %v1735 = vrcp.pop %v1705
    %v1736 = vmul.f32 %v1705, %v1735
    %v1737 = vsub.f32 1.0, %v1736
    %v1738 = vmul.f32 %v1735, %v1737
    %v1739 = vadd.f32 %v1735, %v1738
    %vm1740 = vweird.f32 %v1705
    %vm1741 = vweird.f32 %v1735
    %vm1742 = vmor %vm1740, %vm1741
    %v1743 = vsel %vm1742, %v1735, %v1739
    %v1744 = vand.u32 2147483647, %v1705
    %vm1745 = vcmp.eq.f32.partialorder %v1744, 8.507059e+37
    %v1746 = vand.u32 %v1705, 2147483648
    %v1747 = vor.u32 1.1754944e-38, %v1746
    %v1748 = vsel %vm1745, %v1747, %v1743
    %v1749 = vmul.f32 1.0, %v1748
    %v1750 = vrcp.pop %v1706
    %v1751 = vmul.f32 %v1706, %v1750
    %v1752 = vsub.f32 1.0, %v1751
    %v1753 = vmul.f32 %v1750, %v1752
    %v1754 = vadd.f32 %v1750, %v1753
    %vm1755 = vweird.f32 %v1706
    %vm1756 = vweird.f32 %v1750
    %vm1757 = vmor %vm1755, %vm1756
    %v1758 = vsel %vm1757, %v1750, %v1754
    %v1759 = vand.u32 2147483647, %v1706
    %vm1760 = vcmp.eq.f32.partialorder %v1759, 8.507059e+37
    %v1761 = vand.u32 %v1706, 2147483648
    %v1762 = vor.u32 1.1754944e-38, %v1761
    %v1763 = vsel %vm1760, %v1762, %v1758
    %v1764 = vmul.f32 1.0, %v1763
    %v1765 = vrcp.pop %v1707
    %v1766 = vmul.f32 %v1707, %v1765
    %v1767 = vsub.f32 1.0, %v1766
    %v1768 = vmul.f32 %v1765, %v1767
    %v1769 = vadd.f32 %v1765, %v1768
    %vm1770 = vweird.f32 %v1707
    %vm1771 = vweird.f32 %v1765
    %vm1772 = vmor %vm1770, %vm1771
    %v1773 = vsel %vm1772, %v1765, %v1769
    %v1774 = vand.u32 2147483647, %v1707
    %vm1775 = vcmp.eq.f32.partialorder %v1774, 8.507059e+37
    %v1776 = vand.u32 %v1707, 2147483648
    %v1777 = vor.u32 1.1754944e-38, %v1776
    %v1778 = vsel %vm1775, %v1777, %v1773
    %v1779 = vmul.f32 1.0, %v1778
    %v1780 = vrcp.pop %v1708
    %v1781 = vmul.f32 %v1708, %v1780
    %v1782 = vsub.f32 1.0, %v1781
    %v1783 = vmul.f32 %v1780, %v1782
    %v1784 = vadd.f32 %v1780, %v1783
    %vm1785 = vweird.f32 %v1708
    %vm1786 = vweird.f32 %v1780
    %vm1787 = vmor %vm1785, %vm1786
    %v1788 = vsel %vm1787, %v1780, %v1784
    %v1789 = vand.u32 2147483647, %v1708
    %vm1790 = vcmp.eq.f32.partialorder %v1789, 8.507059e+37
    %v1791 = vand.u32 %v1708, 2147483648
    %v1792 = vor.u32 1.1754944e-38, %v1791
    %v1793 = vsel %vm1790, %v1792, %v1788
    %v1794 = vmul.f32 1.0, %v1793
    %v1795 = vrcp.pop %v1709
    %v1796 = vmul.f32 %v1709, %v1795
    %v1797 = vsub.f32 1.0, %v1796
    %v1798 = vmul.f32 %v1795, %v1797
    %v1799 = vadd.f32 %v1795, %v1798
    %vm1800 = vweird.f32 %v1709
    %vm1801 = vweird.f32 %v1795
    %vm1802 = vmor %vm1800, %vm1801
    %v1803 = vsel %vm1802, %v1795, %v1799
    %v1804 = vand.u32 2147483647, %v1709
    %vm1805 = vcmp.eq.f32.partialorder %v1804, 8.507059e+37
    %v1806 = vand.u32 %v1709, 2147483648
    %v1807 = vor.u32 1.1754944e-38, %v1806
    %v1808 = vsel %vm1805, %v1807, %v1803
    %v1809 = vmul.f32 1.0, %v1808
    %v1810 = vrcp.pop %v1710
    %v1811 = vmul.f32 %v1710, %v1810
    %v1812 = vsub.f32 1.0, %v1811
    %v1813 = vmul.f32 %v1810, %v1812
    %v1814 = vadd.f32 %v1810, %v1813
    %vm1815 = vweird.f32 %v1710
    %vm1816 = vweird.f32 %v1810
    %vm1817 = vmor %vm1815, %vm1816
    %v1818 = vsel %vm1817, %v1810, %v1814
    %v1819 = vand.u32 2147483647, %v1710
    %vm1820 = vcmp.eq.f32.partialorder %v1819, 8.507059e+37
    %v1821 = vand.u32 %v1710, 2147483648
    %v1822 = vor.u32 1.1754944e-38, %v1821
    %v1823 = vsel %vm1820, %v1822, %v1818
    %v1824 = vmul.f32 1.0, %v1823
    %v1825 = vrcp.pop %v1711
    %v1826 = vmul.f32 %v1711, %v1825
    %v1827 = vsub.f32 1.0, %v1826
    %v1828 = vmul.f32 %v1825, %v1827
    %v1829 = vadd.f32 %v1825, %v1828
    %vm1830 = vweird.f32 %v1711
    %vm1831 = vweird.f32 %v1825
    %vm1832 = vmor %vm1830, %vm1831
    %v1833 = vsel %vm1832, %v1825, %v1829
    %v1834 = vand.u32 2147483647, %v1711
    %vm1835 = vcmp.eq.f32.partialorder %v1834, 8.507059e+37
    %v1836 = vand.u32 %v1711, 2147483648
    %v1837 = vor.u32 1.1754944e-38, %v1836
    %v1838 = vsel %vm1835, %v1837, %v1833
    %v1839 = vmul.f32 1.0, %v1838
    %v1840 = vrcp.pop %v1712
    %v1841 = vmul.f32 %v1712, %v1840
    %v1842 = vsub.f32 1.0, %v1841
    %v1843 = vmul.f32 %v1840, %v1842
    %v1844 = vadd.f32 %v1840, %v1843
    %vm1845 = vweird.f32 %v1712
    %vm1846 = vweird.f32 %v1840
    %vm1847 = vmor %vm1845, %vm1846
    %v1848 = vsel %vm1847, %v1840, %v1844
    %v1849 = vand.u32 2147483647, %v1712
    %vm1850 = vcmp.eq.f32.partialorder %v1849, 8.507059e+37
    %v1851 = vand.u32 %v1712, 2147483648
    %v1852 = vor.u32 1.1754944e-38, %v1851
    %v1853 = vsel %vm1850, %v1852, %v1848
    %v1854 = vmul.f32 1.0, %v1853
    %v1855 = vrcp.pop %v1713
    %v1856 = vmul.f32 %v1713, %v1855
    %v1857 = vsub.f32 1.0, %v1856
    %v1858 = vmul.f32 %v1855, %v1857
    %v1859 = vadd.f32 %v1855, %v1858
    %vm1860 = vweird.f32 %v1713
    %vm1861 = vweird.f32 %v1855
    %vm1862 = vmor %vm1860, %vm1861
    %v1863 = vsel %vm1862, %v1855, %v1859
    %v1864 = vand.u32 2147483647, %v1713
    %vm1865 = vcmp.eq.f32.partialorder %v1864, 8.507059e+37
    %v1866 = vand.u32 %v1713, 2147483648
    %v1867 = vor.u32 1.1754944e-38, %v1866
    %v1868 = vsel %vm1865, %v1867, %v1863
    %v1869 = vmul.f32 1.0, %v1868
    %v1870 = vrcp.pop %v1714
    %v1871 = vmul.f32 %v1714, %v1870
    %v1872 = vsub.f32 1.0, %v1871
    %v1873 = vmul.f32 %v1870, %v1872
    %v1874 = vadd.f32 %v1870, %v1873
    %vm1875 = vweird.f32 %v1714
    %vm1876 = vweird.f32 %v1870
    %vm1877 = vmor %vm1875, %vm1876
    %v1878 = vsel %vm1877, %v1870, %v1874
    %v1879 = vand.u32 2147483647, %v1714
    %vm1880 = vcmp.eq.f32.partialorder %v1879, 8.507059e+37
    %v1881 = vand.u32 %v1714, 2147483648
    %v1882 = vor.u32 1.1754944e-38, %v1881
    %v1883 = vsel %vm1880, %v1882, %v1878
    %v1884 = vmul.f32 1.0, %v1883
    %v1885 = vrcp.pop %v1715
    %v1886 = vmul.f32 %v1715, %v1885
    %v1887 = vsub.f32 1.0, %v1886
    %v1888 = vmul.f32 %v1885, %v1887
    %v1889 = vadd.f32 %v1885, %v1888
    %vm1890 = vweird.f32 %v1715
    %vm1891 = vweird.f32 %v1885
    %vm1892 = vmor %vm1890, %vm1891
    %v1893 = vsel %vm1892, %v1885, %v1889
    %v1894 = vand.u32 2147483647, %v1715
    %vm1895 = vcmp.eq.f32.partialorder %v1894, 8.507059e+37
    %v1896 = vand.u32 %v1715, 2147483648
    %v1897 = vor.u32 1.1754944e-38, %v1896
    %v1898 = vsel %vm1895, %v1897, %v1893
    %v1899 = vmul.f32 1.0, %v1898
    %v1900 = vrcp.pop %v1716
    %v1901 = vmul.f32 %v1716, %v1900
    %v1902 = vsub.f32 1.0, %v1901
    %v1903 = vmul.f32 %v1900, %v1902
    %v1904 = vadd.f32 %v1900, %v1903
    %vm1905 = vweird.f32 %v1716
    %vm1906 = vweird.f32 %v1900
    %vm1907 = vmor %vm1905, %vm1906
    %v1908 = vsel %vm1907, %v1900, %v1904
    %v1909 = vand.u32 2147483647, %v1716
    %vm1910 = vcmp.eq.f32.partialorder %v1909, 8.507059e+37
    %v1911 = vand.u32 %v1716, 2147483648
    %v1912 = vor.u32 1.1754944e-38, %v1911
    %v1913 = vsel %vm1910, %v1912, %v1908
    %v1914 = vmul.f32 1.0, %v1913
    %v1915 = vrcp.pop %v1717
    %v1916 = vmul.f32 %v1717, %v1915
    %v1917 = vsub.f32 1.0, %v1916
    %v1918 = vmul.f32 %v1915, %v1917
    %v1919 = vadd.f32 %v1915, %v1918
    %vm1920 = vweird.f32 %v1717
    %vm1921 = vweird.f32 %v1915
    %vm1922 = vmor %vm1920, %vm1921
    %v1923 = vsel %vm1922, %v1915, %v1919
    %v1924 = vand.u32 2147483647, %v1717
    %vm1925 = vcmp.eq.f32.partialorder %v1924, 8.507059e+37
    %v1926 = vand.u32 %v1717, 2147483648
    %v1927 = vor.u32 1.1754944e-38, %v1926
    %v1928 = vsel %vm1925, %v1927, %v1923
    %v1929 = vmul.f32 1.0, %v1928
    %v1930 = vrcp.pop %v1718
    %v1931 = vmul.f32 %v1718, %v1930
    %v1932 = vsub.f32 1.0, %v1931
    %v1933 = vmul.f32 %v1930, %v1932
    %v1934 = vadd.f32 %v1930, %v1933
    %vm1935 = vweird.f32 %v1718
    %vm1936 = vweird.f32 %v1930
    %vm1937 = vmor %vm1935, %vm1936
    %v1938 = vsel %vm1937, %v1930, %v1934
    %v1939 = vand.u32 2147483647, %v1718
    %vm1940 = vcmp.eq.f32.partialorder %v1939, 8.507059e+37
    %v1941 = vand.u32 %v1718, 2147483648
    %v1942 = vor.u32 1.1754944e-38, %v1941
    %v1943 = vsel %vm1940, %v1942, %v1938
    %v1944 = vmul.f32 1.0, %v1943
    %v1945 = vrcp.pop %v1719
    %v1946 = vmul.f32 %v1719, %v1945
    %v1947 = vsub.f32 1.0, %v1946
    %v1948 = vmul.f32 %v1945, %v1947
    %v1949 = vadd.f32 %v1945, %v1948
    %vm1950 = vweird.f32 %v1719
    %vm1951 = vweird.f32 %v1945
    %vm1952 = vmor %vm1950, %vm1951
    %v1953 = vsel %vm1952, %v1945, %v1949
    %v1954 = vand.u32 2147483647, %v1719
    %vm1955 = vcmp.eq.f32.partialorder %v1954, 8.507059e+37
    %v1956 = vand.u32 %v1719, 2147483648
    %v1957 = vor.u32 1.1754944e-38, %v1956
    %v1958 = vsel %vm1955, %v1957, %v1953
    %v1959 = vmul.f32 1.0, %v1958
    %v1960 = vmul.f32 %v1734, 1.0614054
    %v1961 = vmul.f32 %v1749, 1.0614054
    %v1962 = vmul.f32 %v1764, 1.0614054
    %v1963 = vmul.f32 %v1779, 1.0614054
    %v1964 = vmul.f32 %v1794, 1.0614054
    %v1965 = vmul.f32 %v1809, 1.0614054
    %v1966 = vmul.f32 %v1824, 1.0614054
    %v1967 = vmul.f32 %v1839, 1.0614054
    %v1968 = vmul.f32 %v1854, 1.0614054
    %v1969 = vmul.f32 %v1869, 1.0614054
    %v1970 = vmul.f32 %v1884, 1.0614054
    %v1971 = vmul.f32 %v1899, 1.0614054
    %v1972 = vmul.f32 %v1914, 1.0614054
    %v1973 = vmul.f32 %v1929, 1.0614054
    %v1974 = vmul.f32 %v1944, 1.0614054
    %v1975 = vmul.f32 %v1959, 1.0614054
    %v1976 = vadd.f32 %v1960, -1.4531521
    %v1977 = vadd.f32 %v1961, -1.4531521
    %v1978 = vadd.f32 %v1962, -1.4531521
    %v1979 = vadd.f32 %v1963, -1.4531521
    %v1980 = vadd.f32 %v1964, -1.4531521
    %v1981 = vadd.f32 %v1965, -1.4531521
    %v1982 = vadd.f32 %v1966, -1.4531521
    %v1983 = vadd.f32 %v1967, -1.4531521
    %v1984 = vadd.f32 %v1968, -1.4531521
    %v1985 = vadd.f32 %v1969, -1.4531521
    %v1986 = vadd.f32 %v1970, -1.4531521
    %v1987 = vadd.f32 %v1971, -1.4531521
    %v1988 = vadd.f32 %v1972, -1.4531521
    %v1989 = vadd.f32 %v1973, -1.4531521
    %v1990 = vadd.f32 %v1974, -1.4531521
    %v1991 = vadd.f32 %v1975, -1.4531521
    %v1992 = vmul.f32 %v1976, %v1734
    %v1993 = vmul.f32 %v1977, %v1749
    %v1994 = vmul.f32 %v1978, %v1764
    %v1995 = vmul.f32 %v1979, %v1779
    %v1996 = vmul.f32 %v1980, %v1794
    %v1997 = vmul.f32 %v1981, %v1809
    %v1998 = vmul.f32 %v1982, %v1824
    %v1999 = vmul.f32 %v1983, %v1839
    %v2000 = vmul.f32 %v1984, %v1854
    %v2001 = vmul.f32 %v1985, %v1869
    %v2002 = vmul.f32 %v1986, %v1884
    %v2003 = vmul.f32 %v1987, %v1899
    %v2004 = vmul.f32 %v1988, %v1914
    %v2005 = vmul.f32 %v1989, %v1929
    %v2006 = vmul.f32 %v1990, %v1944
    %v2007 = vmul.f32 %v1991, %v1959
    %v2008 = vadd.f32 %v1992, 1.4214138
    %v2009 = vadd.f32 %v1993, 1.4214138
    %v2010 = vadd.f32 %v1994, 1.4214138
    %v2011 = vadd.f32 %v1995, 1.4214138
    %v2012 = vadd.f32 %v1996, 1.4214138
    %v2013 = vadd.f32 %v1997, 1.4214138
    %v2014 = vadd.f32 %v1998, 1.4214138
    %v2015 = vadd.f32 %v1999, 1.4214138
    %v2016 = vadd.f32 %v2000, 1.4214138
    %v2017 = vadd.f32 %v2001, 1.4214138
    %v2018 = vadd.f32 %v2002, 1.4214138
    %v2019 = vadd.f32 %v2003, 1.4214138
    %v2020 = vadd.f32 %v2004, 1.4214138
    %v2021 = vadd.f32 %v2005, 1.4214138
    %v2022 = vadd.f32 %v2006, 1.4214138
    %v2023 = vadd.f32 %v2007, 1.4214138
    %v2024 = vmul.f32 %v2008, %v1734
    %v2025 = vmul.f32 %v2009, %v1749
    %v2026 = vmul.f32 %v2010, %v1764
    %v2027 = vmul.f32 %v2011, %v1779
    %v2028 = vmul.f32 %v2012, %v1794
    %v2029 = vmul.f32 %v2013, %v1809
    %v2030 = vmul.f32 %v2014, %v1824
    %v2031 = vmul.f32 %v2015, %v1839
    %v2032 = vmul.f32 %v2016, %v1854
    %v2033 = vmul.f32 %v2017, %v1869
    %v2034 = vmul.f32 %v2018, %v1884
    %v2035 = vmul.f32 %v2019, %v1899
    %v2036 = vmul.f32 %v2020, %v1914
    %v2037 = vmul.f32 %v2021, %v1929
    %v2038 = vmul.f32 %v2022, %v1944
    %v2039 = vmul.f32 %v2023, %v1959
    %v2040 = vadd.f32 %v2024, -0.28449672
    %v2041 = vadd.f32 %v2025, -0.28449672
    %v2042 = vadd.f32 %v2026, -0.28449672
    %v2043 = vadd.f32 %v2027, -0.28449672
    %v2044 = vadd.f32 %v2028, -0.28449672
    %v2045 = vadd.f32 %v2029, -0.28449672
    %v2046 = vadd.f32 %v2030, -0.28449672
    %v2047 = vadd.f32 %v2031, -0.28449672
    %v2048 = vadd.f32 %v2032, -0.28449672
    %v2049 = vadd.f32 %v2033, -0.28449672
    %v2050 = vadd.f32 %v2034, -0.28449672
    %v2051 = vadd.f32 %v2035, -0.28449672
    %v2052 = vadd.f32 %v2036, -0.28449672
    %v2053 = vadd.f32 %v2037, -0.28449672
    %v2054 = vadd.f32 %v2038, -0.28449672
    %v2055 = vadd.f32 %v2039, -0.28449672
    %v2056 = vmul.f32 %v2040, %v1734
    %v2057 = vmul.f32 %v2041, %v1749
    %v2058 = vmul.f32 %v2042, %v1764
    %v2059 = vmul.f32 %v2043, %v1779
    %v2060 = vmul.f32 %v2044, %v1794
    %v2061 = vmul.f32 %v2045, %v1809
    %v2062 = vmul.f32 %v2046, %v1824
    %v2063 = vmul.f32 %v2047, %v1839
    %v2064 = vmul.f32 %v2048, %v1854
    %v2065 = vmul.f32 %v2049, %v1869
    %v2066 = vmul.f32 %v2050, %v1884
    %v2067 = vmul.f32 %v2051, %v1899
    %v2068 = vmul.f32 %v2052, %v1914
    %v2069 = vmul.f32 %v2053, %v1929
    %v2070 = vmul.f32 %v2054, %v1944
    %v2071 = vmul.f32 %v2055, %v1959
    %v2072 = vadd.f32 %v2056, 0.2548296
    %v2073 = vadd.f32 %v2057, 0.2548296
    %v2074 = vadd.f32 %v2058, 0.2548296
    %v2075 = vadd.f32 %v2059, 0.2548296
    %v2076 = vadd.f32 %v2060, 0.2548296
    %v2077 = vadd.f32 %v2061, 0.2548296
    %v2078 = vadd.f32 %v2062, 0.2548296
    %v2079 = vadd.f32 %v2063, 0.2548296
    %v2080 = vadd.f32 %v2064, 0.2548296
    %v2081 = vadd.f32 %v2065, 0.2548296
    %v2082 = vadd.f32 %v2066, 0.2548296
    %v2083 = vadd.f32 %v2067, 0.2548296
    %v2084 = vadd.f32 %v2068, 0.2548296
    %v2085 = vadd.f32 %v2069, 0.2548296
    %v2086 = vadd.f32 %v2070, 0.2548296
    %v2087 = vadd.f32 %v2071, 0.2548296
    %v2088 = vmul.f32 %v2072, %v1734
    %v2089 = vmul.f32 %v2073, %v1749
    %v2090 = vmul.f32 %v2074, %v1764
    %v2091 = vmul.f32 %v2075, %v1779
    %v2092 = vmul.f32 %v2076, %v1794
    %v2093 = vmul.f32 %v2077, %v1809
    %v2094 = vmul.f32 %v2078, %v1824
    %v2095 = vmul.f32 %v2079, %v1839
    %v2096 = vmul.f32 %v2080, %v1854
    %v2097 = vmul.f32 %v2081, %v1869
    %v2098 = vmul.f32 %v2082, %v1884
    %v2099 = vmul.f32 %v2083, %v1899
    %v2100 = vmul.f32 %v2084, %v1914
    %v2101 = vmul.f32 %v2085, %v1929
    %v2102 = vmul.f32 %v2086, %v1944
    %v2103 = vmul.f32 %v2087, %v1959
    %v2104 = vsub.f32 0.0, %v1672
    %v2105 = vsub.f32 0.0, %v1673
    %v2106 = vsub.f32 0.0, %v1674
    %v2107 = vsub.f32 0.0, %v1675
    %v2108 = vsub.f32 0.0, %v1676
    %v2109 = vsub.f32 0.0, %v1677
    %v2110 = vsub.f32 0.0, %v1678
    %v2111 = vsub.f32 0.0, %v1679
    %v2112 = vsub.f32 0.0, %v1680
    %v2113 = vsub.f32 0.0, %v1681
    %v2114 = vsub.f32 0.0, %v1682
    %v2115 = vsub.f32 0.0, %v1683
    %v2116 = vsub.f32 0.0, %v1684
    %v2117 = vsub.f32 0.0, %v1685
    %v2118 = vsub.f32 0.0, %v1686
    %v2119 = vsub.f32 0.0, %v1687
    %v2120 = vmul.f32 %v2104, %v1672
    %v2121 = vmul.f32 %v2105, %v1673
    %v2122 = vmul.f32 %v2106, %v1674
    %v2123 = vmul.f32 %v2107, %v1675
    %v2124 = vmul.f32 %v2108, %v1676
    %v2125 = vmul.f32 %v2109, %v1677
    %v2126 = vmul.f32 %v2110, %v1678
    %v2127 = vmul.f32 %v2111, %v1679
    %v2128 = vmul.f32 %v2112, %v1680
    %v2129 = vmul.f32 %v2113, %v1681
    %v2130 = vmul.f32 %v2114, %v1682
    %v2131 = vmul.f32 %v2115, %v1683
    %v2132 = vmul.f32 %v2116, %v1684
    %v2133 = vmul.f32 %v2117, %v1685
    %v2134 = vmul.f32 %v2118, %v1686
    %v2135 = vmul.f32 %v2119, %v1687
    %v2136 = vmul.f32 %v2120, 1.442695
    %v2137 = vpow.pop %v2136
    %v2138 = vmul.f32 %v2121, 1.442695
    %v2139 = vpow.pop %v2138
    %v2140 = vmul.f32 %v2122, 1.442695
    %v2141 = vpow.pop %v2140
    %v2142 = vmul.f32 %v2123, 1.442695
    %v2143 = vpow.pop %v2142
    %v2144 = vmul.f32 %v2124, 1.442695
    %v2145 = vpow.pop %v2144
    %v2146 = vmul.f32 %v2125, 1.442695
    %v2147 = vpow.pop %v2146
    %v2148 = vmul.f32 %v2126, 1.442695
    %v2149 = vpow.pop %v2148
    %v2150 = vmul.f32 %v2127, 1.442695
    %v2151 = vpow.pop %v2150
    %v2152 = vmul.f32 %v2128, 1.442695
    %v2153 = vpow.pop %v2152
    %v2154 = vmul.f32 %v2129, 1.442695
    %v2155 = vpow.pop %v2154
    %v2156 = vmul.f32 %v2130, 1.442695
    %v2157 = vpow.pop %v2156
    %v2158 = vmul.f32 %v2131, 1.442695
    %v2159 = vpow.pop %v2158
    %v2160 = vmul.f32 %v2132, 1.442695
    %v2161 = vpow.pop %v2160
    %v2162 = vmul.f32 %v2133, 1.442695
    %v2163 = vpow.pop %v2162
    %v2164 = vmul.f32 %v2134, 1.442695
    %v2165 = vpow.pop %v2164
    %v2166 = vmul.f32 %v2135, 1.442695
    %v2167 = vpow.pop %v2166
    %v2168 = vmul.f32 %v2088, %v2137
    %v2169 = vmul.f32 %v2089, %v2139
    %v2170 = vmul.f32 %v2090, %v2141
    %v2171 = vmul.f32 %v2091, %v2143
    %v2172 = vmul.f32 %v2092, %v2145
    %v2173 = vmul.f32 %v2093, %v2147
    %v2174 = vmul.f32 %v2094, %v2149
    %v2175 = vmul.f32 %v2095, %v2151
    %v2176 = vmul.f32 %v2096, %v2153
    %v2177 = vmul.f32 %v2097, %v2155
    %v2178 = vmul.f32 %v2098, %v2157
    %v2179 = vmul.f32 %v2099, %v2159
    %v2180 = vmul.f32 %v2100, %v2161
    %v2181 = vmul.f32 %v2101, %v2163
    %v2182 = vmul.f32 %v2102, %v2165
    %v2183 = vmul.f32 %v2103, %v2167
    %v2184 = vsub.f32 1.0, %v2168
    %v2185 = vsub.f32 1.0, %v2169
    %v2186 = vsub.f32 1.0, %v2170
    %v2187 = vsub.f32 1.0, %v2171
    %v2188 = vsub.f32 1.0, %v2172
    %v2189 = vsub.f32 1.0, %v2173
    %v2190 = vsub.f32 1.0, %v2174
    %v2191 = vsub.f32 1.0, %v2175
    %v2192 = vsub.f32 1.0, %v2176
    %v2193 = vsub.f32 1.0, %v2177
    %v2194 = vsub.f32 1.0, %v2178
    %v2195 = vsub.f32 1.0, %v2179
    %v2196 = vsub.f32 1.0, %v2180
    %v2197 = vsub.f32 1.0, %v2181
    %v2198 = vsub.f32 1.0, %v2182
    %v2199 = vsub.f32 1.0, %v2183
    %v2200 = vmul.f32 %v1656, %v2184
    %v2201 = vmul.f32 %v1657, %v2185
    %v2202 = vmul.f32 %v1658, %v2186
    %v2203 = vmul.f32 %v1659, %v2187
    %v2204 = vmul.f32 %v1660, %v2188
    %v2205 = vmul.f32 %v1661, %v2189
    %v2206 = vmul.f32 %v1662, %v2190
    %v2207 = vmul.f32 %v1663, %v2191
    %v2208 = vmul.f32 %v1664, %v2192
    %v2209 = vmul.f32 %v1665, %v2193
    %v2210 = vmul.f32 %v1666, %v2194
    %v2211 = vmul.f32 %v1667, %v2195
    %v2212 = vmul.f32 %v1668, %v2196
    %v2213 = vmul.f32 %v1669, %v2197
    %v2214 = vmul.f32 %v1670, %v2198
    %v2215 = vmul.f32 %v1671, %v2199
    %v2216 = vadd.f32 %v2200, 1.0
    %v2217 = vadd.f32 %v2201, 1.0
    %v2218 = vadd.f32 %v2202, 1.0
    %v2219 = vadd.f32 %v2203, 1.0
    %v2220 = vadd.f32 %v2204, 1.0
    %v2221 = vadd.f32 %v2205, 1.0
    %v2222 = vadd.f32 %v2206, 1.0
    %v2223 = vadd.f32 %v2207, 1.0
    %v2224 = vadd.f32 %v2208, 1.0
    %v2225 = vadd.f32 %v2209, 1.0
    %v2226 = vadd.f32 %v2210, 1.0
    %v2227 = vadd.f32 %v2211, 1.0
    %v2228 = vadd.f32 %v2212, 1.0
    %v2229 = vadd.f32 %v2213, 1.0
    %v2230 = vadd.f32 %v2214, 1.0
    %v2231 = vadd.f32 %v2215, 1.0
    %v2232 = vmul.f32 %v1608, %v2216
    %v2233 = vmul.f32 %v1609, %v2217
    %v2234 = vmul.f32 %v1610, %v2218
    %v2235 = vmul.f32 %v1611, %v2219
    %v2236 = vmul.f32 %v1612, %v2220
    %v2237 = vmul.f32 %v1613, %v2221
    %v2238 = vmul.f32 %v1614, %v2222
    %v2239 = vmul.f32 %v1615, %v2223
    %v2240 = vmul.f32 %v1616, %v2224
    %v2241 = vmul.f32 %v1617, %v2225
    %v2242 = vmul.f32 %v1618, %v2226
    %v2243 = vmul.f32 %v1619, %v2227
    %v2244 = vmul.f32 %v1620, %v2228
    %v2245 = vmul.f32 %v1621, %v2229
    %v2246 = vmul.f32 %v1622, %v2230
    %v2247 = vmul.f32 %v1623, %v2231
    %v2248 = vpack.c.bf16 %v2234, %v2232
    %v2249 = vpack.c.bf16 %v2235, %v2233
    %v2250 = vpack.c.bf16 %v2238, %v2236
    %v2251 = vpack.c.bf16 %v2239, %v2237
    %v2252 = vpack.c.bf16 %v2242, %v2240
    %v2253 = vpack.c.bf16 %v2243, %v2241
    %v2254 = vpack.c.bf16 %v2246, %v2244
    %v2255 = vpack.c.bf16 %v2247, %v2245
    %v2256 = vld [vmem:[%s14] sm:$0xf]
    %v2257 = vld [vmem:[%s14 + $0x4] sm:$0xf]
    %v2258 = vld [vmem:[%s14 + $0x8] sm:$0xf]
    %v2259 = vld [vmem:[%s14 + $0xc] sm:$0xf]
    %v2260 = vld [vmem:[%s14 + $0x10] sm:$0xf]
    %v2261 = vld [vmem:[%s14 + $0x14] sm:$0xf]
    %v2262 = vld [vmem:[%s14 + $0x18] sm:$0xf]
    %v2263 = vld [vmem:[%s14 + $0x1c] sm:$0xf]
    %v2264 = vld [vmem:[%s14 + $0x20] sm:$0xf]
    %v2265 = vld [vmem:[%s14 + $0x24] sm:$0xf]
    %v2266 = vld [vmem:[%s14 + $0x28] sm:$0xf]
    %v2267 = vld [vmem:[%s14 + $0x2c] sm:$0xf]
    %v2268 = vld [vmem:[%s14 + $0x30] sm:$0xf]
    %v2269 = vld [vmem:[%s14 + $0x34] sm:$0xf]
    %v2270 = vld [vmem:[%s14 + $0x38] sm:$0xf]
    %v2271 = vld [vmem:[%s14 + $0x3c] sm:$0xf]
    %v2272 = vld [vmem:[%s14 + $0x40] sm:$0xf]
    %v2273 = vld [vmem:[%s14 + $0x44] sm:$0xf]
    %v2274 = vld [vmem:[%s14 + $0x48] sm:$0xf]
    %v2275 = vld [vmem:[%s14 + $0x4c] sm:$0xf]
    %v2276 = vld [vmem:[%s14 + $0x50] sm:$0xf]
    %v2277 = vld [vmem:[%s14 + $0x54] sm:$0xf]
    %v2278 = vld [vmem:[%s14 + $0x58] sm:$0xf]
    %v2279 = vld [vmem:[%s14 + $0x5c] sm:$0xf]
    %v2280 = vld [vmem:[%s15] sm:$0x1]
    %v2282 = vperm.slane %v2280, 0
    %v2308 = vunpack.c.l.b16 %v2256
    %v2309 = vunpack.c.l.b16 %v2257
    %v2310 = vunpack.c.l.b16 %v2258
    %v2311 = vunpack.c.l.b16 %v2259
    %v2312 = vunpack.c.l.b16 %v2260
    %v2313 = vunpack.c.l.b16 %v2261
    %v2314 = vunpack.c.l.b16 %v2262
    %v2315 = vunpack.c.l.b16 %v2263
    %v2316 = vunpack.c.l.b16 %v2264
    %v2317 = vunpack.c.l.b16 %v2265
    %v2318 = vunpack.c.l.b16 %v2266
    %v2319 = vunpack.c.l.b16 %v2267
    %v2320 = vunpack.c.l.b16 %v2268
    %v2321 = vunpack.c.l.b16 %v2269
    %v2322 = vunpack.c.l.b16 %v2270
    %v2323 = vunpack.c.l.b16 %v2271
    %v2324 = vunpack.c.l.b16 %v2272
    %v2325 = vunpack.c.l.b16 %v2273
    %v2326 = vunpack.c.l.b16 %v2274
    %v2327 = vunpack.c.l.b16 %v2275
    %v2328 = vunpack.c.l.b16 %v2276
    %v2329 = vunpack.c.l.b16 %v2277
    %v2330 = vunpack.c.l.b16 %v2278
    %v2331 = vunpack.c.l.b16 %v2279
    %v2332 = vpack.c.b16 %v2309, %v2308
    %v2333 = vpack.c.b16 %v2311, %v2310
    %v2334 = vpack.c.b16 %v2313, %v2312
    %v2335 = vpack.c.b16 %v2315, %v2314
    %v2336 = vpack.c.b16 %v2317, %v2316
    %v2337 = vpack.c.b16 %v2319, %v2318
    %v2338 = vpack.c.b16 %v2321, %v2320
    %v2339 = vpack.c.b16 %v2323, %v2322
    %v2340 = vpack.c.b16 %v2325, %v2324
    %v2341 = vpack.c.b16 %v2327, %v2326
    %v2342 = vpack.c.b16 %v2329, %v2328
    %v2343 = vpack.c.b16 %v2331, %v2330
    %v2357 = vsel %vm483, %v2249, 0
    %v2360 = vsel %vm483, %v2251, 0
    %v2363 = vsel %vm483, %v2253, 0
    %v2366 = vsel %vm483, %v2255, 0
    %2368 = vmatpush.bf16.msra.mxu0 %v2339
    %2369 = vmatpush.bf16.msra.mxu0 %v2338
    %2370 = vmatpush.bf16.msra.mxu0 %v2337
    %2371 = vmatpush.bf16.msra.mxu0 %v2336
    %2372 = vmatpush.bf16.msra.mxu0 %v2335
    %2373 = vmatpush.bf16.msra.mxu0 %v2334
    %2374 = vmatpush.bf16.msra.mxu0 %v2333
    %2375 = vmatpush.bf16.msra.mxu0 %v2332
    %2376 = vmatmul.bf16.gmra.mxu0 %v2248
    %v2377 = vpop.f32.mrf.mxu0
    %v2378 = vadd.f32 %v2282, %v2377
    %v2379 = vpop.f32.mrf.mxu0
    %v2380 = vadd.f32 %v2282, %v2379
    %2381 = vmatmul.bf16.gmra.mxu0 %v2250
    %v2382 = vpop.f32.mrf.mxu0
    %v2383 = vadd.f32 %v2282, %v2382
    %v2384 = vpop.f32.mrf.mxu0
    %v2385 = vadd.f32 %v2282, %v2384
    %2386 = vmatmul.bf16.gmra.mxu0 %v2252
    %v2387 = vpop.f32.mrf.mxu0
    %v2388 = vadd.f32 %v2282, %v2387
    %v2389 = vpop.f32.mrf.mxu0
    %v2390 = vadd.f32 %v2282, %v2389
    %2391 = vmatmul.bf16.gmra.mxu0 %v2254
    %v2392 = vpop.f32.mrf.mxu0
    %v2393 = vadd.f32 %v2282, %v2392
    %v2394 = vpop.f32.mrf.mxu0
    %v2395 = vadd.f32 %v2282, %v2394
    %2396 = vdwg.mxu0
    %2397 = vmatpush.bf16.msra.mxu0 0
    %2398 = vmatpush.bf16.msra.mxu0 0
    %2399 = vmatpush.bf16.msra.mxu0 0
    %2400 = vmatpush.bf16.msra.mxu0 0
    %2401 = vmatpush.bf16.msra.mxu0 %v2343
    %2402 = vmatpush.bf16.msra.mxu0 %v2342
    %2403 = vmatpush.bf16.msra.mxu0 %v2341
    %2404 = vmatpush.bf16.msra.mxu0 %v2340
    %2405 = vmatmul.bf16.gmra.mxu0 %v2357
    %v2406 = vpop.f32.mrf.mxu0
    %v2407 = vadd.f32 %v2378, %v2406
    %v2408 = vpop.f32.mrf.mxu0
    %v2409 = vadd.f32 %v2380, %v2408
    %2410 = vmatmul.bf16.gmra.mxu0 %v2360
    %v2411 = vpop.f32.mrf.mxu0
    %v2412 = vadd.f32 %v2383, %v2411
    %v2413 = vpop.f32.mrf.mxu0
    %v2414 = vadd.f32 %v2385, %v2413
    %2415 = vmatmul.bf16.gmra.mxu0 %v2363
    %v2416 = vpop.f32.mrf.mxu0
    %v2417 = vadd.f32 %v2388, %v2416
    %v2418 = vpop.f32.mrf.mxu0
    %v2419 = vadd.f32 %v2390, %v2418
    %2420 = vmatmul.bf16.gmra.mxu0 %v2366
    %v2421 = vpop.f32.mrf.mxu0
    %v2422 = vadd.f32 %v2393, %v2421
    %v2423 = vpop.f32.mrf.mxu0
    %v2424 = vadd.f32 %v2395, %v2423
    %2425 = vdwg.mxu0
    %v2426 = vadd.f32 %v1284, %v2407
    %v2427 = vadd.f32 %v1285, %v2409
    %v2428 = vadd.f32 %v1286, %v2412
    %v2429 = vadd.f32 %v1287, %v2414
    %v2430 = vadd.f32 %v1288, %v2417
    %v2431 = vadd.f32 %v1289, %v2419
    %v2432 = vadd.f32 %v1290, %v2422
    %v2433 = vadd.f32 %v1291, %v2424
    %2434 = vst.msk [vmem:[%s16] sm:$0xff] %vm75, %v2426
    %2435 = vst.msk [vmem:[%s16 + $0x8] sm:$0xff] %vm75, %v2427
    %2436 = vst.msk [vmem:[%s16 + $0x10] sm:$0xff] %vm75, %v2428
    %2437 = vst.msk [vmem:[%s16 + $0x18] sm:$0xff] %vm75, %v2429
    %2438 = vst.msk [vmem:[%s16 + $0x20] sm:$0xff] %vm75, %v2430
    %2439 = vst.msk [vmem:[%s16 + $0x28] sm:$0xff] %vm75, %v2431
    %2440 = vst.msk [vmem:[%s16 + $0x30] sm:$0xff] %vm75, %v2432
    %2441 = vst.msk [vmem:[%s16 + $0x38] sm:$0xff] %vm75, %v2433
    %v2442 = vld [vmem:[%s2] sm:$0x3]
    %v2444 = vsel %vm483, %v2442, 0
    %v2447 = vsel %vm483, %v1158, 0
    %v2450 = vsel %vm483, %v1159, 0
    %v2453 = vsel %vm483, %v1160, 0
    %v2456 = vsel %vm483, %v1161, 0
    %v2459 = vsel %vm483, %v1162, 0
    %v2462 = vsel %vm483, %v1163, 0
    %v2465 = vsel %vm483, %v1164, 0
    %v2468 = vsel %vm483, %v1165, 0
    %2470 = vmatpush.xpose.msra.mxu0 0.0
    %2471 = vmatpush.xpose.msra.mxu0 0.0
    %2472 = vmatpush.xpose.msra.mxu0 0.0
    %2473 = vmatpush.xpose.msra.mxu0 0.0
    %2474 = vmatpush.xpose.msra.mxu0 0.0
    %2475 = vmatpush.xpose.msra.mxu0 0.0
    %2476 = vmatpush.xpose.msra.mxu0 0.0
    %2477 = vmatpush.xpose.msra.mxu0 0.0
    %2478 = vmatpush.xpose.msra.mxu0 %v2468
    %2479 = vmatpush.xpose.msra.mxu0 %v2465
    %2480 = vmatpush.xpose.msra.mxu0 %v2462
    %2481 = vmatpush.xpose.msra.mxu0 %v2459
    %2482 = vmatpush.xpose.msra.mxu0 %v2456
    %2483 = vmatpush.xpose.msra.mxu0 %v2453
    %2484 = vmatpush.xpose.msra.mxu0 %v2450
    %2485 = vmatpush.xpose.msra.mxu0 %v2447
    %2486 = vmatmul.f32.gmra.mxu0 %v2444
    %v2487 = vpop.f32.mrf.mxu0
    %v2488 = vadd.f32 0.0, %v2487
    %2489 = vdwg.mxu0
    %v2490 = vld [vmem:[%s3] sm:$0xff]
    %v2491 = vld [vmem:[%s3 + $0x8] sm:$0xff]
    %v2492 = vld [vmem:[%s3 + $0x10] sm:$0xff]
    %v2493 = vld [vmem:[%s3 + $0x18] sm:$0xff]
    %v2494 = vld [vmem:[%s3 + $0x20] sm:$0xff]
    %v2495 = vld [vmem:[%s3 + $0x28] sm:$0xff]
    %v2496 = vld [vmem:[%s3 + $0x30] sm:$0xff]
    %v2497 = vld [vmem:[%s3 + $0x38] sm:$0xff]
    %v2499 = vsel %vm483, %v2488, 0
    %2501 = vmatpush.msra.mxu0 0.0
    %2502 = vmatpush.msra.mxu0 0.0
    %2503 = vmatpush.msra.mxu0 0.0
    %2504 = vmatpush.msra.mxu0 0.0
    %2505 = vmatpush.msra.mxu0 0.0
    %2506 = vmatpush.msra.mxu0 0.0
    %2507 = vmatpush.msra.mxu0 0.0
    %2508 = vmatpush.msra.mxu0 0.0
    %2509 = vmatpush.msra.mxu0 %v2497
    %2510 = vmatpush.msra.mxu0 %v2496
    %2511 = vmatpush.msra.mxu0 %v2495
    %2512 = vmatpush.msra.mxu0 %v2494
    %2513 = vmatpush.msra.mxu0 %v2493
    %2514 = vmatpush.msra.mxu0 %v2492
    %2515 = vmatpush.msra.mxu0 %v2491
    %2516 = vmatpush.msra.mxu0 %v2490
    %2517 = vmatmul.f32.gmra.mxu0 %v2499
    %v2518 = vpop.f32.mrf.mxu0
    %v2519 = vadd.f32 0.0, %v2518
    %2520 = vdwg.mxu0
    %v2521 = vmul.f32 %v2519, 0.33333334
    %vm2522 = vcmask 254976
    %2523 = vst.msk [vmem:[#allocation2] sm:$0x3] %vm2522, %v2521
    // Predicated region
    $region66: #{_lambda_.12} parent=1 // pred_check
      _
    $region67: #{_lambda_.12} parent=1 // pred_check_branch
      %2525 = sbr.rel (0) target = $region69
    $region68: #{_lambda_.12} parent=1 // pred_region
      _
    $region69: #{_lambda_.12} parent=1 // pred_fallthru
      _
    // Predicated region
    $region70: #{_lambda_.12} parent=1 // pred_check
      _
    $region71: #{_lambda_.12} parent=1 // pred_check_branch
      %2527 = sbr.rel (0) target = $region73
    $region72: #{_lambda_.12} parent=1 // pred_region
      %2529 = vsyncadd [#allocation3], 0
      %s2531 = sshll.u32 [#allocation2], 4
      %s2532 = int_to_ptr.vmem [resolvable:$true] %s2531
      %s2533 = sshll.u32 %s17, 4
      %s2534 = int_to_ptr.hbm [resolvable:$true] %s2533
      %2536 = dma.vmem_to_hbm [thread:$0]  %s2532, 32, %s2534, [#allocation3]
    $region73: #{_lambda_.12} parent=1 // pred_fallthru
      _
    // Predicated region
    $region74: #{_lambda_.12} parent=1 // pred_check
      _
    $region75: #{_lambda_.12} parent=1 // pred_check_branch
      %2538 = sbr.rel (0) target = $region77
    $region76: #{_lambda_.12} parent=1 // pred_region
      _
    $region77: #{_lambda_.12} parent=1 // pred_fallthru
      _
    // Predicated region
    $region78: #{_lambda_.12} parent=1 // pred_check
      _
    $region79: #{_lambda_.12} parent=1 // pred_check_branch
      %2540 = sbr.rel (0) target = $region81
    $region80: #{_lambda_.12} parent=1 // pred_region
      %2542 = dma.done [#allocation3], 32
    $region81: #{_lambda_.12} parent=1 // pred_fallthru
      _
    %2543 = vsyncpa [#allocation3], 1

</llo_original>
